<compile_context>
chip_gen: v7x
topology: tpu7x:2x2x1
jax: 0.10.0
libtpu: 0.0.40
codegen_flags: <defaults>
</compile_context>

<pallas_src>
import jax
import jax.numpy as jnp
from jax.experimental import pallas as pl
from jax.experimental.pallas import tpu as pltpu

h_D = [2048, 1024, 512]
in_D = 875
out_D = 206
BN_EPS = 1e-5

_LANE = 128
_SUBLANE = 8


def _pad_to(x, axis, mult):
    pad = (-x.shape[axis]) % mult
    if pad == 0:
        return x
    widths = [(0, 0)] * x.ndim
    widths[axis] = (0, pad)
    return jnp.pad(x, widths)


def _full_spec(shape):
    zeros = (0,) * len(shape)
    return pl.BlockSpec(tuple(shape), lambda *_: zeros)


def _fused_mlp_kernel(x_ref,
                      w1_ref, s1_ref, b1_ref,
                      w2_ref, s2_ref, b2_ref,
                      w3_ref, s3_ref, b3_ref,
                      w4_ref, s4_ref, b4_ref,
                      o_ref):
    """Single-launch fused MLP: activation stays resident across all 4 layers."""

    def layer(h, w_ref, s_ref, b_ref, relu):
        # Weight-only int8: dequantize to bf16 for the MXU; the per-output-
        # channel scale is applied to the small (M, N) accumulator (epilogue),
        # not to the big (K, N) weight tile.
        w = w_ref[...].astype(jnp.bfloat16)
        acc = jnp.dot(h, w, preferred_element_type=jnp.float32)
        y = acc * s_ref[...] + b_ref[...]
        if relu:
            y = jnp.maximum(y, 0.0)
        return y

    h = x_ref[...]                                                # (Mp, K0) bf16
    h = layer(h, w1_ref, s1_ref, b1_ref, True).astype(jnp.bfloat16)
    h = layer(h, w2_ref, s2_ref, b2_ref, True).astype(jnp.bfloat16)
    h = layer(h, w3_ref, s3_ref, b3_ref, True).astype(jnp.bfloat16)
    o_ref[...] = layer(h, w4_ref, s4_ref, b4_ref, False).astype(o_ref.dtype)


# ----------------------------- parameters ----------------------------------

def init_linear(key, fan_in, fan_out):
    """Deterministic init mirroring nn.Linear's uniform(-1/sqrt(fan_in), ...)."""
    kw, kb = jax.random.split(key)
    bound = 1.0 / jnp.sqrt(jnp.float32(fan_in))
    w = jax.random.uniform(kw, (fan_in, fan_out), jnp.float32, -bound, bound)
    b = jax.random.uniform(kb, (fan_out,), jnp.float32, -bound, bound)
    return w, b


def init_bn(n):
    """gamma, beta, running_mean, running_var (fresh nn.BatchNorm1d defaults)."""
    return (jnp.ones((n,), jnp.float32), jnp.zeros((n,), jnp.float32),
            jnp.zeros((n,), jnp.float32), jnp.ones((n,), jnp.float32))


def init_params(key):
    dims = [in_D] + h_D + [out_D]
    keys = jax.random.split(key, 4)
    linears = [init_linear(keys[i], dims[i], dims[i + 1]) for i in range(4)]
    bns = [init_bn(h_D[i]) for i in range(3)]
    return linears, bns


def _quantize_per_channel(w):
    """Symmetric per-output-channel int8 quantization of a (K, N) weight."""
    amax = jnp.max(jnp.abs(w), axis=0, keepdims=True)          # (1, N)
    scale = jnp.where(amax > 0, amax / 127.0, 1.0)
    wq = jnp.clip(jnp.round(w / scale), -127, 127).astype(jnp.int8)
    return wq, scale.astype(jnp.float32)


def prepare_params(linears, bns):
    """One-time prep (NOT per forward): fold eval-mode BN per-channel into
    W/b, pad to lane multiples, int8-quantize weights per output channel."""
    prepared = []
    for i, (w, b) in enumerate(linears):
        if i < 3:  # fc1..fc3 are followed by BatchNorm1d (eval mode)
            gamma, beta, mean, var = bns[i]
            bn_scale = gamma / jnp.sqrt(var + BN_EPS)           # per channel
            w = w * bn_scale[None, :]
            b = (b - mean) * bn_scale + beta
        wp = _pad_to(_pad_to(w, 0, _LANE), 1, _LANE)
        wq, scale = _quantize_per_channel(wp)
        bp = _pad_to(b.reshape(1, -1), 1, _LANE).astype(jnp.float32)
        prepared.append((wq, scale, bp))
    return prepared


# ------------------------------ forward -------------------------------------

def net_forward(prepared, x):
    # TODO(synk): training-mode Dropout / batch-statistics BatchNorm are not
    # implemented; this matches the module's inference (eval) semantics.
    M = x.shape[0]
    h = _pad_to(_pad_to(x, 0, _SUBLANE), 1, _LANE).astype(jnp.bfloat16)
    Mp = h.shape[0]
    Np = prepared[-1][0].shape[1]

    operands = [h]
    for wq, s, b in prepared:
        operands.extend((wq, s, b))

    out = pl.pallas_call(
        _fused_mlp_kernel,
        out_shape=jax.ShapeDtypeStruct((Mp, Np), jnp.float32),
        grid=(1,),
        in_specs=[_full_spec(a.shape) for a in operands],
        out_specs=_full_spec((Mp, Np)),
        compiler_params=pltpu.CompilerParams(
            vmem_limit_bytes=32 * 1024 * 1024),
    )(*operands)
    return out[:M, :out_D]


def ref_forward(linears, bns, x):
    """Pure-JAX fp32 reference (eval semantics) for a correctness check."""
    h = x
    for i, (w, b) in enumerate(linears):
        h = h @ w + b
        if i < 3:
            gamma, beta, mean, var = bns[i]
            h = (h - mean) / jnp.sqrt(var + BN_EPS) * gamma + beta
            h = jnp.maximum(h, 0.0)        # dropout is identity in eval mode
    return h


if __name__ == "__main__":
    key = jax.random.PRNGKey(0)
    k_params, k_x = jax.random.split(key)

    linears, bns = init_params(k_params)
    prepared = prepare_params(linears, bns)

    batch = 8
    x = jax.random.normal(k_x, (batch, in_D), jnp.float32)

    fwd = jax.jit(net_forward)
    out = jax.block_until_ready(fwd(prepared, x))

    assert out.shape == (batch, out_D), out.shape
    assert bool(jnp.all(jnp.isfinite(out)))

    # Loose check against the fp32 reference: the only error sources are the
    # int8 weight quantization and bf16 activations (~1e-3 absolute expected).
    ref = ref_forward(linears, bns, x)
    err = float(jnp.max(jnp.abs(out - ref)))
    tol = 1e-2 + 5e-2 * float(jnp.max(jnp.abs(ref)))
    assert err < tol, (err, tol)

    print("KERNEL_OK")
</pallas_src>

<mosaic_0001>
module attributes {stable_mosaic.version = 11 : i64} {
  func.func @_fused_mlp_kernel(%arg0: i32, %arg1: memref<8x896xbf16, #tpu.memory_space<vmem>>, %arg2: memref<896x2048xi8, #tpu.memory_space<vmem>>, %arg3: memref<1x2048xf32, #tpu.memory_space<vmem>>, %arg4: memref<1x2048xf32, #tpu.memory_space<vmem>>, %arg5: memref<2048x1024xi8, #tpu.memory_space<vmem>>, %arg6: memref<1x1024xf32, #tpu.memory_space<vmem>>, %arg7: memref<1x1024xf32, #tpu.memory_space<vmem>>, %arg8: memref<1024x512xi8, #tpu.memory_space<vmem>>, %arg9: memref<1x512xf32, #tpu.memory_space<vmem>>, %arg10: memref<1x512xf32, #tpu.memory_space<vmem>>, %arg11: memref<512x256xi8, #tpu.memory_space<vmem>>, %arg12: memref<1x256xf32, #tpu.memory_space<vmem>>, %arg13: memref<1x256xf32, #tpu.memory_space<vmem>>, %arg14: memref<8x256xf32, #tpu.memory_space<vmem>>) attributes {dimension_semantics = [#tpu.dimension_semantics<arbitrary>], iteration_bounds = array<i64: 1>, scalar_prefetch = 0 : i64, scratch_operands = 0 : i64, tpu.core_type = #tpu.core_type<tc>, window_params = [{pipeline_mode = #tpu.pipeline_mode<synchronous>, transform_indices = @transform_0, window_bounds = array<i64: 8, 896>}, {pipeline_mode = #tpu.pipeline_mode<synchronous>, transform_indices = @transform_1, window_bounds = array<i64: 896, 2048>}, {pipeline_mode = #tpu.pipeline_mode<synchronous>, transform_indices = @transform_2, window_bounds = array<i64: 1, 2048>}, {pipeline_mode = #tpu.pipeline_mode<synchronous>, transform_indices = @transform_3, window_bounds = array<i64: 1, 2048>}, {pipeline_mode = #tpu.pipeline_mode<synchronous>, transform_indices = @transform_4, window_bounds = array<i64: 2048, 1024>}, {pipeline_mode = #tpu.pipeline_mode<synchronous>, transform_indices = @transform_5, window_bounds = array<i64: 1, 1024>}, {pipeline_mode = #tpu.pipeline_mode<synchronous>, transform_indices = @transform_6, window_bounds = array<i64: 1, 1024>}, {pipeline_mode = #tpu.pipeline_mode<synchronous>, transform_indices = @transform_7, window_bounds = array<i64: 1024, 512>}, {pipeline_mode = #tpu.pipeline_mode<synchronous>, transform_indices = @transform_8, window_bounds = array<i64: 1, 512>}, {pipeline_mode = #tpu.pipeline_mode<synchronous>, transform_indices = @transform_9, window_bounds = array<i64: 1, 512>}, {pipeline_mode = #tpu.pipeline_mode<synchronous>, transform_indices = @transform_10, window_bounds = array<i64: 512, 256>}, {pipeline_mode = #tpu.pipeline_mode<synchronous>, transform_indices = @transform_11, window_bounds = array<i64: 1, 256>}, {pipeline_mode = #tpu.pipeline_mode<synchronous>, transform_indices = @transform_12, window_bounds = array<i64: 1, 256>}, {pipeline_mode = #tpu.pipeline_mode<synchronous>, transform_indices = @transform_13, window_bounds = array<i64: 8, 256>}]} {
    %c0 = arith.constant 0 : index
    %c0_0 = arith.constant 0 : index
    %0 = vector.load %arg1[%c0, %c0_0] : memref<8x896xbf16, #tpu.memory_space<vmem>>, vector<8x896xbf16>
    %c0_1 = arith.constant 0 : index
    %c0_2 = arith.constant 0 : index
    %1 = vector.load %arg2[%c0_1, %c0_2] : memref<896x2048xi8, #tpu.memory_space<vmem>>, vector<896x2048xi8>
    %2 = arith.sitofp %1 : vector<896x2048xi8> to vector<896x2048xbf16>
    %cst = arith.constant dense<0.000000e+00> : vector<8x2048xf32>
    %3 = tpu.matmul %0, %2, %cst {dimension_numbers = #tpu.dot_dimension_numbers<[1], [0], [0], [1], [0, 0, 1, 1], [], []>} : vector<8x896xbf16>, vector<896x2048xbf16>, vector<8x2048xf32> -> vector<8x2048xf32>
    %c0_3 = arith.constant 0 : index
    %c0_4 = arith.constant 0 : index
    %4 = vector.load %arg3[%c0_3, %c0_4] : memref<1x2048xf32, #tpu.memory_space<vmem>>, vector<1x2048xf32>
    %5 = vector.broadcast %4 : vector<1x2048xf32> to vector<8x2048xf32>
    %6 = arith.mulf %3, %5 : vector<8x2048xf32>
    %c0_5 = arith.constant 0 : index
    %c0_6 = arith.constant 0 : index
    %7 = vector.load %arg4[%c0_5, %c0_6] : memref<1x2048xf32, #tpu.memory_space<vmem>>, vector<1x2048xf32>
    %8 = vector.broadcast %7 : vector<1x2048xf32> to vector<8x2048xf32>
    %9 = arith.addf %6, %8 : vector<8x2048xf32>
    %cst_7 = arith.constant 0.000000e+00 : f32
    %10 = vector.broadcast %cst_7 : f32 to vector<8x2048xf32>
    %11 = arith.maximumf %9, %10 : vector<8x2048xf32>
    %12 = arith.truncf %11 : vector<8x2048xf32> to vector<8x2048xbf16>
    %c0_8 = arith.constant 0 : index
    %c0_9 = arith.constant 0 : index
    %13 = vector.load %arg5[%c0_8, %c0_9] : memref<2048x1024xi8, #tpu.memory_space<vmem>>, vector<2048x1024xi8>
    %14 = arith.sitofp %13 : vector<2048x1024xi8> to vector<2048x1024xbf16>
    %cst_10 = arith.constant dense<0.000000e+00> : vector<8x1024xf32>
    %15 = tpu.matmul %12, %14, %cst_10 {dimension_numbers = #tpu.dot_dimension_numbers<[1], [0], [0], [1], [0, 0, 1, 1], [], []>} : vector<8x2048xbf16>, vector<2048x1024xbf16>, vector<8x1024xf32> -> vector<8x1024xf32>
    %c0_11 = arith.constant 0 : index
    %c0_12 = arith.constant 0 : index
    %16 = vector.load %arg6[%c0_11, %c0_12] : memref<1x1024xf32, #tpu.memory_space<vmem>>, vector<1x1024xf32>
    %17 = vector.broadcast %16 : vector<1x1024xf32> to vector<8x1024xf32>
    %18 = arith.mulf %15, %17 : vector<8x1024xf32>
    %c0_13 = arith.constant 0 : index
    %c0_14 = arith.constant 0 : index
    %19 = vector.load %arg7[%c0_13, %c0_14] : memref<1x1024xf32, #tpu.memory_space<vmem>>, vector<1x1024xf32>
    %20 = vector.broadcast %19 : vector<1x1024xf32> to vector<8x1024xf32>
    %21 = arith.addf %18, %20 : vector<8x1024xf32>
    %cst_15 = arith.constant 0.000000e+00 : f32
    %22 = vector.broadcast %cst_15 : f32 to vector<8x1024xf32>
    %23 = arith.maximumf %21, %22 : vector<8x1024xf32>
    %24 = arith.truncf %23 : vector<8x1024xf32> to vector<8x1024xbf16>
    %c0_16 = arith.constant 0 : index
    %c0_17 = arith.constant 0 : index
    %25 = vector.load %arg8[%c0_16, %c0_17] : memref<1024x512xi8, #tpu.memory_space<vmem>>, vector<1024x512xi8>
    %26 = arith.sitofp %25 : vector<1024x512xi8> to vector<1024x512xbf16>
    %cst_18 = arith.constant dense<0.000000e+00> : vector<8x512xf32>
    %27 = tpu.matmul %24, %26, %cst_18 {dimension_numbers = #tpu.dot_dimension_numbers<[1], [0], [0], [1], [0, 0, 1, 1], [], []>} : vector<8x1024xbf16>, vector<1024x512xbf16>, vector<8x512xf32> -> vector<8x512xf32>
    %c0_19 = arith.constant 0 : index
    %c0_20 = arith.constant 0 : index
    %28 = vector.load %arg9[%c0_19, %c0_20] : memref<1x512xf32, #tpu.memory_space<vmem>>, vector<1x512xf32>
    %29 = vector.broadcast %28 : vector<1x512xf32> to vector<8x512xf32>
    %30 = arith.mulf %27, %29 : vector<8x512xf32>
    %c0_21 = arith.constant 0 : index
    %c0_22 = arith.constant 0 : index
    %31 = vector.load %arg10[%c0_21, %c0_22] : memref<1x512xf32, #tpu.memory_space<vmem>>, vector<1x512xf32>
    %32 = vector.broadcast %31 : vector<1x512xf32> to vector<8x512xf32>
    %33 = arith.addf %30, %32 : vector<8x512xf32>
    %cst_23 = arith.constant 0.000000e+00 : f32
    %34 = vector.broadcast %cst_23 : f32 to vector<8x512xf32>
    %35 = arith.maximumf %33, %34 : vector<8x512xf32>
    %36 = arith.truncf %35 : vector<8x512xf32> to vector<8x512xbf16>
    %c0_24 = arith.constant 0 : index
    %c0_25 = arith.constant 0 : index
    %37 = vector.load %arg11[%c0_24, %c0_25] : memref<512x256xi8, #tpu.memory_space<vmem>>, vector<512x256xi8>
    %38 = arith.sitofp %37 : vector<512x256xi8> to vector<512x256xbf16>
    %cst_26 = arith.constant dense<0.000000e+00> : vector<8x256xf32>
    %39 = tpu.matmul %36, %38, %cst_26 {dimension_numbers = #tpu.dot_dimension_numbers<[1], [0], [0], [1], [0, 0, 1, 1], [], []>} : vector<8x512xbf16>, vector<512x256xbf16>, vector<8x256xf32> -> vector<8x256xf32>
    %c0_27 = arith.constant 0 : index
    %c0_28 = arith.constant 0 : index
    %40 = vector.load %arg12[%c0_27, %c0_28] : memref<1x256xf32, #tpu.memory_space<vmem>>, vector<1x256xf32>
    %41 = vector.broadcast %40 : vector<1x256xf32> to vector<8x256xf32>
    %42 = arith.mulf %39, %41 : vector<8x256xf32>
    %c0_29 = arith.constant 0 : index
    %c0_30 = arith.constant 0 : index
    %43 = vector.load %arg13[%c0_29, %c0_30] : memref<1x256xf32, #tpu.memory_space<vmem>>, vector<1x256xf32>
    %44 = vector.broadcast %43 : vector<1x256xf32> to vector<8x256xf32>
    %45 = arith.addf %42, %44 : vector<8x256xf32>
    %c0_31 = arith.constant 0 : index
    %c0_32 = arith.constant 0 : index
    %46 = vector.load %arg14[%c0_31, %c0_32] : memref<8x256xf32, #tpu.memory_space<vmem>>, vector<8x256xf32>
    tpu.vector_store %arg14[%c0_31, %c0_32], %45 {strides = array<i32>} : memref<8x256xf32, #tpu.memory_space<vmem>>, vector<8x256xf32>,
    return
  }
  func.func @transform_0(%arg0: i32) -> (i32, i32) {
    %c0_i32 = arith.constant 0 : i32
    %c0_i32_0 = arith.constant 0 : i32
    %c0_i32_1 = arith.constant 0 : i32
    return %c0_i32, %c0_i32_0 : i32, i32
  }
  func.func @transform_1(%arg0: i32) -> (i32, i32) {
    %c0_i32 = arith.constant 0 : i32
    %c0_i32_0 = arith.constant 0 : i32
    %c0_i32_1 = arith.constant 0 : i32
    return %c0_i32, %c0_i32_0 : i32, i32
  }
  func.func @transform_2(%arg0: i32) -> (i32, i32) {
    %c0_i32 = arith.constant 0 : i32
    %c0_i32_0 = arith.constant 0 : i32
    %c0_i32_1 = arith.constant 0 : i32
    return %c0_i32, %c0_i32_0 : i32, i32
  }
  func.func @transform_3(%arg0: i32) -> (i32, i32) {
    %c0_i32 = arith.constant 0 : i32
    %c0_i32_0 = arith.constant 0 : i32
    %c0_i32_1 = arith.constant 0 : i32
    return %c0_i32, %c0_i32_0 : i32, i32
  }
  func.func @transform_4(%arg0: i32) -> (i32, i32) {
    %c0_i32 = arith.constant 0 : i32
    %c0_i32_0 = arith.constant 0 : i32
    %c0_i32_1 = arith.constant 0 : i32
    return %c0_i32, %c0_i32_0 : i32, i32
  }
  func.func @transform_5(%arg0: i32) -> (i32, i32) {
    %c0_i32 = arith.constant 0 : i32
    %c0_i32_0 = arith.constant 0 : i32
    %c0_i32_1 = arith.constant 0 : i32
    return %c0_i32, %c0_i32_0 : i32, i32
  }
  func.func @transform_6(%arg0: i32) -> (i32, i32) {
    %c0_i32 = arith.constant 0 : i32
    %c0_i32_0 = arith.constant 0 : i32
    %c0_i32_1 = arith.constant 0 : i32
    return %c0_i32, %c0_i32_0 : i32, i32
  }
  func.func @transform_7(%arg0: i32) -> (i32, i32) {
    %c0_i32 = arith.constant 0 : i32
    %c0_i32_0 = arith.constant 0 : i32
    %c0_i32_1 = arith.constant 0 : i32
    return %c0_i32, %c0_i32_0 : i32, i32
  }
  func.func @transform_8(%arg0: i32) -> (i32, i32) {
    %c0_i32 = arith.constant 0 : i32
    %c0_i32_0 = arith.constant 0 : i32
    %c0_i32_1 = arith.constant 0 : i32
    return %c0_i32, %c0_i32_0 : i32, i32
  }
  func.func @transform_9(%arg0: i32) -> (i32, i32) {
    %c0_i32 = arith.constant 0 : i32
    %c0_i32_0 = arith.constant 0 : i32
    %c0_i32_1 = arith.constant 0 : i32
    return %c0_i32, %c0_i32_0 : i32, i32
  }
  func.func @transform_10(%arg0: i32) -> (i32, i32) {
    %c0_i32 = arith.constant 0 : i32
    %c0_i32_0 = arith.constant 0 : i32
    %c0_i32_1 = arith.constant 0 : i32
    return %c0_i32, %c0_i32_0 : i32, i32
  }
  func.func @transform_11(%arg0: i32) -> (i32, i32) {
    %c0_i32 = arith.constant 0 : i32
    %c0_i32_0 = arith.constant 0 : i32
    %c0_i32_1 = arith.constant 0 : i32
    return %c0_i32, %c0_i32_0 : i32, i32
  }
  func.func @transform_12(%arg0: i32) -> (i32, i32) {
    %c0_i32 = arith.constant 0 : i32
    %c0_i32_0 = arith.constant 0 : i32
    %c0_i32_1 = arith.constant 0 : i32
    return %c0_i32, %c0_i32_0 : i32, i32
  }
  func.func @transform_13(%arg0: i32) -> (i32, i32) {
    %c0_i32 = arith.constant 0 : i32
    %c0_i32_0 = arith.constant 0 : i32
    %c0_i32_1 = arith.constant 0 : i32
    return %c0_i32, %c0_i32_0 : i32, i32
  }
}

</mosaic_0001>

<llo_original>
// kernel: net_forward.1
$region0: #{net_forward.1}
  #allocation0 [shape = 'u32[]', space=smem, size = 0x4, offset = 0x4, fixed_abs, tag = 'smem constant byte address 0x4 - core index']
  #allocation1 [shape = 'u32[144,128]{1,0:T(1,128)}', space=vmem, size = 0x12000, scoped, tag = 'internal scratch']
  %s0 = inlined_call_operand.vmem [shape: bf16[8,896], index: 0, kind: input, shape index: {}]
  %s1 = inlined_call_operand.hbm [shape: s8[896,2048], index: 1, kind: input, shape index: {}]
  %s2 = inlined_call_operand.hbm [shape: f32[1,2048], index: 2, kind: input, shape index: {}]
  %s3 = inlined_call_operand.hbm [shape: f32[1,2048], index: 3, kind: input, shape index: {}]
  %s4 = inlined_call_operand.hbm [shape: s8[2048,1024], index: 4, kind: input, shape index: {}]
  %s5 = inlined_call_operand.hbm [shape: f32[1,1024], index: 5, kind: input, shape index: {}]
  %s6 = inlined_call_operand.hbm [shape: f32[1,1024], index: 6, kind: input, shape index: {}]
  %s7 = inlined_call_operand.hbm [shape: s8[1024,512], index: 7, kind: input, shape index: {}]
  %s8 = inlined_call_operand.hbm [shape: f32[1,512], index: 8, kind: input, shape index: {}]
  %s9 = inlined_call_operand.hbm [shape: f32[1,512], index: 9, kind: input, shape index: {}]
  %s10 = inlined_call_operand.hbm [shape: s8[512,256], index: 10, kind: input, shape index: {}]
  %s11 = inlined_call_operand.hbm [shape: f32[1,256], index: 11, kind: input, shape index: {}]
  %s12 = inlined_call_operand.hbm [shape: f32[1,256], index: 12, kind: input, shape index: {}]
  %s13 = inlined_call_operand.hbm [shape: f32[8,256], index: 13, kind: output, shape index: {}]
  %s14 = sld [smem:[#allocation0]]
  $region110: #{net_forward.1} parent=0
    _
  %s16 = ssub.s32 1, %s14
  %s17 = scalar_select 0, %s16, %s14
  $region1: #{net_forward.1} parent=0
    #allocation2 [shape = 'u8[1835008]{0}', space=vmem, size = 0x1c0000, scoped, tag = 'input window, operand 1, single buffered']
    #allocation3 [shape = 's32[1]{0}', space=sflag, size = 0x4, scoped, tag = 'scoped memory for net_forward.1']
    #allocation4 [shape = 's32[1]{0}', space=sflag, size = 0x4, scoped, tag = 'scoped memory for net_forward.1']
    #allocation5 [shape = 'u8[8192]{0}', space=vmem, size = 0x2000, scoped, tag = 'input window, operand 2, single buffered']
    #allocation6 [shape = 's32[1]{0}', space=sflag, size = 0x4, scoped, tag = 'scoped memory for net_forward.1']
    #allocation7 [shape = 'u8[8192]{0}', space=vmem, size = 0x2000, scoped, tag = 'input window, operand 3, single buffered']
    #allocation8 [shape = 'u8[2097152]{0}', space=vmem, size = 0x200000, scoped, tag = 'input window, operand 4, single buffered']
    #allocation9 [shape = 's32[1]{0}', space=sflag, size = 0x4, scoped, tag = 'scoped memory for net_forward.1']
    #allocation10 [shape = 'u8[4096]{0}', space=vmem, size = 0x1000, scoped, tag = 'input window, operand 5, single buffered']
    #allocation11 [shape = 'u8[4096]{0}', space=vmem, size = 0x1000, scoped, tag = 'input window, operand 6, single buffered']
    #allocation12 [shape = 's32[1]{0}', space=sflag, size = 0x4, scoped, tag = 'scoped memory for net_forward.1']
    #allocation13 [shape = 'u8[524288]{0}', space=vmem, size = 0x80000, scoped, tag = 'input window, operand 7, single buffered']
    #allocation14 [shape = 'u8[2048]{0}', space=vmem, size = 0x800, scoped, tag = 'input window, operand 8, single buffered']
    #allocation15 [shape = 's32[1]{0}', space=sflag, size = 0x4, scoped, tag = 'scoped memory for net_forward.1']
    #allocation16 [shape = 'u8[2048]{0}', space=vmem, size = 0x800, scoped, tag = 'input window, operand 9, single buffered']
    #allocation17 [shape = 'u8[131072]{0}', space=vmem, size = 0x20000, scoped, tag = 'input window, operand 10, single buffered']
    #allocation18 [shape = 's32[1]{0}', space=sflag, size = 0x4, scoped, tag = 'scoped memory for net_forward.1']
    #allocation19 [shape = 'u8[1024]{0}', space=vmem, size = 0x400, scoped, tag = 'input window, operand 11, single buffered']
    #allocation20 [shape = 'u8[1024]{0}', space=vmem, size = 0x400, scoped, tag = 'input window, operand 12, single buffered']
    #allocation21 [shape = 's32[1]{0}', space=sflag, size = 0x4, scoped, tag = 'scoped memory for net_forward.1']
    #allocation22 [shape = 'u8[8192]{0}', space=vmem, size = 0x2000, scoped, tag = 'output window, operand 0, single buffered']
    %18 = vsyncpa [#allocation3], 0
    %19 = vsyncpa [#allocation6], 0
    %20 = vsyncpa [#allocation9], 0
    %21 = vsyncpa [#allocation12], 0
    %22 = vsyncpa [#allocation15], 0
    %23 = vsyncpa [#allocation18], 0
    %24 = vsyncpa [#allocation21], 0
    %25 = vsyncpa [#allocation4], 0
    // Predicated region
    $region2: #{net_forward.1} parent=1 // pred_check
      _
    $region3: #{net_forward.1} parent=1 // pred_check_branch
      %27 = sbr.rel (0) target = $region5
    $region4: #{net_forward.1} parent=1 // pred_region
      _
    $region5: #{net_forward.1} parent=1 // pred_fallthru
      _
    // Predicated region
    $region6: #{net_forward.1} parent=1 // pred_check
      _
    $region7: #{net_forward.1} parent=1 // pred_check_branch
      %29 = sbr.rel (0) target = $region9
    $region8: #{net_forward.1} parent=1 // pred_region
      %s31 = ssub.s32 57344, 57344
      %32 = vsyncadd [#allocation3], %s31
      %s33 = sshll.u32 [#allocation2], 4
      %s34 = int_to_ptr.vmem [resolvable:$true] %s33
      %39 = dma.hbm_to_vmem [thread:$0]  %s1, 57344, %s34, [#allocation3], 2048, 2048, 128
    $region9: #{net_forward.1} parent=1 // pred_fallthru
      _
    // Predicated region
    $region10: #{net_forward.1} parent=1 // pred_check
      _
    $region11: #{net_forward.1} parent=1 // pred_check_branch
      %41 = sbr.rel (0) target = $region13
    $region12: #{net_forward.1} parent=1 // pred_region
      %s43 = ssub.s32 256, 256
      %44 = vsyncadd [#allocation6], %s43
      %s46 = sshll.u32 [#allocation5], 4
      %s47 = int_to_ptr.vmem [resolvable:$true] %s46
      %49 = dma.hbm_to_vmem [thread:$0]  %s2, 256, %s47, [#allocation6]
    $region13: #{net_forward.1} parent=1 // pred_fallthru
      _
    // Predicated region
    $region14: #{net_forward.1} parent=1 // pred_check
      _
    $region15: #{net_forward.1} parent=1 // pred_check_branch
      %51 = sbr.rel (0) target = $region17
    $region16: #{net_forward.1} parent=1 // pred_region
      %s53 = ssub.s32 256, 256
      %54 = vsyncadd [#allocation6], %s53
      %s56 = sshll.u32 [#allocation7], 4
      %s57 = int_to_ptr.vmem [resolvable:$true] %s56
      %59 = dma.hbm_to_vmem [thread:$0]  %s3, 256, %s57, [#allocation6]
    $region17: #{net_forward.1} parent=1 // pred_fallthru
      _
    // Predicated region
    $region18: #{net_forward.1} parent=1 // pred_check
      _
    $region19: #{net_forward.1} parent=1 // pred_check_branch
      %61 = sbr.rel (0) target = $region21
    $region20: #{net_forward.1} parent=1 // pred_region
      %s63 = ssub.s32 65536, 65536
      %64 = vsyncadd [#allocation9], %s63
      %s65 = sshll.u32 [#allocation8], 4
      %s66 = int_to_ptr.vmem [resolvable:$true] %s65
      %71 = dma.hbm_to_vmem [thread:$0]  %s4, 65536, %s66, [#allocation9], 1024, 1024, 64
    $region21: #{net_forward.1} parent=1 // pred_fallthru
      _
    // Predicated region
    $region22: #{net_forward.1} parent=1 // pred_check
      _
    $region23: #{net_forward.1} parent=1 // pred_check_branch
      %73 = sbr.rel (0) target = $region25
    $region24: #{net_forward.1} parent=1 // pred_region
      %s75 = ssub.s32 128, 128
      %76 = vsyncadd [#allocation9], %s75
      %s78 = sshll.u32 [#allocation10], 4
      %s79 = int_to_ptr.vmem [resolvable:$true] %s78
      %81 = dma.hbm_to_vmem [thread:$0]  %s5, 128, %s79, [#allocation9]
    $region25: #{net_forward.1} parent=1 // pred_fallthru
      _
    // Predicated region
    $region26: #{net_forward.1} parent=1 // pred_check
      _
    $region27: #{net_forward.1} parent=1 // pred_check_branch
      %83 = sbr.rel (0) target = $region29
    $region28: #{net_forward.1} parent=1 // pred_region
      %s85 = ssub.s32 128, 128
      %86 = vsyncadd [#allocation12], %s85
      %s88 = sshll.u32 [#allocation11], 4
      %s89 = int_to_ptr.vmem [resolvable:$true] %s88
      %91 = dma.hbm_to_vmem [thread:$0]  %s6, 128, %s89, [#allocation12]
    $region29: #{net_forward.1} parent=1 // pred_fallthru
      _
    // Predicated region
    $region30: #{net_forward.1} parent=1 // pred_check
      _
    $region31: #{net_forward.1} parent=1 // pred_check_branch
      %93 = sbr.rel (0) target = $region33
    $region32: #{net_forward.1} parent=1 // pred_region
      %s95 = ssub.s32 16384, 16384
      %96 = vsyncadd [#allocation12], %s95
      %s97 = sshll.u32 [#allocation13], 4
      %s98 = int_to_ptr.vmem [resolvable:$true] %s97
      %103 = dma.hbm_to_vmem [thread:$0]  %s7, 16384, %s98, [#allocation12], 512, 512, 32
    $region33: #{net_forward.1} parent=1 // pred_fallthru
      _
    // Predicated region
    $region34: #{net_forward.1} parent=1 // pred_check
      _
    $region35: #{net_forward.1} parent=1 // pred_check_branch
      %105 = sbr.rel (0) target = $region37
    $region36: #{net_forward.1} parent=1 // pred_region
      %s107 = ssub.s32 64, 64
      %108 = vsyncadd [#allocation15], %s107
      %s110 = sshll.u32 [#allocation14], 4
      %s111 = int_to_ptr.vmem [resolvable:$true] %s110
      %113 = dma.hbm_to_vmem [thread:$0]  %s8, 64, %s111, [#allocation15]
    $region37: #{net_forward.1} parent=1 // pred_fallthru
      _
    // Predicated region
    $region38: #{net_forward.1} parent=1 // pred_check
      _
    $region39: #{net_forward.1} parent=1 // pred_check_branch
      %115 = sbr.rel (0) target = $region41
    $region40: #{net_forward.1} parent=1 // pred_region
      %s117 = ssub.s32 64, 64
      %118 = vsyncadd [#allocation15], %s117
      %s120 = sshll.u32 [#allocation16], 4
      %s121 = int_to_ptr.vmem [resolvable:$true] %s120
      %123 = dma.hbm_to_vmem [thread:$0]  %s9, 64, %s121, [#allocation15]
    $region41: #{net_forward.1} parent=1 // pred_fallthru
      _
    // Predicated region
    $region42: #{net_forward.1} parent=1 // pred_check
      _
    $region43: #{net_forward.1} parent=1 // pred_check_branch
      %125 = sbr.rel (0) target = $region45
    $region44: #{net_forward.1} parent=1 // pred_region
      %s127 = ssub.s32 4096, 4096
      %128 = vsyncadd [#allocation18], %s127
      %s129 = sshll.u32 [#allocation17], 4
      %s130 = int_to_ptr.vmem [resolvable:$true] %s129
      %135 = dma.hbm_to_vmem [thread:$0]  %s10, 4096, %s130, [#allocation18], 256, 256, 16
    $region45: #{net_forward.1} parent=1 // pred_fallthru
      _
    // Predicated region
    $region46: #{net_forward.1} parent=1 // pred_check
      _
    $region47: #{net_forward.1} parent=1 // pred_check_branch
      %137 = sbr.rel (0) target = $region49
    $region48: #{net_forward.1} parent=1 // pred_region
      %s139 = ssub.s32 32, 32
      %140 = vsyncadd [#allocation18], %s139
      %s142 = sshll.u32 [#allocation19], 4
      %s143 = int_to_ptr.vmem [resolvable:$true] %s142
      %145 = dma.hbm_to_vmem [thread:$0]  %s11, 32, %s143, [#allocation18]
    $region49: #{net_forward.1} parent=1 // pred_fallthru
      _
    // Predicated region
    $region50: #{net_forward.1} parent=1 // pred_check
      _
    $region51: #{net_forward.1} parent=1 // pred_check_branch
      %147 = sbr.rel (0) target = $region53
    $region52: #{net_forward.1} parent=1 // pred_region
      %s149 = ssub.s32 32, 32
      %150 = vsyncadd [#allocation21], %s149
      %s152 = sshll.u32 [#allocation20], 4
      %s153 = int_to_ptr.vmem [resolvable:$true] %s152
      %155 = dma.hbm_to_vmem [thread:$0]  %s12, 32, %s153, [#allocation21]
    $region53: #{net_forward.1} parent=1 // pred_fallthru
      _
    // Predicated region
    $region54: #{net_forward.1} parent=1 // pred_check
      _
    $region55: #{net_forward.1} parent=1 // pred_check_branch
      %157 = sbr.rel (0) target = $region57
    $region56: #{net_forward.1} parent=1 // pred_region
      %158 = dma.done [#allocation3], 57344
    $region57: #{net_forward.1} parent=1 // pred_fallthru
      _
    // Predicated region
    $region58: #{net_forward.1} parent=1 // pred_check
      _
    $region59: #{net_forward.1} parent=1 // pred_check_branch
      %160 = sbr.rel (0) target = $region61
    $region60: #{net_forward.1} parent=1 // pred_region
      %161 = dma.done [#allocation6], 256
    $region61: #{net_forward.1} parent=1 // pred_fallthru
      _
    // Predicated region
    $region62: #{net_forward.1} parent=1 // pred_check
      _
    $region63: #{net_forward.1} parent=1 // pred_check_branch
      %163 = sbr.rel (0) target = $region65
    $region64: #{net_forward.1} parent=1 // pred_region
      %164 = dma.done [#allocation6], 256
    $region65: #{net_forward.1} parent=1 // pred_fallthru
      _
    // Predicated region
    $region66: #{net_forward.1} parent=1 // pred_check
      _
    $region67: #{net_forward.1} parent=1 // pred_check_branch
      %166 = sbr.rel (0) target = $region69
    $region68: #{net_forward.1} parent=1 // pred_region
      %167 = dma.done [#allocation9], 65536
    $region69: #{net_forward.1} parent=1 // pred_fallthru
      _
    // Predicated region
    $region70: #{net_forward.1} parent=1 // pred_check
      _
    $region71: #{net_forward.1} parent=1 // pred_check_branch
      %169 = sbr.rel (0) target = $region73
    $region72: #{net_forward.1} parent=1 // pred_region
      %170 = dma.done [#allocation9], 128
    $region73: #{net_forward.1} parent=1 // pred_fallthru
      _
    // Predicated region
    $region74: #{net_forward.1} parent=1 // pred_check
      _
    $region75: #{net_forward.1} parent=1 // pred_check_branch
      %172 = sbr.rel (0) target = $region77
    $region76: #{net_forward.1} parent=1 // pred_region
      %173 = dma.done [#allocation12], 128
    $region77: #{net_forward.1} parent=1 // pred_fallthru
      _
    // Predicated region
    $region78: #{net_forward.1} parent=1 // pred_check
      _
    $region79: #{net_forward.1} parent=1 // pred_check_branch
      %175 = sbr.rel (0) target = $region81
    $region80: #{net_forward.1} parent=1 // pred_region
      %176 = dma.done [#allocation12], 16384
    $region81: #{net_forward.1} parent=1 // pred_fallthru
      _
    // Predicated region
    $region82: #{net_forward.1} parent=1 // pred_check
      _
    $region83: #{net_forward.1} parent=1 // pred_check_branch
      %178 = sbr.rel (0) target = $region85
    $region84: #{net_forward.1} parent=1 // pred_region
      %179 = dma.done [#allocation15], 64
    $region85: #{net_forward.1} parent=1 // pred_fallthru
      _
    // Predicated region
    $region86: #{net_forward.1} parent=1 // pred_check
      _
    $region87: #{net_forward.1} parent=1 // pred_check_branch
      %181 = sbr.rel (0) target = $region89
    $region88: #{net_forward.1} parent=1 // pred_region
      %182 = dma.done [#allocation15], 64
    $region89: #{net_forward.1} parent=1 // pred_fallthru
      _
    // Predicated region
    $region90: #{net_forward.1} parent=1 // pred_check
      _
    $region91: #{net_forward.1} parent=1 // pred_check_branch
      %184 = sbr.rel (0) target = $region93
    $region92: #{net_forward.1} parent=1 // pred_region
      %185 = dma.done [#allocation18], 4096
    $region93: #{net_forward.1} parent=1 // pred_fallthru
      _
    // Predicated region
    $region94: #{net_forward.1} parent=1 // pred_check
      _
    $region95: #{net_forward.1} parent=1 // pred_check_branch
      %187 = sbr.rel (0) target = $region97
    $region96: #{net_forward.1} parent=1 // pred_region
      %188 = dma.done [#allocation18], 32
    $region97: #{net_forward.1} parent=1 // pred_fallthru
      _
    // Predicated region
    $region98: #{net_forward.1} parent=1 // pred_check
      _
    $region99: #{net_forward.1} parent=1 // pred_check_branch
      %190 = sbr.rel (0) target = $region101
    $region100: #{net_forward.1} parent=1 // pred_region
      %191 = dma.done [#allocation21], 32
    $region101: #{net_forward.1} parent=1 // pred_fallthru
      _
    %v193 = vld [vmem:[%s0] sm:$0xff]
    %v194 = vld [vmem:[%s0 + $0x8] sm:$0xff]
    %v195 = vld [vmem:[%s0 + $0x10] sm:$0xff]
    %v196 = vld [vmem:[%s0 + $0x18] sm:$0xf]
    %v197 = vld [vmem:[#allocation2] sm:$0xff]
    %v198 = vld [vmem:[#allocation2 + $0x8] sm:$0xff]
    %v199 = vld [vmem:[#allocation2 + $0x10] sm:$0xff]
    %v200 = vld [vmem:[#allocation2 + $0x18] sm:$0xff]
    %v201 = vld [vmem:[#allocation2 + $0x20] sm:$0xff]
    %v202 = vld [vmem:[#allocation2 + $0x28] sm:$0xff]
    %v203 = vld [vmem:[#allocation2 + $0x30] sm:$0xff]
    %v204 = vld [vmem:[#allocation2 + $0x38] sm:$0xff]
    %v205 = vld [vmem:[#allocation2 + $0x40] sm:$0xff]
    %v206 = vld [vmem:[#allocation2 + $0x48] sm:$0xff]
    %v207 = vld [vmem:[#allocation2 + $0x50] sm:$0xff]
    %v208 = vld [vmem:[#allocation2 + $0x58] sm:$0xff]
    %v209 = vld [vmem:[#allocation2 + $0x60] sm:$0xff]
    %v210 = vld [vmem:[#allocation2 + $0x68] sm:$0xff]
    %v211 = vld [vmem:[#allocation2 + $0x70] sm:$0xff]
    %v212 = vld [vmem:[#allocation2 + $0x78] sm:$0xff]
    %v213 = vld [vmem:[#allocation2 + $0x80] sm:$0xff]
    %v214 = vld [vmem:[#allocation2 + $0x88] sm:$0xff]
    %v215 = vld [vmem:[#allocation2 + $0x90] sm:$0xff]
    %v216 = vld [vmem:[#allocation2 + $0x98] sm:$0xff]
    %v217 = vld [vmem:[#allocation2 + $0xa0] sm:$0xff]
    %v218 = vld [vmem:[#allocation2 + $0xa8] sm:$0xff]
    %v219 = vld [vmem:[#allocation2 + $0xb0] sm:$0xff]
    %v220 = vld [vmem:[#allocation2 + $0xb8] sm:$0xff]
    %v221 = vld [vmem:[#allocation2 + $0xc0] sm:$0xff]
    %v222 = vld [vmem:[#allocation2 + $0xc8] sm:$0xff]
    %v223 = vld [vmem:[#allocation2 + $0xd0] sm:$0xff]
    %v224 = vld [vmem:[#allocation2 + $0xd8] sm:$0xff]
    %v225 = vld [vmem:[#allocation2 + $0xe0] sm:$0xff]
    %v226 = vld [vmem:[#allocation2 + $0xe8] sm:$0xff]
    %v227 = vld [vmem:[#allocation2 + $0xf0] sm:$0xff]
    %v228 = vld [vmem:[#allocation2 + $0xf8] sm:$0xff]
    %v229 = vld [vmem:[#allocation2 + $0x100] sm:$0xff]
    %v230 = vld [vmem:[#allocation2 + $0x108] sm:$0xff]
    %v231 = vld [vmem:[#allocation2 + $0x110] sm:$0xff]
    %v232 = vld [vmem:[#allocation2 + $0x118] sm:$0xff]
    %v233 = vld [vmem:[#allocation2 + $0x120] sm:$0xff]
    %v234 = vld [vmem:[#allocation2 + $0x128] sm:$0xff]
    %v235 = vld [vmem:[#allocation2 + $0x130] sm:$0xff]
    %v236 = vld [vmem:[#allocation2 + $0x138] sm:$0xff]
    %v237 = vld [vmem:[#allocation2 + $0x140] sm:$0xff]
    %v238 = vld [vmem:[#allocation2 + $0x148] sm:$0xff]
    %v239 = vld [vmem:[#allocation2 + $0x150] sm:$0xff]
    %v240 = vld [vmem:[#allocation2 + $0x158] sm:$0xff]
    %v241 = vld [vmem:[#allocation2 + $0x160] sm:$0xff]
    %v242 = vld [vmem:[#allocation2 + $0x168] sm:$0xff]
    %v243 = vld [vmem:[#allocation2 + $0x170] sm:$0xff]
    %v244 = vld [vmem:[#allocation2 + $0x178] sm:$0xff]
    %v245 = vld [vmem:[#allocation2 + $0x180] sm:$0xff]
    %v246 = vld [vmem:[#allocation2 + $0x188] sm:$0xff]
    %v247 = vld [vmem:[#allocation2 + $0x190] sm:$0xff]
    %v248 = vld [vmem:[#allocation2 + $0x198] sm:$0xff]
    %v249 = vld [vmem:[#allocation2 + $0x1a0] sm:$0xff]
    %v250 = vld [vmem:[#allocation2 + $0x1a8] sm:$0xff]
    %v251 = vld [vmem:[#allocation2 + $0x1b0] sm:$0xff]
    %v252 = vld [vmem:[#allocation2 + $0x1b8] sm:$0xff]
    %v253 = vld [vmem:[#allocation2 + $0x1c0] sm:$0xff]
    %v254 = vld [vmem:[#allocation2 + $0x1c8] sm:$0xff]
    %v255 = vld [vmem:[#allocation2 + $0x1d0] sm:$0xff]
    %v256 = vld [vmem:[#allocation2 + $0x1d8] sm:$0xff]
    %v257 = vld [vmem:[#allocation2 + $0x1e0] sm:$0xff]
    %v258 = vld [vmem:[#allocation2 + $0x1e8] sm:$0xff]
    %v259 = vld [vmem:[#allocation2 + $0x1f0] sm:$0xff]
    %v260 = vld [vmem:[#allocation2 + $0x1f8] sm:$0xff]
    %v261 = vld [vmem:[#allocation2 + $0x200] sm:$0xff]
    %v262 = vld [vmem:[#allocation2 + $0x208] sm:$0xff]
    %v263 = vld [vmem:[#allocation2 + $0x210] sm:$0xff]
    %v264 = vld [vmem:[#allocation2 + $0x218] sm:$0xff]
    %v265 = vld [vmem:[#allocation2 + $0x220] sm:$0xff]
    %v266 = vld [vmem:[#allocation2 + $0x228] sm:$0xff]
    %v267 = vld [vmem:[#allocation2 + $0x230] sm:$0xff]
    %v268 = vld [vmem:[#allocation2 + $0x238] sm:$0xff]
    %v269 = vld [vmem:[#allocation2 + $0x240] sm:$0xff]
    %v270 = vld [vmem:[#allocation2 + $0x248] sm:$0xff]
    %v271 = vld [vmem:[#allocation2 + $0x250] sm:$0xff]
    %v272 = vld [vmem:[#allocation2 + $0x258] sm:$0xff]
    %v273 = vld [vmem:[#allocation2 + $0x260] sm:$0xff]
    %v274 = vld [vmem:[#allocation2 + $0x268] sm:$0xff]
    %v275 = vld [vmem:[#allocation2 + $0x270] sm:$0xff]
    %v276 = vld [vmem:[#allocation2 + $0x278] sm:$0xff]
    %v277 = vld [vmem:[#allocation2 + $0x280] sm:$0xff]
    %v278 = vld [vmem:[#allocation2 + $0x288] sm:$0xff]
    %v279 = vld [vmem:[#allocation2 + $0x290] sm:$0xff]
    %v280 = vld [vmem:[#allocation2 + $0x298] sm:$0xff]
    %v281 = vld [vmem:[#allocation2 + $0x2a0] sm:$0xff]
    %v282 = vld [vmem:[#allocation2 + $0x2a8] sm:$0xff]
    %v283 = vld [vmem:[#allocation2 + $0x2b0] sm:$0xff]
    %v284 = vld [vmem:[#allocation2 + $0x2b8] sm:$0xff]
    %v285 = vld [vmem:[#allocation2 + $0x2c0] sm:$0xff]
    %v286 = vld [vmem:[#allocation2 + $0x2c8] sm:$0xff]
    %v287 = vld [vmem:[#allocation2 + $0x2d0] sm:$0xff]
    %v288 = vld [vmem:[#allocation2 + $0x2d8] sm:$0xff]
    %v289 = vld [vmem:[#allocation2 + $0x2e0] sm:$0xff]
    %v290 = vld [vmem:[#allocation2 + $0x2e8] sm:$0xff]
    %v291 = vld [vmem:[#allocation2 + $0x2f0] sm:$0xff]
    %v292 = vld [vmem:[#allocation2 + $0x2f8] sm:$0xff]
    %v293 = vld [vmem:[#allocation2 + $0x300] sm:$0xff]
    %v294 = vld [vmem:[#allocation2 + $0x308] sm:$0xff]
    %v295 = vld [vmem:[#allocation2 + $0x310] sm:$0xff]
    %v296 = vld [vmem:[#allocation2 + $0x318] sm:$0xff]
    %v297 = vld [vmem:[#allocation2 + $0x320] sm:$0xff]
    %v298 = vld [vmem:[#allocation2 + $0x328] sm:$0xff]
    %v299 = vld [vmem:[#allocation2 + $0x330] sm:$0xff]
    %v300 = vld [vmem:[#allocation2 + $0x338] sm:$0xff]
    %v301 = vld [vmem:[#allocation2 + $0x340] sm:$0xff]
    %v302 = vld [vmem:[#allocation2 + $0x348] sm:$0xff]
    %v303 = vld [vmem:[#allocation2 + $0x350] sm:$0xff]
    %v304 = vld [vmem:[#allocation2 + $0x358] sm:$0xff]
    %v305 = vld [vmem:[#allocation2 + $0x360] sm:$0xff]
    %v306 = vld [vmem:[#allocation2 + $0x368] sm:$0xff]
    %v307 = vld [vmem:[#allocation2 + $0x370] sm:$0xff]
    %v308 = vld [vmem:[#allocation2 + $0x378] sm:$0xff]
    %v309 = vld [vmem:[#allocation2 + $0x380] sm:$0xff]
    %v310 = vld [vmem:[#allocation2 + $0x388] sm:$0xff]
    %v311 = vld [vmem:[#allocation2 + $0x390] sm:$0xff]
    %v312 = vld [vmem:[#allocation2 + $0x398] sm:$0xff]
    %v313 = vld [vmem:[#allocation2 + $0x3a0] sm:$0xff]
    %v314 = vld [vmem:[#allocation2 + $0x3a8] sm:$0xff]
    %v315 = vld [vmem:[#allocation2 + $0x3b0] sm:$0xff]
    %v316 = vld [vmem:[#allocation2 + $0x3b8] sm:$0xff]
    %v317 = vld [vmem:[#allocation2 + $0x3c0] sm:$0xff]
    %v318 = vld [vmem:[#allocation2 + $0x3c8] sm:$0xff]
    %v319 = vld [vmem:[#allocation2 + $0x3d0] sm:$0xff]
    %v320 = vld [vmem:[#allocation2 + $0x3d8] sm:$0xff]
    %v321 = vld [vmem:[#allocation2 + $0x3e0] sm:$0xff]
    %v322 = vld [vmem:[#allocation2 + $0x3e8] sm:$0xff]
    %v323 = vld [vmem:[#allocation2 + $0x3f0] sm:$0xff]
    %v324 = vld [vmem:[#allocation2 + $0x3f8] sm:$0xff]
    %v325 = vld [vmem:[#allocation2 + $0x400] sm:$0xff]
    %v326 = vld [vmem:[#allocation2 + $0x408] sm:$0xff]
    %v327 = vld [vmem:[#allocation2 + $0x410] sm:$0xff]
    %v328 = vld [vmem:[#allocation2 + $0x418] sm:$0xff]
    %v329 = vld [vmem:[#allocation2 + $0x420] sm:$0xff]
    %v330 = vld [vmem:[#allocation2 + $0x428] sm:$0xff]
    %v331 = vld [vmem:[#allocation2 + $0x430] sm:$0xff]
    %v332 = vld [vmem:[#allocation2 + $0x438] sm:$0xff]
    %v333 = vld [vmem:[#allocation2 + $0x440] sm:$0xff]
    %v334 = vld [vmem:[#allocation2 + $0x448] sm:$0xff]
    %v335 = vld [vmem:[#allocation2 + $0x450] sm:$0xff]
    %v336 = vld [vmem:[#allocation2 + $0x458] sm:$0xff]
    %v337 = vld [vmem:[#allocation2 + $0x460] sm:$0xff]
    %v338 = vld [vmem:[#allocation2 + $0x468] sm:$0xff]
    %v339 = vld [vmem:[#allocation2 + $0x470] sm:$0xff]
    %v340 = vld [vmem:[#allocation2 + $0x478] sm:$0xff]
    %v341 = vld [vmem:[#allocation2 + $0x480] sm:$0xff]
    %v342 = vld [vmem:[#allocation2 + $0x488] sm:$0xff]
    %v343 = vld [vmem:[#allocation2 + $0x490] sm:$0xff]
    %v344 = vld [vmem:[#allocation2 + $0x498] sm:$0xff]
    %v345 = vld [vmem:[#allocation2 + $0x4a0] sm:$0xff]
    %v346 = vld [vmem:[#allocation2 + $0x4a8] sm:$0xff]
    %v347 = vld [vmem:[#allocation2 + $0x4b0] sm:$0xff]
    %v348 = vld [vmem:[#allocation2 + $0x4b8] sm:$0xff]
    %v349 = vld [vmem:[#allocation2 + $0x4c0] sm:$0xff]
    %v350 = vld [vmem:[#allocation2 + $0x4c8] sm:$0xff]
    %v351 = vld [vmem:[#allocation2 + $0x4d0] sm:$0xff]
    %v352 = vld [vmem:[#allocation2 + $0x4d8] sm:$0xff]
    %v353 = vld [vmem:[#allocation2 + $0x4e0] sm:$0xff]
    %v354 = vld [vmem:[#allocation2 + $0x4e8] sm:$0xff]
    %v355 = vld [vmem:[#allocation2 + $0x4f0] sm:$0xff]
    %v356 = vld [vmem:[#allocation2 + $0x4f8] sm:$0xff]
    %v357 = vld [vmem:[#allocation2 + $0x500] sm:$0xff]
    %v358 = vld [vmem:[#allocation2 + $0x508] sm:$0xff]
    %v359 = vld [vmem:[#allocation2 + $0x510] sm:$0xff]
    %v360 = vld [vmem:[#allocation2 + $0x518] sm:$0xff]
    %v361 = vld [vmem:[#allocation2 + $0x520] sm:$0xff]
    %v362 = vld [vmem:[#allocation2 + $0x528] sm:$0xff]
    %v363 = vld [vmem:[#allocation2 + $0x530] sm:$0xff]
    %v364 = vld [vmem:[#allocation2 + $0x538] sm:$0xff]
    %v365 = vld [vmem:[#allocation2 + $0x540] sm:$0xff]
    %v366 = vld [vmem:[#allocation2 + $0x548] sm:$0xff]
    %v367 = vld [vmem:[#allocation2 + $0x550] sm:$0xff]
    %v368 = vld [vmem:[#allocation2 + $0x558] sm:$0xff]
    %v369 = vld [vmem:[#allocation2 + $0x560] sm:$0xff]
    %v370 = vld [vmem:[#allocation2 + $0x568] sm:$0xff]
    %v371 = vld [vmem:[#allocation2 + $0x570] sm:$0xff]
    %v372 = vld [vmem:[#allocation2 + $0x578] sm:$0xff]
    %v373 = vld [vmem:[#allocation2 + $0x580] sm:$0xff]
    %v374 = vld [vmem:[#allocation2 + $0x588] sm:$0xff]
    %v375 = vld [vmem:[#allocation2 + $0x590] sm:$0xff]
    %v376 = vld [vmem:[#allocation2 + $0x598] sm:$0xff]
    %v377 = vld [vmem:[#allocation2 + $0x5a0] sm:$0xff]
    %v378 = vld [vmem:[#allocation2 + $0x5a8] sm:$0xff]
    %v379 = vld [vmem:[#allocation2 + $0x5b0] sm:$0xff]
    %v380 = vld [vmem:[#allocation2 + $0x5b8] sm:$0xff]
    %v381 = vld [vmem:[#allocation2 + $0x5c0] sm:$0xff]
    %v382 = vld [vmem:[#allocation2 + $0x5c8] sm:$0xff]
    %v383 = vld [vmem:[#allocation2 + $0x5d0] sm:$0xff]
    %v384 = vld [vmem:[#allocation2 + $0x5d8] sm:$0xff]
    %v385 = vld [vmem:[#allocation2 + $0x5e0] sm:$0xff]
    %v386 = vld [vmem:[#allocation2 + $0x5e8] sm:$0xff]
    %v387 = vld [vmem:[#allocation2 + $0x5f0] sm:$0xff]
    %v388 = vld [vmem:[#allocation2 + $0x5f8] sm:$0xff]
    %v389 = vld [vmem:[#allocation2 + $0x600] sm:$0xff]
    %v390 = vld [vmem:[#allocation2 + $0x608] sm:$0xff]
    %v391 = vld [vmem:[#allocation2 + $0x610] sm:$0xff]
    %v392 = vld [vmem:[#allocation2 + $0x618] sm:$0xff]
    %v393 = vld [vmem:[#allocation2 + $0x620] sm:$0xff]
    %v394 = vld [vmem:[#allocation2 + $0x628] sm:$0xff]
    %v395 = vld [vmem:[#allocation2 + $0x630] sm:$0xff]
    %v396 = vld [vmem:[#allocation2 + $0x638] sm:$0xff]
    %v397 = vld [vmem:[#allocation2 + $0x640] sm:$0xff]
    %v398 = vld [vmem:[#allocation2 + $0x648] sm:$0xff]
    %v399 = vld [vmem:[#allocation2 + $0x650] sm:$0xff]
    %v400 = vld [vmem:[#allocation2 + $0x658] sm:$0xff]
    %v401 = vld [vmem:[#allocation2 + $0x660] sm:$0xff]
    %v402 = vld [vmem:[#allocation2 + $0x668] sm:$0xff]
    %v403 = vld [vmem:[#allocation2 + $0x670] sm:$0xff]
    %v404 = vld [vmem:[#allocation2 + $0x678] sm:$0xff]
    %v405 = vld [vmem:[#allocation2 + $0x680] sm:$0xff]
    %v406 = vld [vmem:[#allocation2 + $0x688] sm:$0xff]
    %v407 = vld [vmem:[#allocation2 + $0x690] sm:$0xff]
    %v408 = vld [vmem:[#allocation2 + $0x698] sm:$0xff]
    %v409 = vld [vmem:[#allocation2 + $0x6a0] sm:$0xff]
    %v410 = vld [vmem:[#allocation2 + $0x6a8] sm:$0xff]
    %v411 = vld [vmem:[#allocation2 + $0x6b0] sm:$0xff]
    %v412 = vld [vmem:[#allocation2 + $0x6b8] sm:$0xff]
    %v413 = vld [vmem:[#allocation2 + $0x6c0] sm:$0xff]
    %v414 = vld [vmem:[#allocation2 + $0x6c8] sm:$0xff]
    %v415 = vld [vmem:[#allocation2 + $0x6d0] sm:$0xff]
    %v416 = vld [vmem:[#allocation2 + $0x6d8] sm:$0xff]
    %v417 = vld [vmem:[#allocation2 + $0x6e0] sm:$0xff]
    %v418 = vld [vmem:[#allocation2 + $0x6e8] sm:$0xff]
    %v419 = vld [vmem:[#allocation2 + $0x6f0] sm:$0xff]
    %v420 = vld [vmem:[#allocation2 + $0x6f8] sm:$0xff]
    %v421 = vld [vmem:[#allocation2 + $0x700] sm:$0xff]
    %v422 = vld [vmem:[#allocation2 + $0x708] sm:$0xff]
    %v423 = vld [vmem:[#allocation2 + $0x710] sm:$0xff]
    %v424 = vld [vmem:[#allocation2 + $0x718] sm:$0xff]
    %v425 = vld [vmem:[#allocation2 + $0x720] sm:$0xff]
    %v426 = vld [vmem:[#allocation2 + $0x728] sm:$0xff]
    %v427 = vld [vmem:[#allocation2 + $0x730] sm:$0xff]
    %v428 = vld [vmem:[#allocation2 + $0x738] sm:$0xff]
    %v429 = vld [vmem:[#allocation2 + $0x740] sm:$0xff]
    %v430 = vld [vmem:[#allocation2 + $0x748] sm:$0xff]
    %v431 = vld [vmem:[#allocation2 + $0x750] sm:$0xff]
    %v432 = vld [vmem:[#allocation2 + $0x758] sm:$0xff]
    %v433 = vld [vmem:[#allocation2 + $0x760] sm:$0xff]
    %v434 = vld [vmem:[#allocation2 + $0x768] sm:$0xff]
    %v435 = vld [vmem:[#allocation2 + $0x770] sm:$0xff]
    %v436 = vld [vmem:[#allocation2 + $0x778] sm:$0xff]
    %v437 = vld [vmem:[#allocation2 + $0x780] sm:$0xff]
    %v438 = vld [vmem:[#allocation2 + $0x788] sm:$0xff]
    %v439 = vld [vmem:[#allocation2 + $0x790] sm:$0xff]
    %v440 = vld [vmem:[#allocation2 + $0x798] sm:$0xff]
    %v441 = vld [vmem:[#allocation2 + $0x7a0] sm:$0xff]
    %v442 = vld [vmem:[#allocation2 + $0x7a8] sm:$0xff]
    %v443 = vld [vmem:[#allocation2 + $0x7b0] sm:$0xff]
    %v444 = vld [vmem:[#allocation2 + $0x7b8] sm:$0xff]
    %v445 = vld [vmem:[#allocation2 + $0x7c0] sm:$0xff]
    %v446 = vld [vmem:[#allocation2 + $0x7c8] sm:$0xff]
    %v447 = vld [vmem:[#allocation2 + $0x7d0] sm:$0xff]
    %v448 = vld [vmem:[#allocation2 + $0x7d8] sm:$0xff]
    %v449 = vld [vmem:[#allocation2 + $0x7e0] sm:$0xff]
    %v450 = vld [vmem:[#allocation2 + $0x7e8] sm:$0xff]
    %v451 = vld [vmem:[#allocation2 + $0x7f0] sm:$0xff]
    %v452 = vld [vmem:[#allocation2 + $0x7f8] sm:$0xff]
    %v453 = vld [vmem:[#allocation2 + $0x800] sm:$0xff]
    %v454 = vld [vmem:[#allocation2 + $0x808] sm:$0xff]
    %v455 = vld [vmem:[#allocation2 + $0x810] sm:$0xff]
    %v456 = vld [vmem:[#allocation2 + $0x818] sm:$0xff]
    %v457 = vld [vmem:[#allocation2 + $0x820] sm:$0xff]
    %v458 = vld [vmem:[#allocation2 + $0x828] sm:$0xff]
    %v459 = vld [vmem:[#allocation2 + $0x830] sm:$0xff]
    %v460 = vld [vmem:[#allocation2 + $0x838] sm:$0xff]
    %v461 = vld [vmem:[#allocation2 + $0x840] sm:$0xff]
    %v462 = vld [vmem:[#allocation2 + $0x848] sm:$0xff]
    %v463 = vld [vmem:[#allocation2 + $0x850] sm:$0xff]
    %v464 = vld [vmem:[#allocation2 + $0x858] sm:$0xff]
    %v465 = vld [vmem:[#allocation2 + $0x860] sm:$0xff]
    %v466 = vld [vmem:[#allocation2 + $0x868] sm:$0xff]
    %v467 = vld [vmem:[#allocation2 + $0x870] sm:$0xff]
    %v468 = vld [vmem:[#allocation2 + $0x878] sm:$0xff]
    %v469 = vld [vmem:[#allocation2 + $0x880] sm:$0xff]
    %v470 = vld [vmem:[#allocation2 + $0x888] sm:$0xff]
    %v471 = vld [vmem:[#allocation2 + $0x890] sm:$0xff]
    %v472 = vld [vmem:[#allocation2 + $0x898] sm:$0xff]
    %v473 = vld [vmem:[#allocation2 + $0x8a0] sm:$0xff]
    %v474 = vld [vmem:[#allocation2 + $0x8a8] sm:$0xff]
    %v475 = vld [vmem:[#allocation2 + $0x8b0] sm:$0xff]
    %v476 = vld [vmem:[#allocation2 + $0x8b8] sm:$0xff]
    %v477 = vld [vmem:[#allocation2 + $0x8c0] sm:$0xff]
    %v478 = vld [vmem:[#allocation2 + $0x8c8] sm:$0xff]
    %v479 = vld [vmem:[#allocation2 + $0x8d0] sm:$0xff]
    %v480 = vld [vmem:[#allocation2 + $0x8d8] sm:$0xff]
    %v481 = vld [vmem:[#allocation2 + $0x8e0] sm:$0xff]
    %v482 = vld [vmem:[#allocation2 + $0x8e8] sm:$0xff]
    %v483 = vld [vmem:[#allocation2 + $0x8f0] sm:$0xff]
    %v484 = vld [vmem:[#allocation2 + $0x8f8] sm:$0xff]
    %v485 = vld [vmem:[#allocation2 + $0x900] sm:$0xff]
    %v486 = vld [vmem:[#allocation2 + $0x908] sm:$0xff]
    %v487 = vld [vmem:[#allocation2 + $0x910] sm:$0xff]
    %v488 = vld [vmem:[#allocation2 + $0x918] sm:$0xff]
    %v489 = vld [vmem:[#allocation2 + $0x920] sm:$0xff]
    %v490 = vld [vmem:[#allocation2 + $0x928] sm:$0xff]
    %v491 = vld [vmem:[#allocation2 + $0x930] sm:$0xff]
    %v492 = vld [vmem:[#allocation2 + $0x938] sm:$0xff]
    %v493 = vld [vmem:[#allocation2 + $0x940] sm:$0xff]
    %v494 = vld [vmem:[#allocation2 + $0x948] sm:$0xff]
    %v495 = vld [vmem:[#allocation2 + $0x950] sm:$0xff]
    %v496 = vld [vmem:[#allocation2 + $0x958] sm:$0xff]
    %v497 = vld [vmem:[#allocation2 + $0x960] sm:$0xff]
    %v498 = vld [vmem:[#allocation2 + $0x968] sm:$0xff]
    %v499 = vld [vmem:[#allocation2 + $0x970] sm:$0xff]
    %v500 = vld [vmem:[#allocation2 + $0x978] sm:$0xff]
    %v501 = vld [vmem:[#allocation2 + $0x980] sm:$0xff]
    %v502 = vld [vmem:[#allocation2 + $0x988] sm:$0xff]
    %v503 = vld [vmem:[#allocation2 + $0x990] sm:$0xff]
    %v504 = vld [vmem:[#allocation2 + $0x998] sm:$0xff]
    %v505 = vld [vmem:[#allocation2 + $0x9a0] sm:$0xff]
    %v506 = vld [vmem:[#allocation2 + $0x9a8] sm:$0xff]
    %v507 = vld [vmem:[#allocation2 + $0x9b0] sm:$0xff]
    %v508 = vld [vmem:[#allocation2 + $0x9b8] sm:$0xff]
    %v509 = vld [vmem:[#allocation2 + $0x9c0] sm:$0xff]
    %v510 = vld [vmem:[#allocation2 + $0x9c8] sm:$0xff]
    %v511 = vld [vmem:[#allocation2 + $0x9d0] sm:$0xff]
    %v512 = vld [vmem:[#allocation2 + $0x9d8] sm:$0xff]
    %v513 = vld [vmem:[#allocation2 + $0x9e0] sm:$0xff]
    %v514 = vld [vmem:[#allocation2 + $0x9e8] sm:$0xff]
    %v515 = vld [vmem:[#allocation2 + $0x9f0] sm:$0xff]
    %v516 = vld [vmem:[#allocation2 + $0x9f8] sm:$0xff]
    %v517 = vld [vmem:[#allocation2 + $0xa00] sm:$0xff]
    %v518 = vld [vmem:[#allocation2 + $0xa08] sm:$0xff]
    %v519 = vld [vmem:[#allocation2 + $0xa10] sm:$0xff]
    %v520 = vld [vmem:[#allocation2 + $0xa18] sm:$0xff]
    %v521 = vld [vmem:[#allocation2 + $0xa20] sm:$0xff]
    %v522 = vld [vmem:[#allocation2 + $0xa28] sm:$0xff]
    %v523 = vld [vmem:[#allocation2 + $0xa30] sm:$0xff]
    %v524 = vld [vmem:[#allocation2 + $0xa38] sm:$0xff]
    %v525 = vld [vmem:[#allocation2 + $0xa40] sm:$0xff]
    %v526 = vld [vmem:[#allocation2 + $0xa48] sm:$0xff]
    %v527 = vld [vmem:[#allocation2 + $0xa50] sm:$0xff]
    %v528 = vld [vmem:[#allocation2 + $0xa58] sm:$0xff]
    %v529 = vld [vmem:[#allocation2 + $0xa60] sm:$0xff]
    %v530 = vld [vmem:[#allocation2 + $0xa68] sm:$0xff]
    %v531 = vld [vmem:[#allocation2 + $0xa70] sm:$0xff]
    %v532 = vld [vmem:[#allocation2 + $0xa78] sm:$0xff]
    %v533 = vld [vmem:[#allocation2 + $0xa80] sm:$0xff]
    %v534 = vld [vmem:[#allocation2 + $0xa88] sm:$0xff]
    %v535 = vld [vmem:[#allocation2 + $0xa90] sm:$0xff]
    %v536 = vld [vmem:[#allocation2 + $0xa98] sm:$0xff]
    %v537 = vld [vmem:[#allocation2 + $0xaa0] sm:$0xff]
    %v538 = vld [vmem:[#allocation2 + $0xaa8] sm:$0xff]
    %v539 = vld [vmem:[#allocation2 + $0xab0] sm:$0xff]
    %v540 = vld [vmem:[#allocation2 + $0xab8] sm:$0xff]
    %v541 = vld [vmem:[#allocation2 + $0xac0] sm:$0xff]
    %v542 = vld [vmem:[#allocation2 + $0xac8] sm:$0xff]
    %v543 = vld [vmem:[#allocation2 + $0xad0] sm:$0xff]
    %v544 = vld [vmem:[#allocation2 + $0xad8] sm:$0xff]
    %v545 = vld [vmem:[#allocation2 + $0xae0] sm:$0xff]
    %v546 = vld [vmem:[#allocation2 + $0xae8] sm:$0xff]
    %v547 = vld [vmem:[#allocation2 + $0xaf0] sm:$0xff]
    %v548 = vld [vmem:[#allocation2 + $0xaf8] sm:$0xff]
    %v549 = vld [vmem:[#allocation2 + $0xb00] sm:$0xff]
    %v550 = vld [vmem:[#allocation2 + $0xb08] sm:$0xff]
    %v551 = vld [vmem:[#allocation2 + $0xb10] sm:$0xff]
    %v552 = vld [vmem:[#allocation2 + $0xb18] sm:$0xff]
    %v553 = vld [vmem:[#allocation2 + $0xb20] sm:$0xff]
    %v554 = vld [vmem:[#allocation2 + $0xb28] sm:$0xff]
    %v555 = vld [vmem:[#allocation2 + $0xb30] sm:$0xff]
    %v556 = vld [vmem:[#allocation2 + $0xb38] sm:$0xff]
    %v557 = vld [vmem:[#allocation2 + $0xb40] sm:$0xff]
    %v558 = vld [vmem:[#allocation2 + $0xb48] sm:$0xff]
    %v559 = vld [vmem:[#allocation2 + $0xb50] sm:$0xff]
    %v560 = vld [vmem:[#allocation2 + $0xb58] sm:$0xff]
    %v561 = vld [vmem:[#allocation2 + $0xb60] sm:$0xff]
    %v562 = vld [vmem:[#allocation2 + $0xb68] sm:$0xff]
    %v563 = vld [vmem:[#allocation2 + $0xb70] sm:$0xff]
    %v564 = vld [vmem:[#allocation2 + $0xb78] sm:$0xff]
    %v565 = vld [vmem:[#allocation2 + $0xb80] sm:$0xff]
    %v566 = vld [vmem:[#allocation2 + $0xb88] sm:$0xff]
    %v567 = vld [vmem:[#allocation2 + $0xb90] sm:$0xff]
    %v568 = vld [vmem:[#allocation2 + $0xb98] sm:$0xff]
    %v569 = vld [vmem:[#allocation2 + $0xba0] sm:$0xff]
    %v570 = vld [vmem:[#allocation2 + $0xba8] sm:$0xff]
    %v571 = vld [vmem:[#allocation2 + $0xbb0] sm:$0xff]
    %v572 = vld [vmem:[#allocation2 + $0xbb8] sm:$0xff]
    %v573 = vld [vmem:[#allocation2 + $0xbc0] sm:$0xff]
    %v574 = vld [vmem:[#allocation2 + $0xbc8] sm:$0xff]
    %v575 = vld [vmem:[#allocation2 + $0xbd0] sm:$0xff]
    %v576 = vld [vmem:[#allocation2 + $0xbd8] sm:$0xff]
    %v577 = vld [vmem:[#allocation2 + $0xbe0] sm:$0xff]
    %v578 = vld [vmem:[#allocation2 + $0xbe8] sm:$0xff]
    %v579 = vld [vmem:[#allocation2 + $0xbf0] sm:$0xff]
    %v580 = vld [vmem:[#allocation2 + $0xbf8] sm:$0xff]
    %v581 = vld [vmem:[#allocation2 + $0xc00] sm:$0xff]
    %v582 = vld [vmem:[#allocation2 + $0xc08] sm:$0xff]
    %v583 = vld [vmem:[#allocation2 + $0xc10] sm:$0xff]
    %v584 = vld [vmem:[#allocation2 + $0xc18] sm:$0xff]
    %v585 = vld [vmem:[#allocation2 + $0xc20] sm:$0xff]
    %v586 = vld [vmem:[#allocation2 + $0xc28] sm:$0xff]
    %v587 = vld [vmem:[#allocation2 + $0xc30] sm:$0xff]
    %v588 = vld [vmem:[#allocation2 + $0xc38] sm:$0xff]
    %v589 = vld [vmem:[#allocation2 + $0xc40] sm:$0xff]
    %v590 = vld [vmem:[#allocation2 + $0xc48] sm:$0xff]
    %v591 = vld [vmem:[#allocation2 + $0xc50] sm:$0xff]
    %v592 = vld [vmem:[#allocation2 + $0xc58] sm:$0xff]
    %v593 = vld [vmem:[#allocation2 + $0xc60] sm:$0xff]
    %v594 = vld [vmem:[#allocation2 + $0xc68] sm:$0xff]
    %v595 = vld [vmem:[#allocation2 + $0xc70] sm:$0xff]
    %v596 = vld [vmem:[#allocation2 + $0xc78] sm:$0xff]
    %v597 = vld [vmem:[#allocation2 + $0xc80] sm:$0xff]
    %v598 = vld [vmem:[#allocation2 + $0xc88] sm:$0xff]
    %v599 = vld [vmem:[#allocation2 + $0xc90] sm:$0xff]
    %v600 = vld [vmem:[#allocation2 + $0xc98] sm:$0xff]
    %v601 = vld [vmem:[#allocation2 + $0xca0] sm:$0xff]
    %v602 = vld [vmem:[#allocation2 + $0xca8] sm:$0xff]
    %v603 = vld [vmem:[#allocation2 + $0xcb0] sm:$0xff]
    %v604 = vld [vmem:[#allocation2 + $0xcb8] sm:$0xff]
    %v605 = vld [vmem:[#allocation2 + $0xcc0] sm:$0xff]
    %v606 = vld [vmem:[#allocation2 + $0xcc8] sm:$0xff]
    %v607 = vld [vmem:[#allocation2 + $0xcd0] sm:$0xff]
    %v608 = vld [vmem:[#allocation2 + $0xcd8] sm:$0xff]
    %v609 = vld [vmem:[#allocation2 + $0xce0] sm:$0xff]
    %v610 = vld [vmem:[#allocation2 + $0xce8] sm:$0xff]
    %v611 = vld [vmem:[#allocation2 + $0xcf0] sm:$0xff]
    %v612 = vld [vmem:[#allocation2 + $0xcf8] sm:$0xff]
    %v613 = vld [vmem:[#allocation2 + $0xd00] sm:$0xff]
    %v614 = vld [vmem:[#allocation2 + $0xd08] sm:$0xff]
    %v615 = vld [vmem:[#allocation2 + $0xd10] sm:$0xff]
    %v616 = vld [vmem:[#allocation2 + $0xd18] sm:$0xff]
    %v617 = vld [vmem:[#allocation2 + $0xd20] sm:$0xff]
    %v618 = vld [vmem:[#allocation2 + $0xd28] sm:$0xff]
    %v619 = vld [vmem:[#allocation2 + $0xd30] sm:$0xff]
    %v620 = vld [vmem:[#allocation2 + $0xd38] sm:$0xff]
    %v621 = vld [vmem:[#allocation2 + $0xd40] sm:$0xff]
    %v622 = vld [vmem:[#allocation2 + $0xd48] sm:$0xff]
    %v623 = vld [vmem:[#allocation2 + $0xd50] sm:$0xff]
    %v624 = vld [vmem:[#allocation2 + $0xd58] sm:$0xff]
    %v625 = vld [vmem:[#allocation2 + $0xd60] sm:$0xff]
    %v626 = vld [vmem:[#allocation2 + $0xd68] sm:$0xff]
    %v627 = vld [vmem:[#allocation2 + $0xd70] sm:$0xff]
    %v628 = vld [vmem:[#allocation2 + $0xd78] sm:$0xff]
    %v629 = vld [vmem:[#allocation2 + $0xd80] sm:$0xff]
    %v630 = vld [vmem:[#allocation2 + $0xd88] sm:$0xff]
    %v631 = vld [vmem:[#allocation2 + $0xd90] sm:$0xff]
    %v632 = vld [vmem:[#allocation2 + $0xd98] sm:$0xff]
    %v633 = vld [vmem:[#allocation2 + $0xda0] sm:$0xff]
    %v634 = vld [vmem:[#allocation2 + $0xda8] sm:$0xff]
    %v635 = vld [vmem:[#allocation2 + $0xdb0] sm:$0xff]
    %v636 = vld [vmem:[#allocation2 + $0xdb8] sm:$0xff]
    %v637 = vld [vmem:[#allocation2 + $0xdc0] sm:$0xff]
    %v638 = vld [vmem:[#allocation2 + $0xdc8] sm:$0xff]
    %v639 = vld [vmem:[#allocation2 + $0xdd0] sm:$0xff]
    %v640 = vld [vmem:[#allocation2 + $0xdd8] sm:$0xff]
    %v641 = vld [vmem:[#allocation2 + $0xde0] sm:$0xff]
    %v642 = vld [vmem:[#allocation2 + $0xde8] sm:$0xff]
    %v643 = vld [vmem:[#allocation2 + $0xdf0] sm:$0xff]
    %v644 = vld [vmem:[#allocation2 + $0xdf8] sm:$0xff]
    %v645 = vunpack.c.l.s8.bf16 %v197
    %v646 = vunpack.c.l.s8.bf16 %v198
    %v647 = vunpack.c.l.s8.bf16 %v199
    %v648 = vunpack.c.l.s8.bf16 %v200
    %v649 = vunpack.c.l.s8.bf16 %v201
    %v650 = vunpack.c.l.s8.bf16 %v202
    %v651 = vunpack.c.l.s8.bf16 %v203
    %v652 = vunpack.c.l.s8.bf16 %v204
    %v653 = vunpack.c.l.s8.bf16 %v205
    %v654 = vunpack.c.l.s8.bf16 %v206
    %v655 = vunpack.c.l.s8.bf16 %v207
    %v656 = vunpack.c.l.s8.bf16 %v208
    %v657 = vunpack.c.l.s8.bf16 %v209
    %v658 = vunpack.c.l.s8.bf16 %v210
    %v659 = vunpack.c.l.s8.bf16 %v211
    %v660 = vunpack.c.l.s8.bf16 %v212
    %v661 = vunpack.c.h.s8.bf16 %v197
    %v662 = vunpack.c.h.s8.bf16 %v198
    %v663 = vunpack.c.h.s8.bf16 %v199
    %v664 = vunpack.c.h.s8.bf16 %v200
    %v665 = vunpack.c.h.s8.bf16 %v201
    %v666 = vunpack.c.h.s8.bf16 %v202
    %v667 = vunpack.c.h.s8.bf16 %v203
    %v668 = vunpack.c.h.s8.bf16 %v204
    %v669 = vunpack.c.h.s8.bf16 %v205
    %v670 = vunpack.c.h.s8.bf16 %v206
    %v671 = vunpack.c.h.s8.bf16 %v207
    %v672 = vunpack.c.h.s8.bf16 %v208
    %v673 = vunpack.c.h.s8.bf16 %v209
    %v674 = vunpack.c.h.s8.bf16 %v210
    %v675 = vunpack.c.h.s8.bf16 %v211
    %v676 = vunpack.c.h.s8.bf16 %v212
    %v677 = vunpack.c.l.s8.bf16 %v213
    %v678 = vunpack.c.l.s8.bf16 %v214
    %v679 = vunpack.c.l.s8.bf16 %v215
    %v680 = vunpack.c.l.s8.bf16 %v216
    %v681 = vunpack.c.l.s8.bf16 %v217
    %v682 = vunpack.c.l.s8.bf16 %v218
    %v683 = vunpack.c.l.s8.bf16 %v219
    %v684 = vunpack.c.l.s8.bf16 %v220
    %v685 = vunpack.c.l.s8.bf16 %v221
    %v686 = vunpack.c.l.s8.bf16 %v222
    %v687 = vunpack.c.l.s8.bf16 %v223
    %v688 = vunpack.c.l.s8.bf16 %v224
    %v689 = vunpack.c.l.s8.bf16 %v225
    %v690 = vunpack.c.l.s8.bf16 %v226
    %v691 = vunpack.c.l.s8.bf16 %v227
    %v692 = vunpack.c.l.s8.bf16 %v228
    %v693 = vunpack.c.h.s8.bf16 %v213
    %v694 = vunpack.c.h.s8.bf16 %v214
    %v695 = vunpack.c.h.s8.bf16 %v215
    %v696 = vunpack.c.h.s8.bf16 %v216
    %v697 = vunpack.c.h.s8.bf16 %v217
    %v698 = vunpack.c.h.s8.bf16 %v218
    %v699 = vunpack.c.h.s8.bf16 %v219
    %v700 = vunpack.c.h.s8.bf16 %v220
    %v701 = vunpack.c.h.s8.bf16 %v221
    %v702 = vunpack.c.h.s8.bf16 %v222
    %v703 = vunpack.c.h.s8.bf16 %v223
    %v704 = vunpack.c.h.s8.bf16 %v224
    %v705 = vunpack.c.h.s8.bf16 %v225
    %v706 = vunpack.c.h.s8.bf16 %v226
    %v707 = vunpack.c.h.s8.bf16 %v227
    %v708 = vunpack.c.h.s8.bf16 %v228
    %v709 = vunpack.c.l.s8.bf16 %v229
    %v710 = vunpack.c.l.s8.bf16 %v230
    %v711 = vunpack.c.l.s8.bf16 %v231
    %v712 = vunpack.c.l.s8.bf16 %v232
    %v713 = vunpack.c.l.s8.bf16 %v233
    %v714 = vunpack.c.l.s8.bf16 %v234
    %v715 = vunpack.c.l.s8.bf16 %v235
    %v716 = vunpack.c.l.s8.bf16 %v236
    %v717 = vunpack.c.l.s8.bf16 %v237
    %v718 = vunpack.c.l.s8.bf16 %v238
    %v719 = vunpack.c.l.s8.bf16 %v239
    %v720 = vunpack.c.l.s8.bf16 %v240
    %v721 = vunpack.c.l.s8.bf16 %v241
    %v722 = vunpack.c.l.s8.bf16 %v242
    %v723 = vunpack.c.l.s8.bf16 %v243
    %v724 = vunpack.c.l.s8.bf16 %v244
    %v725 = vunpack.c.h.s8.bf16 %v229
    %v726 = vunpack.c.h.s8.bf16 %v230
    %v727 = vunpack.c.h.s8.bf16 %v231
    %v728 = vunpack.c.h.s8.bf16 %v232
    %v729 = vunpack.c.h.s8.bf16 %v233
    %v730 = vunpack.c.h.s8.bf16 %v234
    %v731 = vunpack.c.h.s8.bf16 %v235
    %v732 = vunpack.c.h.s8.bf16 %v236
    %v733 = vunpack.c.h.s8.bf16 %v237
    %v734 = vunpack.c.h.s8.bf16 %v238
    %v735 = vunpack.c.h.s8.bf16 %v239
    %v736 = vunpack.c.h.s8.bf16 %v240
    %v737 = vunpack.c.h.s8.bf16 %v241
    %v738 = vunpack.c.h.s8.bf16 %v242
    %v739 = vunpack.c.h.s8.bf16 %v243
    %v740 = vunpack.c.h.s8.bf16 %v244
    %v741 = vunpack.c.l.s8.bf16 %v245
    %v742 = vunpack.c.l.s8.bf16 %v246
    %v743 = vunpack.c.l.s8.bf16 %v247
    %v744 = vunpack.c.l.s8.bf16 %v248
    %v745 = vunpack.c.l.s8.bf16 %v249
    %v746 = vunpack.c.l.s8.bf16 %v250
    %v747 = vunpack.c.l.s8.bf16 %v251
    %v748 = vunpack.c.l.s8.bf16 %v252
    %v749 = vunpack.c.l.s8.bf16 %v253
    %v750 = vunpack.c.l.s8.bf16 %v254
    %v751 = vunpack.c.l.s8.bf16 %v255
    %v752 = vunpack.c.l.s8.bf16 %v256
    %v753 = vunpack.c.l.s8.bf16 %v257
    %v754 = vunpack.c.l.s8.bf16 %v258
    %v755 = vunpack.c.l.s8.bf16 %v259
    %v756 = vunpack.c.l.s8.bf16 %v260
    %v757 = vunpack.c.h.s8.bf16 %v245
    %v758 = vunpack.c.h.s8.bf16 %v246
    %v759 = vunpack.c.h.s8.bf16 %v247
    %v760 = vunpack.c.h.s8.bf16 %v248
    %v761 = vunpack.c.h.s8.bf16 %v249
    %v762 = vunpack.c.h.s8.bf16 %v250
    %v763 = vunpack.c.h.s8.bf16 %v251
    %v764 = vunpack.c.h.s8.bf16 %v252
    %v765 = vunpack.c.h.s8.bf16 %v253
    %v766 = vunpack.c.h.s8.bf16 %v254
    %v767 = vunpack.c.h.s8.bf16 %v255
    %v768 = vunpack.c.h.s8.bf16 %v256
    %v769 = vunpack.c.h.s8.bf16 %v257
    %v770 = vunpack.c.h.s8.bf16 %v258
    %v771 = vunpack.c.h.s8.bf16 %v259
    %v772 = vunpack.c.h.s8.bf16 %v260
    %v773 = vunpack.c.l.s8.bf16 %v261
    %v774 = vunpack.c.l.s8.bf16 %v262
    %v775 = vunpack.c.l.s8.bf16 %v263
    %v776 = vunpack.c.l.s8.bf16 %v264
    %v777 = vunpack.c.l.s8.bf16 %v265
    %v778 = vunpack.c.l.s8.bf16 %v266
    %v779 = vunpack.c.l.s8.bf16 %v267
    %v780 = vunpack.c.l.s8.bf16 %v268
    %v781 = vunpack.c.l.s8.bf16 %v269
    %v782 = vunpack.c.l.s8.bf16 %v270
    %v783 = vunpack.c.l.s8.bf16 %v271
    %v784 = vunpack.c.l.s8.bf16 %v272
    %v785 = vunpack.c.l.s8.bf16 %v273
    %v786 = vunpack.c.l.s8.bf16 %v274
    %v787 = vunpack.c.l.s8.bf16 %v275
    %v788 = vunpack.c.l.s8.bf16 %v276
    %v789 = vunpack.c.h.s8.bf16 %v261
    %v790 = vunpack.c.h.s8.bf16 %v262
    %v791 = vunpack.c.h.s8.bf16 %v263
    %v792 = vunpack.c.h.s8.bf16 %v264
    %v793 = vunpack.c.h.s8.bf16 %v265
    %v794 = vunpack.c.h.s8.bf16 %v266
    %v795 = vunpack.c.h.s8.bf16 %v267
    %v796 = vunpack.c.h.s8.bf16 %v268
    %v797 = vunpack.c.h.s8.bf16 %v269
    %v798 = vunpack.c.h.s8.bf16 %v270
    %v799 = vunpack.c.h.s8.bf16 %v271
    %v800 = vunpack.c.h.s8.bf16 %v272
    %v801 = vunpack.c.h.s8.bf16 %v273
    %v802 = vunpack.c.h.s8.bf16 %v274
    %v803 = vunpack.c.h.s8.bf16 %v275
    %v804 = vunpack.c.h.s8.bf16 %v276
    %v805 = vunpack.c.l.s8.bf16 %v277
    %v806 = vunpack.c.l.s8.bf16 %v278
    %v807 = vunpack.c.l.s8.bf16 %v279
    %v808 = vunpack.c.l.s8.bf16 %v280
    %v809 = vunpack.c.l.s8.bf16 %v281
    %v810 = vunpack.c.l.s8.bf16 %v282
    %v811 = vunpack.c.l.s8.bf16 %v283
    %v812 = vunpack.c.l.s8.bf16 %v284
    %v813 = vunpack.c.l.s8.bf16 %v285
    %v814 = vunpack.c.l.s8.bf16 %v286
    %v815 = vunpack.c.l.s8.bf16 %v287
    %v816 = vunpack.c.l.s8.bf16 %v288
    %v817 = vunpack.c.l.s8.bf16 %v289
    %v818 = vunpack.c.l.s8.bf16 %v290
    %v819 = vunpack.c.l.s8.bf16 %v291
    %v820 = vunpack.c.l.s8.bf16 %v292
    %v821 = vunpack.c.h.s8.bf16 %v277
    %v822 = vunpack.c.h.s8.bf16 %v278
    %v823 = vunpack.c.h.s8.bf16 %v279
    %v824 = vunpack.c.h.s8.bf16 %v280
    %v825 = vunpack.c.h.s8.bf16 %v281
    %v826 = vunpack.c.h.s8.bf16 %v282
    %v827 = vunpack.c.h.s8.bf16 %v283
    %v828 = vunpack.c.h.s8.bf16 %v284
    %v829 = vunpack.c.h.s8.bf16 %v285
    %v830 = vunpack.c.h.s8.bf16 %v286
    %v831 = vunpack.c.h.s8.bf16 %v287
    %v832 = vunpack.c.h.s8.bf16 %v288
    %v833 = vunpack.c.h.s8.bf16 %v289
    %v834 = vunpack.c.h.s8.bf16 %v290
    %v835 = vunpack.c.h.s8.bf16 %v291
    %v836 = vunpack.c.h.s8.bf16 %v292
    %v837 = vunpack.c.l.s8.bf16 %v293
    %v838 = vunpack.c.l.s8.bf16 %v294
    %v839 = vunpack.c.l.s8.bf16 %v295
    %v840 = vunpack.c.l.s8.bf16 %v296
    %v841 = vunpack.c.l.s8.bf16 %v297
    %v842 = vunpack.c.l.s8.bf16 %v298
    %v843 = vunpack.c.l.s8.bf16 %v299
    %v844 = vunpack.c.l.s8.bf16 %v300
    %v845 = vunpack.c.l.s8.bf16 %v301
    %v846 = vunpack.c.l.s8.bf16 %v302
    %v847 = vunpack.c.l.s8.bf16 %v303
    %v848 = vunpack.c.l.s8.bf16 %v304
    %v849 = vunpack.c.l.s8.bf16 %v305
    %v850 = vunpack.c.l.s8.bf16 %v306
    %v851 = vunpack.c.l.s8.bf16 %v307
    %v852 = vunpack.c.l.s8.bf16 %v308
    %v853 = vunpack.c.h.s8.bf16 %v293
    %v854 = vunpack.c.h.s8.bf16 %v294
    %v855 = vunpack.c.h.s8.bf16 %v295
    %v856 = vunpack.c.h.s8.bf16 %v296
    %v857 = vunpack.c.h.s8.bf16 %v297
    %v858 = vunpack.c.h.s8.bf16 %v298
    %v859 = vunpack.c.h.s8.bf16 %v299
    %v860 = vunpack.c.h.s8.bf16 %v300
    %v861 = vunpack.c.h.s8.bf16 %v301
    %v862 = vunpack.c.h.s8.bf16 %v302
    %v863 = vunpack.c.h.s8.bf16 %v303
    %v864 = vunpack.c.h.s8.bf16 %v304
    %v865 = vunpack.c.h.s8.bf16 %v305
    %v866 = vunpack.c.h.s8.bf16 %v306
    %v867 = vunpack.c.h.s8.bf16 %v307
    %v868 = vunpack.c.h.s8.bf16 %v308
    %v869 = vunpack.c.l.s8.bf16 %v309
    %v870 = vunpack.c.l.s8.bf16 %v310
    %v871 = vunpack.c.l.s8.bf16 %v311
    %v872 = vunpack.c.l.s8.bf16 %v312
    %v873 = vunpack.c.l.s8.bf16 %v313
    %v874 = vunpack.c.l.s8.bf16 %v314
    %v875 = vunpack.c.l.s8.bf16 %v315
    %v876 = vunpack.c.l.s8.bf16 %v316
    %v877 = vunpack.c.l.s8.bf16 %v317
    %v878 = vunpack.c.l.s8.bf16 %v318
    %v879 = vunpack.c.l.s8.bf16 %v319
    %v880 = vunpack.c.l.s8.bf16 %v320
    %v881 = vunpack.c.l.s8.bf16 %v321
    %v882 = vunpack.c.l.s8.bf16 %v322
    %v883 = vunpack.c.l.s8.bf16 %v323
    %v884 = vunpack.c.l.s8.bf16 %v324
    %v885 = vunpack.c.h.s8.bf16 %v309
    %v886 = vunpack.c.h.s8.bf16 %v310
    %v887 = vunpack.c.h.s8.bf16 %v311
    %v888 = vunpack.c.h.s8.bf16 %v312
    %v889 = vunpack.c.h.s8.bf16 %v313
    %v890 = vunpack.c.h.s8.bf16 %v314
    %v891 = vunpack.c.h.s8.bf16 %v315
    %v892 = vunpack.c.h.s8.bf16 %v316
    %v893 = vunpack.c.h.s8.bf16 %v317
    %v894 = vunpack.c.h.s8.bf16 %v318
    %v895 = vunpack.c.h.s8.bf16 %v319
    %v896 = vunpack.c.h.s8.bf16 %v320
    %v897 = vunpack.c.h.s8.bf16 %v321
    %v898 = vunpack.c.h.s8.bf16 %v322
    %v899 = vunpack.c.h.s8.bf16 %v323
    %v900 = vunpack.c.h.s8.bf16 %v324
    %v901 = vunpack.c.l.s8.bf16 %v325
    %v902 = vunpack.c.l.s8.bf16 %v326
    %v903 = vunpack.c.l.s8.bf16 %v327
    %v904 = vunpack.c.l.s8.bf16 %v328
    %v905 = vunpack.c.l.s8.bf16 %v329
    %v906 = vunpack.c.l.s8.bf16 %v330
    %v907 = vunpack.c.l.s8.bf16 %v331
    %v908 = vunpack.c.l.s8.bf16 %v332
    %v909 = vunpack.c.l.s8.bf16 %v333
    %v910 = vunpack.c.l.s8.bf16 %v334
    %v911 = vunpack.c.l.s8.bf16 %v335
    %v912 = vunpack.c.l.s8.bf16 %v336
    %v913 = vunpack.c.l.s8.bf16 %v337
    %v914 = vunpack.c.l.s8.bf16 %v338
    %v915 = vunpack.c.l.s8.bf16 %v339
    %v916 = vunpack.c.l.s8.bf16 %v340
    %v917 = vunpack.c.h.s8.bf16 %v325
    %v918 = vunpack.c.h.s8.bf16 %v326
    %v919 = vunpack.c.h.s8.bf16 %v327
    %v920 = vunpack.c.h.s8.bf16 %v328
    %v921 = vunpack.c.h.s8.bf16 %v329
    %v922 = vunpack.c.h.s8.bf16 %v330
    %v923 = vunpack.c.h.s8.bf16 %v331
    %v924 = vunpack.c.h.s8.bf16 %v332
    %v925 = vunpack.c.h.s8.bf16 %v333
    %v926 = vunpack.c.h.s8.bf16 %v334
    %v927 = vunpack.c.h.s8.bf16 %v335
    %v928 = vunpack.c.h.s8.bf16 %v336
    %v929 = vunpack.c.h.s8.bf16 %v337
    %v930 = vunpack.c.h.s8.bf16 %v338
    %v931 = vunpack.c.h.s8.bf16 %v339
    %v932 = vunpack.c.h.s8.bf16 %v340
    %v933 = vunpack.c.l.s8.bf16 %v341
    %v934 = vunpack.c.l.s8.bf16 %v342
    %v935 = vunpack.c.l.s8.bf16 %v343
    %v936 = vunpack.c.l.s8.bf16 %v344
    %v937 = vunpack.c.l.s8.bf16 %v345
    %v938 = vunpack.c.l.s8.bf16 %v346
    %v939 = vunpack.c.l.s8.bf16 %v347
    %v940 = vunpack.c.l.s8.bf16 %v348
    %v941 = vunpack.c.l.s8.bf16 %v349
    %v942 = vunpack.c.l.s8.bf16 %v350
    %v943 = vunpack.c.l.s8.bf16 %v351
    %v944 = vunpack.c.l.s8.bf16 %v352
    %v945 = vunpack.c.l.s8.bf16 %v353
    %v946 = vunpack.c.l.s8.bf16 %v354
    %v947 = vunpack.c.l.s8.bf16 %v355
    %v948 = vunpack.c.l.s8.bf16 %v356
    %v949 = vunpack.c.h.s8.bf16 %v341
    %v950 = vunpack.c.h.s8.bf16 %v342
    %v951 = vunpack.c.h.s8.bf16 %v343
    %v952 = vunpack.c.h.s8.bf16 %v344
    %v953 = vunpack.c.h.s8.bf16 %v345
    %v954 = vunpack.c.h.s8.bf16 %v346
    %v955 = vunpack.c.h.s8.bf16 %v347
    %v956 = vunpack.c.h.s8.bf16 %v348
    %v957 = vunpack.c.h.s8.bf16 %v349
    %v958 = vunpack.c.h.s8.bf16 %v350
    %v959 = vunpack.c.h.s8.bf16 %v351
    %v960 = vunpack.c.h.s8.bf16 %v352
    %v961 = vunpack.c.h.s8.bf16 %v353
    %v962 = vunpack.c.h.s8.bf16 %v354
    %v963 = vunpack.c.h.s8.bf16 %v355
    %v964 = vunpack.c.h.s8.bf16 %v356
    %v965 = vunpack.c.l.s8.bf16 %v357
    %v966 = vunpack.c.l.s8.bf16 %v358
    %v967 = vunpack.c.l.s8.bf16 %v359
    %v968 = vunpack.c.l.s8.bf16 %v360
    %v969 = vunpack.c.l.s8.bf16 %v361
    %v970 = vunpack.c.l.s8.bf16 %v362
    %v971 = vunpack.c.l.s8.bf16 %v363
    %v972 = vunpack.c.l.s8.bf16 %v364
    %v973 = vunpack.c.l.s8.bf16 %v365
    %v974 = vunpack.c.l.s8.bf16 %v366
    %v975 = vunpack.c.l.s8.bf16 %v367
    %v976 = vunpack.c.l.s8.bf16 %v368
    %v977 = vunpack.c.l.s8.bf16 %v369
    %v978 = vunpack.c.l.s8.bf16 %v370
    %v979 = vunpack.c.l.s8.bf16 %v371
    %v980 = vunpack.c.l.s8.bf16 %v372
    %v981 = vunpack.c.h.s8.bf16 %v357
    %v982 = vunpack.c.h.s8.bf16 %v358
    %v983 = vunpack.c.h.s8.bf16 %v359
    %v984 = vunpack.c.h.s8.bf16 %v360
    %v985 = vunpack.c.h.s8.bf16 %v361
    %v986 = vunpack.c.h.s8.bf16 %v362
    %v987 = vunpack.c.h.s8.bf16 %v363
    %v988 = vunpack.c.h.s8.bf16 %v364
    %v989 = vunpack.c.h.s8.bf16 %v365
    %v990 = vunpack.c.h.s8.bf16 %v366
    %v991 = vunpack.c.h.s8.bf16 %v367
    %v992 = vunpack.c.h.s8.bf16 %v368
    %v993 = vunpack.c.h.s8.bf16 %v369
    %v994 = vunpack.c.h.s8.bf16 %v370
    %v995 = vunpack.c.h.s8.bf16 %v371
    %v996 = vunpack.c.h.s8.bf16 %v372
    %v997 = vunpack.c.l.s8.bf16 %v373
    %v998 = vunpack.c.l.s8.bf16 %v374
    %v999 = vunpack.c.l.s8.bf16 %v375
    %v1000 = vunpack.c.l.s8.bf16 %v376
    %v1001 = vunpack.c.l.s8.bf16 %v377
    %v1002 = vunpack.c.l.s8.bf16 %v378
    %v1003 = vunpack.c.l.s8.bf16 %v379
    %v1004 = vunpack.c.l.s8.bf16 %v380
    %v1005 = vunpack.c.l.s8.bf16 %v381
    %v1006 = vunpack.c.l.s8.bf16 %v382
    %v1007 = vunpack.c.l.s8.bf16 %v383
    %v1008 = vunpack.c.l.s8.bf16 %v384
    %v1009 = vunpack.c.l.s8.bf16 %v385
    %v1010 = vunpack.c.l.s8.bf16 %v386
    %v1011 = vunpack.c.l.s8.bf16 %v387
    %v1012 = vunpack.c.l.s8.bf16 %v388
    %v1013 = vunpack.c.h.s8.bf16 %v373
    %v1014 = vunpack.c.h.s8.bf16 %v374
    %v1015 = vunpack.c.h.s8.bf16 %v375
    %v1016 = vunpack.c.h.s8.bf16 %v376
    %v1017 = vunpack.c.h.s8.bf16 %v377
    %v1018 = vunpack.c.h.s8.bf16 %v378
    %v1019 = vunpack.c.h.s8.bf16 %v379
    %v1020 = vunpack.c.h.s8.bf16 %v380
    %v1021 = vunpack.c.h.s8.bf16 %v381
    %v1022 = vunpack.c.h.s8.bf16 %v382
    %v1023 = vunpack.c.h.s8.bf16 %v383
    %v1024 = vunpack.c.h.s8.bf16 %v384
    %v1025 = vunpack.c.h.s8.bf16 %v385
    %v1026 = vunpack.c.h.s8.bf16 %v386
    %v1027 = vunpack.c.h.s8.bf16 %v387
    %v1028 = vunpack.c.h.s8.bf16 %v388
    %v1029 = vunpack.c.l.s8.bf16 %v389
    %v1030 = vunpack.c.l.s8.bf16 %v390
    %v1031 = vunpack.c.l.s8.bf16 %v391
    %v1032 = vunpack.c.l.s8.bf16 %v392
    %v1033 = vunpack.c.l.s8.bf16 %v393
    %v1034 = vunpack.c.l.s8.bf16 %v394
    %v1035 = vunpack.c.l.s8.bf16 %v395
    %v1036 = vunpack.c.l.s8.bf16 %v396
    %v1037 = vunpack.c.l.s8.bf16 %v397
    %v1038 = vunpack.c.l.s8.bf16 %v398
    %v1039 = vunpack.c.l.s8.bf16 %v399
    %v1040 = vunpack.c.l.s8.bf16 %v400
    %v1041 = vunpack.c.l.s8.bf16 %v401
    %v1042 = vunpack.c.l.s8.bf16 %v402
    %v1043 = vunpack.c.l.s8.bf16 %v403
    %v1044 = vunpack.c.l.s8.bf16 %v404
    %v1045 = vunpack.c.h.s8.bf16 %v389
    %v1046 = vunpack.c.h.s8.bf16 %v390
    %v1047 = vunpack.c.h.s8.bf16 %v391
    %v1048 = vunpack.c.h.s8.bf16 %v392
    %v1049 = vunpack.c.h.s8.bf16 %v393
    %v1050 = vunpack.c.h.s8.bf16 %v394
    %v1051 = vunpack.c.h.s8.bf16 %v395
    %v1052 = vunpack.c.h.s8.bf16 %v396
    %v1053 = vunpack.c.h.s8.bf16 %v397
    %v1054 = vunpack.c.h.s8.bf16 %v398
    %v1055 = vunpack.c.h.s8.bf16 %v399
    %v1056 = vunpack.c.h.s8.bf16 %v400
    %v1057 = vunpack.c.h.s8.bf16 %v401
    %v1058 = vunpack.c.h.s8.bf16 %v402
    %v1059 = vunpack.c.h.s8.bf16 %v403
    %v1060 = vunpack.c.h.s8.bf16 %v404
    %v1061 = vunpack.c.l.s8.bf16 %v405
    %v1062 = vunpack.c.l.s8.bf16 %v406
    %v1063 = vunpack.c.l.s8.bf16 %v407
    %v1064 = vunpack.c.l.s8.bf16 %v408
    %v1065 = vunpack.c.l.s8.bf16 %v409
    %v1066 = vunpack.c.l.s8.bf16 %v410
    %v1067 = vunpack.c.l.s8.bf16 %v411
    %v1068 = vunpack.c.l.s8.bf16 %v412
    %v1069 = vunpack.c.l.s8.bf16 %v413
    %v1070 = vunpack.c.l.s8.bf16 %v414
    %v1071 = vunpack.c.l.s8.bf16 %v415
    %v1072 = vunpack.c.l.s8.bf16 %v416
    %v1073 = vunpack.c.l.s8.bf16 %v417
    %v1074 = vunpack.c.l.s8.bf16 %v418
    %v1075 = vunpack.c.l.s8.bf16 %v419
    %v1076 = vunpack.c.l.s8.bf16 %v420
    %v1077 = vunpack.c.h.s8.bf16 %v405
    %v1078 = vunpack.c.h.s8.bf16 %v406
    %v1079 = vunpack.c.h.s8.bf16 %v407
    %v1080 = vunpack.c.h.s8.bf16 %v408
    %v1081 = vunpack.c.h.s8.bf16 %v409
    %v1082 = vunpack.c.h.s8.bf16 %v410
    %v1083 = vunpack.c.h.s8.bf16 %v411
    %v1084 = vunpack.c.h.s8.bf16 %v412
    %v1085 = vunpack.c.h.s8.bf16 %v413
    %v1086 = vunpack.c.h.s8.bf16 %v414
    %v1087 = vunpack.c.h.s8.bf16 %v415
    %v1088 = vunpack.c.h.s8.bf16 %v416
    %v1089 = vunpack.c.h.s8.bf16 %v417
    %v1090 = vunpack.c.h.s8.bf16 %v418
    %v1091 = vunpack.c.h.s8.bf16 %v419
    %v1092 = vunpack.c.h.s8.bf16 %v420
    %v1093 = vunpack.c.l.s8.bf16 %v421
    %v1094 = vunpack.c.l.s8.bf16 %v422
    %v1095 = vunpack.c.l.s8.bf16 %v423
    %v1096 = vunpack.c.l.s8.bf16 %v424
    %v1097 = vunpack.c.l.s8.bf16 %v425
    %v1098 = vunpack.c.l.s8.bf16 %v426
    %v1099 = vunpack.c.l.s8.bf16 %v427
    %v1100 = vunpack.c.l.s8.bf16 %v428
    %v1101 = vunpack.c.l.s8.bf16 %v429
    %v1102 = vunpack.c.l.s8.bf16 %v430
    %v1103 = vunpack.c.l.s8.bf16 %v431
    %v1104 = vunpack.c.l.s8.bf16 %v432
    %v1105 = vunpack.c.l.s8.bf16 %v433
    %v1106 = vunpack.c.l.s8.bf16 %v434
    %v1107 = vunpack.c.l.s8.bf16 %v435
    %v1108 = vunpack.c.l.s8.bf16 %v436
    %v1109 = vunpack.c.h.s8.bf16 %v421
    %v1110 = vunpack.c.h.s8.bf16 %v422
    %v1111 = vunpack.c.h.s8.bf16 %v423
    %v1112 = vunpack.c.h.s8.bf16 %v424
    %v1113 = vunpack.c.h.s8.bf16 %v425
    %v1114 = vunpack.c.h.s8.bf16 %v426
    %v1115 = vunpack.c.h.s8.bf16 %v427
    %v1116 = vunpack.c.h.s8.bf16 %v428
    %v1117 = vunpack.c.h.s8.bf16 %v429
    %v1118 = vunpack.c.h.s8.bf16 %v430
    %v1119 = vunpack.c.h.s8.bf16 %v431
    %v1120 = vunpack.c.h.s8.bf16 %v432
    %v1121 = vunpack.c.h.s8.bf16 %v433
    %v1122 = vunpack.c.h.s8.bf16 %v434
    %v1123 = vunpack.c.h.s8.bf16 %v435
    %v1124 = vunpack.c.h.s8.bf16 %v436
    %v1125 = vunpack.c.l.s8.bf16 %v437
    %v1126 = vunpack.c.l.s8.bf16 %v438
    %v1127 = vunpack.c.l.s8.bf16 %v439
    %v1128 = vunpack.c.l.s8.bf16 %v440
    %v1129 = vunpack.c.l.s8.bf16 %v441
    %v1130 = vunpack.c.l.s8.bf16 %v442
    %v1131 = vunpack.c.l.s8.bf16 %v443
    %v1132 = vunpack.c.l.s8.bf16 %v444
    %v1133 = vunpack.c.l.s8.bf16 %v445
    %v1134 = vunpack.c.l.s8.bf16 %v446
    %v1135 = vunpack.c.l.s8.bf16 %v447
    %v1136 = vunpack.c.l.s8.bf16 %v448
    %v1137 = vunpack.c.l.s8.bf16 %v449
    %v1138 = vunpack.c.l.s8.bf16 %v450
    %v1139 = vunpack.c.l.s8.bf16 %v451
    %v1140 = vunpack.c.l.s8.bf16 %v452
    %v1141 = vunpack.c.h.s8.bf16 %v437
    %v1142 = vunpack.c.h.s8.bf16 %v438
    %v1143 = vunpack.c.h.s8.bf16 %v439
    %v1144 = vunpack.c.h.s8.bf16 %v440
    %v1145 = vunpack.c.h.s8.bf16 %v441
    %v1146 = vunpack.c.h.s8.bf16 %v442
    %v1147 = vunpack.c.h.s8.bf16 %v443
    %v1148 = vunpack.c.h.s8.bf16 %v444
    %v1149 = vunpack.c.h.s8.bf16 %v445
    %v1150 = vunpack.c.h.s8.bf16 %v446
    %v1151 = vunpack.c.h.s8.bf16 %v447
    %v1152 = vunpack.c.h.s8.bf16 %v448
    %v1153 = vunpack.c.h.s8.bf16 %v449
    %v1154 = vunpack.c.h.s8.bf16 %v450
    %v1155 = vunpack.c.h.s8.bf16 %v451
    %v1156 = vunpack.c.h.s8.bf16 %v452
    %v1157 = vunpack.c.l.s8.bf16 %v453
    %v1158 = vunpack.c.l.s8.bf16 %v454
    %v1159 = vunpack.c.l.s8.bf16 %v455
    %v1160 = vunpack.c.l.s8.bf16 %v456
    %v1161 = vunpack.c.l.s8.bf16 %v457
    %v1162 = vunpack.c.l.s8.bf16 %v458
    %v1163 = vunpack.c.l.s8.bf16 %v459
    %v1164 = vunpack.c.l.s8.bf16 %v460
    %v1165 = vunpack.c.l.s8.bf16 %v461
    %v1166 = vunpack.c.l.s8.bf16 %v462
    %v1167 = vunpack.c.l.s8.bf16 %v463
    %v1168 = vunpack.c.l.s8.bf16 %v464
    %v1169 = vunpack.c.l.s8.bf16 %v465
    %v1170 = vunpack.c.l.s8.bf16 %v466
    %v1171 = vunpack.c.l.s8.bf16 %v467
    %v1172 = vunpack.c.l.s8.bf16 %v468
    %v1173 = vunpack.c.h.s8.bf16 %v453
    %v1174 = vunpack.c.h.s8.bf16 %v454
    %v1175 = vunpack.c.h.s8.bf16 %v455
    %v1176 = vunpack.c.h.s8.bf16 %v456
    %v1177 = vunpack.c.h.s8.bf16 %v457
    %v1178 = vunpack.c.h.s8.bf16 %v458
    %v1179 = vunpack.c.h.s8.bf16 %v459
    %v1180 = vunpack.c.h.s8.bf16 %v460
    %v1181 = vunpack.c.h.s8.bf16 %v461
    %v1182 = vunpack.c.h.s8.bf16 %v462
    %v1183 = vunpack.c.h.s8.bf16 %v463
    %v1184 = vunpack.c.h.s8.bf16 %v464
    %v1185 = vunpack.c.h.s8.bf16 %v465
    %v1186 = vunpack.c.h.s8.bf16 %v466
    %v1187 = vunpack.c.h.s8.bf16 %v467
    %v1188 = vunpack.c.h.s8.bf16 %v468
    %v1189 = vunpack.c.l.s8.bf16 %v469
    %v1190 = vunpack.c.l.s8.bf16 %v470
    %v1191 = vunpack.c.l.s8.bf16 %v471
    %v1192 = vunpack.c.l.s8.bf16 %v472
    %v1193 = vunpack.c.l.s8.bf16 %v473
    %v1194 = vunpack.c.l.s8.bf16 %v474
    %v1195 = vunpack.c.l.s8.bf16 %v475
    %v1196 = vunpack.c.l.s8.bf16 %v476
    %v1197 = vunpack.c.l.s8.bf16 %v477
    %v1198 = vunpack.c.l.s8.bf16 %v478
    %v1199 = vunpack.c.l.s8.bf16 %v479
    %v1200 = vunpack.c.l.s8.bf16 %v480
    %v1201 = vunpack.c.l.s8.bf16 %v481
    %v1202 = vunpack.c.l.s8.bf16 %v482
    %v1203 = vunpack.c.l.s8.bf16 %v483
    %v1204 = vunpack.c.l.s8.bf16 %v484
    %v1205 = vunpack.c.h.s8.bf16 %v469
    %v1206 = vunpack.c.h.s8.bf16 %v470
    %v1207 = vunpack.c.h.s8.bf16 %v471
    %v1208 = vunpack.c.h.s8.bf16 %v472
    %v1209 = vunpack.c.h.s8.bf16 %v473
    %v1210 = vunpack.c.h.s8.bf16 %v474
    %v1211 = vunpack.c.h.s8.bf16 %v475
    %v1212 = vunpack.c.h.s8.bf16 %v476
    %v1213 = vunpack.c.h.s8.bf16 %v477
    %v1214 = vunpack.c.h.s8.bf16 %v478
    %v1215 = vunpack.c.h.s8.bf16 %v479
    %v1216 = vunpack.c.h.s8.bf16 %v480
    %v1217 = vunpack.c.h.s8.bf16 %v481
    %v1218 = vunpack.c.h.s8.bf16 %v482
    %v1219 = vunpack.c.h.s8.bf16 %v483
    %v1220 = vunpack.c.h.s8.bf16 %v484
    %v1221 = vunpack.c.l.s8.bf16 %v485
    %v1222 = vunpack.c.l.s8.bf16 %v486
    %v1223 = vunpack.c.l.s8.bf16 %v487
    %v1224 = vunpack.c.l.s8.bf16 %v488
    %v1225 = vunpack.c.l.s8.bf16 %v489
    %v1226 = vunpack.c.l.s8.bf16 %v490
    %v1227 = vunpack.c.l.s8.bf16 %v491
    %v1228 = vunpack.c.l.s8.bf16 %v492
    %v1229 = vunpack.c.l.s8.bf16 %v493
    %v1230 = vunpack.c.l.s8.bf16 %v494
    %v1231 = vunpack.c.l.s8.bf16 %v495
    %v1232 = vunpack.c.l.s8.bf16 %v496
    %v1233 = vunpack.c.l.s8.bf16 %v497
    %v1234 = vunpack.c.l.s8.bf16 %v498
    %v1235 = vunpack.c.l.s8.bf16 %v499
    %v1236 = vunpack.c.l.s8.bf16 %v500
    %v1237 = vunpack.c.h.s8.bf16 %v485
    %v1238 = vunpack.c.h.s8.bf16 %v486
    %v1239 = vunpack.c.h.s8.bf16 %v487
    %v1240 = vunpack.c.h.s8.bf16 %v488
    %v1241 = vunpack.c.h.s8.bf16 %v489
    %v1242 = vunpack.c.h.s8.bf16 %v490
    %v1243 = vunpack.c.h.s8.bf16 %v491
    %v1244 = vunpack.c.h.s8.bf16 %v492
    %v1245 = vunpack.c.h.s8.bf16 %v493
    %v1246 = vunpack.c.h.s8.bf16 %v494
    %v1247 = vunpack.c.h.s8.bf16 %v495
    %v1248 = vunpack.c.h.s8.bf16 %v496
    %v1249 = vunpack.c.h.s8.bf16 %v497
    %v1250 = vunpack.c.h.s8.bf16 %v498
    %v1251 = vunpack.c.h.s8.bf16 %v499
    %v1252 = vunpack.c.h.s8.bf16 %v500
    %v1253 = vunpack.c.l.s8.bf16 %v501
    %v1254 = vunpack.c.l.s8.bf16 %v502
    %v1255 = vunpack.c.l.s8.bf16 %v503
    %v1256 = vunpack.c.l.s8.bf16 %v504
    %v1257 = vunpack.c.l.s8.bf16 %v505
    %v1258 = vunpack.c.l.s8.bf16 %v506
    %v1259 = vunpack.c.l.s8.bf16 %v507
    %v1260 = vunpack.c.l.s8.bf16 %v508
    %v1261 = vunpack.c.l.s8.bf16 %v509
    %v1262 = vunpack.c.l.s8.bf16 %v510
    %v1263 = vunpack.c.l.s8.bf16 %v511
    %v1264 = vunpack.c.l.s8.bf16 %v512
    %v1265 = vunpack.c.l.s8.bf16 %v513
    %v1266 = vunpack.c.l.s8.bf16 %v514
    %v1267 = vunpack.c.l.s8.bf16 %v515
    %v1268 = vunpack.c.l.s8.bf16 %v516
    %v1269 = vunpack.c.h.s8.bf16 %v501
    %v1270 = vunpack.c.h.s8.bf16 %v502
    %v1271 = vunpack.c.h.s8.bf16 %v503
    %v1272 = vunpack.c.h.s8.bf16 %v504
    %v1273 = vunpack.c.h.s8.bf16 %v505
    %v1274 = vunpack.c.h.s8.bf16 %v506
    %v1275 = vunpack.c.h.s8.bf16 %v507
    %v1276 = vunpack.c.h.s8.bf16 %v508
    %v1277 = vunpack.c.h.s8.bf16 %v509
    %v1278 = vunpack.c.h.s8.bf16 %v510
    %v1279 = vunpack.c.h.s8.bf16 %v511
    %v1280 = vunpack.c.h.s8.bf16 %v512
    %v1281 = vunpack.c.h.s8.bf16 %v513
    %v1282 = vunpack.c.h.s8.bf16 %v514
    %v1283 = vunpack.c.h.s8.bf16 %v515
    %v1284 = vunpack.c.h.s8.bf16 %v516
    %v1285 = vunpack.c.l.s8.bf16 %v517
    %v1286 = vunpack.c.l.s8.bf16 %v518
    %v1287 = vunpack.c.l.s8.bf16 %v519
    %v1288 = vunpack.c.l.s8.bf16 %v520
    %v1289 = vunpack.c.l.s8.bf16 %v521
    %v1290 = vunpack.c.l.s8.bf16 %v522
    %v1291 = vunpack.c.l.s8.bf16 %v523
    %v1292 = vunpack.c.l.s8.bf16 %v524
    %v1293 = vunpack.c.l.s8.bf16 %v525
    %v1294 = vunpack.c.l.s8.bf16 %v526
    %v1295 = vunpack.c.l.s8.bf16 %v527
    %v1296 = vunpack.c.l.s8.bf16 %v528
    %v1297 = vunpack.c.l.s8.bf16 %v529
    %v1298 = vunpack.c.l.s8.bf16 %v530
    %v1299 = vunpack.c.l.s8.bf16 %v531
    %v1300 = vunpack.c.l.s8.bf16 %v532
    %v1301 = vunpack.c.h.s8.bf16 %v517
    %v1302 = vunpack.c.h.s8.bf16 %v518
    %v1303 = vunpack.c.h.s8.bf16 %v519
    %v1304 = vunpack.c.h.s8.bf16 %v520
    %v1305 = vunpack.c.h.s8.bf16 %v521
    %v1306 = vunpack.c.h.s8.bf16 %v522
    %v1307 = vunpack.c.h.s8.bf16 %v523
    %v1308 = vunpack.c.h.s8.bf16 %v524
    %v1309 = vunpack.c.h.s8.bf16 %v525
    %v1310 = vunpack.c.h.s8.bf16 %v526
    %v1311 = vunpack.c.h.s8.bf16 %v527
    %v1312 = vunpack.c.h.s8.bf16 %v528
    %v1313 = vunpack.c.h.s8.bf16 %v529
    %v1314 = vunpack.c.h.s8.bf16 %v530
    %v1315 = vunpack.c.h.s8.bf16 %v531
    %v1316 = vunpack.c.h.s8.bf16 %v532
    %v1317 = vunpack.c.l.s8.bf16 %v533
    %v1318 = vunpack.c.l.s8.bf16 %v534
    %v1319 = vunpack.c.l.s8.bf16 %v535
    %v1320 = vunpack.c.l.s8.bf16 %v536
    %v1321 = vunpack.c.l.s8.bf16 %v537
    %v1322 = vunpack.c.l.s8.bf16 %v538
    %v1323 = vunpack.c.l.s8.bf16 %v539
    %v1324 = vunpack.c.l.s8.bf16 %v540
    %v1325 = vunpack.c.l.s8.bf16 %v541
    %v1326 = vunpack.c.l.s8.bf16 %v542
    %v1327 = vunpack.c.l.s8.bf16 %v543
    %v1328 = vunpack.c.l.s8.bf16 %v544
    %v1329 = vunpack.c.l.s8.bf16 %v545
    %v1330 = vunpack.c.l.s8.bf16 %v546
    %v1331 = vunpack.c.l.s8.bf16 %v547
    %v1332 = vunpack.c.l.s8.bf16 %v548
    %v1333 = vunpack.c.h.s8.bf16 %v533
    %v1334 = vunpack.c.h.s8.bf16 %v534
    %v1335 = vunpack.c.h.s8.bf16 %v535
    %v1336 = vunpack.c.h.s8.bf16 %v536
    %v1337 = vunpack.c.h.s8.bf16 %v537
    %v1338 = vunpack.c.h.s8.bf16 %v538
    %v1339 = vunpack.c.h.s8.bf16 %v539
    %v1340 = vunpack.c.h.s8.bf16 %v540
    %v1341 = vunpack.c.h.s8.bf16 %v541
    %v1342 = vunpack.c.h.s8.bf16 %v542
    %v1343 = vunpack.c.h.s8.bf16 %v543
    %v1344 = vunpack.c.h.s8.bf16 %v544
    %v1345 = vunpack.c.h.s8.bf16 %v545
    %v1346 = vunpack.c.h.s8.bf16 %v546
    %v1347 = vunpack.c.h.s8.bf16 %v547
    %v1348 = vunpack.c.h.s8.bf16 %v548
    %v1349 = vunpack.c.l.s8.bf16 %v549
    %v1350 = vunpack.c.l.s8.bf16 %v550
    %v1351 = vunpack.c.l.s8.bf16 %v551
    %v1352 = vunpack.c.l.s8.bf16 %v552
    %v1353 = vunpack.c.l.s8.bf16 %v553
    %v1354 = vunpack.c.l.s8.bf16 %v554
    %v1355 = vunpack.c.l.s8.bf16 %v555
    %v1356 = vunpack.c.l.s8.bf16 %v556
    %v1357 = vunpack.c.l.s8.bf16 %v557
    %v1358 = vunpack.c.l.s8.bf16 %v558
    %v1359 = vunpack.c.l.s8.bf16 %v559
    %v1360 = vunpack.c.l.s8.bf16 %v560
    %v1361 = vunpack.c.l.s8.bf16 %v561
    %v1362 = vunpack.c.l.s8.bf16 %v562
    %v1363 = vunpack.c.l.s8.bf16 %v563
    %v1364 = vunpack.c.l.s8.bf16 %v564
    %v1365 = vunpack.c.h.s8.bf16 %v549
    %v1366 = vunpack.c.h.s8.bf16 %v550
    %v1367 = vunpack.c.h.s8.bf16 %v551
    %v1368 = vunpack.c.h.s8.bf16 %v552
    %v1369 = vunpack.c.h.s8.bf16 %v553
    %v1370 = vunpack.c.h.s8.bf16 %v554
    %v1371 = vunpack.c.h.s8.bf16 %v555
    %v1372 = vunpack.c.h.s8.bf16 %v556
    %v1373 = vunpack.c.h.s8.bf16 %v557
    %v1374 = vunpack.c.h.s8.bf16 %v558
    %v1375 = vunpack.c.h.s8.bf16 %v559
    %v1376 = vunpack.c.h.s8.bf16 %v560
    %v1377 = vunpack.c.h.s8.bf16 %v561
    %v1378 = vunpack.c.h.s8.bf16 %v562
    %v1379 = vunpack.c.h.s8.bf16 %v563
    %v1380 = vunpack.c.h.s8.bf16 %v564
    %v1381 = vunpack.c.l.s8.bf16 %v565
    %v1382 = vunpack.c.l.s8.bf16 %v566
    %v1383 = vunpack.c.l.s8.bf16 %v567
    %v1384 = vunpack.c.l.s8.bf16 %v568
    %v1385 = vunpack.c.l.s8.bf16 %v569
    %v1386 = vunpack.c.l.s8.bf16 %v570
    %v1387 = vunpack.c.l.s8.bf16 %v571
    %v1388 = vunpack.c.l.s8.bf16 %v572
    %v1389 = vunpack.c.l.s8.bf16 %v573
    %v1390 = vunpack.c.l.s8.bf16 %v574
    %v1391 = vunpack.c.l.s8.bf16 %v575
    %v1392 = vunpack.c.l.s8.bf16 %v576
    %v1393 = vunpack.c.l.s8.bf16 %v577
    %v1394 = vunpack.c.l.s8.bf16 %v578
    %v1395 = vunpack.c.l.s8.bf16 %v579
    %v1396 = vunpack.c.l.s8.bf16 %v580
    %v1397 = vunpack.c.h.s8.bf16 %v565
    %v1398 = vunpack.c.h.s8.bf16 %v566
    %v1399 = vunpack.c.h.s8.bf16 %v567
    %v1400 = vunpack.c.h.s8.bf16 %v568
    %v1401 = vunpack.c.h.s8.bf16 %v569
    %v1402 = vunpack.c.h.s8.bf16 %v570
    %v1403 = vunpack.c.h.s8.bf16 %v571
    %v1404 = vunpack.c.h.s8.bf16 %v572
    %v1405 = vunpack.c.h.s8.bf16 %v573
    %v1406 = vunpack.c.h.s8.bf16 %v574
    %v1407 = vunpack.c.h.s8.bf16 %v575
    %v1408 = vunpack.c.h.s8.bf16 %v576
    %v1409 = vunpack.c.h.s8.bf16 %v577
    %v1410 = vunpack.c.h.s8.bf16 %v578
    %v1411 = vunpack.c.h.s8.bf16 %v579
    %v1412 = vunpack.c.h.s8.bf16 %v580
    %v1413 = vunpack.c.l.s8.bf16 %v581
    %v1414 = vunpack.c.l.s8.bf16 %v582
    %v1415 = vunpack.c.l.s8.bf16 %v583
    %v1416 = vunpack.c.l.s8.bf16 %v584
    %v1417 = vunpack.c.l.s8.bf16 %v585
    %v1418 = vunpack.c.l.s8.bf16 %v586
    %v1419 = vunpack.c.l.s8.bf16 %v587
    %v1420 = vunpack.c.l.s8.bf16 %v588
    %v1421 = vunpack.c.l.s8.bf16 %v589
    %v1422 = vunpack.c.l.s8.bf16 %v590
    %v1423 = vunpack.c.l.s8.bf16 %v591
    %v1424 = vunpack.c.l.s8.bf16 %v592
    %v1425 = vunpack.c.l.s8.bf16 %v593
    %v1426 = vunpack.c.l.s8.bf16 %v594
    %v1427 = vunpack.c.l.s8.bf16 %v595
    %v1428 = vunpack.c.l.s8.bf16 %v596
    %v1429 = vunpack.c.h.s8.bf16 %v581
    %v1430 = vunpack.c.h.s8.bf16 %v582
    %v1431 = vunpack.c.h.s8.bf16 %v583
    %v1432 = vunpack.c.h.s8.bf16 %v584
    %v1433 = vunpack.c.h.s8.bf16 %v585
    %v1434 = vunpack.c.h.s8.bf16 %v586
    %v1435 = vunpack.c.h.s8.bf16 %v587
    %v1436 = vunpack.c.h.s8.bf16 %v588
    %v1437 = vunpack.c.h.s8.bf16 %v589
    %v1438 = vunpack.c.h.s8.bf16 %v590
    %v1439 = vunpack.c.h.s8.bf16 %v591
    %v1440 = vunpack.c.h.s8.bf16 %v592
    %v1441 = vunpack.c.h.s8.bf16 %v593
    %v1442 = vunpack.c.h.s8.bf16 %v594
    %v1443 = vunpack.c.h.s8.bf16 %v595
    %v1444 = vunpack.c.h.s8.bf16 %v596
    %v1445 = vunpack.c.l.s8.bf16 %v597
    %v1446 = vunpack.c.l.s8.bf16 %v598
    %v1447 = vunpack.c.l.s8.bf16 %v599
    %v1448 = vunpack.c.l.s8.bf16 %v600
    %v1449 = vunpack.c.l.s8.bf16 %v601
    %v1450 = vunpack.c.l.s8.bf16 %v602
    %v1451 = vunpack.c.l.s8.bf16 %v603
    %v1452 = vunpack.c.l.s8.bf16 %v604
    %v1453 = vunpack.c.l.s8.bf16 %v605
    %v1454 = vunpack.c.l.s8.bf16 %v606
    %v1455 = vunpack.c.l.s8.bf16 %v607
    %v1456 = vunpack.c.l.s8.bf16 %v608
    %v1457 = vunpack.c.l.s8.bf16 %v609
    %v1458 = vunpack.c.l.s8.bf16 %v610
    %v1459 = vunpack.c.l.s8.bf16 %v611
    %v1460 = vunpack.c.l.s8.bf16 %v612
    %v1461 = vunpack.c.h.s8.bf16 %v597
    %v1462 = vunpack.c.h.s8.bf16 %v598
    %v1463 = vunpack.c.h.s8.bf16 %v599
    %v1464 = vunpack.c.h.s8.bf16 %v600
    %v1465 = vunpack.c.h.s8.bf16 %v601
    %v1466 = vunpack.c.h.s8.bf16 %v602
    %v1467 = vunpack.c.h.s8.bf16 %v603
    %v1468 = vunpack.c.h.s8.bf16 %v604
    %v1469 = vunpack.c.h.s8.bf16 %v605
    %v1470 = vunpack.c.h.s8.bf16 %v606
    %v1471 = vunpack.c.h.s8.bf16 %v607
    %v1472 = vunpack.c.h.s8.bf16 %v608
    %v1473 = vunpack.c.h.s8.bf16 %v609
    %v1474 = vunpack.c.h.s8.bf16 %v610
    %v1475 = vunpack.c.h.s8.bf16 %v611
    %v1476 = vunpack.c.h.s8.bf16 %v612
    %v1477 = vunpack.c.l.s8.bf16 %v613
    %v1478 = vunpack.c.l.s8.bf16 %v614
    %v1479 = vunpack.c.l.s8.bf16 %v615
    %v1480 = vunpack.c.l.s8.bf16 %v616
    %v1481 = vunpack.c.l.s8.bf16 %v617
    %v1482 = vunpack.c.l.s8.bf16 %v618
    %v1483 = vunpack.c.l.s8.bf16 %v619
    %v1484 = vunpack.c.l.s8.bf16 %v620
    %v1485 = vunpack.c.l.s8.bf16 %v621
    %v1486 = vunpack.c.l.s8.bf16 %v622
    %v1487 = vunpack.c.l.s8.bf16 %v623
    %v1488 = vunpack.c.l.s8.bf16 %v624
    %v1489 = vunpack.c.l.s8.bf16 %v625
    %v1490 = vunpack.c.l.s8.bf16 %v626
    %v1491 = vunpack.c.l.s8.bf16 %v627
    %v1492 = vunpack.c.l.s8.bf16 %v628
    %v1493 = vunpack.c.h.s8.bf16 %v613
    %v1494 = vunpack.c.h.s8.bf16 %v614
    %v1495 = vunpack.c.h.s8.bf16 %v615
    %v1496 = vunpack.c.h.s8.bf16 %v616
    %v1497 = vunpack.c.h.s8.bf16 %v617
    %v1498 = vunpack.c.h.s8.bf16 %v618
    %v1499 = vunpack.c.h.s8.bf16 %v619
    %v1500 = vunpack.c.h.s8.bf16 %v620
    %v1501 = vunpack.c.h.s8.bf16 %v621
    %v1502 = vunpack.c.h.s8.bf16 %v622
    %v1503 = vunpack.c.h.s8.bf16 %v623
    %v1504 = vunpack.c.h.s8.bf16 %v624
    %v1505 = vunpack.c.h.s8.bf16 %v625
    %v1506 = vunpack.c.h.s8.bf16 %v626
    %v1507 = vunpack.c.h.s8.bf16 %v627
    %v1508 = vunpack.c.h.s8.bf16 %v628
    %v1509 = vunpack.c.l.s8.bf16 %v629
    %v1510 = vunpack.c.l.s8.bf16 %v630
    %v1511 = vunpack.c.l.s8.bf16 %v631
    %v1512 = vunpack.c.l.s8.bf16 %v632
    %v1513 = vunpack.c.l.s8.bf16 %v633
    %v1514 = vunpack.c.l.s8.bf16 %v634
    %v1515 = vunpack.c.l.s8.bf16 %v635
    %v1516 = vunpack.c.l.s8.bf16 %v636
    %v1517 = vunpack.c.l.s8.bf16 %v637
    %v1518 = vunpack.c.l.s8.bf16 %v638
    %v1519 = vunpack.c.l.s8.bf16 %v639
    %v1520 = vunpack.c.l.s8.bf16 %v640
    %v1521 = vunpack.c.l.s8.bf16 %v641
    %v1522 = vunpack.c.l.s8.bf16 %v642
    %v1523 = vunpack.c.l.s8.bf16 %v643
    %v1524 = vunpack.c.l.s8.bf16 %v644
    %v1525 = vunpack.c.h.s8.bf16 %v629
    %v1526 = vunpack.c.h.s8.bf16 %v630
    %v1527 = vunpack.c.h.s8.bf16 %v631
    %v1528 = vunpack.c.h.s8.bf16 %v632
    %v1529 = vunpack.c.h.s8.bf16 %v633
    %v1530 = vunpack.c.h.s8.bf16 %v634
    %v1531 = vunpack.c.h.s8.bf16 %v635
    %v1532 = vunpack.c.h.s8.bf16 %v636
    %v1533 = vunpack.c.h.s8.bf16 %v637
    %v1534 = vunpack.c.h.s8.bf16 %v638
    %v1535 = vunpack.c.h.s8.bf16 %v639
    %v1536 = vunpack.c.h.s8.bf16 %v640
    %v1537 = vunpack.c.h.s8.bf16 %v641
    %v1538 = vunpack.c.h.s8.bf16 %v642
    %v1539 = vunpack.c.h.s8.bf16 %v643
    %v1540 = vunpack.c.h.s8.bf16 %v644
    %v1545 = vunpack.c.l.b16 %v193
    %v1546 = vunpack.c.h.b16 %v193
    %v1547 = vunpack.c.l.b16 %v194
    %v1548 = vunpack.c.h.b16 %v194
    %v1549 = vunpack.c.l.b16 %v195
    %v1550 = vunpack.c.h.b16 %v195
    %v1551 = vunpack.c.l.b16 %v196
    %v1552 = vpack.c.b16 %v1545, %v1545
    %v1553 = vpack.c.b16 %v1546, %v1546
    %v1554 = vpack.c.b16 %v1547, %v1547
    %v1555 = vpack.c.b16 %v1548, %v1548
    %v1556 = vpack.c.b16 %v1549, %v1549
    %v1557 = vpack.c.b16 %v1550, %v1550
    %v1558 = vpack.c.b16 %v1551, %v1551
    %1566 = vmatprep.subr.bf16.mxu0 %v646
    %1567 = vmatpush1.bf16.msra.mxu0 %v645
    %1568 = vmatprep.subr.bf16.mxu0 %v662
    %1569 = vmatpush1.bf16.msra.mxu0 %v661
    %1570 = vmatprep.subr.bf16.mxu0 %v678
    %1571 = vmatpush1.bf16.msra.mxu0 %v677
    %1572 = vmatprep.subr.bf16.mxu0 %v694
    %1573 = vmatpush1.bf16.msra.mxu0 %v693
    %1574 = vmatprep.subr.bf16.mxu0 %v710
    %1575 = vmatpush1.bf16.msra.mxu0 %v709
    %1576 = vmatprep.subr.bf16.mxu0 %v726
    %1577 = vmatpush1.bf16.msra.mxu0 %v725
    %1578 = vmatprep.subr.bf16.mxu0 %v742
    %1579 = vmatpush1.bf16.msra.mxu0 %v741
    %1580 = vmatprep.subr.bf16.mxu0 %v758
    %1581 = vmatpush1.bf16.msra.mxu0 %v757
    %1582 = vmatprep.subr.bf16.mxu0 %v774
    %1583 = vmatpush1.bf16.msra.mxu0 %v773
    %1584 = vmatprep.subr.bf16.mxu0 %v790
    %1585 = vmatpush1.bf16.msra.mxu0 %v789
    %1586 = vmatprep.subr.bf16.mxu0 %v806
    %1587 = vmatpush1.bf16.msra.mxu0 %v805
    %1588 = vmatprep.subr.bf16.mxu0 %v822
    %1589 = vmatpush1.bf16.msra.mxu0 %v821
    %1590 = vmatprep.subr.bf16.mxu0 %v838
    %1591 = vmatpush1.bf16.msra.mxu0 %v837
    %1592 = vmatprep.subr.bf16.mxu0 %v854
    %1593 = vmatpush1.bf16.msra.mxu0 %v853
    %1594 = vmatprep.subr.bf16.mxu0 %v870
    %1595 = vmatpush1.bf16.msra.mxu0 %v869
    %1596 = vmatprep.subr.bf16.mxu0 %v886
    %1597 = vmatpush1.bf16.msra.mxu0 %v885
    %1598 = vmatprep.mubr.bf16.mxu0 %v1553
    %1599 = vmatmul.mubr.bf16.gmra.mrb[0].mxu0 %v1552
    %v1600 = vpop.f32.mrb[0].mxu0
    %v1601 = vadd.f32 0.0, %v1600
    %v1602 = vpop.f32.mrb[0].mxu0
    %v1603 = vadd.f32 0.0, %v1602
    %v1604 = vpop.f32.mrb[0].mxu0
    %v1605 = vpop.f32.mrb[0].mxu0
    %1606 = vdwg.mxu0
    %1607 = vmatprep.subr.bf16.mxu0 %v902
    %1608 = vmatpush1.bf16.msra.mxu0 %v901
    %1609 = vmatprep.subr.bf16.mxu0 %v918
    %1610 = vmatpush1.bf16.msra.mxu0 %v917
    %1611 = vmatprep.subr.bf16.mxu0 %v934
    %1612 = vmatpush1.bf16.msra.mxu0 %v933
    %1613 = vmatprep.subr.bf16.mxu0 %v950
    %1614 = vmatpush1.bf16.msra.mxu0 %v949
    %1615 = vmatprep.subr.bf16.mxu0 %v966
    %1616 = vmatpush1.bf16.msra.mxu0 %v965
    %1617 = vmatprep.subr.bf16.mxu0 %v982
    %1618 = vmatpush1.bf16.msra.mxu0 %v981
    %1619 = vmatprep.subr.bf16.mxu0 %v998
    %1620 = vmatpush1.bf16.msra.mxu0 %v997
    %1621 = vmatprep.subr.bf16.mxu0 %v1014
    %1622 = vmatpush1.bf16.msra.mxu0 %v1013
    %1623 = vmatprep.subr.bf16.mxu0 %v1030
    %1624 = vmatpush1.bf16.msra.mxu0 %v1029
    %1625 = vmatprep.subr.bf16.mxu0 %v1046
    %1626 = vmatpush1.bf16.msra.mxu0 %v1045
    %1627 = vmatprep.subr.bf16.mxu0 %v1062
    %1628 = vmatpush1.bf16.msra.mxu0 %v1061
    %1629 = vmatprep.subr.bf16.mxu0 %v1078
    %1630 = vmatpush1.bf16.msra.mxu0 %v1077
    %1631 = vmatprep.subr.bf16.mxu0 %v1094
    %1632 = vmatpush1.bf16.msra.mxu0 %v1093
    %1633 = vmatprep.subr.bf16.mxu0 %v1110
    %1634 = vmatpush1.bf16.msra.mxu0 %v1109
    %1635 = vmatprep.subr.bf16.mxu0 %v1126
    %1636 = vmatpush1.bf16.msra.mxu0 %v1125
    %1637 = vmatprep.subr.bf16.mxu0 %v1142
    %1638 = vmatpush1.bf16.msra.mxu0 %v1141
    %1639 = vmatprep.mubr.bf16.mxu0 %v1555
    %1640 = vmatmul.mubr.bf16.gmra.mrb[0].mxu0 %v1554
    %v1641 = vpop.f32.mrb[0].mxu0
    %v1642 = vadd.f32 %v1601, %v1641
    %v1643 = vpop.f32.mrb[0].mxu0
    %v1644 = vadd.f32 %v1603, %v1643
    %v1645 = vpop.f32.mrb[0].mxu0
    %v1646 = vpop.f32.mrb[0].mxu0
    %1647 = vdwg.mxu0
    %1648 = vmatprep.subr.bf16.mxu0 %v1158
    %1649 = vmatpush1.bf16.msra.mxu0 %v1157
    %1650 = vmatprep.subr.bf16.mxu0 %v1174
    %1651 = vmatpush1.bf16.msra.mxu0 %v1173
    %1652 = vmatprep.subr.bf16.mxu0 %v1190
    %1653 = vmatpush1.bf16.msra.mxu0 %v1189
    %1654 = vmatprep.subr.bf16.mxu0 %v1206
    %1655 = vmatpush1.bf16.msra.mxu0 %v1205
    %1656 = vmatprep.subr.bf16.mxu0 %v1222
    %1657 = vmatpush1.bf16.msra.mxu0 %v1221
    %1658 = vmatprep.subr.bf16.mxu0 %v1238
    %1659 = vmatpush1.bf16.msra.mxu0 %v1237
    %1660 = vmatprep.subr.bf16.mxu0 %v1254
    %1661 = vmatpush1.bf16.msra.mxu0 %v1253
    %1662 = vmatprep.subr.bf16.mxu0 %v1270
    %1663 = vmatpush1.bf16.msra.mxu0 %v1269
    %1664 = vmatprep.subr.bf16.mxu0 %v1286
    %1665 = vmatpush1.bf16.msra.mxu0 %v1285
    %1666 = vmatprep.subr.bf16.mxu0 %v1302
    %1667 = vmatpush1.bf16.msra.mxu0 %v1301
    %1668 = vmatprep.subr.bf16.mxu0 %v1318
    %1669 = vmatpush1.bf16.msra.mxu0 %v1317
    %1670 = vmatprep.subr.bf16.mxu0 %v1334
    %1671 = vmatpush1.bf16.msra.mxu0 %v1333
    %1672 = vmatprep.subr.bf16.mxu0 %v1350
    %1673 = vmatpush1.bf16.msra.mxu0 %v1349
    %1674 = vmatprep.subr.bf16.mxu0 %v1366
    %1675 = vmatpush1.bf16.msra.mxu0 %v1365
    %1676 = vmatprep.subr.bf16.mxu0 %v1382
    %1677 = vmatpush1.bf16.msra.mxu0 %v1381
    %1678 = vmatprep.subr.bf16.mxu0 %v1398
    %1679 = vmatpush1.bf16.msra.mxu0 %v1397
    %1680 = vmatprep.mubr.bf16.mxu0 %v1557
    %1681 = vmatmul.mubr.bf16.gmra.mrb[0].mxu0 %v1556
    %v1682 = vpop.f32.mrb[0].mxu0
    %v1683 = vadd.f32 %v1642, %v1682
    %v1684 = vpop.f32.mrb[0].mxu0
    %v1685 = vadd.f32 %v1644, %v1684
    %v1686 = vpop.f32.mrb[0].mxu0
    %v1687 = vpop.f32.mrb[0].mxu0
    %1688 = vdwg.mxu0
    %1689 = vmatprep.subr.bf16.mxu0 %v1414
    %1690 = vmatpush1.bf16.msra.mxu0 %v1413
    %1691 = vmatprep.subr.bf16.mxu0 %v1430
    %1692 = vmatpush1.bf16.msra.mxu0 %v1429
    %1693 = vmatprep.subr.bf16.mxu0 %v1446
    %1694 = vmatpush1.bf16.msra.mxu0 %v1445
    %1695 = vmatprep.subr.bf16.mxu0 %v1462
    %1696 = vmatpush1.bf16.msra.mxu0 %v1461
    %1697 = vmatprep.subr.bf16.mxu0 %v1478
    %1698 = vmatpush1.bf16.msra.mxu0 %v1477
    %1699 = vmatprep.subr.bf16.mxu0 %v1494
    %1700 = vmatpush1.bf16.msra.mxu0 %v1493
    %1701 = vmatprep.subr.bf16.mxu0 %v1510
    %1702 = vmatpush1.bf16.msra.mxu0 %v1509
    %1703 = vmatprep.subr.bf16.mxu0 %v1526
    %1704 = vmatpush1.bf16.msra.mxu0 %v1525
    %1705 = vmatprep.subr.bf16.mxu0 0
    %1706 = vmatpush1.bf16.msra.mxu0 0
    %1707 = vmatprep.subr.bf16.mxu0 0
    %1708 = vmatpush1.bf16.msra.mxu0 0
    %1709 = vmatprep.subr.bf16.mxu0 0
    %1710 = vmatpush1.bf16.msra.mxu0 0
    %1711 = vmatprep.subr.bf16.mxu0 0
    %1712 = vmatpush1.bf16.msra.mxu0 0
    %1713 = vmatprep.subr.bf16.mxu0 0
    %1714 = vmatpush1.bf16.msra.mxu0 0
    %1715 = vmatprep.subr.bf16.mxu0 0
    %1716 = vmatpush1.bf16.msra.mxu0 0
    %1717 = vmatprep.subr.bf16.mxu0 0
    %1718 = vmatpush1.bf16.msra.mxu0 0
    %1719 = vmatprep.subr.bf16.mxu0 0
    %1720 = vmatpush1.bf16.msra.mxu0 0
    %1721 = vmatprep.mubr.bf16.mxu0 0
    %1722 = vmatmul.mubr.bf16.gmra.mrb[0].mxu0 %v1558
    %v1723 = vpop.f32.mrb[0].mxu0
    %v1724 = vadd.f32 %v1683, %v1723
    %v1725 = vpop.f32.mrb[0].mxu0
    %v1726 = vadd.f32 %v1685, %v1725
    %v1727 = vpop.f32.mrb[0].mxu0
    %v1728 = vpop.f32.mrb[0].mxu0
    %1729 = vdwg.mxu0
    %1730 = vmatprep.subr.bf16.mxu0 %v648
    %1731 = vmatpush1.bf16.msra.mxu0 %v647
    %1732 = vmatprep.subr.bf16.mxu0 %v664
    %1733 = vmatpush1.bf16.msra.mxu0 %v663
    %1734 = vmatprep.subr.bf16.mxu0 %v680
    %1735 = vmatpush1.bf16.msra.mxu0 %v679
    %1736 = vmatprep.subr.bf16.mxu0 %v696
    %1737 = vmatpush1.bf16.msra.mxu0 %v695
    %1738 = vmatprep.subr.bf16.mxu0 %v712
    %1739 = vmatpush1.bf16.msra.mxu0 %v711
    %1740 = vmatprep.subr.bf16.mxu0 %v728
    %1741 = vmatpush1.bf16.msra.mxu0 %v727
    %1742 = vmatprep.subr.bf16.mxu0 %v744
    %1743 = vmatpush1.bf16.msra.mxu0 %v743
    %1744 = vmatprep.subr.bf16.mxu0 %v760
    %1745 = vmatpush1.bf16.msra.mxu0 %v759
    %1746 = vmatprep.subr.bf16.mxu0 %v776
    %1747 = vmatpush1.bf16.msra.mxu0 %v775
    %1748 = vmatprep.subr.bf16.mxu0 %v792
    %1749 = vmatpush1.bf16.msra.mxu0 %v791
    %1750 = vmatprep.subr.bf16.mxu0 %v808
    %1751 = vmatpush1.bf16.msra.mxu0 %v807
    %1752 = vmatprep.subr.bf16.mxu0 %v824
    %1753 = vmatpush1.bf16.msra.mxu0 %v823
    %1754 = vmatprep.subr.bf16.mxu0 %v840
    %1755 = vmatpush1.bf16.msra.mxu0 %v839
    %1756 = vmatprep.subr.bf16.mxu0 %v856
    %1757 = vmatpush1.bf16.msra.mxu0 %v855
    %1758 = vmatprep.subr.bf16.mxu0 %v872
    %1759 = vmatpush1.bf16.msra.mxu0 %v871
    %1760 = vmatprep.subr.bf16.mxu0 %v888
    %1761 = vmatpush1.bf16.msra.mxu0 %v887
    %1762 = vmatprep.mubr.bf16.mxu0 %v1553
    %1763 = vmatmul.mubr.bf16.gmra.mrb[0].mxu0 %v1552
    %v1764 = vpop.f32.mrb[0].mxu0
    %v1765 = vadd.f32 0.0, %v1764
    %v1766 = vpop.f32.mrb[0].mxu0
    %v1767 = vadd.f32 0.0, %v1766
    %v1768 = vpop.f32.mrb[0].mxu0
    %v1769 = vpop.f32.mrb[0].mxu0
    %1770 = vdwg.mxu0
    %1771 = vmatprep.subr.bf16.mxu0 %v904
    %1772 = vmatpush1.bf16.msra.mxu0 %v903
    %1773 = vmatprep.subr.bf16.mxu0 %v920
    %1774 = vmatpush1.bf16.msra.mxu0 %v919
    %1775 = vmatprep.subr.bf16.mxu0 %v936
    %1776 = vmatpush1.bf16.msra.mxu0 %v935
    %1777 = vmatprep.subr.bf16.mxu0 %v952
    %1778 = vmatpush1.bf16.msra.mxu0 %v951
    %1779 = vmatprep.subr.bf16.mxu0 %v968
    %1780 = vmatpush1.bf16.msra.mxu0 %v967
    %1781 = vmatprep.subr.bf16.mxu0 %v984
    %1782 = vmatpush1.bf16.msra.mxu0 %v983
    %1783 = vmatprep.subr.bf16.mxu0 %v1000
    %1784 = vmatpush1.bf16.msra.mxu0 %v999
    %1785 = vmatprep.subr.bf16.mxu0 %v1016
    %1786 = vmatpush1.bf16.msra.mxu0 %v1015
    %1787 = vmatprep.subr.bf16.mxu0 %v1032
    %1788 = vmatpush1.bf16.msra.mxu0 %v1031
    %1789 = vmatprep.subr.bf16.mxu0 %v1048
    %1790 = vmatpush1.bf16.msra.mxu0 %v1047
    %1791 = vmatprep.subr.bf16.mxu0 %v1064
    %1792 = vmatpush1.bf16.msra.mxu0 %v1063
    %1793 = vmatprep.subr.bf16.mxu0 %v1080
    %1794 = vmatpush1.bf16.msra.mxu0 %v1079
    %1795 = vmatprep.subr.bf16.mxu0 %v1096
    %1796 = vmatpush1.bf16.msra.mxu0 %v1095
    %1797 = vmatprep.subr.bf16.mxu0 %v1112
    %1798 = vmatpush1.bf16.msra.mxu0 %v1111
    %1799 = vmatprep.subr.bf16.mxu0 %v1128
    %1800 = vmatpush1.bf16.msra.mxu0 %v1127
    %1801 = vmatprep.subr.bf16.mxu0 %v1144
    %1802 = vmatpush1.bf16.msra.mxu0 %v1143
    %1803 = vmatprep.mubr.bf16.mxu0 %v1555
    %1804 = vmatmul.mubr.bf16.gmra.mrb[0].mxu0 %v1554
    %v1805 = vpop.f32.mrb[0].mxu0
    %v1806 = vadd.f32 %v1765, %v1805
    %v1807 = vpop.f32.mrb[0].mxu0
    %v1808 = vadd.f32 %v1767, %v1807
    %v1809 = vpop.f32.mrb[0].mxu0
    %v1810 = vpop.f32.mrb[0].mxu0
    %1811 = vdwg.mxu0
    %1812 = vmatprep.subr.bf16.mxu0 %v1160
    %1813 = vmatpush1.bf16.msra.mxu0 %v1159
    %1814 = vmatprep.subr.bf16.mxu0 %v1176
    %1815 = vmatpush1.bf16.msra.mxu0 %v1175
    %1816 = vmatprep.subr.bf16.mxu0 %v1192
    %1817 = vmatpush1.bf16.msra.mxu0 %v1191
    %1818 = vmatprep.subr.bf16.mxu0 %v1208
    %1819 = vmatpush1.bf16.msra.mxu0 %v1207
    %1820 = vmatprep.subr.bf16.mxu0 %v1224
    %1821 = vmatpush1.bf16.msra.mxu0 %v1223
    %1822 = vmatprep.subr.bf16.mxu0 %v1240
    %1823 = vmatpush1.bf16.msra.mxu0 %v1239
    %1824 = vmatprep.subr.bf16.mxu0 %v1256
    %1825 = vmatpush1.bf16.msra.mxu0 %v1255
    %1826 = vmatprep.subr.bf16.mxu0 %v1272
    %1827 = vmatpush1.bf16.msra.mxu0 %v1271
    %1828 = vmatprep.subr.bf16.mxu0 %v1288
    %1829 = vmatpush1.bf16.msra.mxu0 %v1287
    %1830 = vmatprep.subr.bf16.mxu0 %v1304
    %1831 = vmatpush1.bf16.msra.mxu0 %v1303
    %1832 = vmatprep.subr.bf16.mxu0 %v1320
    %1833 = vmatpush1.bf16.msra.mxu0 %v1319
    %1834 = vmatprep.subr.bf16.mxu0 %v1336
    %1835 = vmatpush1.bf16.msra.mxu0 %v1335
    %1836 = vmatprep.subr.bf16.mxu0 %v1352
    %1837 = vmatpush1.bf16.msra.mxu0 %v1351
    %1838 = vmatprep.subr.bf16.mxu0 %v1368
    %1839 = vmatpush1.bf16.msra.mxu0 %v1367
    %1840 = vmatprep.subr.bf16.mxu0 %v1384
    %1841 = vmatpush1.bf16.msra.mxu0 %v1383
    %1842 = vmatprep.subr.bf16.mxu0 %v1400
    %1843 = vmatpush1.bf16.msra.mxu0 %v1399
    %1844 = vmatprep.mubr.bf16.mxu0 %v1557
    %1845 = vmatmul.mubr.bf16.gmra.mrb[0].mxu0 %v1556
    %v1846 = vpop.f32.mrb[0].mxu0
    %v1847 = vadd.f32 %v1806, %v1846
    %v1848 = vpop.f32.mrb[0].mxu0
    %v1849 = vadd.f32 %v1808, %v1848
    %v1850 = vpop.f32.mrb[0].mxu0
    %v1851 = vpop.f32.mrb[0].mxu0
    %1852 = vdwg.mxu0
    %1853 = vmatprep.subr.bf16.mxu0 %v1416
    %1854 = vmatpush1.bf16.msra.mxu0 %v1415
    %1855 = vmatprep.subr.bf16.mxu0 %v1432
    %1856 = vmatpush1.bf16.msra.mxu0 %v1431
    %1857 = vmatprep.subr.bf16.mxu0 %v1448
    %1858 = vmatpush1.bf16.msra.mxu0 %v1447
    %1859 = vmatprep.subr.bf16.mxu0 %v1464
    %1860 = vmatpush1.bf16.msra.mxu0 %v1463
    %1861 = vmatprep.subr.bf16.mxu0 %v1480
    %1862 = vmatpush1.bf16.msra.mxu0 %v1479
    %1863 = vmatprep.subr.bf16.mxu0 %v1496
    %1864 = vmatpush1.bf16.msra.mxu0 %v1495
    %1865 = vmatprep.subr.bf16.mxu0 %v1512
    %1866 = vmatpush1.bf16.msra.mxu0 %v1511
    %1867 = vmatprep.subr.bf16.mxu0 %v1528
    %1868 = vmatpush1.bf16.msra.mxu0 %v1527
    %1869 = vmatprep.subr.bf16.mxu0 0
    %1870 = vmatpush1.bf16.msra.mxu0 0
    %1871 = vmatprep.subr.bf16.mxu0 0
    %1872 = vmatpush1.bf16.msra.mxu0 0
    %1873 = vmatprep.subr.bf16.mxu0 0
    %1874 = vmatpush1.bf16.msra.mxu0 0
    %1875 = vmatprep.subr.bf16.mxu0 0
    %1876 = vmatpush1.bf16.msra.mxu0 0
    %1877 = vmatprep.subr.bf16.mxu0 0
    %1878 = vmatpush1.bf16.msra.mxu0 0
    %1879 = vmatprep.subr.bf16.mxu0 0
    %1880 = vmatpush1.bf16.msra.mxu0 0
    %1881 = vmatprep.subr.bf16.mxu0 0
    %1882 = vmatpush1.bf16.msra.mxu0 0
    %1883 = vmatprep.subr.bf16.mxu0 0
    %1884 = vmatpush1.bf16.msra.mxu0 0
    %1885 = vmatprep.mubr.bf16.mxu0 0
    %1886 = vmatmul.mubr.bf16.gmra.mrb[0].mxu0 %v1558
    %v1887 = vpop.f32.mrb[0].mxu0
    %v1888 = vadd.f32 %v1847, %v1887
    %v1889 = vpop.f32.mrb[0].mxu0
    %v1890 = vadd.f32 %v1849, %v1889
    %v1891 = vpop.f32.mrb[0].mxu0
    %v1892 = vpop.f32.mrb[0].mxu0
    %1893 = vdwg.mxu0
    %1894 = vmatprep.subr.bf16.mxu0 %v650
    %1895 = vmatpush1.bf16.msra.mxu0 %v649
    %1896 = vmatprep.subr.bf16.mxu0 %v666
    %1897 = vmatpush1.bf16.msra.mxu0 %v665
    %1898 = vmatprep.subr.bf16.mxu0 %v682
    %1899 = vmatpush1.bf16.msra.mxu0 %v681
    %1900 = vmatprep.subr.bf16.mxu0 %v698
    %1901 = vmatpush1.bf16.msra.mxu0 %v697
    %1902 = vmatprep.subr.bf16.mxu0 %v714
    %1903 = vmatpush1.bf16.msra.mxu0 %v713
    %1904 = vmatprep.subr.bf16.mxu0 %v730
    %1905 = vmatpush1.bf16.msra.mxu0 %v729
    %1906 = vmatprep.subr.bf16.mxu0 %v746
    %1907 = vmatpush1.bf16.msra.mxu0 %v745
    %1908 = vmatprep.subr.bf16.mxu0 %v762
    %1909 = vmatpush1.bf16.msra.mxu0 %v761
    %1910 = vmatprep.subr.bf16.mxu0 %v778
    %1911 = vmatpush1.bf16.msra.mxu0 %v777
    %1912 = vmatprep.subr.bf16.mxu0 %v794
    %1913 = vmatpush1.bf16.msra.mxu0 %v793
    %1914 = vmatprep.subr.bf16.mxu0 %v810
    %1915 = vmatpush1.bf16.msra.mxu0 %v809
    %1916 = vmatprep.subr.bf16.mxu0 %v826
    %1917 = vmatpush1.bf16.msra.mxu0 %v825
    %1918 = vmatprep.subr.bf16.mxu0 %v842
    %1919 = vmatpush1.bf16.msra.mxu0 %v841
    %1920 = vmatprep.subr.bf16.mxu0 %v858
    %1921 = vmatpush1.bf16.msra.mxu0 %v857
    %1922 = vmatprep.subr.bf16.mxu0 %v874
    %1923 = vmatpush1.bf16.msra.mxu0 %v873
    %1924 = vmatprep.subr.bf16.mxu0 %v890
    %1925 = vmatpush1.bf16.msra.mxu0 %v889
    %1926 = vmatprep.mubr.bf16.mxu0 %v1553
    %1927 = vmatmul.mubr.bf16.gmra.mrb[0].mxu0 %v1552
    %v1928 = vpop.f32.mrb[0].mxu0
    %v1929 = vadd.f32 0.0, %v1928
    %v1930 = vpop.f32.mrb[0].mxu0
    %v1931 = vadd.f32 0.0, %v1930
    %v1932 = vpop.f32.mrb[0].mxu0
    %v1933 = vpop.f32.mrb[0].mxu0
    %1934 = vdwg.mxu0
    %1935 = vmatprep.subr.bf16.mxu0 %v906
    %1936 = vmatpush1.bf16.msra.mxu0 %v905
    %1937 = vmatprep.subr.bf16.mxu0 %v922
    %1938 = vmatpush1.bf16.msra.mxu0 %v921
    %1939 = vmatprep.subr.bf16.mxu0 %v938
    %1940 = vmatpush1.bf16.msra.mxu0 %v937
    %1941 = vmatprep.subr.bf16.mxu0 %v954
    %1942 = vmatpush1.bf16.msra.mxu0 %v953
    %1943 = vmatprep.subr.bf16.mxu0 %v970
    %1944 = vmatpush1.bf16.msra.mxu0 %v969
    %1945 = vmatprep.subr.bf16.mxu0 %v986
    %1946 = vmatpush1.bf16.msra.mxu0 %v985
    %1947 = vmatprep.subr.bf16.mxu0 %v1002
    %1948 = vmatpush1.bf16.msra.mxu0 %v1001
    %1949 = vmatprep.subr.bf16.mxu0 %v1018
    %1950 = vmatpush1.bf16.msra.mxu0 %v1017
    %1951 = vmatprep.subr.bf16.mxu0 %v1034
    %1952 = vmatpush1.bf16.msra.mxu0 %v1033
    %1953 = vmatprep.subr.bf16.mxu0 %v1050
    %1954 = vmatpush1.bf16.msra.mxu0 %v1049
    %1955 = vmatprep.subr.bf16.mxu0 %v1066
    %1956 = vmatpush1.bf16.msra.mxu0 %v1065
    %1957 = vmatprep.subr.bf16.mxu0 %v1082
    %1958 = vmatpush1.bf16.msra.mxu0 %v1081
    %1959 = vmatprep.subr.bf16.mxu0 %v1098
    %1960 = vmatpush1.bf16.msra.mxu0 %v1097
    %1961 = vmatprep.subr.bf16.mxu0 %v1114
    %1962 = vmatpush1.bf16.msra.mxu0 %v1113
    %1963 = vmatprep.subr.bf16.mxu0 %v1130
    %1964 = vmatpush1.bf16.msra.mxu0 %v1129
    %1965 = vmatprep.subr.bf16.mxu0 %v1146
    %1966 = vmatpush1.bf16.msra.mxu0 %v1145
    %1967 = vmatprep.mubr.bf16.mxu0 %v1555
    %1968 = vmatmul.mubr.bf16.gmra.mrb[0].mxu0 %v1554
    %v1969 = vpop.f32.mrb[0].mxu0
    %v1970 = vadd.f32 %v1929, %v1969
    %v1971 = vpop.f32.mrb[0].mxu0
    %v1972 = vadd.f32 %v1931, %v1971
    %v1973 = vpop.f32.mrb[0].mxu0
    %v1974 = vpop.f32.mrb[0].mxu0
    %1975 = vdwg.mxu0
    %1976 = vmatprep.subr.bf16.mxu0 %v1162
    %1977 = vmatpush1.bf16.msra.mxu0 %v1161
    %1978 = vmatprep.subr.bf16.mxu0 %v1178
    %1979 = vmatpush1.bf16.msra.mxu0 %v1177
    %1980 = vmatprep.subr.bf16.mxu0 %v1194
    %1981 = vmatpush1.bf16.msra.mxu0 %v1193
    %1982 = vmatprep.subr.bf16.mxu0 %v1210
    %1983 = vmatpush1.bf16.msra.mxu0 %v1209
    %1984 = vmatprep.subr.bf16.mxu0 %v1226
    %1985 = vmatpush1.bf16.msra.mxu0 %v1225
    %1986 = vmatprep.subr.bf16.mxu0 %v1242
    %1987 = vmatpush1.bf16.msra.mxu0 %v1241
    %1988 = vmatprep.subr.bf16.mxu0 %v1258
    %1989 = vmatpush1.bf16.msra.mxu0 %v1257
    %1990 = vmatprep.subr.bf16.mxu0 %v1274
    %1991 = vmatpush1.bf16.msra.mxu0 %v1273
    %1992 = vmatprep.subr.bf16.mxu0 %v1290
    %1993 = vmatpush1.bf16.msra.mxu0 %v1289
    %1994 = vmatprep.subr.bf16.mxu0 %v1306
    %1995 = vmatpush1.bf16.msra.mxu0 %v1305
    %1996 = vmatprep.subr.bf16.mxu0 %v1322
    %1997 = vmatpush1.bf16.msra.mxu0 %v1321
    %1998 = vmatprep.subr.bf16.mxu0 %v1338
    %1999 = vmatpush1.bf16.msra.mxu0 %v1337
    %2000 = vmatprep.subr.bf16.mxu0 %v1354
    %2001 = vmatpush1.bf16.msra.mxu0 %v1353
    %2002 = vmatprep.subr.bf16.mxu0 %v1370
    %2003 = vmatpush1.bf16.msra.mxu0 %v1369
    %2004 = vmatprep.subr.bf16.mxu0 %v1386
    %2005 = vmatpush1.bf16.msra.mxu0 %v1385
    %2006 = vmatprep.subr.bf16.mxu0 %v1402
    %2007 = vmatpush1.bf16.msra.mxu0 %v1401
    %2008 = vmatprep.mubr.bf16.mxu0 %v1557
    %2009 = vmatmul.mubr.bf16.gmra.mrb[0].mxu0 %v1556
    %v2010 = vpop.f32.mrb[0].mxu0
    %v2011 = vadd.f32 %v1970, %v2010
    %v2012 = vpop.f32.mrb[0].mxu0
    %v2013 = vadd.f32 %v1972, %v2012
    %v2014 = vpop.f32.mrb[0].mxu0
    %v2015 = vpop.f32.mrb[0].mxu0
    %2016 = vdwg.mxu0
    %2017 = vmatprep.subr.bf16.mxu0 %v1418
    %2018 = vmatpush1.bf16.msra.mxu0 %v1417
    %2019 = vmatprep.subr.bf16.mxu0 %v1434
    %2020 = vmatpush1.bf16.msra.mxu0 %v1433
    %2021 = vmatprep.subr.bf16.mxu0 %v1450
    %2022 = vmatpush1.bf16.msra.mxu0 %v1449
    %2023 = vmatprep.subr.bf16.mxu0 %v1466
    %2024 = vmatpush1.bf16.msra.mxu0 %v1465
    %2025 = vmatprep.subr.bf16.mxu0 %v1482
    %2026 = vmatpush1.bf16.msra.mxu0 %v1481
    %2027 = vmatprep.subr.bf16.mxu0 %v1498
    %2028 = vmatpush1.bf16.msra.mxu0 %v1497
    %2029 = vmatprep.subr.bf16.mxu0 %v1514
    %2030 = vmatpush1.bf16.msra.mxu0 %v1513
    %2031 = vmatprep.subr.bf16.mxu0 %v1530
    %2032 = vmatpush1.bf16.msra.mxu0 %v1529
    %2033 = vmatprep.subr.bf16.mxu0 0
    %2034 = vmatpush1.bf16.msra.mxu0 0
    %2035 = vmatprep.subr.bf16.mxu0 0
    %2036 = vmatpush1.bf16.msra.mxu0 0
    %2037 = vmatprep.subr.bf16.mxu0 0
    %2038 = vmatpush1.bf16.msra.mxu0 0
    %2039 = vmatprep.subr.bf16.mxu0 0
    %2040 = vmatpush1.bf16.msra.mxu0 0
    %2041 = vmatprep.subr.bf16.mxu0 0
    %2042 = vmatpush1.bf16.msra.mxu0 0
    %2043 = vmatprep.subr.bf16.mxu0 0
    %2044 = vmatpush1.bf16.msra.mxu0 0
    %2045 = vmatprep.subr.bf16.mxu0 0
    %2046 = vmatpush1.bf16.msra.mxu0 0
    %2047 = vmatprep.subr.bf16.mxu0 0
    %2048 = vmatpush1.bf16.msra.mxu0 0
    %2049 = vmatprep.mubr.bf16.mxu0 0
    %2050 = vmatmul.mubr.bf16.gmra.mrb[0].mxu0 %v1558
    %v2051 = vpop.f32.mrb[0].mxu0
    %v2052 = vadd.f32 %v2011, %v2051
    %v2053 = vpop.f32.mrb[0].mxu0
    %v2054 = vadd.f32 %v2013, %v2053
    %v2055 = vpop.f32.mrb[0].mxu0
    %v2056 = vpop.f32.mrb[0].mxu0
    %2057 = vdwg.mxu0
    %2058 = vmatprep.subr.bf16.mxu0 %v652
    %2059 = vmatpush1.bf16.msra.mxu0 %v651
    %2060 = vmatprep.subr.bf16.mxu0 %v668
    %2061 = vmatpush1.bf16.msra.mxu0 %v667
    %2062 = vmatprep.subr.bf16.mxu0 %v684
    %2063 = vmatpush1.bf16.msra.mxu0 %v683
    %2064 = vmatprep.subr.bf16.mxu0 %v700
    %2065 = vmatpush1.bf16.msra.mxu0 %v699
    %2066 = vmatprep.subr.bf16.mxu0 %v716
    %2067 = vmatpush1.bf16.msra.mxu0 %v715
    %2068 = vmatprep.subr.bf16.mxu0 %v732
    %2069 = vmatpush1.bf16.msra.mxu0 %v731
    %2070 = vmatprep.subr.bf16.mxu0 %v748
    %2071 = vmatpush1.bf16.msra.mxu0 %v747
    %2072 = vmatprep.subr.bf16.mxu0 %v764
    %2073 = vmatpush1.bf16.msra.mxu0 %v763
    %2074 = vmatprep.subr.bf16.mxu0 %v780
    %2075 = vmatpush1.bf16.msra.mxu0 %v779
    %2076 = vmatprep.subr.bf16.mxu0 %v796
    %2077 = vmatpush1.bf16.msra.mxu0 %v795
    %2078 = vmatprep.subr.bf16.mxu0 %v812
    %2079 = vmatpush1.bf16.msra.mxu0 %v811
    %2080 = vmatprep.subr.bf16.mxu0 %v828
    %2081 = vmatpush1.bf16.msra.mxu0 %v827
    %2082 = vmatprep.subr.bf16.mxu0 %v844
    %2083 = vmatpush1.bf16.msra.mxu0 %v843
    %2084 = vmatprep.subr.bf16.mxu0 %v860
    %2085 = vmatpush1.bf16.msra.mxu0 %v859
    %2086 = vmatprep.subr.bf16.mxu0 %v876
    %2087 = vmatpush1.bf16.msra.mxu0 %v875
    %2088 = vmatprep.subr.bf16.mxu0 %v892
    %2089 = vmatpush1.bf16.msra.mxu0 %v891
    %2090 = vmatprep.mubr.bf16.mxu0 %v1553
    %2091 = vmatmul.mubr.bf16.gmra.mrb[0].mxu0 %v1552
    %v2092 = vpop.f32.mrb[0].mxu0
    %v2093 = vadd.f32 0.0, %v2092
    %v2094 = vpop.f32.mrb[0].mxu0
    %v2095 = vadd.f32 0.0, %v2094
    %v2096 = vpop.f32.mrb[0].mxu0
    %v2097 = vpop.f32.mrb[0].mxu0
    %2098 = vdwg.mxu0
    %2099 = vmatprep.subr.bf16.mxu0 %v908
    %2100 = vmatpush1.bf16.msra.mxu0 %v907
    %2101 = vmatprep.subr.bf16.mxu0 %v924
    %2102 = vmatpush1.bf16.msra.mxu0 %v923
    %2103 = vmatprep.subr.bf16.mxu0 %v940
    %2104 = vmatpush1.bf16.msra.mxu0 %v939
    %2105 = vmatprep.subr.bf16.mxu0 %v956
    %2106 = vmatpush1.bf16.msra.mxu0 %v955
    %2107 = vmatprep.subr.bf16.mxu0 %v972
    %2108 = vmatpush1.bf16.msra.mxu0 %v971
    %2109 = vmatprep.subr.bf16.mxu0 %v988
    %2110 = vmatpush1.bf16.msra.mxu0 %v987
    %2111 = vmatprep.subr.bf16.mxu0 %v1004
    %2112 = vmatpush1.bf16.msra.mxu0 %v1003
    %2113 = vmatprep.subr.bf16.mxu0 %v1020
    %2114 = vmatpush1.bf16.msra.mxu0 %v1019
    %2115 = vmatprep.subr.bf16.mxu0 %v1036
    %2116 = vmatpush1.bf16.msra.mxu0 %v1035
    %2117 = vmatprep.subr.bf16.mxu0 %v1052
    %2118 = vmatpush1.bf16.msra.mxu0 %v1051
    %2119 = vmatprep.subr.bf16.mxu0 %v1068
    %2120 = vmatpush1.bf16.msra.mxu0 %v1067
    %2121 = vmatprep.subr.bf16.mxu0 %v1084
    %2122 = vmatpush1.bf16.msra.mxu0 %v1083
    %2123 = vmatprep.subr.bf16.mxu0 %v1100
    %2124 = vmatpush1.bf16.msra.mxu0 %v1099
    %2125 = vmatprep.subr.bf16.mxu0 %v1116
    %2126 = vmatpush1.bf16.msra.mxu0 %v1115
    %2127 = vmatprep.subr.bf16.mxu0 %v1132
    %2128 = vmatpush1.bf16.msra.mxu0 %v1131
    %2129 = vmatprep.subr.bf16.mxu0 %v1148
    %2130 = vmatpush1.bf16.msra.mxu0 %v1147
    %2131 = vmatprep.mubr.bf16.mxu0 %v1555
    %2132 = vmatmul.mubr.bf16.gmra.mrb[0].mxu0 %v1554
    %v2133 = vpop.f32.mrb[0].mxu0
    %v2134 = vadd.f32 %v2093, %v2133
    %v2135 = vpop.f32.mrb[0].mxu0
    %v2136 = vadd.f32 %v2095, %v2135
    %v2137 = vpop.f32.mrb[0].mxu0
    %v2138 = vpop.f32.mrb[0].mxu0
    %2139 = vdwg.mxu0
    %2140 = vmatprep.subr.bf16.mxu0 %v1164
    %2141 = vmatpush1.bf16.msra.mxu0 %v1163
    %2142 = vmatprep.subr.bf16.mxu0 %v1180
    %2143 = vmatpush1.bf16.msra.mxu0 %v1179
    %2144 = vmatprep.subr.bf16.mxu0 %v1196
    %2145 = vmatpush1.bf16.msra.mxu0 %v1195
    %2146 = vmatprep.subr.bf16.mxu0 %v1212
    %2147 = vmatpush1.bf16.msra.mxu0 %v1211
    %2148 = vmatprep.subr.bf16.mxu0 %v1228
    %2149 = vmatpush1.bf16.msra.mxu0 %v1227
    %2150 = vmatprep.subr.bf16.mxu0 %v1244
    %2151 = vmatpush1.bf16.msra.mxu0 %v1243
    %2152 = vmatprep.subr.bf16.mxu0 %v1260
    %2153 = vmatpush1.bf16.msra.mxu0 %v1259
    %2154 = vmatprep.subr.bf16.mxu0 %v1276
    %2155 = vmatpush1.bf16.msra.mxu0 %v1275
    %2156 = vmatprep.subr.bf16.mxu0 %v1292
    %2157 = vmatpush1.bf16.msra.mxu0 %v1291
    %2158 = vmatprep.subr.bf16.mxu0 %v1308
    %2159 = vmatpush1.bf16.msra.mxu0 %v1307
    %2160 = vmatprep.subr.bf16.mxu0 %v1324
    %2161 = vmatpush1.bf16.msra.mxu0 %v1323
    %2162 = vmatprep.subr.bf16.mxu0 %v1340
    %2163 = vmatpush1.bf16.msra.mxu0 %v1339
    %2164 = vmatprep.subr.bf16.mxu0 %v1356
    %2165 = vmatpush1.bf16.msra.mxu0 %v1355
    %2166 = vmatprep.subr.bf16.mxu0 %v1372
    %2167 = vmatpush1.bf16.msra.mxu0 %v1371
    %2168 = vmatprep.subr.bf16.mxu0 %v1388
    %2169 = vmatpush1.bf16.msra.mxu0 %v1387
    %2170 = vmatprep.subr.bf16.mxu0 %v1404
    %2171 = vmatpush1.bf16.msra.mxu0 %v1403
    %2172 = vmatprep.mubr.bf16.mxu0 %v1557
    %2173 = vmatmul.mubr.bf16.gmra.mrb[0].mxu0 %v1556
    %v2174 = vpop.f32.mrb[0].mxu0
    %v2175 = vadd.f32 %v2134, %v2174
    %v2176 = vpop.f32.mrb[0].mxu0
    %v2177 = vadd.f32 %v2136, %v2176
    %v2178 = vpop.f32.mrb[0].mxu0
    %v2179 = vpop.f32.mrb[0].mxu0
    %2180 = vdwg.mxu0
    %2181 = vmatprep.subr.bf16.mxu0 %v1420
    %2182 = vmatpush1.bf16.msra.mxu0 %v1419
    %2183 = vmatprep.subr.bf16.mxu0 %v1436
    %2184 = vmatpush1.bf16.msra.mxu0 %v1435
    %2185 = vmatprep.subr.bf16.mxu0 %v1452
    %2186 = vmatpush1.bf16.msra.mxu0 %v1451
    %2187 = vmatprep.subr.bf16.mxu0 %v1468
    %2188 = vmatpush1.bf16.msra.mxu0 %v1467
    %2189 = vmatprep.subr.bf16.mxu0 %v1484
    %2190 = vmatpush1.bf16.msra.mxu0 %v1483
    %2191 = vmatprep.subr.bf16.mxu0 %v1500
    %2192 = vmatpush1.bf16.msra.mxu0 %v1499
    %2193 = vmatprep.subr.bf16.mxu0 %v1516
    %2194 = vmatpush1.bf16.msra.mxu0 %v1515
    %2195 = vmatprep.subr.bf16.mxu0 %v1532
    %2196 = vmatpush1.bf16.msra.mxu0 %v1531
    %2197 = vmatprep.subr.bf16.mxu0 0
    %2198 = vmatpush1.bf16.msra.mxu0 0
    %2199 = vmatprep.subr.bf16.mxu0 0
    %2200 = vmatpush1.bf16.msra.mxu0 0
    %2201 = vmatprep.subr.bf16.mxu0 0
    %2202 = vmatpush1.bf16.msra.mxu0 0
    %2203 = vmatprep.subr.bf16.mxu0 0
    %2204 = vmatpush1.bf16.msra.mxu0 0
    %2205 = vmatprep.subr.bf16.mxu0 0
    %2206 = vmatpush1.bf16.msra.mxu0 0
    %2207 = vmatprep.subr.bf16.mxu0 0
    %2208 = vmatpush1.bf16.msra.mxu0 0
    %2209 = vmatprep.subr.bf16.mxu0 0
    %2210 = vmatpush1.bf16.msra.mxu0 0
    %2211 = vmatprep.subr.bf16.mxu0 0
    %2212 = vmatpush1.bf16.msra.mxu0 0
    %2213 = vmatprep.mubr.bf16.mxu0 0
    %2214 = vmatmul.mubr.bf16.gmra.mrb[0].mxu0 %v1558
    %v2215 = vpop.f32.mrb[0].mxu0
    %v2216 = vadd.f32 %v2175, %v2215
    %v2217 = vpop.f32.mrb[0].mxu0
    %v2218 = vadd.f32 %v2177, %v2217
    %v2219 = vpop.f32.mrb[0].mxu0
    %v2220 = vpop.f32.mrb[0].mxu0
    %2221 = vdwg.mxu0
    %2222 = vmatprep.subr.bf16.mxu0 %v654
    %2223 = vmatpush1.bf16.msra.mxu0 %v653
    %2224 = vmatprep.subr.bf16.mxu0 %v670
    %2225 = vmatpush1.bf16.msra.mxu0 %v669
    %2226 = vmatprep.subr.bf16.mxu0 %v686
    %2227 = vmatpush1.bf16.msra.mxu0 %v685
    %2228 = vmatprep.subr.bf16.mxu0 %v702
    %2229 = vmatpush1.bf16.msra.mxu0 %v701
    %2230 = vmatprep.subr.bf16.mxu0 %v718
    %2231 = vmatpush1.bf16.msra.mxu0 %v717
    %2232 = vmatprep.subr.bf16.mxu0 %v734
    %2233 = vmatpush1.bf16.msra.mxu0 %v733
    %2234 = vmatprep.subr.bf16.mxu0 %v750
    %2235 = vmatpush1.bf16.msra.mxu0 %v749
    %2236 = vmatprep.subr.bf16.mxu0 %v766
    %2237 = vmatpush1.bf16.msra.mxu0 %v765
    %2238 = vmatprep.subr.bf16.mxu0 %v782
    %2239 = vmatpush1.bf16.msra.mxu0 %v781
    %2240 = vmatprep.subr.bf16.mxu0 %v798
    %2241 = vmatpush1.bf16.msra.mxu0 %v797
    %2242 = vmatprep.subr.bf16.mxu0 %v814
    %2243 = vmatpush1.bf16.msra.mxu0 %v813
    %2244 = vmatprep.subr.bf16.mxu0 %v830
    %2245 = vmatpush1.bf16.msra.mxu0 %v829
    %2246 = vmatprep.subr.bf16.mxu0 %v846
    %2247 = vmatpush1.bf16.msra.mxu0 %v845
    %2248 = vmatprep.subr.bf16.mxu0 %v862
    %2249 = vmatpush1.bf16.msra.mxu0 %v861
    %2250 = vmatprep.subr.bf16.mxu0 %v878
    %2251 = vmatpush1.bf16.msra.mxu0 %v877
    %2252 = vmatprep.subr.bf16.mxu0 %v894
    %2253 = vmatpush1.bf16.msra.mxu0 %v893
    %2254 = vmatprep.mubr.bf16.mxu0 %v1553
    %2255 = vmatmul.mubr.bf16.gmra.mrb[0].mxu0 %v1552
    %v2256 = vpop.f32.mrb[0].mxu0
    %v2257 = vadd.f32 0.0, %v2256
    %v2258 = vpop.f32.mrb[0].mxu0
    %v2259 = vadd.f32 0.0, %v2258
    %v2260 = vpop.f32.mrb[0].mxu0
    %v2261 = vpop.f32.mrb[0].mxu0
    %2262 = vdwg.mxu0
    %2263 = vmatprep.subr.bf16.mxu0 %v910
    %2264 = vmatpush1.bf16.msra.mxu0 %v909
    %2265 = vmatprep.subr.bf16.mxu0 %v926
    %2266 = vmatpush1.bf16.msra.mxu0 %v925
    %2267 = vmatprep.subr.bf16.mxu0 %v942
    %2268 = vmatpush1.bf16.msra.mxu0 %v941
    %2269 = vmatprep.subr.bf16.mxu0 %v958
    %2270 = vmatpush1.bf16.msra.mxu0 %v957
    %2271 = vmatprep.subr.bf16.mxu0 %v974
    %2272 = vmatpush1.bf16.msra.mxu0 %v973
    %2273 = vmatprep.subr.bf16.mxu0 %v990
    %2274 = vmatpush1.bf16.msra.mxu0 %v989
    %2275 = vmatprep.subr.bf16.mxu0 %v1006
    %2276 = vmatpush1.bf16.msra.mxu0 %v1005
    %2277 = vmatprep.subr.bf16.mxu0 %v1022
    %2278 = vmatpush1.bf16.msra.mxu0 %v1021
    %2279 = vmatprep.subr.bf16.mxu0 %v1038
    %2280 = vmatpush1.bf16.msra.mxu0 %v1037
    %2281 = vmatprep.subr.bf16.mxu0 %v1054
    %2282 = vmatpush1.bf16.msra.mxu0 %v1053
    %2283 = vmatprep.subr.bf16.mxu0 %v1070
    %2284 = vmatpush1.bf16.msra.mxu0 %v1069
    %2285 = vmatprep.subr.bf16.mxu0 %v1086
    %2286 = vmatpush1.bf16.msra.mxu0 %v1085
    %2287 = vmatprep.subr.bf16.mxu0 %v1102
    %2288 = vmatpush1.bf16.msra.mxu0 %v1101
    %2289 = vmatprep.subr.bf16.mxu0 %v1118
    %2290 = vmatpush1.bf16.msra.mxu0 %v1117
    %2291 = vmatprep.subr.bf16.mxu0 %v1134
    %2292 = vmatpush1.bf16.msra.mxu0 %v1133
    %2293 = vmatprep.subr.bf16.mxu0 %v1150
    %2294 = vmatpush1.bf16.msra.mxu0 %v1149
    %2295 = vmatprep.mubr.bf16.mxu0 %v1555
    %2296 = vmatmul.mubr.bf16.gmra.mrb[0].mxu0 %v1554
    %v2297 = vpop.f32.mrb[0].mxu0
    %v2298 = vadd.f32 %v2257, %v2297
    %v2299 = vpop.f32.mrb[0].mxu0
    %v2300 = vadd.f32 %v2259, %v2299
    %v2301 = vpop.f32.mrb[0].mxu0
    %v2302 = vpop.f32.mrb[0].mxu0
    %2303 = vdwg.mxu0
    %2304 = vmatprep.subr.bf16.mxu0 %v1166
    %2305 = vmatpush1.bf16.msra.mxu0 %v1165
    %2306 = vmatprep.subr.bf16.mxu0 %v1182
    %2307 = vmatpush1.bf16.msra.mxu0 %v1181
    %2308 = vmatprep.subr.bf16.mxu0 %v1198
    %2309 = vmatpush1.bf16.msra.mxu0 %v1197
    %2310 = vmatprep.subr.bf16.mxu0 %v1214
    %2311 = vmatpush1.bf16.msra.mxu0 %v1213
    %2312 = vmatprep.subr.bf16.mxu0 %v1230
    %2313 = vmatpush1.bf16.msra.mxu0 %v1229
    %2314 = vmatprep.subr.bf16.mxu0 %v1246
    %2315 = vmatpush1.bf16.msra.mxu0 %v1245
    %2316 = vmatprep.subr.bf16.mxu0 %v1262
    %2317 = vmatpush1.bf16.msra.mxu0 %v1261
    %2318 = vmatprep.subr.bf16.mxu0 %v1278
    %2319 = vmatpush1.bf16.msra.mxu0 %v1277
    %2320 = vmatprep.subr.bf16.mxu0 %v1294
    %2321 = vmatpush1.bf16.msra.mxu0 %v1293
    %2322 = vmatprep.subr.bf16.mxu0 %v1310
    %2323 = vmatpush1.bf16.msra.mxu0 %v1309
    %2324 = vmatprep.subr.bf16.mxu0 %v1326
    %2325 = vmatpush1.bf16.msra.mxu0 %v1325
    %2326 = vmatprep.subr.bf16.mxu0 %v1342
    %2327 = vmatpush1.bf16.msra.mxu0 %v1341
    %2328 = vmatprep.subr.bf16.mxu0 %v1358
    %2329 = vmatpush1.bf16.msra.mxu0 %v1357
    %2330 = vmatprep.subr.bf16.mxu0 %v1374
    %2331 = vmatpush1.bf16.msra.mxu0 %v1373
    %2332 = vmatprep.subr.bf16.mxu0 %v1390
    %2333 = vmatpush1.bf16.msra.mxu0 %v1389
    %2334 = vmatprep.subr.bf16.mxu0 %v1406
    %2335 = vmatpush1.bf16.msra.mxu0 %v1405
    %2336 = vmatprep.mubr.bf16.mxu0 %v1557
    %2337 = vmatmul.mubr.bf16.gmra.mrb[0].mxu0 %v1556
    %v2338 = vpop.f32.mrb[0].mxu0
    %v2339 = vadd.f32 %v2298, %v2338
    %v2340 = vpop.f32.mrb[0].mxu0
    %v2341 = vadd.f32 %v2300, %v2340
    %v2342 = vpop.f32.mrb[0].mxu0
    %v2343 = vpop.f32.mrb[0].mxu0
    %2344 = vdwg.mxu0
    %2345 = vmatprep.subr.bf16.mxu0 %v1422
    %2346 = vmatpush1.bf16.msra.mxu0 %v1421
    %2347 = vmatprep.subr.bf16.mxu0 %v1438
    %2348 = vmatpush1.bf16.msra.mxu0 %v1437
    %2349 = vmatprep.subr.bf16.mxu0 %v1454
    %2350 = vmatpush1.bf16.msra.mxu0 %v1453
    %2351 = vmatprep.subr.bf16.mxu0 %v1470
    %2352 = vmatpush1.bf16.msra.mxu0 %v1469
    %2353 = vmatprep.subr.bf16.mxu0 %v1486
    %2354 = vmatpush1.bf16.msra.mxu0 %v1485
    %2355 = vmatprep.subr.bf16.mxu0 %v1502
    %2356 = vmatpush1.bf16.msra.mxu0 %v1501
    %2357 = vmatprep.subr.bf16.mxu0 %v1518
    %2358 = vmatpush1.bf16.msra.mxu0 %v1517
    %2359 = vmatprep.subr.bf16.mxu0 %v1534
    %2360 = vmatpush1.bf16.msra.mxu0 %v1533
    %2361 = vmatprep.subr.bf16.mxu0 0
    %2362 = vmatpush1.bf16.msra.mxu0 0
    %2363 = vmatprep.subr.bf16.mxu0 0
    %2364 = vmatpush1.bf16.msra.mxu0 0
    %2365 = vmatprep.subr.bf16.mxu0 0
    %2366 = vmatpush1.bf16.msra.mxu0 0
    %2367 = vmatprep.subr.bf16.mxu0 0
    %2368 = vmatpush1.bf16.msra.mxu0 0
    %2369 = vmatprep.subr.bf16.mxu0 0
    %2370 = vmatpush1.bf16.msra.mxu0 0
    %2371 = vmatprep.subr.bf16.mxu0 0
    %2372 = vmatpush1.bf16.msra.mxu0 0
    %2373 = vmatprep.subr.bf16.mxu0 0
    %2374 = vmatpush1.bf16.msra.mxu0 0
    %2375 = vmatprep.subr.bf16.mxu0 0
    %2376 = vmatpush1.bf16.msra.mxu0 0
    %2377 = vmatprep.mubr.bf16.mxu0 0
    %2378 = vmatmul.mubr.bf16.gmra.mrb[0].mxu0 %v1558
    %v2379 = vpop.f32.mrb[0].mxu0
    %v2380 = vadd.f32 %v2339, %v2379
    %v2381 = vpop.f32.mrb[0].mxu0
    %v2382 = vadd.f32 %v2341, %v2381
    %v2383 = vpop.f32.mrb[0].mxu0
    %v2384 = vpop.f32.mrb[0].mxu0
    %2385 = vdwg.mxu0
    %2386 = vmatprep.subr.bf16.mxu0 %v656
    %2387 = vmatpush1.bf16.msra.mxu0 %v655
    %2388 = vmatprep.subr.bf16.mxu0 %v672
    %2389 = vmatpush1.bf16.msra.mxu0 %v671
    %2390 = vmatprep.subr.bf16.mxu0 %v688
    %2391 = vmatpush1.bf16.msra.mxu0 %v687
    %2392 = vmatprep.subr.bf16.mxu0 %v704
    %2393 = vmatpush1.bf16.msra.mxu0 %v703
    %2394 = vmatprep.subr.bf16.mxu0 %v720
    %2395 = vmatpush1.bf16.msra.mxu0 %v719
    %2396 = vmatprep.subr.bf16.mxu0 %v736
    %2397 = vmatpush1.bf16.msra.mxu0 %v735
    %2398 = vmatprep.subr.bf16.mxu0 %v752
    %2399 = vmatpush1.bf16.msra.mxu0 %v751
    %2400 = vmatprep.subr.bf16.mxu0 %v768
    %2401 = vmatpush1.bf16.msra.mxu0 %v767
    %2402 = vmatprep.subr.bf16.mxu0 %v784
    %2403 = vmatpush1.bf16.msra.mxu0 %v783
    %2404 = vmatprep.subr.bf16.mxu0 %v800
    %2405 = vmatpush1.bf16.msra.mxu0 %v799
    %2406 = vmatprep.subr.bf16.mxu0 %v816
    %2407 = vmatpush1.bf16.msra.mxu0 %v815
    %2408 = vmatprep.subr.bf16.mxu0 %v832
    %2409 = vmatpush1.bf16.msra.mxu0 %v831
    %2410 = vmatprep.subr.bf16.mxu0 %v848
    %2411 = vmatpush1.bf16.msra.mxu0 %v847
    %2412 = vmatprep.subr.bf16.mxu0 %v864
    %2413 = vmatpush1.bf16.msra.mxu0 %v863
    %2414 = vmatprep.subr.bf16.mxu0 %v880
    %2415 = vmatpush1.bf16.msra.mxu0 %v879
    %2416 = vmatprep.subr.bf16.mxu0 %v896
    %2417 = vmatpush1.bf16.msra.mxu0 %v895
    %2418 = vmatprep.mubr.bf16.mxu0 %v1553
    %2419 = vmatmul.mubr.bf16.gmra.mrb[0].mxu0 %v1552
    %v2420 = vpop.f32.mrb[0].mxu0
    %v2421 = vadd.f32 0.0, %v2420
    %v2422 = vpop.f32.mrb[0].mxu0
    %v2423 = vadd.f32 0.0, %v2422
    %v2424 = vpop.f32.mrb[0].mxu0
    %v2425 = vpop.f32.mrb[0].mxu0
    %2426 = vdwg.mxu0
    %2427 = vmatprep.subr.bf16.mxu0 %v912
    %2428 = vmatpush1.bf16.msra.mxu0 %v911
    %2429 = vmatprep.subr.bf16.mxu0 %v928
    %2430 = vmatpush1.bf16.msra.mxu0 %v927
    %2431 = vmatprep.subr.bf16.mxu0 %v944
    %2432 = vmatpush1.bf16.msra.mxu0 %v943
    %2433 = vmatprep.subr.bf16.mxu0 %v960
    %2434 = vmatpush1.bf16.msra.mxu0 %v959
    %2435 = vmatprep.subr.bf16.mxu0 %v976
    %2436 = vmatpush1.bf16.msra.mxu0 %v975
    %2437 = vmatprep.subr.bf16.mxu0 %v992
    %2438 = vmatpush1.bf16.msra.mxu0 %v991
    %2439 = vmatprep.subr.bf16.mxu0 %v1008
    %2440 = vmatpush1.bf16.msra.mxu0 %v1007
    %2441 = vmatprep.subr.bf16.mxu0 %v1024
    %2442 = vmatpush1.bf16.msra.mxu0 %v1023
    %2443 = vmatprep.subr.bf16.mxu0 %v1040
    %2444 = vmatpush1.bf16.msra.mxu0 %v1039
    %2445 = vmatprep.subr.bf16.mxu0 %v1056
    %2446 = vmatpush1.bf16.msra.mxu0 %v1055
    %2447 = vmatprep.subr.bf16.mxu0 %v1072
    %2448 = vmatpush1.bf16.msra.mxu0 %v1071
    %2449 = vmatprep.subr.bf16.mxu0 %v1088
    %2450 = vmatpush1.bf16.msra.mxu0 %v1087
    %2451 = vmatprep.subr.bf16.mxu0 %v1104
    %2452 = vmatpush1.bf16.msra.mxu0 %v1103
    %2453 = vmatprep.subr.bf16.mxu0 %v1120
    %2454 = vmatpush1.bf16.msra.mxu0 %v1119
    %2455 = vmatprep.subr.bf16.mxu0 %v1136
    %2456 = vmatpush1.bf16.msra.mxu0 %v1135
    %2457 = vmatprep.subr.bf16.mxu0 %v1152
    %2458 = vmatpush1.bf16.msra.mxu0 %v1151
    %2459 = vmatprep.mubr.bf16.mxu0 %v1555
    %2460 = vmatmul.mubr.bf16.gmra.mrb[0].mxu0 %v1554
    %v2461 = vpop.f32.mrb[0].mxu0
    %v2462 = vadd.f32 %v2421, %v2461
    %v2463 = vpop.f32.mrb[0].mxu0
    %v2464 = vadd.f32 %v2423, %v2463
    %v2465 = vpop.f32.mrb[0].mxu0
    %v2466 = vpop.f32.mrb[0].mxu0
    %2467 = vdwg.mxu0
    %2468 = vmatprep.subr.bf16.mxu0 %v1168
    %2469 = vmatpush1.bf16.msra.mxu0 %v1167
    %2470 = vmatprep.subr.bf16.mxu0 %v1184
    %2471 = vmatpush1.bf16.msra.mxu0 %v1183
    %2472 = vmatprep.subr.bf16.mxu0 %v1200
    %2473 = vmatpush1.bf16.msra.mxu0 %v1199
    %2474 = vmatprep.subr.bf16.mxu0 %v1216
    %2475 = vmatpush1.bf16.msra.mxu0 %v1215
    %2476 = vmatprep.subr.bf16.mxu0 %v1232
    %2477 = vmatpush1.bf16.msra.mxu0 %v1231
    %2478 = vmatprep.subr.bf16.mxu0 %v1248
    %2479 = vmatpush1.bf16.msra.mxu0 %v1247
    %2480 = vmatprep.subr.bf16.mxu0 %v1264
    %2481 = vmatpush1.bf16.msra.mxu0 %v1263
    %2482 = vmatprep.subr.bf16.mxu0 %v1280
    %2483 = vmatpush1.bf16.msra.mxu0 %v1279
    %2484 = vmatprep.subr.bf16.mxu0 %v1296
    %2485 = vmatpush1.bf16.msra.mxu0 %v1295
    %2486 = vmatprep.subr.bf16.mxu0 %v1312
    %2487 = vmatpush1.bf16.msra.mxu0 %v1311
    %2488 = vmatprep.subr.bf16.mxu0 %v1328
    %2489 = vmatpush1.bf16.msra.mxu0 %v1327
    %2490 = vmatprep.subr.bf16.mxu0 %v1344
    %2491 = vmatpush1.bf16.msra.mxu0 %v1343
    %2492 = vmatprep.subr.bf16.mxu0 %v1360
    %2493 = vmatpush1.bf16.msra.mxu0 %v1359
    %2494 = vmatprep.subr.bf16.mxu0 %v1376
    %2495 = vmatpush1.bf16.msra.mxu0 %v1375
    %2496 = vmatprep.subr.bf16.mxu0 %v1392
    %2497 = vmatpush1.bf16.msra.mxu0 %v1391
    %2498 = vmatprep.subr.bf16.mxu0 %v1408
    %2499 = vmatpush1.bf16.msra.mxu0 %v1407
    %2500 = vmatprep.mubr.bf16.mxu0 %v1557
    %2501 = vmatmul.mubr.bf16.gmra.mrb[0].mxu0 %v1556
    %v2502 = vpop.f32.mrb[0].mxu0
    %v2503 = vadd.f32 %v2462, %v2502
    %v2504 = vpop.f32.mrb[0].mxu0
    %v2505 = vadd.f32 %v2464, %v2504
    %v2506 = vpop.f32.mrb[0].mxu0
    %v2507 = vpop.f32.mrb[0].mxu0
    %2508 = vdwg.mxu0
    %2509 = vmatprep.subr.bf16.mxu0 %v1424
    %2510 = vmatpush1.bf16.msra.mxu0 %v1423
    %2511 = vmatprep.subr.bf16.mxu0 %v1440
    %2512 = vmatpush1.bf16.msra.mxu0 %v1439
    %2513 = vmatprep.subr.bf16.mxu0 %v1456
    %2514 = vmatpush1.bf16.msra.mxu0 %v1455
    %2515 = vmatprep.subr.bf16.mxu0 %v1472
    %2516 = vmatpush1.bf16.msra.mxu0 %v1471
    %2517 = vmatprep.subr.bf16.mxu0 %v1488
    %2518 = vmatpush1.bf16.msra.mxu0 %v1487
    %2519 = vmatprep.subr.bf16.mxu0 %v1504
    %2520 = vmatpush1.bf16.msra.mxu0 %v1503
    %2521 = vmatprep.subr.bf16.mxu0 %v1520
    %2522 = vmatpush1.bf16.msra.mxu0 %v1519
    %2523 = vmatprep.subr.bf16.mxu0 %v1536
    %2524 = vmatpush1.bf16.msra.mxu0 %v1535
    %2525 = vmatprep.subr.bf16.mxu0 0
    %2526 = vmatpush1.bf16.msra.mxu0 0
    %2527 = vmatprep.subr.bf16.mxu0 0
    %2528 = vmatpush1.bf16.msra.mxu0 0
    %2529 = vmatprep.subr.bf16.mxu0 0
    %2530 = vmatpush1.bf16.msra.mxu0 0
    %2531 = vmatprep.subr.bf16.mxu0 0
    %2532 = vmatpush1.bf16.msra.mxu0 0
    %2533 = vmatprep.subr.bf16.mxu0 0
    %2534 = vmatpush1.bf16.msra.mxu0 0
    %2535 = vmatprep.subr.bf16.mxu0 0
    %2536 = vmatpush1.bf16.msra.mxu0 0
    %2537 = vmatprep.subr.bf16.mxu0 0
    %2538 = vmatpush1.bf16.msra.mxu0 0
    %2539 = vmatprep.subr.bf16.mxu0 0
    %2540 = vmatpush1.bf16.msra.mxu0 0
    %2541 = vmatprep.mubr.bf16.mxu0 0
    %2542 = vmatmul.mubr.bf16.gmra.mrb[0].mxu0 %v1558
    %v2543 = vpop.f32.mrb[0].mxu0
    %v2544 = vadd.f32 %v2503, %v2543
    %v2545 = vpop.f32.mrb[0].mxu0
    %v2546 = vadd.f32 %v2505, %v2545
    %v2547 = vpop.f32.mrb[0].mxu0
    %v2548 = vpop.f32.mrb[0].mxu0
    %2549 = vdwg.mxu0
    %2550 = vmatprep.subr.bf16.mxu0 %v658
    %2551 = vmatpush1.bf16.msra.mxu0 %v657
    %2552 = vmatprep.subr.bf16.mxu0 %v674
    %2553 = vmatpush1.bf16.msra.mxu0 %v673
    %2554 = vmatprep.subr.bf16.mxu0 %v690
    %2555 = vmatpush1.bf16.msra.mxu0 %v689
    %2556 = vmatprep.subr.bf16.mxu0 %v706
    %2557 = vmatpush1.bf16.msra.mxu0 %v705
    %2558 = vmatprep.subr.bf16.mxu0 %v722
    %2559 = vmatpush1.bf16.msra.mxu0 %v721
    %2560 = vmatprep.subr.bf16.mxu0 %v738
    %2561 = vmatpush1.bf16.msra.mxu0 %v737
    %2562 = vmatprep.subr.bf16.mxu0 %v754
    %2563 = vmatpush1.bf16.msra.mxu0 %v753
    %2564 = vmatprep.subr.bf16.mxu0 %v770
    %2565 = vmatpush1.bf16.msra.mxu0 %v769
    %2566 = vmatprep.subr.bf16.mxu0 %v786
    %2567 = vmatpush1.bf16.msra.mxu0 %v785
    %2568 = vmatprep.subr.bf16.mxu0 %v802
    %2569 = vmatpush1.bf16.msra.mxu0 %v801
    %2570 = vmatprep.subr.bf16.mxu0 %v818
    %2571 = vmatpush1.bf16.msra.mxu0 %v817
    %2572 = vmatprep.subr.bf16.mxu0 %v834
    %2573 = vmatpush1.bf16.msra.mxu0 %v833
    %2574 = vmatprep.subr.bf16.mxu0 %v850
    %2575 = vmatpush1.bf16.msra.mxu0 %v849
    %2576 = vmatprep.subr.bf16.mxu0 %v866
    %2577 = vmatpush1.bf16.msra.mxu0 %v865
    %2578 = vmatprep.subr.bf16.mxu0 %v882
    %2579 = vmatpush1.bf16.msra.mxu0 %v881
    %2580 = vmatprep.subr.bf16.mxu0 %v898
    %2581 = vmatpush1.bf16.msra.mxu0 %v897
    %2582 = vmatprep.mubr.bf16.mxu0 %v1553
    %2583 = vmatmul.mubr.bf16.gmra.mrb[0].mxu0 %v1552
    %v2584 = vpop.f32.mrb[0].mxu0
    %v2585 = vadd.f32 0.0, %v2584
    %v2586 = vpop.f32.mrb[0].mxu0
    %v2587 = vadd.f32 0.0, %v2586
    %v2588 = vpop.f32.mrb[0].mxu0
    %v2589 = vpop.f32.mrb[0].mxu0
    %2590 = vdwg.mxu0
    %2591 = vmatprep.subr.bf16.mxu0 %v914
    %2592 = vmatpush1.bf16.msra.mxu0 %v913
    %2593 = vmatprep.subr.bf16.mxu0 %v930
    %2594 = vmatpush1.bf16.msra.mxu0 %v929
    %2595 = vmatprep.subr.bf16.mxu0 %v946
    %2596 = vmatpush1.bf16.msra.mxu0 %v945
    %2597 = vmatprep.subr.bf16.mxu0 %v962
    %2598 = vmatpush1.bf16.msra.mxu0 %v961
    %2599 = vmatprep.subr.bf16.mxu0 %v978
    %2600 = vmatpush1.bf16.msra.mxu0 %v977
    %2601 = vmatprep.subr.bf16.mxu0 %v994
    %2602 = vmatpush1.bf16.msra.mxu0 %v993
    %2603 = vmatprep.subr.bf16.mxu0 %v1010
    %2604 = vmatpush1.bf16.msra.mxu0 %v1009
    %2605 = vmatprep.subr.bf16.mxu0 %v1026
    %2606 = vmatpush1.bf16.msra.mxu0 %v1025
    %2607 = vmatprep.subr.bf16.mxu0 %v1042
    %2608 = vmatpush1.bf16.msra.mxu0 %v1041
    %2609 = vmatprep.subr.bf16.mxu0 %v1058
    %2610 = vmatpush1.bf16.msra.mxu0 %v1057
    %2611 = vmatprep.subr.bf16.mxu0 %v1074
    %2612 = vmatpush1.bf16.msra.mxu0 %v1073
    %2613 = vmatprep.subr.bf16.mxu0 %v1090
    %2614 = vmatpush1.bf16.msra.mxu0 %v1089
    %2615 = vmatprep.subr.bf16.mxu0 %v1106
    %2616 = vmatpush1.bf16.msra.mxu0 %v1105
    %2617 = vmatprep.subr.bf16.mxu0 %v1122
    %2618 = vmatpush1.bf16.msra.mxu0 %v1121
    %2619 = vmatprep.subr.bf16.mxu0 %v1138
    %2620 = vmatpush1.bf16.msra.mxu0 %v1137
    %2621 = vmatprep.subr.bf16.mxu0 %v1154
    %2622 = vmatpush1.bf16.msra.mxu0 %v1153
    %2623 = vmatprep.mubr.bf16.mxu0 %v1555
    %2624 = vmatmul.mubr.bf16.gmra.mrb[0].mxu0 %v1554
    %v2625 = vpop.f32.mrb[0].mxu0
    %v2626 = vadd.f32 %v2585, %v2625
    %v2627 = vpop.f32.mrb[0].mxu0
    %v2628 = vadd.f32 %v2587, %v2627
    %v2629 = vpop.f32.mrb[0].mxu0
    %v2630 = vpop.f32.mrb[0].mxu0
    %2631 = vdwg.mxu0
    %2632 = vmatprep.subr.bf16.mxu0 %v1170
    %2633 = vmatpush1.bf16.msra.mxu0 %v1169
    %2634 = vmatprep.subr.bf16.mxu0 %v1186
    %2635 = vmatpush1.bf16.msra.mxu0 %v1185
    %2636 = vmatprep.subr.bf16.mxu0 %v1202
    %2637 = vmatpush1.bf16.msra.mxu0 %v1201
    %2638 = vmatprep.subr.bf16.mxu0 %v1218
    %2639 = vmatpush1.bf16.msra.mxu0 %v1217
    %2640 = vmatprep.subr.bf16.mxu0 %v1234
    %2641 = vmatpush1.bf16.msra.mxu0 %v1233
    %2642 = vmatprep.subr.bf16.mxu0 %v1250
    %2643 = vmatpush1.bf16.msra.mxu0 %v1249
    %2644 = vmatprep.subr.bf16.mxu0 %v1266
    %2645 = vmatpush1.bf16.msra.mxu0 %v1265
    %2646 = vmatprep.subr.bf16.mxu0 %v1282
    %2647 = vmatpush1.bf16.msra.mxu0 %v1281
    %2648 = vmatprep.subr.bf16.mxu0 %v1298
    %2649 = vmatpush1.bf16.msra.mxu0 %v1297
    %2650 = vmatprep.subr.bf16.mxu0 %v1314
    %2651 = vmatpush1.bf16.msra.mxu0 %v1313
    %2652 = vmatprep.subr.bf16.mxu0 %v1330
    %2653 = vmatpush1.bf16.msra.mxu0 %v1329
    %2654 = vmatprep.subr.bf16.mxu0 %v1346
    %2655 = vmatpush1.bf16.msra.mxu0 %v1345
    %2656 = vmatprep.subr.bf16.mxu0 %v1362
    %2657 = vmatpush1.bf16.msra.mxu0 %v1361
    %2658 = vmatprep.subr.bf16.mxu0 %v1378
    %2659 = vmatpush1.bf16.msra.mxu0 %v1377
    %2660 = vmatprep.subr.bf16.mxu0 %v1394
    %2661 = vmatpush1.bf16.msra.mxu0 %v1393
    %2662 = vmatprep.subr.bf16.mxu0 %v1410
    %2663 = vmatpush1.bf16.msra.mxu0 %v1409
    %2664 = vmatprep.mubr.bf16.mxu0 %v1557
    %2665 = vmatmul.mubr.bf16.gmra.mrb[0].mxu0 %v1556
    %v2666 = vpop.f32.mrb[0].mxu0
    %v2667 = vadd.f32 %v2626, %v2666
    %v2668 = vpop.f32.mrb[0].mxu0
    %v2669 = vadd.f32 %v2628, %v2668
    %v2670 = vpop.f32.mrb[0].mxu0
    %v2671 = vpop.f32.mrb[0].mxu0
    %2672 = vdwg.mxu0
    %2673 = vmatprep.subr.bf16.mxu0 %v1426
    %2674 = vmatpush1.bf16.msra.mxu0 %v1425
    %2675 = vmatprep.subr.bf16.mxu0 %v1442
    %2676 = vmatpush1.bf16.msra.mxu0 %v1441
    %2677 = vmatprep.subr.bf16.mxu0 %v1458
    %2678 = vmatpush1.bf16.msra.mxu0 %v1457
    %2679 = vmatprep.subr.bf16.mxu0 %v1474
    %2680 = vmatpush1.bf16.msra.mxu0 %v1473
    %2681 = vmatprep.subr.bf16.mxu0 %v1490
    %2682 = vmatpush1.bf16.msra.mxu0 %v1489
    %2683 = vmatprep.subr.bf16.mxu0 %v1506
    %2684 = vmatpush1.bf16.msra.mxu0 %v1505
    %2685 = vmatprep.subr.bf16.mxu0 %v1522
    %2686 = vmatpush1.bf16.msra.mxu0 %v1521
    %2687 = vmatprep.subr.bf16.mxu0 %v1538
    %2688 = vmatpush1.bf16.msra.mxu0 %v1537
    %2689 = vmatprep.subr.bf16.mxu0 0
    %2690 = vmatpush1.bf16.msra.mxu0 0
    %2691 = vmatprep.subr.bf16.mxu0 0
    %2692 = vmatpush1.bf16.msra.mxu0 0
    %2693 = vmatprep.subr.bf16.mxu0 0
    %2694 = vmatpush1.bf16.msra.mxu0 0
    %2695 = vmatprep.subr.bf16.mxu0 0
    %2696 = vmatpush1.bf16.msra.mxu0 0
    %2697 = vmatprep.subr.bf16.mxu0 0
    %2698 = vmatpush1.bf16.msra.mxu0 0
    %2699 = vmatprep.subr.bf16.mxu0 0
    %2700 = vmatpush1.bf16.msra.mxu0 0
    %2701 = vmatprep.subr.bf16.mxu0 0
    %2702 = vmatpush1.bf16.msra.mxu0 0
    %2703 = vmatprep.subr.bf16.mxu0 0
    %2704 = vmatpush1.bf16.msra.mxu0 0
    %2705 = vmatprep.mubr.bf16.mxu0 0
    %2706 = vmatmul.mubr.bf16.gmra.mrb[0].mxu0 %v1558
    %v2707 = vpop.f32.mrb[0].mxu0
    %v2708 = vadd.f32 %v2667, %v2707
    %v2709 = vpop.f32.mrb[0].mxu0
    %v2710 = vadd.f32 %v2669, %v2709
    %v2711 = vpop.f32.mrb[0].mxu0
    %v2712 = vpop.f32.mrb[0].mxu0
    %2713 = vdwg.mxu0
    %2714 = vmatprep.subr.bf16.mxu0 %v660
    %2715 = vmatpush1.bf16.msra.mxu0 %v659
    %2716 = vmatprep.subr.bf16.mxu0 %v676
    %2717 = vmatpush1.bf16.msra.mxu0 %v675
    %2718 = vmatprep.subr.bf16.mxu0 %v692
    %2719 = vmatpush1.bf16.msra.mxu0 %v691
    %2720 = vmatprep.subr.bf16.mxu0 %v708
    %2721 = vmatpush1.bf16.msra.mxu0 %v707
    %2722 = vmatprep.subr.bf16.mxu0 %v724
    %2723 = vmatpush1.bf16.msra.mxu0 %v723
    %2724 = vmatprep.subr.bf16.mxu0 %v740
    %2725 = vmatpush1.bf16.msra.mxu0 %v739
    %2726 = vmatprep.subr.bf16.mxu0 %v756
    %2727 = vmatpush1.bf16.msra.mxu0 %v755
    %2728 = vmatprep.subr.bf16.mxu0 %v772
    %2729 = vmatpush1.bf16.msra.mxu0 %v771
    %2730 = vmatprep.subr.bf16.mxu0 %v788
    %2731 = vmatpush1.bf16.msra.mxu0 %v787
    %2732 = vmatprep.subr.bf16.mxu0 %v804
    %2733 = vmatpush1.bf16.msra.mxu0 %v803
    %2734 = vmatprep.subr.bf16.mxu0 %v820
    %2735 = vmatpush1.bf16.msra.mxu0 %v819
    %2736 = vmatprep.subr.bf16.mxu0 %v836
    %2737 = vmatpush1.bf16.msra.mxu0 %v835
    %2738 = vmatprep.subr.bf16.mxu0 %v852
    %2739 = vmatpush1.bf16.msra.mxu0 %v851
    %2740 = vmatprep.subr.bf16.mxu0 %v868
    %2741 = vmatpush1.bf16.msra.mxu0 %v867
    %2742 = vmatprep.subr.bf16.mxu0 %v884
    %2743 = vmatpush1.bf16.msra.mxu0 %v883
    %2744 = vmatprep.subr.bf16.mxu0 %v900
    %2745 = vmatpush1.bf16.msra.mxu0 %v899
    %2746 = vmatprep.mubr.bf16.mxu0 %v1553
    %2747 = vmatmul.mubr.bf16.gmra.mrb[0].mxu0 %v1552
    %v2748 = vpop.f32.mrb[0].mxu0
    %v2749 = vadd.f32 0.0, %v2748
    %v2750 = vpop.f32.mrb[0].mxu0
    %v2751 = vadd.f32 0.0, %v2750
    %v2752 = vpop.f32.mrb[0].mxu0
    %v2753 = vpop.f32.mrb[0].mxu0
    %2754 = vdwg.mxu0
    %2755 = vmatprep.subr.bf16.mxu0 %v916
    %2756 = vmatpush1.bf16.msra.mxu0 %v915
    %2757 = vmatprep.subr.bf16.mxu0 %v932
    %2758 = vmatpush1.bf16.msra.mxu0 %v931
    %2759 = vmatprep.subr.bf16.mxu0 %v948
    %2760 = vmatpush1.bf16.msra.mxu0 %v947
    %2761 = vmatprep.subr.bf16.mxu0 %v964
    %2762 = vmatpush1.bf16.msra.mxu0 %v963
    %2763 = vmatprep.subr.bf16.mxu0 %v980
    %2764 = vmatpush1.bf16.msra.mxu0 %v979
    %2765 = vmatprep.subr.bf16.mxu0 %v996
    %2766 = vmatpush1.bf16.msra.mxu0 %v995
    %2767 = vmatprep.subr.bf16.mxu0 %v1012
    %2768 = vmatpush1.bf16.msra.mxu0 %v1011
    %2769 = vmatprep.subr.bf16.mxu0 %v1028
    %2770 = vmatpush1.bf16.msra.mxu0 %v1027
    %2771 = vmatprep.subr.bf16.mxu0 %v1044
    %2772 = vmatpush1.bf16.msra.mxu0 %v1043
    %2773 = vmatprep.subr.bf16.mxu0 %v1060
    %2774 = vmatpush1.bf16.msra.mxu0 %v1059
    %2775 = vmatprep.subr.bf16.mxu0 %v1076
    %2776 = vmatpush1.bf16.msra.mxu0 %v1075
    %2777 = vmatprep.subr.bf16.mxu0 %v1092
    %2778 = vmatpush1.bf16.msra.mxu0 %v1091
    %2779 = vmatprep.subr.bf16.mxu0 %v1108
    %2780 = vmatpush1.bf16.msra.mxu0 %v1107
    %2781 = vmatprep.subr.bf16.mxu0 %v1124
    %2782 = vmatpush1.bf16.msra.mxu0 %v1123
    %2783 = vmatprep.subr.bf16.mxu0 %v1140
    %2784 = vmatpush1.bf16.msra.mxu0 %v1139
    %2785 = vmatprep.subr.bf16.mxu0 %v1156
    %2786 = vmatpush1.bf16.msra.mxu0 %v1155
    %2787 = vmatprep.mubr.bf16.mxu0 %v1555
    %2788 = vmatmul.mubr.bf16.gmra.mrb[0].mxu0 %v1554
    %v2789 = vpop.f32.mrb[0].mxu0
    %v2790 = vadd.f32 %v2749, %v2789
    %v2791 = vpop.f32.mrb[0].mxu0
    %v2792 = vadd.f32 %v2751, %v2791
    %v2793 = vpop.f32.mrb[0].mxu0
    %v2794 = vpop.f32.mrb[0].mxu0
    %2795 = vdwg.mxu0
    %2796 = vmatprep.subr.bf16.mxu0 %v1172
    %2797 = vmatpush1.bf16.msra.mxu0 %v1171
    %2798 = vmatprep.subr.bf16.mxu0 %v1188
    %2799 = vmatpush1.bf16.msra.mxu0 %v1187
    %2800 = vmatprep.subr.bf16.mxu0 %v1204
    %2801 = vmatpush1.bf16.msra.mxu0 %v1203
    %2802 = vmatprep.subr.bf16.mxu0 %v1220
    %2803 = vmatpush1.bf16.msra.mxu0 %v1219
    %2804 = vmatprep.subr.bf16.mxu0 %v1236
    %2805 = vmatpush1.bf16.msra.mxu0 %v1235
    %2806 = vmatprep.subr.bf16.mxu0 %v1252
    %2807 = vmatpush1.bf16.msra.mxu0 %v1251
    %2808 = vmatprep.subr.bf16.mxu0 %v1268
    %2809 = vmatpush1.bf16.msra.mxu0 %v1267
    %2810 = vmatprep.subr.bf16.mxu0 %v1284
    %2811 = vmatpush1.bf16.msra.mxu0 %v1283
    %2812 = vmatprep.subr.bf16.mxu0 %v1300
    %2813 = vmatpush1.bf16.msra.mxu0 %v1299
    %2814 = vmatprep.subr.bf16.mxu0 %v1316
    %2815 = vmatpush1.bf16.msra.mxu0 %v1315
    %2816 = vmatprep.subr.bf16.mxu0 %v1332
    %2817 = vmatpush1.bf16.msra.mxu0 %v1331
    %2818 = vmatprep.subr.bf16.mxu0 %v1348
    %2819 = vmatpush1.bf16.msra.mxu0 %v1347
    %2820 = vmatprep.subr.bf16.mxu0 %v1364
    %2821 = vmatpush1.bf16.msra.mxu0 %v1363
    %2822 = vmatprep.subr.bf16.mxu0 %v1380
    %2823 = vmatpush1.bf16.msra.mxu0 %v1379
    %2824 = vmatprep.subr.bf16.mxu0 %v1396
    %2825 = vmatpush1.bf16.msra.mxu0 %v1395
    %2826 = vmatprep.subr.bf16.mxu0 %v1412
    %2827 = vmatpush1.bf16.msra.mxu0 %v1411
    %2828 = vmatprep.mubr.bf16.mxu0 %v1557
    %2829 = vmatmul.mubr.bf16.gmra.mrb[0].mxu0 %v1556
    %v2830 = vpop.f32.mrb[0].mxu0
    %v2831 = vadd.f32 %v2790, %v2830
    %v2832 = vpop.f32.mrb[0].mxu0
    %v2833 = vadd.f32 %v2792, %v2832
    %v2834 = vpop.f32.mrb[0].mxu0
    %v2835 = vpop.f32.mrb[0].mxu0
    %2836 = vdwg.mxu0
    %2837 = vmatprep.subr.bf16.mxu0 %v1428
    %2838 = vmatpush1.bf16.msra.mxu0 %v1427
    %2839 = vmatprep.subr.bf16.mxu0 %v1444
    %2840 = vmatpush1.bf16.msra.mxu0 %v1443
    %2841 = vmatprep.subr.bf16.mxu0 %v1460
    %2842 = vmatpush1.bf16.msra.mxu0 %v1459
    %2843 = vmatprep.subr.bf16.mxu0 %v1476
    %2844 = vmatpush1.bf16.msra.mxu0 %v1475
    %2845 = vmatprep.subr.bf16.mxu0 %v1492
    %2846 = vmatpush1.bf16.msra.mxu0 %v1491
    %2847 = vmatprep.subr.bf16.mxu0 %v1508
    %2848 = vmatpush1.bf16.msra.mxu0 %v1507
    %2849 = vmatprep.subr.bf16.mxu0 %v1524
    %2850 = vmatpush1.bf16.msra.mxu0 %v1523
    %2851 = vmatprep.subr.bf16.mxu0 %v1540
    %2852 = vmatpush1.bf16.msra.mxu0 %v1539
    %2853 = vmatprep.subr.bf16.mxu0 0
    %2854 = vmatpush1.bf16.msra.mxu0 0
    %2855 = vmatprep.subr.bf16.mxu0 0
    %2856 = vmatpush1.bf16.msra.mxu0 0
    %2857 = vmatprep.subr.bf16.mxu0 0
    %2858 = vmatpush1.bf16.msra.mxu0 0
    %2859 = vmatprep.subr.bf16.mxu0 0
    %2860 = vmatpush1.bf16.msra.mxu0 0
    %2861 = vmatprep.subr.bf16.mxu0 0
    %2862 = vmatpush1.bf16.msra.mxu0 0
    %2863 = vmatprep.subr.bf16.mxu0 0
    %2864 = vmatpush1.bf16.msra.mxu0 0
    %2865 = vmatprep.subr.bf16.mxu0 0
    %2866 = vmatpush1.bf16.msra.mxu0 0
    %2867 = vmatprep.subr.bf16.mxu0 0
    %2868 = vmatpush1.bf16.msra.mxu0 0
    %2869 = vmatprep.mubr.bf16.mxu0 0
    %2870 = vmatmul.mubr.bf16.gmra.mrb[0].mxu0 %v1558
    %v2871 = vpop.f32.mrb[0].mxu0
    %v2872 = vadd.f32 %v2831, %v2871
    %v2873 = vpop.f32.mrb[0].mxu0
    %v2874 = vadd.f32 %v2833, %v2873
    %v2875 = vpop.f32.mrb[0].mxu0
    %v2876 = vpop.f32.mrb[0].mxu0
    %2877 = vdwg.mxu0
    %v2878 = vld [vmem:[#allocation5] sm:$0xff]
    %v2879 = vld [vmem:[#allocation5 + $0x8] sm:$0xff]
    %v2882 = vlaneseq
    %v2883 = vshrl.u32 %v2882, 7
    %v2884 = vsub.s32 0, %v2883
    %v2885 = vrot.slane %v2878, %v2884
    %v2886 = vlaneseq
    %v2887 = vshrl.u32 %v2886, 7
    %v2888 = vsub.s32 1, %v2887
    %v2889 = vrot.slane %v2878, %v2888
    %v2890 = vlaneseq
    %v2891 = vshrl.u32 %v2890, 7
    %v2892 = vsub.s32 2, %v2891
    %v2893 = vrot.slane %v2878, %v2892
    %v2894 = vlaneseq
    %v2895 = vshrl.u32 %v2894, 7
    %v2896 = vsub.s32 3, %v2895
    %v2897 = vrot.slane %v2878, %v2896
    %v2898 = vlaneseq
    %v2899 = vshrl.u32 %v2898, 7
    %v2900 = vsub.s32 4, %v2899
    %v2901 = vrot.slane %v2878, %v2900
    %v2902 = vlaneseq
    %v2903 = vshrl.u32 %v2902, 7
    %v2904 = vsub.s32 5, %v2903
    %v2905 = vrot.slane %v2878, %v2904
    %v2906 = vlaneseq
    %v2907 = vshrl.u32 %v2906, 7
    %v2908 = vsub.s32 6, %v2907
    %v2909 = vrot.slane %v2878, %v2908
    %v2910 = vlaneseq
    %v2911 = vshrl.u32 %v2910, 7
    %v2912 = vsub.s32 7, %v2911
    %v2913 = vrot.slane %v2878, %v2912
    %v2914 = vlaneseq
    %v2915 = vshrl.u32 %v2914, 7
    %v2916 = vsub.s32 0, %v2915
    %v2917 = vrot.slane %v2879, %v2916
    %v2918 = vlaneseq
    %v2919 = vshrl.u32 %v2918, 7
    %v2920 = vsub.s32 1, %v2919
    %v2921 = vrot.slane %v2879, %v2920
    %v2922 = vlaneseq
    %v2923 = vshrl.u32 %v2922, 7
    %v2924 = vsub.s32 2, %v2923
    %v2925 = vrot.slane %v2879, %v2924
    %v2926 = vlaneseq
    %v2927 = vshrl.u32 %v2926, 7
    %v2928 = vsub.s32 3, %v2927
    %v2929 = vrot.slane %v2879, %v2928
    %v2930 = vlaneseq
    %v2931 = vshrl.u32 %v2930, 7
    %v2932 = vsub.s32 4, %v2931
    %v2933 = vrot.slane %v2879, %v2932
    %v2934 = vlaneseq
    %v2935 = vshrl.u32 %v2934, 7
    %v2936 = vsub.s32 5, %v2935
    %v2937 = vrot.slane %v2879, %v2936
    %v2938 = vlaneseq
    %v2939 = vshrl.u32 %v2938, 7
    %v2940 = vsub.s32 6, %v2939
    %v2941 = vrot.slane %v2879, %v2940
    %v2942 = vlaneseq
    %v2943 = vshrl.u32 %v2942, 7
    %v2944 = vsub.s32 7, %v2943
    %v2945 = vrot.slane %v2879, %v2944
    %v2962 = vmul.f32 %v1724, %v2885
    %v2963 = vmul.f32 %v1726, %v2889
    %v2964 = vmul.f32 %v1888, %v2893
    %v2965 = vmul.f32 %v1890, %v2897
    %v2966 = vmul.f32 %v2052, %v2901
    %v2967 = vmul.f32 %v2054, %v2905
    %v2968 = vmul.f32 %v2216, %v2909
    %v2969 = vmul.f32 %v2218, %v2913
    %v2970 = vmul.f32 %v2380, %v2917
    %v2971 = vmul.f32 %v2382, %v2921
    %v2972 = vmul.f32 %v2544, %v2925
    %v2973 = vmul.f32 %v2546, %v2929
    %v2974 = vmul.f32 %v2708, %v2933
    %v2975 = vmul.f32 %v2710, %v2937
    %v2976 = vmul.f32 %v2872, %v2941
    %v2977 = vmul.f32 %v2874, %v2945
    %v2978 = vld [vmem:[#allocation7] sm:$0xff]
    %v2979 = vld [vmem:[#allocation7 + $0x8] sm:$0xff]
    %v2982 = vlaneseq
    %v2983 = vshrl.u32 %v2982, 7
    %v2984 = vsub.s32 0, %v2983
    %v2985 = vrot.slane %v2978, %v2984
    %v2986 = vlaneseq
    %v2987 = vshrl.u32 %v2986, 7
    %v2988 = vsub.s32 1, %v2987
    %v2989 = vrot.slane %v2978, %v2988
    %v2990 = vlaneseq
    %v2991 = vshrl.u32 %v2990, 7
    %v2992 = vsub.s32 2, %v2991
    %v2993 = vrot.slane %v2978, %v2992
    %v2994 = vlaneseq
    %v2995 = vshrl.u32 %v2994, 7
    %v2996 = vsub.s32 3, %v2995
    %v2997 = vrot.slane %v2978, %v2996
    %v2998 = vlaneseq
    %v2999 = vshrl.u32 %v2998, 7
    %v3000 = vsub.s32 4, %v2999
    %v3001 = vrot.slane %v2978, %v3000
    %v3002 = vlaneseq
    %v3003 = vshrl.u32 %v3002, 7
    %v3004 = vsub.s32 5, %v3003
    %v3005 = vrot.slane %v2978, %v3004
    %v3006 = vlaneseq
    %v3007 = vshrl.u32 %v3006, 7
    %v3008 = vsub.s32 6, %v3007
    %v3009 = vrot.slane %v2978, %v3008
    %v3010 = vlaneseq
    %v3011 = vshrl.u32 %v3010, 7
    %v3012 = vsub.s32 7, %v3011
    %v3013 = vrot.slane %v2978, %v3012
    %v3014 = vlaneseq
    %v3015 = vshrl.u32 %v3014, 7
    %v3016 = vsub.s32 0, %v3015
    %v3017 = vrot.slane %v2979, %v3016
    %v3018 = vlaneseq
    %v3019 = vshrl.u32 %v3018, 7
    %v3020 = vsub.s32 1, %v3019
    %v3021 = vrot.slane %v2979, %v3020
    %v3022 = vlaneseq
    %v3023 = vshrl.u32 %v3022, 7
    %v3024 = vsub.s32 2, %v3023
    %v3025 = vrot.slane %v2979, %v3024
    %v3026 = vlaneseq
    %v3027 = vshrl.u32 %v3026, 7
    %v3028 = vsub.s32 3, %v3027
    %v3029 = vrot.slane %v2979, %v3028
    %v3030 = vlaneseq
    %v3031 = vshrl.u32 %v3030, 7
    %v3032 = vsub.s32 4, %v3031
    %v3033 = vrot.slane %v2979, %v3032
    %v3034 = vlaneseq
    %v3035 = vshrl.u32 %v3034, 7
    %v3036 = vsub.s32 5, %v3035
    %v3037 = vrot.slane %v2979, %v3036
    %v3038 = vlaneseq
    %v3039 = vshrl.u32 %v3038, 7
    %v3040 = vsub.s32 6, %v3039
    %v3041 = vrot.slane %v2979, %v3040
    %v3042 = vlaneseq
    %v3043 = vshrl.u32 %v3042, 7
    %v3044 = vsub.s32 7, %v3043
    %v3045 = vrot.slane %v2979, %v3044
    %v3062 = vadd.f32 %v2962, %v2985
    %v3063 = vadd.f32 %v2963, %v2989
    %v3064 = vadd.f32 %v2964, %v2993
    %v3065 = vadd.f32 %v2965, %v2997
    %v3066 = vadd.f32 %v2966, %v3001
    %v3067 = vadd.f32 %v2967, %v3005
    %v3068 = vadd.f32 %v2968, %v3009
    %v3069 = vadd.f32 %v2969, %v3013
    %v3070 = vadd.f32 %v2970, %v3017
    %v3071 = vadd.f32 %v2971, %v3021
    %v3072 = vadd.f32 %v2972, %v3025
    %v3073 = vadd.f32 %v2973, %v3029
    %v3074 = vadd.f32 %v2974, %v3033
    %v3075 = vadd.f32 %v2975, %v3037
    %v3076 = vadd.f32 %v2976, %v3041
    %v3077 = vadd.f32 %v2977, %v3045
    %v3078 = vmax.f32 %v3062, 0.0
    %v3079 = vmax.f32 %v3063, 0.0
    %v3080 = vmax.f32 %v3064, 0.0
    %v3081 = vmax.f32 %v3065, 0.0
    %v3082 = vmax.f32 %v3066, 0.0
    %v3083 = vmax.f32 %v3067, 0.0
    %v3084 = vmax.f32 %v3068, 0.0
    %v3085 = vmax.f32 %v3069, 0.0
    %v3086 = vmax.f32 %v3070, 0.0
    %v3087 = vmax.f32 %v3071, 0.0
    %v3088 = vmax.f32 %v3072, 0.0
    %v3089 = vmax.f32 %v3073, 0.0
    %v3090 = vmax.f32 %v3074, 0.0
    %v3091 = vmax.f32 %v3075, 0.0
    %v3092 = vmax.f32 %v3076, 0.0
    %v3093 = vmax.f32 %v3077, 0.0
    %v3094 = vpack.c.bf16 %v3078, %v3078
    %v3095 = vpack.c.bf16 %v3079, %v3079
    %v3096 = vpack.c.bf16 %v3080, %v3080
    %v3097 = vpack.c.bf16 %v3081, %v3081
    %v3098 = vpack.c.bf16 %v3082, %v3082
    %v3099 = vpack.c.bf16 %v3083, %v3083
    %v3100 = vpack.c.bf16 %v3084, %v3084
    %v3101 = vpack.c.bf16 %v3085, %v3085
    %v3102 = vpack.c.bf16 %v3086, %v3086
    %v3103 = vpack.c.bf16 %v3087, %v3087
    %v3104 = vpack.c.bf16 %v3088, %v3088
    %v3105 = vpack.c.bf16 %v3089, %v3089
    %v3106 = vpack.c.bf16 %v3090, %v3090
    %v3107 = vpack.c.bf16 %v3091, %v3091
    %v3108 = vpack.c.bf16 %v3092, %v3092
    %v3109 = vpack.c.bf16 %v3093, %v3093
    %v3110 = vld [vmem:[#allocation8] sm:$0xff]
    %v3111 = vld [vmem:[#allocation8 + $0x8] sm:$0xff]
    %v3112 = vld [vmem:[#allocation8 + $0x10] sm:$0xff]
    %v3113 = vld [vmem:[#allocation8 + $0x18] sm:$0xff]
    %v3114 = vld [vmem:[#allocation8 + $0x20] sm:$0xff]
    %v3115 = vld [vmem:[#allocation8 + $0x28] sm:$0xff]
    %v3116 = vld [vmem:[#allocation8 + $0x30] sm:$0xff]
    %v3117 = vld [vmem:[#allocation8 + $0x38] sm:$0xff]
    %v3118 = vld [vmem:[#allocation8 + $0x40] sm:$0xff]
    %v3119 = vld [vmem:[#allocation8 + $0x48] sm:$0xff]
    %v3120 = vld [vmem:[#allocation8 + $0x50] sm:$0xff]
    %v3121 = vld [vmem:[#allocation8 + $0x58] sm:$0xff]
    %v3122 = vld [vmem:[#allocation8 + $0x60] sm:$0xff]
    %v3123 = vld [vmem:[#allocation8 + $0x68] sm:$0xff]
    %v3124 = vld [vmem:[#allocation8 + $0x70] sm:$0xff]
    %v3125 = vld [vmem:[#allocation8 + $0x78] sm:$0xff]
    %v3126 = vld [vmem:[#allocation8 + $0x80] sm:$0xff]
    %v3127 = vld [vmem:[#allocation8 + $0x88] sm:$0xff]
    %v3128 = vld [vmem:[#allocation8 + $0x90] sm:$0xff]
    %v3129 = vld [vmem:[#allocation8 + $0x98] sm:$0xff]
    %v3130 = vld [vmem:[#allocation8 + $0xa0] sm:$0xff]
    %v3131 = vld [vmem:[#allocation8 + $0xa8] sm:$0xff]
    %v3132 = vld [vmem:[#allocation8 + $0xb0] sm:$0xff]
    %v3133 = vld [vmem:[#allocation8 + $0xb8] sm:$0xff]
    %v3134 = vld [vmem:[#allocation8 + $0xc0] sm:$0xff]
    %v3135 = vld [vmem:[#allocation8 + $0xc8] sm:$0xff]
    %v3136 = vld [vmem:[#allocation8 + $0xd0] sm:$0xff]
    %v3137 = vld [vmem:[#allocation8 + $0xd8] sm:$0xff]
    %v3138 = vld [vmem:[#allocation8 + $0xe0] sm:$0xff]
    %v3139 = vld [vmem:[#allocation8 + $0xe8] sm:$0xff]
    %v3140 = vld [vmem:[#allocation8 + $0xf0] sm:$0xff]
    %v3141 = vld [vmem:[#allocation8 + $0xf8] sm:$0xff]
    %v3142 = vld [vmem:[#allocation8 + $0x100] sm:$0xff]
    %v3143 = vld [vmem:[#allocation8 + $0x108] sm:$0xff]
    %v3144 = vld [vmem:[#allocation8 + $0x110] sm:$0xff]
    %v3145 = vld [vmem:[#allocation8 + $0x118] sm:$0xff]
    %v3146 = vld [vmem:[#allocation8 + $0x120] sm:$0xff]
    %v3147 = vld [vmem:[#allocation8 + $0x128] sm:$0xff]
    %v3148 = vld [vmem:[#allocation8 + $0x130] sm:$0xff]
    %v3149 = vld [vmem:[#allocation8 + $0x138] sm:$0xff]
    %v3150 = vld [vmem:[#allocation8 + $0x140] sm:$0xff]
    %v3151 = vld [vmem:[#allocation8 + $0x148] sm:$0xff]
    %v3152 = vld [vmem:[#allocation8 + $0x150] sm:$0xff]
    %v3153 = vld [vmem:[#allocation8 + $0x158] sm:$0xff]
    %v3154 = vld [vmem:[#allocation8 + $0x160] sm:$0xff]
    %v3155 = vld [vmem:[#allocation8 + $0x168] sm:$0xff]
    %v3156 = vld [vmem:[#allocation8 + $0x170] sm:$0xff]
    %v3157 = vld [vmem:[#allocation8 + $0x178] sm:$0xff]
    %v3158 = vld [vmem:[#allocation8 + $0x180] sm:$0xff]
    %v3159 = vld [vmem:[#allocation8 + $0x188] sm:$0xff]
    %v3160 = vld [vmem:[#allocation8 + $0x190] sm:$0xff]
    %v3161 = vld [vmem:[#allocation8 + $0x198] sm:$0xff]
    %v3162 = vld [vmem:[#allocation8 + $0x1a0] sm:$0xff]
    %v3163 = vld [vmem:[#allocation8 + $0x1a8] sm:$0xff]
    %v3164 = vld [vmem:[#allocation8 + $0x1b0] sm:$0xff]
    %v3165 = vld [vmem:[#allocation8 + $0x1b8] sm:$0xff]
    %v3166 = vld [vmem:[#allocation8 + $0x1c0] sm:$0xff]
    %v3167 = vld [vmem:[#allocation8 + $0x1c8] sm:$0xff]
    %v3168 = vld [vmem:[#allocation8 + $0x1d0] sm:$0xff]
    %v3169 = vld [vmem:[#allocation8 + $0x1d8] sm:$0xff]
    %v3170 = vld [vmem:[#allocation8 + $0x1e0] sm:$0xff]
    %v3171 = vld [vmem:[#allocation8 + $0x1e8] sm:$0xff]
    %v3172 = vld [vmem:[#allocation8 + $0x1f0] sm:$0xff]
    %v3173 = vld [vmem:[#allocation8 + $0x1f8] sm:$0xff]
    %v3174 = vld [vmem:[#allocation8 + $0x200] sm:$0xff]
    %v3175 = vld [vmem:[#allocation8 + $0x208] sm:$0xff]
    %v3176 = vld [vmem:[#allocation8 + $0x210] sm:$0xff]
    %v3177 = vld [vmem:[#allocation8 + $0x218] sm:$0xff]
    %v3178 = vld [vmem:[#allocation8 + $0x220] sm:$0xff]
    %v3179 = vld [vmem:[#allocation8 + $0x228] sm:$0xff]
    %v3180 = vld [vmem:[#allocation8 + $0x230] sm:$0xff]
    %v3181 = vld [vmem:[#allocation8 + $0x238] sm:$0xff]
    %v3182 = vld [vmem:[#allocation8 + $0x240] sm:$0xff]
    %v3183 = vld [vmem:[#allocation8 + $0x248] sm:$0xff]
    %v3184 = vld [vmem:[#allocation8 + $0x250] sm:$0xff]
    %v3185 = vld [vmem:[#allocation8 + $0x258] sm:$0xff]
    %v3186 = vld [vmem:[#allocation8 + $0x260] sm:$0xff]
    %v3187 = vld [vmem:[#allocation8 + $0x268] sm:$0xff]
    %v3188 = vld [vmem:[#allocation8 + $0x270] sm:$0xff]
    %v3189 = vld [vmem:[#allocation8 + $0x278] sm:$0xff]
    %v3190 = vld [vmem:[#allocation8 + $0x280] sm:$0xff]
    %v3191 = vld [vmem:[#allocation8 + $0x288] sm:$0xff]
    %v3192 = vld [vmem:[#allocation8 + $0x290] sm:$0xff]
    %v3193 = vld [vmem:[#allocation8 + $0x298] sm:$0xff]
    %v3194 = vld [vmem:[#allocation8 + $0x2a0] sm:$0xff]
    %v3195 = vld [vmem:[#allocation8 + $0x2a8] sm:$0xff]
    %v3196 = vld [vmem:[#allocation8 + $0x2b0] sm:$0xff]
    %v3197 = vld [vmem:[#allocation8 + $0x2b8] sm:$0xff]
    %v3198 = vld [vmem:[#allocation8 + $0x2c0] sm:$0xff]
    %v3199 = vld [vmem:[#allocation8 + $0x2c8] sm:$0xff]
    %v3200 = vld [vmem:[#allocation8 + $0x2d0] sm:$0xff]
    %v3201 = vld [vmem:[#allocation8 + $0x2d8] sm:$0xff]
    %v3202 = vld [vmem:[#allocation8 + $0x2e0] sm:$0xff]
    %v3203 = vld [vmem:[#allocation8 + $0x2e8] sm:$0xff]
    %v3204 = vld [vmem:[#allocation8 + $0x2f0] sm:$0xff]
    %v3205 = vld [vmem:[#allocation8 + $0x2f8] sm:$0xff]
    %v3206 = vld [vmem:[#allocation8 + $0x300] sm:$0xff]
    %v3207 = vld [vmem:[#allocation8 + $0x308] sm:$0xff]
    %v3208 = vld [vmem:[#allocation8 + $0x310] sm:$0xff]
    %v3209 = vld [vmem:[#allocation8 + $0x318] sm:$0xff]
    %v3210 = vld [vmem:[#allocation8 + $0x320] sm:$0xff]
    %v3211 = vld [vmem:[#allocation8 + $0x328] sm:$0xff]
    %v3212 = vld [vmem:[#allocation8 + $0x330] sm:$0xff]
    %v3213 = vld [vmem:[#allocation8 + $0x338] sm:$0xff]
    %v3214 = vld [vmem:[#allocation8 + $0x340] sm:$0xff]
    %v3215 = vld [vmem:[#allocation8 + $0x348] sm:$0xff]
    %v3216 = vld [vmem:[#allocation8 + $0x350] sm:$0xff]
    %v3217 = vld [vmem:[#allocation8 + $0x358] sm:$0xff]
    %v3218 = vld [vmem:[#allocation8 + $0x360] sm:$0xff]
    %v3219 = vld [vmem:[#allocation8 + $0x368] sm:$0xff]
    %v3220 = vld [vmem:[#allocation8 + $0x370] sm:$0xff]
    %v3221 = vld [vmem:[#allocation8 + $0x378] sm:$0xff]
    %v3222 = vld [vmem:[#allocation8 + $0x380] sm:$0xff]
    %v3223 = vld [vmem:[#allocation8 + $0x388] sm:$0xff]
    %v3224 = vld [vmem:[#allocation8 + $0x390] sm:$0xff]
    %v3225 = vld [vmem:[#allocation8 + $0x398] sm:$0xff]
    %v3226 = vld [vmem:[#allocation8 + $0x3a0] sm:$0xff]
    %v3227 = vld [vmem:[#allocation8 + $0x3a8] sm:$0xff]
    %v3228 = vld [vmem:[#allocation8 + $0x3b0] sm:$0xff]
    %v3229 = vld [vmem:[#allocation8 + $0x3b8] sm:$0xff]
    %v3230 = vld [vmem:[#allocation8 + $0x3c0] sm:$0xff]
    %v3231 = vld [vmem:[#allocation8 + $0x3c8] sm:$0xff]
    %v3232 = vld [vmem:[#allocation8 + $0x3d0] sm:$0xff]
    %v3233 = vld [vmem:[#allocation8 + $0x3d8] sm:$0xff]
    %v3234 = vld [vmem:[#allocation8 + $0x3e0] sm:$0xff]
    %v3235 = vld [vmem:[#allocation8 + $0x3e8] sm:$0xff]
    %v3236 = vld [vmem:[#allocation8 + $0x3f0] sm:$0xff]
    %v3237 = vld [vmem:[#allocation8 + $0x3f8] sm:$0xff]
    %v3238 = vld [vmem:[#allocation8 + $0x400] sm:$0xff]
    %v3239 = vld [vmem:[#allocation8 + $0x408] sm:$0xff]
    %v3240 = vld [vmem:[#allocation8 + $0x410] sm:$0xff]
    %v3241 = vld [vmem:[#allocation8 + $0x418] sm:$0xff]
    %v3242 = vld [vmem:[#allocation8 + $0x420] sm:$0xff]
    %v3243 = vld [vmem:[#allocation8 + $0x428] sm:$0xff]
    %v3244 = vld [vmem:[#allocation8 + $0x430] sm:$0xff]
    %v3245 = vld [vmem:[#allocation8 + $0x438] sm:$0xff]
    %v3246 = vld [vmem:[#allocation8 + $0x440] sm:$0xff]
    %v3247 = vld [vmem:[#allocation8 + $0x448] sm:$0xff]
    %v3248 = vld [vmem:[#allocation8 + $0x450] sm:$0xff]
    %v3249 = vld [vmem:[#allocation8 + $0x458] sm:$0xff]
    %v3250 = vld [vmem:[#allocation8 + $0x460] sm:$0xff]
    %v3251 = vld [vmem:[#allocation8 + $0x468] sm:$0xff]
    %v3252 = vld [vmem:[#allocation8 + $0x470] sm:$0xff]
    %v3253 = vld [vmem:[#allocation8 + $0x478] sm:$0xff]
    %v3254 = vld [vmem:[#allocation8 + $0x480] sm:$0xff]
    %v3255 = vld [vmem:[#allocation8 + $0x488] sm:$0xff]
    %v3256 = vld [vmem:[#allocation8 + $0x490] sm:$0xff]
    %v3257 = vld [vmem:[#allocation8 + $0x498] sm:$0xff]
    %v3258 = vld [vmem:[#allocation8 + $0x4a0] sm:$0xff]
    %v3259 = vld [vmem:[#allocation8 + $0x4a8] sm:$0xff]
    %v3260 = vld [vmem:[#allocation8 + $0x4b0] sm:$0xff]
    %v3261 = vld [vmem:[#allocation8 + $0x4b8] sm:$0xff]
    %v3262 = vld [vmem:[#allocation8 + $0x4c0] sm:$0xff]
    %v3263 = vld [vmem:[#allocation8 + $0x4c8] sm:$0xff]
    %v3264 = vld [vmem:[#allocation8 + $0x4d0] sm:$0xff]
    %v3265 = vld [vmem:[#allocation8 + $0x4d8] sm:$0xff]
    %v3266 = vld [vmem:[#allocation8 + $0x4e0] sm:$0xff]
    %v3267 = vld [vmem:[#allocation8 + $0x4e8] sm:$0xff]
    %v3268 = vld [vmem:[#allocation8 + $0x4f0] sm:$0xff]
    %v3269 = vld [vmem:[#allocation8 + $0x4f8] sm:$0xff]
    %v3270 = vld [vmem:[#allocation8 + $0x500] sm:$0xff]
    %v3271 = vld [vmem:[#allocation8 + $0x508] sm:$0xff]
    %v3272 = vld [vmem:[#allocation8 + $0x510] sm:$0xff]
    %v3273 = vld [vmem:[#allocation8 + $0x518] sm:$0xff]
    %v3274 = vld [vmem:[#allocation8 + $0x520] sm:$0xff]
    %v3275 = vld [vmem:[#allocation8 + $0x528] sm:$0xff]
    %v3276 = vld [vmem:[#allocation8 + $0x530] sm:$0xff]
    %v3277 = vld [vmem:[#allocation8 + $0x538] sm:$0xff]
    %v3278 = vld [vmem:[#allocation8 + $0x540] sm:$0xff]
    %v3279 = vld [vmem:[#allocation8 + $0x548] sm:$0xff]
    %v3280 = vld [vmem:[#allocation8 + $0x550] sm:$0xff]
    %v3281 = vld [vmem:[#allocation8 + $0x558] sm:$0xff]
    %v3282 = vld [vmem:[#allocation8 + $0x560] sm:$0xff]
    %v3283 = vld [vmem:[#allocation8 + $0x568] sm:$0xff]
    %v3284 = vld [vmem:[#allocation8 + $0x570] sm:$0xff]
    %v3285 = vld [vmem:[#allocation8 + $0x578] sm:$0xff]
    %v3286 = vld [vmem:[#allocation8 + $0x580] sm:$0xff]
    %v3287 = vld [vmem:[#allocation8 + $0x588] sm:$0xff]
    %v3288 = vld [vmem:[#allocation8 + $0x590] sm:$0xff]
    %v3289 = vld [vmem:[#allocation8 + $0x598] sm:$0xff]
    %v3290 = vld [vmem:[#allocation8 + $0x5a0] sm:$0xff]
    %v3291 = vld [vmem:[#allocation8 + $0x5a8] sm:$0xff]
    %v3292 = vld [vmem:[#allocation8 + $0x5b0] sm:$0xff]
    %v3293 = vld [vmem:[#allocation8 + $0x5b8] sm:$0xff]
    %v3294 = vld [vmem:[#allocation8 + $0x5c0] sm:$0xff]
    %v3295 = vld [vmem:[#allocation8 + $0x5c8] sm:$0xff]
    %v3296 = vld [vmem:[#allocation8 + $0x5d0] sm:$0xff]
    %v3297 = vld [vmem:[#allocation8 + $0x5d8] sm:$0xff]
    %v3298 = vld [vmem:[#allocation8 + $0x5e0] sm:$0xff]
    %v3299 = vld [vmem:[#allocation8 + $0x5e8] sm:$0xff]
    %v3300 = vld [vmem:[#allocation8 + $0x5f0] sm:$0xff]
    %v3301 = vld [vmem:[#allocation8 + $0x5f8] sm:$0xff]
    %v3302 = vld [vmem:[#allocation8 + $0x600] sm:$0xff]
    %v3303 = vld [vmem:[#allocation8 + $0x608] sm:$0xff]
    %v3304 = vld [vmem:[#allocation8 + $0x610] sm:$0xff]
    %v3305 = vld [vmem:[#allocation8 + $0x618] sm:$0xff]
    %v3306 = vld [vmem:[#allocation8 + $0x620] sm:$0xff]
    %v3307 = vld [vmem:[#allocation8 + $0x628] sm:$0xff]
    %v3308 = vld [vmem:[#allocation8 + $0x630] sm:$0xff]
    %v3309 = vld [vmem:[#allocation8 + $0x638] sm:$0xff]
    %v3310 = vld [vmem:[#allocation8 + $0x640] sm:$0xff]
    %v3311 = vld [vmem:[#allocation8 + $0x648] sm:$0xff]
    %v3312 = vld [vmem:[#allocation8 + $0x650] sm:$0xff]
    %v3313 = vld [vmem:[#allocation8 + $0x658] sm:$0xff]
    %v3314 = vld [vmem:[#allocation8 + $0x660] sm:$0xff]
    %v3315 = vld [vmem:[#allocation8 + $0x668] sm:$0xff]
    %v3316 = vld [vmem:[#allocation8 + $0x670] sm:$0xff]
    %v3317 = vld [vmem:[#allocation8 + $0x678] sm:$0xff]
    %v3318 = vld [vmem:[#allocation8 + $0x680] sm:$0xff]
    %v3319 = vld [vmem:[#allocation8 + $0x688] sm:$0xff]
    %v3320 = vld [vmem:[#allocation8 + $0x690] sm:$0xff]
    %v3321 = vld [vmem:[#allocation8 + $0x698] sm:$0xff]
    %v3322 = vld [vmem:[#allocation8 + $0x6a0] sm:$0xff]
    %v3323 = vld [vmem:[#allocation8 + $0x6a8] sm:$0xff]
    %v3324 = vld [vmem:[#allocation8 + $0x6b0] sm:$0xff]
    %v3325 = vld [vmem:[#allocation8 + $0x6b8] sm:$0xff]
    %v3326 = vld [vmem:[#allocation8 + $0x6c0] sm:$0xff]
    %v3327 = vld [vmem:[#allocation8 + $0x6c8] sm:$0xff]
    %v3328 = vld [vmem:[#allocation8 + $0x6d0] sm:$0xff]
    %v3329 = vld [vmem:[#allocation8 + $0x6d8] sm:$0xff]
    %v3330 = vld [vmem:[#allocation8 + $0x6e0] sm:$0xff]
    %v3331 = vld [vmem:[#allocation8 + $0x6e8] sm:$0xff]
    %v3332 = vld [vmem:[#allocation8 + $0x6f0] sm:$0xff]
    %v3333 = vld [vmem:[#allocation8 + $0x6f8] sm:$0xff]
    %v3334 = vld [vmem:[#allocation8 + $0x700] sm:$0xff]
    %v3335 = vld [vmem:[#allocation8 + $0x708] sm:$0xff]
    %v3336 = vld [vmem:[#allocation8 + $0x710] sm:$0xff]
    %v3337 = vld [vmem:[#allocation8 + $0x718] sm:$0xff]
    %v3338 = vld [vmem:[#allocation8 + $0x720] sm:$0xff]
    %v3339 = vld [vmem:[#allocation8 + $0x728] sm:$0xff]
    %v3340 = vld [vmem:[#allocation8 + $0x730] sm:$0xff]
    %v3341 = vld [vmem:[#allocation8 + $0x738] sm:$0xff]
    %v3342 = vld [vmem:[#allocation8 + $0x740] sm:$0xff]
    %v3343 = vld [vmem:[#allocation8 + $0x748] sm:$0xff]
    %v3344 = vld [vmem:[#allocation8 + $0x750] sm:$0xff]
    %v3345 = vld [vmem:[#allocation8 + $0x758] sm:$0xff]
    %v3346 = vld [vmem:[#allocation8 + $0x760] sm:$0xff]
    %v3347 = vld [vmem:[#allocation8 + $0x768] sm:$0xff]
    %v3348 = vld [vmem:[#allocation8 + $0x770] sm:$0xff]
    %v3349 = vld [vmem:[#allocation8 + $0x778] sm:$0xff]
    %v3350 = vld [vmem:[#allocation8 + $0x780] sm:$0xff]
    %v3351 = vld [vmem:[#allocation8 + $0x788] sm:$0xff]
    %v3352 = vld [vmem:[#allocation8 + $0x790] sm:$0xff]
    %v3353 = vld [vmem:[#allocation8 + $0x798] sm:$0xff]
    %v3354 = vld [vmem:[#allocation8 + $0x7a0] sm:$0xff]
    %v3355 = vld [vmem:[#allocation8 + $0x7a8] sm:$0xff]
    %v3356 = vld [vmem:[#allocation8 + $0x7b0] sm:$0xff]
    %v3357 = vld [vmem:[#allocation8 + $0x7b8] sm:$0xff]
    %v3358 = vld [vmem:[#allocation8 + $0x7c0] sm:$0xff]
    %v3359 = vld [vmem:[#allocation8 + $0x7c8] sm:$0xff]
    %v3360 = vld [vmem:[#allocation8 + $0x7d0] sm:$0xff]
    %v3361 = vld [vmem:[#allocation8 + $0x7d8] sm:$0xff]
    %v3362 = vld [vmem:[#allocation8 + $0x7e0] sm:$0xff]
    %v3363 = vld [vmem:[#allocation8 + $0x7e8] sm:$0xff]
    %v3364 = vld [vmem:[#allocation8 + $0x7f0] sm:$0xff]
    %v3365 = vld [vmem:[#allocation8 + $0x7f8] sm:$0xff]
    %v3366 = vld [vmem:[#allocation8 + $0x800] sm:$0xff]
    %v3367 = vld [vmem:[#allocation8 + $0x808] sm:$0xff]
    %v3368 = vld [vmem:[#allocation8 + $0x810] sm:$0xff]
    %v3369 = vld [vmem:[#allocation8 + $0x818] sm:$0xff]
    %v3370 = vld [vmem:[#allocation8 + $0x820] sm:$0xff]
    %v3371 = vld [vmem:[#allocation8 + $0x828] sm:$0xff]
    %v3372 = vld [vmem:[#allocation8 + $0x830] sm:$0xff]
    %v3373 = vld [vmem:[#allocation8 + $0x838] sm:$0xff]
    %v3374 = vld [vmem:[#allocation8 + $0x840] sm:$0xff]
    %v3375 = vld [vmem:[#allocation8 + $0x848] sm:$0xff]
    %v3376 = vld [vmem:[#allocation8 + $0x850] sm:$0xff]
    %v3377 = vld [vmem:[#allocation8 + $0x858] sm:$0xff]
    %v3378 = vld [vmem:[#allocation8 + $0x860] sm:$0xff]
    %v3379 = vld [vmem:[#allocation8 + $0x868] sm:$0xff]
    %v3380 = vld [vmem:[#allocation8 + $0x870] sm:$0xff]
    %v3381 = vld [vmem:[#allocation8 + $0x878] sm:$0xff]
    %v3382 = vld [vmem:[#allocation8 + $0x880] sm:$0xff]
    %v3383 = vld [vmem:[#allocation8 + $0x888] sm:$0xff]
    %v3384 = vld [vmem:[#allocation8 + $0x890] sm:$0xff]
    %v3385 = vld [vmem:[#allocation8 + $0x898] sm:$0xff]
    %v3386 = vld [vmem:[#allocation8 + $0x8a0] sm:$0xff]
    %v3387 = vld [vmem:[#allocation8 + $0x8a8] sm:$0xff]
    %v3388 = vld [vmem:[#allocation8 + $0x8b0] sm:$0xff]
    %v3389 = vld [vmem:[#allocation8 + $0x8b8] sm:$0xff]
    %v3390 = vld [vmem:[#allocation8 + $0x8c0] sm:$0xff]
    %v3391 = vld [vmem:[#allocation8 + $0x8c8] sm:$0xff]
    %v3392 = vld [vmem:[#allocation8 + $0x8d0] sm:$0xff]
    %v3393 = vld [vmem:[#allocation8 + $0x8d8] sm:$0xff]
    %v3394 = vld [vmem:[#allocation8 + $0x8e0] sm:$0xff]
    %v3395 = vld [vmem:[#allocation8 + $0x8e8] sm:$0xff]
    %v3396 = vld [vmem:[#allocation8 + $0x8f0] sm:$0xff]
    %v3397 = vld [vmem:[#allocation8 + $0x8f8] sm:$0xff]
    %v3398 = vld [vmem:[#allocation8 + $0x900] sm:$0xff]
    %v3399 = vld [vmem:[#allocation8 + $0x908] sm:$0xff]
    %v3400 = vld [vmem:[#allocation8 + $0x910] sm:$0xff]
    %v3401 = vld [vmem:[#allocation8 + $0x918] sm:$0xff]
    %v3402 = vld [vmem:[#allocation8 + $0x920] sm:$0xff]
    %v3403 = vld [vmem:[#allocation8 + $0x928] sm:$0xff]
    %v3404 = vld [vmem:[#allocation8 + $0x930] sm:$0xff]
    %v3405 = vld [vmem:[#allocation8 + $0x938] sm:$0xff]
    %v3406 = vld [vmem:[#allocation8 + $0x940] sm:$0xff]
    %v3407 = vld [vmem:[#allocation8 + $0x948] sm:$0xff]
    %v3408 = vld [vmem:[#allocation8 + $0x950] sm:$0xff]
    %v3409 = vld [vmem:[#allocation8 + $0x958] sm:$0xff]
    %v3410 = vld [vmem:[#allocation8 + $0x960] sm:$0xff]
    %v3411 = vld [vmem:[#allocation8 + $0x968] sm:$0xff]
    %v3412 = vld [vmem:[#allocation8 + $0x970] sm:$0xff]
    %v3413 = vld [vmem:[#allocation8 + $0x978] sm:$0xff]
    %v3414 = vld [vmem:[#allocation8 + $0x980] sm:$0xff]
    %v3415 = vld [vmem:[#allocation8 + $0x988] sm:$0xff]
    %v3416 = vld [vmem:[#allocation8 + $0x990] sm:$0xff]
    %v3417 = vld [vmem:[#allocation8 + $0x998] sm:$0xff]
    %v3418 = vld [vmem:[#allocation8 + $0x9a0] sm:$0xff]
    %v3419 = vld [vmem:[#allocation8 + $0x9a8] sm:$0xff]
    %v3420 = vld [vmem:[#allocation8 + $0x9b0] sm:$0xff]
    %v3421 = vld [vmem:[#allocation8 + $0x9b8] sm:$0xff]
    %v3422 = vld [vmem:[#allocation8 + $0x9c0] sm:$0xff]
    %v3423 = vld [vmem:[#allocation8 + $0x9c8] sm:$0xff]
    %v3424 = vld [vmem:[#allocation8 + $0x9d0] sm:$0xff]
    %v3425 = vld [vmem:[#allocation8 + $0x9d8] sm:$0xff]
    %v3426 = vld [vmem:[#allocation8 + $0x9e0] sm:$0xff]
    %v3427 = vld [vmem:[#allocation8 + $0x9e8] sm:$0xff]
    %v3428 = vld [vmem:[#allocation8 + $0x9f0] sm:$0xff]
    %v3429 = vld [vmem:[#allocation8 + $0x9f8] sm:$0xff]
    %v3430 = vld [vmem:[#allocation8 + $0xa00] sm:$0xff]
    %v3431 = vld [vmem:[#allocation8 + $0xa08] sm:$0xff]
    %v3432 = vld [vmem:[#allocation8 + $0xa10] sm:$0xff]
    %v3433 = vld [vmem:[#allocation8 + $0xa18] sm:$0xff]
    %v3434 = vld [vmem:[#allocation8 + $0xa20] sm:$0xff]
    %v3435 = vld [vmem:[#allocation8 + $0xa28] sm:$0xff]
    %v3436 = vld [vmem:[#allocation8 + $0xa30] sm:$0xff]
    %v3437 = vld [vmem:[#allocation8 + $0xa38] sm:$0xff]
    %v3438 = vld [vmem:[#allocation8 + $0xa40] sm:$0xff]
    %v3439 = vld [vmem:[#allocation8 + $0xa48] sm:$0xff]
    %v3440 = vld [vmem:[#allocation8 + $0xa50] sm:$0xff]
    %v3441 = vld [vmem:[#allocation8 + $0xa58] sm:$0xff]
    %v3442 = vld [vmem:[#allocation8 + $0xa60] sm:$0xff]
    %v3443 = vld [vmem:[#allocation8 + $0xa68] sm:$0xff]
    %v3444 = vld [vmem:[#allocation8 + $0xa70] sm:$0xff]
    %v3445 = vld [vmem:[#allocation8 + $0xa78] sm:$0xff]
    %v3446 = vld [vmem:[#allocation8 + $0xa80] sm:$0xff]
    %v3447 = vld [vmem:[#allocation8 + $0xa88] sm:$0xff]
    %v3448 = vld [vmem:[#allocation8 + $0xa90] sm:$0xff]
    %v3449 = vld [vmem:[#allocation8 + $0xa98] sm:$0xff]
    %v3450 = vld [vmem:[#allocation8 + $0xaa0] sm:$0xff]
    %v3451 = vld [vmem:[#allocation8 + $0xaa8] sm:$0xff]
    %v3452 = vld [vmem:[#allocation8 + $0xab0] sm:$0xff]
    %v3453 = vld [vmem:[#allocation8 + $0xab8] sm:$0xff]
    %v3454 = vld [vmem:[#allocation8 + $0xac0] sm:$0xff]
    %v3455 = vld [vmem:[#allocation8 + $0xac8] sm:$0xff]
    %v3456 = vld [vmem:[#allocation8 + $0xad0] sm:$0xff]
    %v3457 = vld [vmem:[#allocation8 + $0xad8] sm:$0xff]
    %v3458 = vld [vmem:[#allocation8 + $0xae0] sm:$0xff]
    %v3459 = vld [vmem:[#allocation8 + $0xae8] sm:$0xff]
    %v3460 = vld [vmem:[#allocation8 + $0xaf0] sm:$0xff]
    %v3461 = vld [vmem:[#allocation8 + $0xaf8] sm:$0xff]
    %v3462 = vld [vmem:[#allocation8 + $0xb00] sm:$0xff]
    %v3463 = vld [vmem:[#allocation8 + $0xb08] sm:$0xff]
    %v3464 = vld [vmem:[#allocation8 + $0xb10] sm:$0xff]
    %v3465 = vld [vmem:[#allocation8 + $0xb18] sm:$0xff]
    %v3466 = vld [vmem:[#allocation8 + $0xb20] sm:$0xff]
    %v3467 = vld [vmem:[#allocation8 + $0xb28] sm:$0xff]
    %v3468 = vld [vmem:[#allocation8 + $0xb30] sm:$0xff]
    %v3469 = vld [vmem:[#allocation8 + $0xb38] sm:$0xff]
    %v3470 = vld [vmem:[#allocation8 + $0xb40] sm:$0xff]
    %v3471 = vld [vmem:[#allocation8 + $0xb48] sm:$0xff]
    %v3472 = vld [vmem:[#allocation8 + $0xb50] sm:$0xff]
    %v3473 = vld [vmem:[#allocation8 + $0xb58] sm:$0xff]
    %v3474 = vld [vmem:[#allocation8 + $0xb60] sm:$0xff]
    %v3475 = vld [vmem:[#allocation8 + $0xb68] sm:$0xff]
    %v3476 = vld [vmem:[#allocation8 + $0xb70] sm:$0xff]
    %v3477 = vld [vmem:[#allocation8 + $0xb78] sm:$0xff]
    %v3478 = vld [vmem:[#allocation8 + $0xb80] sm:$0xff]
    %v3479 = vld [vmem:[#allocation8 + $0xb88] sm:$0xff]
    %v3480 = vld [vmem:[#allocation8 + $0xb90] sm:$0xff]
    %v3481 = vld [vmem:[#allocation8 + $0xb98] sm:$0xff]
    %v3482 = vld [vmem:[#allocation8 + $0xba0] sm:$0xff]
    %v3483 = vld [vmem:[#allocation8 + $0xba8] sm:$0xff]
    %v3484 = vld [vmem:[#allocation8 + $0xbb0] sm:$0xff]
    %v3485 = vld [vmem:[#allocation8 + $0xbb8] sm:$0xff]
    %v3486 = vld [vmem:[#allocation8 + $0xbc0] sm:$0xff]
    %v3487 = vld [vmem:[#allocation8 + $0xbc8] sm:$0xff]
    %v3488 = vld [vmem:[#allocation8 + $0xbd0] sm:$0xff]
    %v3489 = vld [vmem:[#allocation8 + $0xbd8] sm:$0xff]
    %v3490 = vld [vmem:[#allocation8 + $0xbe0] sm:$0xff]
    %v3491 = vld [vmem:[#allocation8 + $0xbe8] sm:$0xff]
    %v3492 = vld [vmem:[#allocation8 + $0xbf0] sm:$0xff]
    %v3493 = vld [vmem:[#allocation8 + $0xbf8] sm:$0xff]
    %v3494 = vld [vmem:[#allocation8 + $0xc00] sm:$0xff]
    %v3495 = vld [vmem:[#allocation8 + $0xc08] sm:$0xff]
    %v3496 = vld [vmem:[#allocation8 + $0xc10] sm:$0xff]
    %v3497 = vld [vmem:[#allocation8 + $0xc18] sm:$0xff]
    %v3498 = vld [vmem:[#allocation8 + $0xc20] sm:$0xff]
    %v3499 = vld [vmem:[#allocation8 + $0xc28] sm:$0xff]
    %v3500 = vld [vmem:[#allocation8 + $0xc30] sm:$0xff]
    %v3501 = vld [vmem:[#allocation8 + $0xc38] sm:$0xff]
    %v3502 = vld [vmem:[#allocation8 + $0xc40] sm:$0xff]
    %v3503 = vld [vmem:[#allocation8 + $0xc48] sm:$0xff]
    %v3504 = vld [vmem:[#allocation8 + $0xc50] sm:$0xff]
    %v3505 = vld [vmem:[#allocation8 + $0xc58] sm:$0xff]
    %v3506 = vld [vmem:[#allocation8 + $0xc60] sm:$0xff]
    %v3507 = vld [vmem:[#allocation8 + $0xc68] sm:$0xff]
    %v3508 = vld [vmem:[#allocation8 + $0xc70] sm:$0xff]
    %v3509 = vld [vmem:[#allocation8 + $0xc78] sm:$0xff]
    %v3510 = vld [vmem:[#allocation8 + $0xc80] sm:$0xff]
    %v3511 = vld [vmem:[#allocation8 + $0xc88] sm:$0xff]
    %v3512 = vld [vmem:[#allocation8 + $0xc90] sm:$0xff]
    %v3513 = vld [vmem:[#allocation8 + $0xc98] sm:$0xff]
    %v3514 = vld [vmem:[#allocation8 + $0xca0] sm:$0xff]
    %v3515 = vld [vmem:[#allocation8 + $0xca8] sm:$0xff]
    %v3516 = vld [vmem:[#allocation8 + $0xcb0] sm:$0xff]
    %v3517 = vld [vmem:[#allocation8 + $0xcb8] sm:$0xff]
    %v3518 = vld [vmem:[#allocation8 + $0xcc0] sm:$0xff]
    %v3519 = vld [vmem:[#allocation8 + $0xcc8] sm:$0xff]
    %v3520 = vld [vmem:[#allocation8 + $0xcd0] sm:$0xff]
    %v3521 = vld [vmem:[#allocation8 + $0xcd8] sm:$0xff]
    %v3522 = vld [vmem:[#allocation8 + $0xce0] sm:$0xff]
    %v3523 = vld [vmem:[#allocation8 + $0xce8] sm:$0xff]
    %v3524 = vld [vmem:[#allocation8 + $0xcf0] sm:$0xff]
    %v3525 = vld [vmem:[#allocation8 + $0xcf8] sm:$0xff]
    %v3526 = vld [vmem:[#allocation8 + $0xd00] sm:$0xff]
    %v3527 = vld [vmem:[#allocation8 + $0xd08] sm:$0xff]
    %v3528 = vld [vmem:[#allocation8 + $0xd10] sm:$0xff]
    %v3529 = vld [vmem:[#allocation8 + $0xd18] sm:$0xff]
    %v3530 = vld [vmem:[#allocation8 + $0xd20] sm:$0xff]
    %v3531 = vld [vmem:[#allocation8 + $0xd28] sm:$0xff]
    %v3532 = vld [vmem:[#allocation8 + $0xd30] sm:$0xff]
    %v3533 = vld [vmem:[#allocation8 + $0xd38] sm:$0xff]
    %v3534 = vld [vmem:[#allocation8 + $0xd40] sm:$0xff]
    %v3535 = vld [vmem:[#allocation8 + $0xd48] sm:$0xff]
    %v3536 = vld [vmem:[#allocation8 + $0xd50] sm:$0xff]
    %v3537 = vld [vmem:[#allocation8 + $0xd58] sm:$0xff]
    %v3538 = vld [vmem:[#allocation8 + $0xd60] sm:$0xff]
    %v3539 = vld [vmem:[#allocation8 + $0xd68] sm:$0xff]
    %v3540 = vld [vmem:[#allocation8 + $0xd70] sm:$0xff]
    %v3541 = vld [vmem:[#allocation8 + $0xd78] sm:$0xff]
    %v3542 = vld [vmem:[#allocation8 + $0xd80] sm:$0xff]
    %v3543 = vld [vmem:[#allocation8 + $0xd88] sm:$0xff]
    %v3544 = vld [vmem:[#allocation8 + $0xd90] sm:$0xff]
    %v3545 = vld [vmem:[#allocation8 + $0xd98] sm:$0xff]
    %v3546 = vld [vmem:[#allocation8 + $0xda0] sm:$0xff]
    %v3547 = vld [vmem:[#allocation8 + $0xda8] sm:$0xff]
    %v3548 = vld [vmem:[#allocation8 + $0xdb0] sm:$0xff]
    %v3549 = vld [vmem:[#allocation8 + $0xdb8] sm:$0xff]
    %v3550 = vld [vmem:[#allocation8 + $0xdc0] sm:$0xff]
    %v3551 = vld [vmem:[#allocation8 + $0xdc8] sm:$0xff]
    %v3552 = vld [vmem:[#allocation8 + $0xdd0] sm:$0xff]
    %v3553 = vld [vmem:[#allocation8 + $0xdd8] sm:$0xff]
    %v3554 = vld [vmem:[#allocation8 + $0xde0] sm:$0xff]
    %v3555 = vld [vmem:[#allocation8 + $0xde8] sm:$0xff]
    %v3556 = vld [vmem:[#allocation8 + $0xdf0] sm:$0xff]
    %v3557 = vld [vmem:[#allocation8 + $0xdf8] sm:$0xff]
    %v3558 = vld [vmem:[#allocation8 + $0xe00] sm:$0xff]
    %v3559 = vld [vmem:[#allocation8 + $0xe08] sm:$0xff]
    %v3560 = vld [vmem:[#allocation8 + $0xe10] sm:$0xff]
    %v3561 = vld [vmem:[#allocation8 + $0xe18] sm:$0xff]
    %v3562 = vld [vmem:[#allocation8 + $0xe20] sm:$0xff]
    %v3563 = vld [vmem:[#allocation8 + $0xe28] sm:$0xff]
    %v3564 = vld [vmem:[#allocation8 + $0xe30] sm:$0xff]
    %v3565 = vld [vmem:[#allocation8 + $0xe38] sm:$0xff]
    %v3566 = vld [vmem:[#allocation8 + $0xe40] sm:$0xff]
    %v3567 = vld [vmem:[#allocation8 + $0xe48] sm:$0xff]
    %v3568 = vld [vmem:[#allocation8 + $0xe50] sm:$0xff]
    %v3569 = vld [vmem:[#allocation8 + $0xe58] sm:$0xff]
    %v3570 = vld [vmem:[#allocation8 + $0xe60] sm:$0xff]
    %v3571 = vld [vmem:[#allocation8 + $0xe68] sm:$0xff]
    %v3572 = vld [vmem:[#allocation8 + $0xe70] sm:$0xff]
    %v3573 = vld [vmem:[#allocation8 + $0xe78] sm:$0xff]
    %v3574 = vld [vmem:[#allocation8 + $0xe80] sm:$0xff]
    %v3575 = vld [vmem:[#allocation8 + $0xe88] sm:$0xff]
    %v3576 = vld [vmem:[#allocation8 + $0xe90] sm:$0xff]
    %v3577 = vld [vmem:[#allocation8 + $0xe98] sm:$0xff]
    %v3578 = vld [vmem:[#allocation8 + $0xea0] sm:$0xff]
    %v3579 = vld [vmem:[#allocation8 + $0xea8] sm:$0xff]
    %v3580 = vld [vmem:[#allocation8 + $0xeb0] sm:$0xff]
    %v3581 = vld [vmem:[#allocation8 + $0xeb8] sm:$0xff]
    %v3582 = vld [vmem:[#allocation8 + $0xec0] sm:$0xff]
    %v3583 = vld [vmem:[#allocation8 + $0xec8] sm:$0xff]
    %v3584 = vld [vmem:[#allocation8 + $0xed0] sm:$0xff]
    %v3585 = vld [vmem:[#allocation8 + $0xed8] sm:$0xff]
    %v3586 = vld [vmem:[#allocation8 + $0xee0] sm:$0xff]
    %v3587 = vld [vmem:[#allocation8 + $0xee8] sm:$0xff]
    %v3588 = vld [vmem:[#allocation8 + $0xef0] sm:$0xff]
    %v3589 = vld [vmem:[#allocation8 + $0xef8] sm:$0xff]
    %v3590 = vld [vmem:[#allocation8 + $0xf00] sm:$0xff]
    %v3591 = vld [vmem:[#allocation8 + $0xf08] sm:$0xff]
    %v3592 = vld [vmem:[#allocation8 + $0xf10] sm:$0xff]
    %v3593 = vld [vmem:[#allocation8 + $0xf18] sm:$0xff]
    %v3594 = vld [vmem:[#allocation8 + $0xf20] sm:$0xff]
    %v3595 = vld [vmem:[#allocation8 + $0xf28] sm:$0xff]
    %v3596 = vld [vmem:[#allocation8 + $0xf30] sm:$0xff]
    %v3597 = vld [vmem:[#allocation8 + $0xf38] sm:$0xff]
    %v3598 = vld [vmem:[#allocation8 + $0xf40] sm:$0xff]
    %v3599 = vld [vmem:[#allocation8 + $0xf48] sm:$0xff]
    %v3600 = vld [vmem:[#allocation8 + $0xf50] sm:$0xff]
    %v3601 = vld [vmem:[#allocation8 + $0xf58] sm:$0xff]
    %v3602 = vld [vmem:[#allocation8 + $0xf60] sm:$0xff]
    %v3603 = vld [vmem:[#allocation8 + $0xf68] sm:$0xff]
    %v3604 = vld [vmem:[#allocation8 + $0xf70] sm:$0xff]
    %v3605 = vld [vmem:[#allocation8 + $0xf78] sm:$0xff]
    %v3606 = vld [vmem:[#allocation8 + $0xf80] sm:$0xff]
    %v3607 = vld [vmem:[#allocation8 + $0xf88] sm:$0xff]
    %v3608 = vld [vmem:[#allocation8 + $0xf90] sm:$0xff]
    %v3609 = vld [vmem:[#allocation8 + $0xf98] sm:$0xff]
    %v3610 = vld [vmem:[#allocation8 + $0xfa0] sm:$0xff]
    %v3611 = vld [vmem:[#allocation8 + $0xfa8] sm:$0xff]
    %v3612 = vld [vmem:[#allocation8 + $0xfb0] sm:$0xff]
    %v3613 = vld [vmem:[#allocation8 + $0xfb8] sm:$0xff]
    %v3614 = vld [vmem:[#allocation8 + $0xfc0] sm:$0xff]
    %v3615 = vld [vmem:[#allocation8 + $0xfc8] sm:$0xff]
    %v3616 = vld [vmem:[#allocation8 + $0xfd0] sm:$0xff]
    %v3617 = vld [vmem:[#allocation8 + $0xfd8] sm:$0xff]
    %v3618 = vld [vmem:[#allocation8 + $0xfe0] sm:$0xff]
    %v3619 = vld [vmem:[#allocation8 + $0xfe8] sm:$0xff]
    %v3620 = vld [vmem:[#allocation8 + $0xff0] sm:$0xff]
    %v3621 = vld [vmem:[#allocation8 + $0xff8] sm:$0xff]
    %v3622 = vunpack.c.l.s8.bf16 %v3110
    %v3623 = vunpack.c.l.s8.bf16 %v3111
    %v3624 = vunpack.c.l.s8.bf16 %v3112
    %v3625 = vunpack.c.l.s8.bf16 %v3113
    %v3626 = vunpack.c.l.s8.bf16 %v3114
    %v3627 = vunpack.c.l.s8.bf16 %v3115
    %v3628 = vunpack.c.l.s8.bf16 %v3116
    %v3629 = vunpack.c.l.s8.bf16 %v3117
    %v3630 = vunpack.c.h.s8.bf16 %v3110
    %v3631 = vunpack.c.h.s8.bf16 %v3111
    %v3632 = vunpack.c.h.s8.bf16 %v3112
    %v3633 = vunpack.c.h.s8.bf16 %v3113
    %v3634 = vunpack.c.h.s8.bf16 %v3114
    %v3635 = vunpack.c.h.s8.bf16 %v3115
    %v3636 = vunpack.c.h.s8.bf16 %v3116
    %v3637 = vunpack.c.h.s8.bf16 %v3117
    %v3638 = vunpack.c.l.s8.bf16 %v3118
    %v3639 = vunpack.c.l.s8.bf16 %v3119
    %v3640 = vunpack.c.l.s8.bf16 %v3120
    %v3641 = vunpack.c.l.s8.bf16 %v3121
    %v3642 = vunpack.c.l.s8.bf16 %v3122
    %v3643 = vunpack.c.l.s8.bf16 %v3123
    %v3644 = vunpack.c.l.s8.bf16 %v3124
    %v3645 = vunpack.c.l.s8.bf16 %v3125
    %v3646 = vunpack.c.h.s8.bf16 %v3118
    %v3647 = vunpack.c.h.s8.bf16 %v3119
    %v3648 = vunpack.c.h.s8.bf16 %v3120
    %v3649 = vunpack.c.h.s8.bf16 %v3121
    %v3650 = vunpack.c.h.s8.bf16 %v3122
    %v3651 = vunpack.c.h.s8.bf16 %v3123
    %v3652 = vunpack.c.h.s8.bf16 %v3124
    %v3653 = vunpack.c.h.s8.bf16 %v3125
    %v3654 = vunpack.c.l.s8.bf16 %v3126
    %v3655 = vunpack.c.l.s8.bf16 %v3127
    %v3656 = vunpack.c.l.s8.bf16 %v3128
    %v3657 = vunpack.c.l.s8.bf16 %v3129
    %v3658 = vunpack.c.l.s8.bf16 %v3130
    %v3659 = vunpack.c.l.s8.bf16 %v3131
    %v3660 = vunpack.c.l.s8.bf16 %v3132
    %v3661 = vunpack.c.l.s8.bf16 %v3133
    %v3662 = vunpack.c.h.s8.bf16 %v3126
    %v3663 = vunpack.c.h.s8.bf16 %v3127
    %v3664 = vunpack.c.h.s8.bf16 %v3128
    %v3665 = vunpack.c.h.s8.bf16 %v3129
    %v3666 = vunpack.c.h.s8.bf16 %v3130
    %v3667 = vunpack.c.h.s8.bf16 %v3131
    %v3668 = vunpack.c.h.s8.bf16 %v3132
    %v3669 = vunpack.c.h.s8.bf16 %v3133
    %v3670 = vunpack.c.l.s8.bf16 %v3134
    %v3671 = vunpack.c.l.s8.bf16 %v3135
    %v3672 = vunpack.c.l.s8.bf16 %v3136
    %v3673 = vunpack.c.l.s8.bf16 %v3137
    %v3674 = vunpack.c.l.s8.bf16 %v3138
    %v3675 = vunpack.c.l.s8.bf16 %v3139
    %v3676 = vunpack.c.l.s8.bf16 %v3140
    %v3677 = vunpack.c.l.s8.bf16 %v3141
    %v3678 = vunpack.c.h.s8.bf16 %v3134
    %v3679 = vunpack.c.h.s8.bf16 %v3135
    %v3680 = vunpack.c.h.s8.bf16 %v3136
    %v3681 = vunpack.c.h.s8.bf16 %v3137
    %v3682 = vunpack.c.h.s8.bf16 %v3138
    %v3683 = vunpack.c.h.s8.bf16 %v3139
    %v3684 = vunpack.c.h.s8.bf16 %v3140
    %v3685 = vunpack.c.h.s8.bf16 %v3141
    %v3686 = vunpack.c.l.s8.bf16 %v3142
    %v3687 = vunpack.c.l.s8.bf16 %v3143
    %v3688 = vunpack.c.l.s8.bf16 %v3144
    %v3689 = vunpack.c.l.s8.bf16 %v3145
    %v3690 = vunpack.c.l.s8.bf16 %v3146
    %v3691 = vunpack.c.l.s8.bf16 %v3147
    %v3692 = vunpack.c.l.s8.bf16 %v3148
    %v3693 = vunpack.c.l.s8.bf16 %v3149
    %v3694 = vunpack.c.h.s8.bf16 %v3142
    %v3695 = vunpack.c.h.s8.bf16 %v3143
    %v3696 = vunpack.c.h.s8.bf16 %v3144
    %v3697 = vunpack.c.h.s8.bf16 %v3145
    %v3698 = vunpack.c.h.s8.bf16 %v3146
    %v3699 = vunpack.c.h.s8.bf16 %v3147
    %v3700 = vunpack.c.h.s8.bf16 %v3148
    %v3701 = vunpack.c.h.s8.bf16 %v3149
    %v3702 = vunpack.c.l.s8.bf16 %v3150
    %v3703 = vunpack.c.l.s8.bf16 %v3151
    %v3704 = vunpack.c.l.s8.bf16 %v3152
    %v3705 = vunpack.c.l.s8.bf16 %v3153
    %v3706 = vunpack.c.l.s8.bf16 %v3154
    %v3707 = vunpack.c.l.s8.bf16 %v3155
    %v3708 = vunpack.c.l.s8.bf16 %v3156
    %v3709 = vunpack.c.l.s8.bf16 %v3157
    %v3710 = vunpack.c.h.s8.bf16 %v3150
    %v3711 = vunpack.c.h.s8.bf16 %v3151
    %v3712 = vunpack.c.h.s8.bf16 %v3152
    %v3713 = vunpack.c.h.s8.bf16 %v3153
    %v3714 = vunpack.c.h.s8.bf16 %v3154
    %v3715 = vunpack.c.h.s8.bf16 %v3155
    %v3716 = vunpack.c.h.s8.bf16 %v3156
    %v3717 = vunpack.c.h.s8.bf16 %v3157
    %v3718 = vunpack.c.l.s8.bf16 %v3158
    %v3719 = vunpack.c.l.s8.bf16 %v3159
    %v3720 = vunpack.c.l.s8.bf16 %v3160
    %v3721 = vunpack.c.l.s8.bf16 %v3161
    %v3722 = vunpack.c.l.s8.bf16 %v3162
    %v3723 = vunpack.c.l.s8.bf16 %v3163
    %v3724 = vunpack.c.l.s8.bf16 %v3164
    %v3725 = vunpack.c.l.s8.bf16 %v3165
    %v3726 = vunpack.c.h.s8.bf16 %v3158
    %v3727 = vunpack.c.h.s8.bf16 %v3159
    %v3728 = vunpack.c.h.s8.bf16 %v3160
    %v3729 = vunpack.c.h.s8.bf16 %v3161
    %v3730 = vunpack.c.h.s8.bf16 %v3162
    %v3731 = vunpack.c.h.s8.bf16 %v3163
    %v3732 = vunpack.c.h.s8.bf16 %v3164
    %v3733 = vunpack.c.h.s8.bf16 %v3165
    %v3734 = vunpack.c.l.s8.bf16 %v3166
    %v3735 = vunpack.c.l.s8.bf16 %v3167
    %v3736 = vunpack.c.l.s8.bf16 %v3168
    %v3737 = vunpack.c.l.s8.bf16 %v3169
    %v3738 = vunpack.c.l.s8.bf16 %v3170
    %v3739 = vunpack.c.l.s8.bf16 %v3171
    %v3740 = vunpack.c.l.s8.bf16 %v3172
    %v3741 = vunpack.c.l.s8.bf16 %v3173
    %v3742 = vunpack.c.h.s8.bf16 %v3166
    %v3743 = vunpack.c.h.s8.bf16 %v3167
    %v3744 = vunpack.c.h.s8.bf16 %v3168
    %v3745 = vunpack.c.h.s8.bf16 %v3169
    %v3746 = vunpack.c.h.s8.bf16 %v3170
    %v3747 = vunpack.c.h.s8.bf16 %v3171
    %v3748 = vunpack.c.h.s8.bf16 %v3172
    %v3749 = vunpack.c.h.s8.bf16 %v3173
    %v3750 = vunpack.c.l.s8.bf16 %v3174
    %v3751 = vunpack.c.l.s8.bf16 %v3175
    %v3752 = vunpack.c.l.s8.bf16 %v3176
    %v3753 = vunpack.c.l.s8.bf16 %v3177
    %v3754 = vunpack.c.l.s8.bf16 %v3178
    %v3755 = vunpack.c.l.s8.bf16 %v3179
    %v3756 = vunpack.c.l.s8.bf16 %v3180
    %v3757 = vunpack.c.l.s8.bf16 %v3181
    %v3758 = vunpack.c.h.s8.bf16 %v3174
    %v3759 = vunpack.c.h.s8.bf16 %v3175
    %v3760 = vunpack.c.h.s8.bf16 %v3176
    %v3761 = vunpack.c.h.s8.bf16 %v3177
    %v3762 = vunpack.c.h.s8.bf16 %v3178
    %v3763 = vunpack.c.h.s8.bf16 %v3179
    %v3764 = vunpack.c.h.s8.bf16 %v3180
    %v3765 = vunpack.c.h.s8.bf16 %v3181
    %v3766 = vunpack.c.l.s8.bf16 %v3182
    %v3767 = vunpack.c.l.s8.bf16 %v3183
    %v3768 = vunpack.c.l.s8.bf16 %v3184
    %v3769 = vunpack.c.l.s8.bf16 %v3185
    %v3770 = vunpack.c.l.s8.bf16 %v3186
    %v3771 = vunpack.c.l.s8.bf16 %v3187
    %v3772 = vunpack.c.l.s8.bf16 %v3188
    %v3773 = vunpack.c.l.s8.bf16 %v3189
    %v3774 = vunpack.c.h.s8.bf16 %v3182
    %v3775 = vunpack.c.h.s8.bf16 %v3183
    %v3776 = vunpack.c.h.s8.bf16 %v3184
    %v3777 = vunpack.c.h.s8.bf16 %v3185
    %v3778 = vunpack.c.h.s8.bf16 %v3186
    %v3779 = vunpack.c.h.s8.bf16 %v3187
    %v3780 = vunpack.c.h.s8.bf16 %v3188
    %v3781 = vunpack.c.h.s8.bf16 %v3189
    %v3782 = vunpack.c.l.s8.bf16 %v3190
    %v3783 = vunpack.c.l.s8.bf16 %v3191
    %v3784 = vunpack.c.l.s8.bf16 %v3192
    %v3785 = vunpack.c.l.s8.bf16 %v3193
    %v3786 = vunpack.c.l.s8.bf16 %v3194
    %v3787 = vunpack.c.l.s8.bf16 %v3195
    %v3788 = vunpack.c.l.s8.bf16 %v3196
    %v3789 = vunpack.c.l.s8.bf16 %v3197
    %v3790 = vunpack.c.h.s8.bf16 %v3190
    %v3791 = vunpack.c.h.s8.bf16 %v3191
    %v3792 = vunpack.c.h.s8.bf16 %v3192
    %v3793 = vunpack.c.h.s8.bf16 %v3193
    %v3794 = vunpack.c.h.s8.bf16 %v3194
    %v3795 = vunpack.c.h.s8.bf16 %v3195
    %v3796 = vunpack.c.h.s8.bf16 %v3196
    %v3797 = vunpack.c.h.s8.bf16 %v3197
    %v3798 = vunpack.c.l.s8.bf16 %v3198
    %v3799 = vunpack.c.l.s8.bf16 %v3199
    %v3800 = vunpack.c.l.s8.bf16 %v3200
    %v3801 = vunpack.c.l.s8.bf16 %v3201
    %v3802 = vunpack.c.l.s8.bf16 %v3202
    %v3803 = vunpack.c.l.s8.bf16 %v3203
    %v3804 = vunpack.c.l.s8.bf16 %v3204
    %v3805 = vunpack.c.l.s8.bf16 %v3205
    %v3806 = vunpack.c.h.s8.bf16 %v3198
    %v3807 = vunpack.c.h.s8.bf16 %v3199
    %v3808 = vunpack.c.h.s8.bf16 %v3200
    %v3809 = vunpack.c.h.s8.bf16 %v3201
    %v3810 = vunpack.c.h.s8.bf16 %v3202
    %v3811 = vunpack.c.h.s8.bf16 %v3203
    %v3812 = vunpack.c.h.s8.bf16 %v3204
    %v3813 = vunpack.c.h.s8.bf16 %v3205
    %v3814 = vunpack.c.l.s8.bf16 %v3206
    %v3815 = vunpack.c.l.s8.bf16 %v3207
    %v3816 = vunpack.c.l.s8.bf16 %v3208
    %v3817 = vunpack.c.l.s8.bf16 %v3209
    %v3818 = vunpack.c.l.s8.bf16 %v3210
    %v3819 = vunpack.c.l.s8.bf16 %v3211
    %v3820 = vunpack.c.l.s8.bf16 %v3212
    %v3821 = vunpack.c.l.s8.bf16 %v3213
    %v3822 = vunpack.c.h.s8.bf16 %v3206
    %v3823 = vunpack.c.h.s8.bf16 %v3207
    %v3824 = vunpack.c.h.s8.bf16 %v3208
    %v3825 = vunpack.c.h.s8.bf16 %v3209
    %v3826 = vunpack.c.h.s8.bf16 %v3210
    %v3827 = vunpack.c.h.s8.bf16 %v3211
    %v3828 = vunpack.c.h.s8.bf16 %v3212
    %v3829 = vunpack.c.h.s8.bf16 %v3213
    %v3830 = vunpack.c.l.s8.bf16 %v3214
    %v3831 = vunpack.c.l.s8.bf16 %v3215
    %v3832 = vunpack.c.l.s8.bf16 %v3216
    %v3833 = vunpack.c.l.s8.bf16 %v3217
    %v3834 = vunpack.c.l.s8.bf16 %v3218
    %v3835 = vunpack.c.l.s8.bf16 %v3219
    %v3836 = vunpack.c.l.s8.bf16 %v3220
    %v3837 = vunpack.c.l.s8.bf16 %v3221
    %v3838 = vunpack.c.h.s8.bf16 %v3214
    %v3839 = vunpack.c.h.s8.bf16 %v3215
    %v3840 = vunpack.c.h.s8.bf16 %v3216
    %v3841 = vunpack.c.h.s8.bf16 %v3217
    %v3842 = vunpack.c.h.s8.bf16 %v3218
    %v3843 = vunpack.c.h.s8.bf16 %v3219
    %v3844 = vunpack.c.h.s8.bf16 %v3220
    %v3845 = vunpack.c.h.s8.bf16 %v3221
    %v3846 = vunpack.c.l.s8.bf16 %v3222
    %v3847 = vunpack.c.l.s8.bf16 %v3223
    %v3848 = vunpack.c.l.s8.bf16 %v3224
    %v3849 = vunpack.c.l.s8.bf16 %v3225
    %v3850 = vunpack.c.l.s8.bf16 %v3226
    %v3851 = vunpack.c.l.s8.bf16 %v3227
    %v3852 = vunpack.c.l.s8.bf16 %v3228
    %v3853 = vunpack.c.l.s8.bf16 %v3229
    %v3854 = vunpack.c.h.s8.bf16 %v3222
    %v3855 = vunpack.c.h.s8.bf16 %v3223
    %v3856 = vunpack.c.h.s8.bf16 %v3224
    %v3857 = vunpack.c.h.s8.bf16 %v3225
    %v3858 = vunpack.c.h.s8.bf16 %v3226
    %v3859 = vunpack.c.h.s8.bf16 %v3227
    %v3860 = vunpack.c.h.s8.bf16 %v3228
    %v3861 = vunpack.c.h.s8.bf16 %v3229
    %v3862 = vunpack.c.l.s8.bf16 %v3230
    %v3863 = vunpack.c.l.s8.bf16 %v3231
    %v3864 = vunpack.c.l.s8.bf16 %v3232
    %v3865 = vunpack.c.l.s8.bf16 %v3233
    %v3866 = vunpack.c.l.s8.bf16 %v3234
    %v3867 = vunpack.c.l.s8.bf16 %v3235
    %v3868 = vunpack.c.l.s8.bf16 %v3236
    %v3869 = vunpack.c.l.s8.bf16 %v3237
    %v3870 = vunpack.c.h.s8.bf16 %v3230
    %v3871 = vunpack.c.h.s8.bf16 %v3231
    %v3872 = vunpack.c.h.s8.bf16 %v3232
    %v3873 = vunpack.c.h.s8.bf16 %v3233
    %v3874 = vunpack.c.h.s8.bf16 %v3234
    %v3875 = vunpack.c.h.s8.bf16 %v3235
    %v3876 = vunpack.c.h.s8.bf16 %v3236
    %v3877 = vunpack.c.h.s8.bf16 %v3237
    %v3878 = vunpack.c.l.s8.bf16 %v3238
    %v3879 = vunpack.c.l.s8.bf16 %v3239
    %v3880 = vunpack.c.l.s8.bf16 %v3240
    %v3881 = vunpack.c.l.s8.bf16 %v3241
    %v3882 = vunpack.c.l.s8.bf16 %v3242
    %v3883 = vunpack.c.l.s8.bf16 %v3243
    %v3884 = vunpack.c.l.s8.bf16 %v3244
    %v3885 = vunpack.c.l.s8.bf16 %v3245
    %v3886 = vunpack.c.h.s8.bf16 %v3238
    %v3887 = vunpack.c.h.s8.bf16 %v3239
    %v3888 = vunpack.c.h.s8.bf16 %v3240
    %v3889 = vunpack.c.h.s8.bf16 %v3241
    %v3890 = vunpack.c.h.s8.bf16 %v3242
    %v3891 = vunpack.c.h.s8.bf16 %v3243
    %v3892 = vunpack.c.h.s8.bf16 %v3244
    %v3893 = vunpack.c.h.s8.bf16 %v3245
    %v3894 = vunpack.c.l.s8.bf16 %v3246
    %v3895 = vunpack.c.l.s8.bf16 %v3247
    %v3896 = vunpack.c.l.s8.bf16 %v3248
    %v3897 = vunpack.c.l.s8.bf16 %v3249
    %v3898 = vunpack.c.l.s8.bf16 %v3250
    %v3899 = vunpack.c.l.s8.bf16 %v3251
    %v3900 = vunpack.c.l.s8.bf16 %v3252
    %v3901 = vunpack.c.l.s8.bf16 %v3253
    %v3902 = vunpack.c.h.s8.bf16 %v3246
    %v3903 = vunpack.c.h.s8.bf16 %v3247
    %v3904 = vunpack.c.h.s8.bf16 %v3248
    %v3905 = vunpack.c.h.s8.bf16 %v3249
    %v3906 = vunpack.c.h.s8.bf16 %v3250
    %v3907 = vunpack.c.h.s8.bf16 %v3251
    %v3908 = vunpack.c.h.s8.bf16 %v3252
    %v3909 = vunpack.c.h.s8.bf16 %v3253
    %v3910 = vunpack.c.l.s8.bf16 %v3254
    %v3911 = vunpack.c.l.s8.bf16 %v3255
    %v3912 = vunpack.c.l.s8.bf16 %v3256
    %v3913 = vunpack.c.l.s8.bf16 %v3257
    %v3914 = vunpack.c.l.s8.bf16 %v3258
    %v3915 = vunpack.c.l.s8.bf16 %v3259
    %v3916 = vunpack.c.l.s8.bf16 %v3260
    %v3917 = vunpack.c.l.s8.bf16 %v3261
    %v3918 = vunpack.c.h.s8.bf16 %v3254
    %v3919 = vunpack.c.h.s8.bf16 %v3255
    %v3920 = vunpack.c.h.s8.bf16 %v3256
    %v3921 = vunpack.c.h.s8.bf16 %v3257
    %v3922 = vunpack.c.h.s8.bf16 %v3258
    %v3923 = vunpack.c.h.s8.bf16 %v3259
    %v3924 = vunpack.c.h.s8.bf16 %v3260
    %v3925 = vunpack.c.h.s8.bf16 %v3261
    %v3926 = vunpack.c.l.s8.bf16 %v3262
    %v3927 = vunpack.c.l.s8.bf16 %v3263
    %v3928 = vunpack.c.l.s8.bf16 %v3264
    %v3929 = vunpack.c.l.s8.bf16 %v3265
    %v3930 = vunpack.c.l.s8.bf16 %v3266
    %v3931 = vunpack.c.l.s8.bf16 %v3267
    %v3932 = vunpack.c.l.s8.bf16 %v3268
    %v3933 = vunpack.c.l.s8.bf16 %v3269
    %v3934 = vunpack.c.h.s8.bf16 %v3262
    %v3935 = vunpack.c.h.s8.bf16 %v3263
    %v3936 = vunpack.c.h.s8.bf16 %v3264
    %v3937 = vunpack.c.h.s8.bf16 %v3265
    %v3938 = vunpack.c.h.s8.bf16 %v3266
    %v3939 = vunpack.c.h.s8.bf16 %v3267
    %v3940 = vunpack.c.h.s8.bf16 %v3268
    %v3941 = vunpack.c.h.s8.bf16 %v3269
    %v3942 = vunpack.c.l.s8.bf16 %v3270
    %v3943 = vunpack.c.l.s8.bf16 %v3271
    %v3944 = vunpack.c.l.s8.bf16 %v3272
    %v3945 = vunpack.c.l.s8.bf16 %v3273
    %v3946 = vunpack.c.l.s8.bf16 %v3274
    %v3947 = vunpack.c.l.s8.bf16 %v3275
    %v3948 = vunpack.c.l.s8.bf16 %v3276
    %v3949 = vunpack.c.l.s8.bf16 %v3277
    %v3950 = vunpack.c.h.s8.bf16 %v3270
    %v3951 = vunpack.c.h.s8.bf16 %v3271
    %v3952 = vunpack.c.h.s8.bf16 %v3272
    %v3953 = vunpack.c.h.s8.bf16 %v3273
    %v3954 = vunpack.c.h.s8.bf16 %v3274
    %v3955 = vunpack.c.h.s8.bf16 %v3275
    %v3956 = vunpack.c.h.s8.bf16 %v3276
    %v3957 = vunpack.c.h.s8.bf16 %v3277
    %v3958 = vunpack.c.l.s8.bf16 %v3278
    %v3959 = vunpack.c.l.s8.bf16 %v3279
    %v3960 = vunpack.c.l.s8.bf16 %v3280
    %v3961 = vunpack.c.l.s8.bf16 %v3281
    %v3962 = vunpack.c.l.s8.bf16 %v3282
    %v3963 = vunpack.c.l.s8.bf16 %v3283
    %v3964 = vunpack.c.l.s8.bf16 %v3284
    %v3965 = vunpack.c.l.s8.bf16 %v3285
    %v3966 = vunpack.c.h.s8.bf16 %v3278
    %v3967 = vunpack.c.h.s8.bf16 %v3279
    %v3968 = vunpack.c.h.s8.bf16 %v3280
    %v3969 = vunpack.c.h.s8.bf16 %v3281
    %v3970 = vunpack.c.h.s8.bf16 %v3282
    %v3971 = vunpack.c.h.s8.bf16 %v3283
    %v3972 = vunpack.c.h.s8.bf16 %v3284
    %v3973 = vunpack.c.h.s8.bf16 %v3285
    %v3974 = vunpack.c.l.s8.bf16 %v3286
    %v3975 = vunpack.c.l.s8.bf16 %v3287
    %v3976 = vunpack.c.l.s8.bf16 %v3288
    %v3977 = vunpack.c.l.s8.bf16 %v3289
    %v3978 = vunpack.c.l.s8.bf16 %v3290
    %v3979 = vunpack.c.l.s8.bf16 %v3291
    %v3980 = vunpack.c.l.s8.bf16 %v3292
    %v3981 = vunpack.c.l.s8.bf16 %v3293
    %v3982 = vunpack.c.h.s8.bf16 %v3286
    %v3983 = vunpack.c.h.s8.bf16 %v3287
    %v3984 = vunpack.c.h.s8.bf16 %v3288
    %v3985 = vunpack.c.h.s8.bf16 %v3289
    %v3986 = vunpack.c.h.s8.bf16 %v3290
    %v3987 = vunpack.c.h.s8.bf16 %v3291
    %v3988 = vunpack.c.h.s8.bf16 %v3292
    %v3989 = vunpack.c.h.s8.bf16 %v3293
    %v3990 = vunpack.c.l.s8.bf16 %v3294
    %v3991 = vunpack.c.l.s8.bf16 %v3295
    %v3992 = vunpack.c.l.s8.bf16 %v3296
    %v3993 = vunpack.c.l.s8.bf16 %v3297
    %v3994 = vunpack.c.l.s8.bf16 %v3298
    %v3995 = vunpack.c.l.s8.bf16 %v3299
    %v3996 = vunpack.c.l.s8.bf16 %v3300
    %v3997 = vunpack.c.l.s8.bf16 %v3301
    %v3998 = vunpack.c.h.s8.bf16 %v3294
    %v3999 = vunpack.c.h.s8.bf16 %v3295
    %v4000 = vunpack.c.h.s8.bf16 %v3296
    %v4001 = vunpack.c.h.s8.bf16 %v3297
    %v4002 = vunpack.c.h.s8.bf16 %v3298
    %v4003 = vunpack.c.h.s8.bf16 %v3299
    %v4004 = vunpack.c.h.s8.bf16 %v3300
    %v4005 = vunpack.c.h.s8.bf16 %v3301
    %v4006 = vunpack.c.l.s8.bf16 %v3302
    %v4007 = vunpack.c.l.s8.bf16 %v3303
    %v4008 = vunpack.c.l.s8.bf16 %v3304
    %v4009 = vunpack.c.l.s8.bf16 %v3305
    %v4010 = vunpack.c.l.s8.bf16 %v3306
    %v4011 = vunpack.c.l.s8.bf16 %v3307
    %v4012 = vunpack.c.l.s8.bf16 %v3308
    %v4013 = vunpack.c.l.s8.bf16 %v3309
    %v4014 = vunpack.c.h.s8.bf16 %v3302
    %v4015 = vunpack.c.h.s8.bf16 %v3303
    %v4016 = vunpack.c.h.s8.bf16 %v3304
    %v4017 = vunpack.c.h.s8.bf16 %v3305
    %v4018 = vunpack.c.h.s8.bf16 %v3306
    %v4019 = vunpack.c.h.s8.bf16 %v3307
    %v4020 = vunpack.c.h.s8.bf16 %v3308
    %v4021 = vunpack.c.h.s8.bf16 %v3309
    %v4022 = vunpack.c.l.s8.bf16 %v3310
    %v4023 = vunpack.c.l.s8.bf16 %v3311
    %v4024 = vunpack.c.l.s8.bf16 %v3312
    %v4025 = vunpack.c.l.s8.bf16 %v3313
    %v4026 = vunpack.c.l.s8.bf16 %v3314
    %v4027 = vunpack.c.l.s8.bf16 %v3315
    %v4028 = vunpack.c.l.s8.bf16 %v3316
    %v4029 = vunpack.c.l.s8.bf16 %v3317
    %v4030 = vunpack.c.h.s8.bf16 %v3310
    %v4031 = vunpack.c.h.s8.bf16 %v3311
    %v4032 = vunpack.c.h.s8.bf16 %v3312
    %v4033 = vunpack.c.h.s8.bf16 %v3313
    %v4034 = vunpack.c.h.s8.bf16 %v3314
    %v4035 = vunpack.c.h.s8.bf16 %v3315
    %v4036 = vunpack.c.h.s8.bf16 %v3316
    %v4037 = vunpack.c.h.s8.bf16 %v3317
    %v4038 = vunpack.c.l.s8.bf16 %v3318
    %v4039 = vunpack.c.l.s8.bf16 %v3319
    %v4040 = vunpack.c.l.s8.bf16 %v3320
    %v4041 = vunpack.c.l.s8.bf16 %v3321
    %v4042 = vunpack.c.l.s8.bf16 %v3322
    %v4043 = vunpack.c.l.s8.bf16 %v3323
    %v4044 = vunpack.c.l.s8.bf16 %v3324
    %v4045 = vunpack.c.l.s8.bf16 %v3325
    %v4046 = vunpack.c.h.s8.bf16 %v3318
    %v4047 = vunpack.c.h.s8.bf16 %v3319
    %v4048 = vunpack.c.h.s8.bf16 %v3320
    %v4049 = vunpack.c.h.s8.bf16 %v3321
    %v4050 = vunpack.c.h.s8.bf16 %v3322
    %v4051 = vunpack.c.h.s8.bf16 %v3323
    %v4052 = vunpack.c.h.s8.bf16 %v3324
    %v4053 = vunpack.c.h.s8.bf16 %v3325
    %v4054 = vunpack.c.l.s8.bf16 %v3326
    %v4055 = vunpack.c.l.s8.bf16 %v3327
    %v4056 = vunpack.c.l.s8.bf16 %v3328
    %v4057 = vunpack.c.l.s8.bf16 %v3329
    %v4058 = vunpack.c.l.s8.bf16 %v3330
    %v4059 = vunpack.c.l.s8.bf16 %v3331
    %v4060 = vunpack.c.l.s8.bf16 %v3332
    %v4061 = vunpack.c.l.s8.bf16 %v3333
    %v4062 = vunpack.c.h.s8.bf16 %v3326
    %v4063 = vunpack.c.h.s8.bf16 %v3327
    %v4064 = vunpack.c.h.s8.bf16 %v3328
    %v4065 = vunpack.c.h.s8.bf16 %v3329
    %v4066 = vunpack.c.h.s8.bf16 %v3330
    %v4067 = vunpack.c.h.s8.bf16 %v3331
    %v4068 = vunpack.c.h.s8.bf16 %v3332
    %v4069 = vunpack.c.h.s8.bf16 %v3333
    %v4070 = vunpack.c.l.s8.bf16 %v3334
    %v4071 = vunpack.c.l.s8.bf16 %v3335
    %v4072 = vunpack.c.l.s8.bf16 %v3336
    %v4073 = vunpack.c.l.s8.bf16 %v3337
    %v4074 = vunpack.c.l.s8.bf16 %v3338
    %v4075 = vunpack.c.l.s8.bf16 %v3339
    %v4076 = vunpack.c.l.s8.bf16 %v3340
    %v4077 = vunpack.c.l.s8.bf16 %v3341
    %v4078 = vunpack.c.h.s8.bf16 %v3334
    %v4079 = vunpack.c.h.s8.bf16 %v3335
    %v4080 = vunpack.c.h.s8.bf16 %v3336
    %v4081 = vunpack.c.h.s8.bf16 %v3337
    %v4082 = vunpack.c.h.s8.bf16 %v3338
    %v4083 = vunpack.c.h.s8.bf16 %v3339
    %v4084 = vunpack.c.h.s8.bf16 %v3340
    %v4085 = vunpack.c.h.s8.bf16 %v3341
    %v4086 = vunpack.c.l.s8.bf16 %v3342
    %v4087 = vunpack.c.l.s8.bf16 %v3343
    %v4088 = vunpack.c.l.s8.bf16 %v3344
    %v4089 = vunpack.c.l.s8.bf16 %v3345
    %v4090 = vunpack.c.l.s8.bf16 %v3346
    %v4091 = vunpack.c.l.s8.bf16 %v3347
    %v4092 = vunpack.c.l.s8.bf16 %v3348
    %v4093 = vunpack.c.l.s8.bf16 %v3349
    %v4094 = vunpack.c.h.s8.bf16 %v3342
    %v4095 = vunpack.c.h.s8.bf16 %v3343
    %v4096 = vunpack.c.h.s8.bf16 %v3344
    %v4097 = vunpack.c.h.s8.bf16 %v3345
    %v4098 = vunpack.c.h.s8.bf16 %v3346
    %v4099 = vunpack.c.h.s8.bf16 %v3347
    %v4100 = vunpack.c.h.s8.bf16 %v3348
    %v4101 = vunpack.c.h.s8.bf16 %v3349
    %v4102 = vunpack.c.l.s8.bf16 %v3350
    %v4103 = vunpack.c.l.s8.bf16 %v3351
    %v4104 = vunpack.c.l.s8.bf16 %v3352
    %v4105 = vunpack.c.l.s8.bf16 %v3353
    %v4106 = vunpack.c.l.s8.bf16 %v3354
    %v4107 = vunpack.c.l.s8.bf16 %v3355
    %v4108 = vunpack.c.l.s8.bf16 %v3356
    %v4109 = vunpack.c.l.s8.bf16 %v3357
    %v4110 = vunpack.c.h.s8.bf16 %v3350
    %v4111 = vunpack.c.h.s8.bf16 %v3351
    %v4112 = vunpack.c.h.s8.bf16 %v3352
    %v4113 = vunpack.c.h.s8.bf16 %v3353
    %v4114 = vunpack.c.h.s8.bf16 %v3354
    %v4115 = vunpack.c.h.s8.bf16 %v3355
    %v4116 = vunpack.c.h.s8.bf16 %v3356
    %v4117 = vunpack.c.h.s8.bf16 %v3357
    %v4118 = vunpack.c.l.s8.bf16 %v3358
    %v4119 = vunpack.c.l.s8.bf16 %v3359
    %v4120 = vunpack.c.l.s8.bf16 %v3360
    %v4121 = vunpack.c.l.s8.bf16 %v3361
    %v4122 = vunpack.c.l.s8.bf16 %v3362
    %v4123 = vunpack.c.l.s8.bf16 %v3363
    %v4124 = vunpack.c.l.s8.bf16 %v3364
    %v4125 = vunpack.c.l.s8.bf16 %v3365
    %v4126 = vunpack.c.h.s8.bf16 %v3358
    %v4127 = vunpack.c.h.s8.bf16 %v3359
    %v4128 = vunpack.c.h.s8.bf16 %v3360
    %v4129 = vunpack.c.h.s8.bf16 %v3361
    %v4130 = vunpack.c.h.s8.bf16 %v3362
    %v4131 = vunpack.c.h.s8.bf16 %v3363
    %v4132 = vunpack.c.h.s8.bf16 %v3364
    %v4133 = vunpack.c.h.s8.bf16 %v3365
    %v4134 = vunpack.c.l.s8.bf16 %v3366
    %v4135 = vunpack.c.l.s8.bf16 %v3367
    %v4136 = vunpack.c.l.s8.bf16 %v3368
    %v4137 = vunpack.c.l.s8.bf16 %v3369
    %v4138 = vunpack.c.l.s8.bf16 %v3370
    %v4139 = vunpack.c.l.s8.bf16 %v3371
    %v4140 = vunpack.c.l.s8.bf16 %v3372
    %v4141 = vunpack.c.l.s8.bf16 %v3373
    %v4142 = vunpack.c.h.s8.bf16 %v3366
    %v4143 = vunpack.c.h.s8.bf16 %v3367
    %v4144 = vunpack.c.h.s8.bf16 %v3368
    %v4145 = vunpack.c.h.s8.bf16 %v3369
    %v4146 = vunpack.c.h.s8.bf16 %v3370
    %v4147 = vunpack.c.h.s8.bf16 %v3371
    %v4148 = vunpack.c.h.s8.bf16 %v3372
    %v4149 = vunpack.c.h.s8.bf16 %v3373
    %v4150 = vunpack.c.l.s8.bf16 %v3374
    %v4151 = vunpack.c.l.s8.bf16 %v3375
    %v4152 = vunpack.c.l.s8.bf16 %v3376
    %v4153 = vunpack.c.l.s8.bf16 %v3377
    %v4154 = vunpack.c.l.s8.bf16 %v3378
    %v4155 = vunpack.c.l.s8.bf16 %v3379
    %v4156 = vunpack.c.l.s8.bf16 %v3380
    %v4157 = vunpack.c.l.s8.bf16 %v3381
    %v4158 = vunpack.c.h.s8.bf16 %v3374
    %v4159 = vunpack.c.h.s8.bf16 %v3375
    %v4160 = vunpack.c.h.s8.bf16 %v3376
    %v4161 = vunpack.c.h.s8.bf16 %v3377
    %v4162 = vunpack.c.h.s8.bf16 %v3378
    %v4163 = vunpack.c.h.s8.bf16 %v3379
    %v4164 = vunpack.c.h.s8.bf16 %v3380
    %v4165 = vunpack.c.h.s8.bf16 %v3381
    %v4166 = vunpack.c.l.s8.bf16 %v3382
    %v4167 = vunpack.c.l.s8.bf16 %v3383
    %v4168 = vunpack.c.l.s8.bf16 %v3384
    %v4169 = vunpack.c.l.s8.bf16 %v3385
    %v4170 = vunpack.c.l.s8.bf16 %v3386
    %v4171 = vunpack.c.l.s8.bf16 %v3387
    %v4172 = vunpack.c.l.s8.bf16 %v3388
    %v4173 = vunpack.c.l.s8.bf16 %v3389
    %v4174 = vunpack.c.h.s8.bf16 %v3382
    %v4175 = vunpack.c.h.s8.bf16 %v3383
    %v4176 = vunpack.c.h.s8.bf16 %v3384
    %v4177 = vunpack.c.h.s8.bf16 %v3385
    %v4178 = vunpack.c.h.s8.bf16 %v3386
    %v4179 = vunpack.c.h.s8.bf16 %v3387
    %v4180 = vunpack.c.h.s8.bf16 %v3388
    %v4181 = vunpack.c.h.s8.bf16 %v3389
    %v4182 = vunpack.c.l.s8.bf16 %v3390
    %v4183 = vunpack.c.l.s8.bf16 %v3391
    %v4184 = vunpack.c.l.s8.bf16 %v3392
    %v4185 = vunpack.c.l.s8.bf16 %v3393
    %v4186 = vunpack.c.l.s8.bf16 %v3394
    %v4187 = vunpack.c.l.s8.bf16 %v3395
    %v4188 = vunpack.c.l.s8.bf16 %v3396
    %v4189 = vunpack.c.l.s8.bf16 %v3397
    %v4190 = vunpack.c.h.s8.bf16 %v3390
    %v4191 = vunpack.c.h.s8.bf16 %v3391
    %v4192 = vunpack.c.h.s8.bf16 %v3392
    %v4193 = vunpack.c.h.s8.bf16 %v3393
    %v4194 = vunpack.c.h.s8.bf16 %v3394
    %v4195 = vunpack.c.h.s8.bf16 %v3395
    %v4196 = vunpack.c.h.s8.bf16 %v3396
    %v4197 = vunpack.c.h.s8.bf16 %v3397
    %v4198 = vunpack.c.l.s8.bf16 %v3398
    %v4199 = vunpack.c.l.s8.bf16 %v3399
    %v4200 = vunpack.c.l.s8.bf16 %v3400
    %v4201 = vunpack.c.l.s8.bf16 %v3401
    %v4202 = vunpack.c.l.s8.bf16 %v3402
    %v4203 = vunpack.c.l.s8.bf16 %v3403
    %v4204 = vunpack.c.l.s8.bf16 %v3404
    %v4205 = vunpack.c.l.s8.bf16 %v3405
    %v4206 = vunpack.c.h.s8.bf16 %v3398
    %v4207 = vunpack.c.h.s8.bf16 %v3399
    %v4208 = vunpack.c.h.s8.bf16 %v3400
    %v4209 = vunpack.c.h.s8.bf16 %v3401
    %v4210 = vunpack.c.h.s8.bf16 %v3402
    %v4211 = vunpack.c.h.s8.bf16 %v3403
    %v4212 = vunpack.c.h.s8.bf16 %v3404
    %v4213 = vunpack.c.h.s8.bf16 %v3405
    %v4214 = vunpack.c.l.s8.bf16 %v3406
    %v4215 = vunpack.c.l.s8.bf16 %v3407
    %v4216 = vunpack.c.l.s8.bf16 %v3408
    %v4217 = vunpack.c.l.s8.bf16 %v3409
    %v4218 = vunpack.c.l.s8.bf16 %v3410
    %v4219 = vunpack.c.l.s8.bf16 %v3411
    %v4220 = vunpack.c.l.s8.bf16 %v3412
    %v4221 = vunpack.c.l.s8.bf16 %v3413
    %v4222 = vunpack.c.h.s8.bf16 %v3406
    %v4223 = vunpack.c.h.s8.bf16 %v3407
    %v4224 = vunpack.c.h.s8.bf16 %v3408
    %v4225 = vunpack.c.h.s8.bf16 %v3409
    %v4226 = vunpack.c.h.s8.bf16 %v3410
    %v4227 = vunpack.c.h.s8.bf16 %v3411
    %v4228 = vunpack.c.h.s8.bf16 %v3412
    %v4229 = vunpack.c.h.s8.bf16 %v3413
    %v4230 = vunpack.c.l.s8.bf16 %v3414
    %v4231 = vunpack.c.l.s8.bf16 %v3415
    %v4232 = vunpack.c.l.s8.bf16 %v3416
    %v4233 = vunpack.c.l.s8.bf16 %v3417
    %v4234 = vunpack.c.l.s8.bf16 %v3418
    %v4235 = vunpack.c.l.s8.bf16 %v3419
    %v4236 = vunpack.c.l.s8.bf16 %v3420
    %v4237 = vunpack.c.l.s8.bf16 %v3421
    %v4238 = vunpack.c.h.s8.bf16 %v3414
    %v4239 = vunpack.c.h.s8.bf16 %v3415
    %v4240 = vunpack.c.h.s8.bf16 %v3416
    %v4241 = vunpack.c.h.s8.bf16 %v3417
    %v4242 = vunpack.c.h.s8.bf16 %v3418
    %v4243 = vunpack.c.h.s8.bf16 %v3419
    %v4244 = vunpack.c.h.s8.bf16 %v3420
    %v4245 = vunpack.c.h.s8.bf16 %v3421
    %v4246 = vunpack.c.l.s8.bf16 %v3422
    %v4247 = vunpack.c.l.s8.bf16 %v3423
    %v4248 = vunpack.c.l.s8.bf16 %v3424
    %v4249 = vunpack.c.l.s8.bf16 %v3425
    %v4250 = vunpack.c.l.s8.bf16 %v3426
    %v4251 = vunpack.c.l.s8.bf16 %v3427
    %v4252 = vunpack.c.l.s8.bf16 %v3428
    %v4253 = vunpack.c.l.s8.bf16 %v3429
    %v4254 = vunpack.c.h.s8.bf16 %v3422
    %v4255 = vunpack.c.h.s8.bf16 %v3423
    %v4256 = vunpack.c.h.s8.bf16 %v3424
    %v4257 = vunpack.c.h.s8.bf16 %v3425
    %v4258 = vunpack.c.h.s8.bf16 %v3426
    %v4259 = vunpack.c.h.s8.bf16 %v3427
    %v4260 = vunpack.c.h.s8.bf16 %v3428
    %v4261 = vunpack.c.h.s8.bf16 %v3429
    %v4262 = vunpack.c.l.s8.bf16 %v3430
    %v4263 = vunpack.c.l.s8.bf16 %v3431
    %v4264 = vunpack.c.l.s8.bf16 %v3432
    %v4265 = vunpack.c.l.s8.bf16 %v3433
    %v4266 = vunpack.c.l.s8.bf16 %v3434
    %v4267 = vunpack.c.l.s8.bf16 %v3435
    %v4268 = vunpack.c.l.s8.bf16 %v3436
    %v4269 = vunpack.c.l.s8.bf16 %v3437
    %v4270 = vunpack.c.h.s8.bf16 %v3430
    %v4271 = vunpack.c.h.s8.bf16 %v3431
    %v4272 = vunpack.c.h.s8.bf16 %v3432
    %v4273 = vunpack.c.h.s8.bf16 %v3433
    %v4274 = vunpack.c.h.s8.bf16 %v3434
    %v4275 = vunpack.c.h.s8.bf16 %v3435
    %v4276 = vunpack.c.h.s8.bf16 %v3436
    %v4277 = vunpack.c.h.s8.bf16 %v3437
    %v4278 = vunpack.c.l.s8.bf16 %v3438
    %v4279 = vunpack.c.l.s8.bf16 %v3439
    %v4280 = vunpack.c.l.s8.bf16 %v3440
    %v4281 = vunpack.c.l.s8.bf16 %v3441
    %v4282 = vunpack.c.l.s8.bf16 %v3442
    %v4283 = vunpack.c.l.s8.bf16 %v3443
    %v4284 = vunpack.c.l.s8.bf16 %v3444
    %v4285 = vunpack.c.l.s8.bf16 %v3445
    %v4286 = vunpack.c.h.s8.bf16 %v3438
    %v4287 = vunpack.c.h.s8.bf16 %v3439
    %v4288 = vunpack.c.h.s8.bf16 %v3440
    %v4289 = vunpack.c.h.s8.bf16 %v3441
    %v4290 = vunpack.c.h.s8.bf16 %v3442
    %v4291 = vunpack.c.h.s8.bf16 %v3443
    %v4292 = vunpack.c.h.s8.bf16 %v3444
    %v4293 = vunpack.c.h.s8.bf16 %v3445
    %v4294 = vunpack.c.l.s8.bf16 %v3446
    %v4295 = vunpack.c.l.s8.bf16 %v3447
    %v4296 = vunpack.c.l.s8.bf16 %v3448
    %v4297 = vunpack.c.l.s8.bf16 %v3449
    %v4298 = vunpack.c.l.s8.bf16 %v3450
    %v4299 = vunpack.c.l.s8.bf16 %v3451
    %v4300 = vunpack.c.l.s8.bf16 %v3452
    %v4301 = vunpack.c.l.s8.bf16 %v3453
    %v4302 = vunpack.c.h.s8.bf16 %v3446
    %v4303 = vunpack.c.h.s8.bf16 %v3447
    %v4304 = vunpack.c.h.s8.bf16 %v3448
    %v4305 = vunpack.c.h.s8.bf16 %v3449
    %v4306 = vunpack.c.h.s8.bf16 %v3450
    %v4307 = vunpack.c.h.s8.bf16 %v3451
    %v4308 = vunpack.c.h.s8.bf16 %v3452
    %v4309 = vunpack.c.h.s8.bf16 %v3453
    %v4310 = vunpack.c.l.s8.bf16 %v3454
    %v4311 = vunpack.c.l.s8.bf16 %v3455
    %v4312 = vunpack.c.l.s8.bf16 %v3456
    %v4313 = vunpack.c.l.s8.bf16 %v3457
    %v4314 = vunpack.c.l.s8.bf16 %v3458
    %v4315 = vunpack.c.l.s8.bf16 %v3459
    %v4316 = vunpack.c.l.s8.bf16 %v3460
    %v4317 = vunpack.c.l.s8.bf16 %v3461
    %v4318 = vunpack.c.h.s8.bf16 %v3454
    %v4319 = vunpack.c.h.s8.bf16 %v3455
    %v4320 = vunpack.c.h.s8.bf16 %v3456
    %v4321 = vunpack.c.h.s8.bf16 %v3457
    %v4322 = vunpack.c.h.s8.bf16 %v3458
    %v4323 = vunpack.c.h.s8.bf16 %v3459
    %v4324 = vunpack.c.h.s8.bf16 %v3460
    %v4325 = vunpack.c.h.s8.bf16 %v3461
    %v4326 = vunpack.c.l.s8.bf16 %v3462
    %v4327 = vunpack.c.l.s8.bf16 %v3463
    %v4328 = vunpack.c.l.s8.bf16 %v3464
    %v4329 = vunpack.c.l.s8.bf16 %v3465
    %v4330 = vunpack.c.l.s8.bf16 %v3466
    %v4331 = vunpack.c.l.s8.bf16 %v3467
    %v4332 = vunpack.c.l.s8.bf16 %v3468
    %v4333 = vunpack.c.l.s8.bf16 %v3469
    %v4334 = vunpack.c.h.s8.bf16 %v3462
    %v4335 = vunpack.c.h.s8.bf16 %v3463
    %v4336 = vunpack.c.h.s8.bf16 %v3464
    %v4337 = vunpack.c.h.s8.bf16 %v3465
    %v4338 = vunpack.c.h.s8.bf16 %v3466
    %v4339 = vunpack.c.h.s8.bf16 %v3467
    %v4340 = vunpack.c.h.s8.bf16 %v3468
    %v4341 = vunpack.c.h.s8.bf16 %v3469
    %v4342 = vunpack.c.l.s8.bf16 %v3470
    %v4343 = vunpack.c.l.s8.bf16 %v3471
    %v4344 = vunpack.c.l.s8.bf16 %v3472
    %v4345 = vunpack.c.l.s8.bf16 %v3473
    %v4346 = vunpack.c.l.s8.bf16 %v3474
    %v4347 = vunpack.c.l.s8.bf16 %v3475
    %v4348 = vunpack.c.l.s8.bf16 %v3476
    %v4349 = vunpack.c.l.s8.bf16 %v3477
    %v4350 = vunpack.c.h.s8.bf16 %v3470
    %v4351 = vunpack.c.h.s8.bf16 %v3471
    %v4352 = vunpack.c.h.s8.bf16 %v3472
    %v4353 = vunpack.c.h.s8.bf16 %v3473
    %v4354 = vunpack.c.h.s8.bf16 %v3474
    %v4355 = vunpack.c.h.s8.bf16 %v3475
    %v4356 = vunpack.c.h.s8.bf16 %v3476
    %v4357 = vunpack.c.h.s8.bf16 %v3477
    %v4358 = vunpack.c.l.s8.bf16 %v3478
    %v4359 = vunpack.c.l.s8.bf16 %v3479
    %v4360 = vunpack.c.l.s8.bf16 %v3480
    %v4361 = vunpack.c.l.s8.bf16 %v3481
    %v4362 = vunpack.c.l.s8.bf16 %v3482
    %v4363 = vunpack.c.l.s8.bf16 %v3483
    %v4364 = vunpack.c.l.s8.bf16 %v3484
    %v4365 = vunpack.c.l.s8.bf16 %v3485
    %v4366 = vunpack.c.h.s8.bf16 %v3478
    %v4367 = vunpack.c.h.s8.bf16 %v3479
    %v4368 = vunpack.c.h.s8.bf16 %v3480
    %v4369 = vunpack.c.h.s8.bf16 %v3481
    %v4370 = vunpack.c.h.s8.bf16 %v3482
    %v4371 = vunpack.c.h.s8.bf16 %v3483
    %v4372 = vunpack.c.h.s8.bf16 %v3484
    %v4373 = vunpack.c.h.s8.bf16 %v3485
    %v4374 = vunpack.c.l.s8.bf16 %v3486
    %v4375 = vunpack.c.l.s8.bf16 %v3487
    %v4376 = vunpack.c.l.s8.bf16 %v3488
    %v4377 = vunpack.c.l.s8.bf16 %v3489
    %v4378 = vunpack.c.l.s8.bf16 %v3490
    %v4379 = vunpack.c.l.s8.bf16 %v3491
    %v4380 = vunpack.c.l.s8.bf16 %v3492
    %v4381 = vunpack.c.l.s8.bf16 %v3493
    %v4382 = vunpack.c.h.s8.bf16 %v3486
    %v4383 = vunpack.c.h.s8.bf16 %v3487
    %v4384 = vunpack.c.h.s8.bf16 %v3488
    %v4385 = vunpack.c.h.s8.bf16 %v3489
    %v4386 = vunpack.c.h.s8.bf16 %v3490
    %v4387 = vunpack.c.h.s8.bf16 %v3491
    %v4388 = vunpack.c.h.s8.bf16 %v3492
    %v4389 = vunpack.c.h.s8.bf16 %v3493
    %v4390 = vunpack.c.l.s8.bf16 %v3494
    %v4391 = vunpack.c.l.s8.bf16 %v3495
    %v4392 = vunpack.c.l.s8.bf16 %v3496
    %v4393 = vunpack.c.l.s8.bf16 %v3497
    %v4394 = vunpack.c.l.s8.bf16 %v3498
    %v4395 = vunpack.c.l.s8.bf16 %v3499
    %v4396 = vunpack.c.l.s8.bf16 %v3500
    %v4397 = vunpack.c.l.s8.bf16 %v3501
    %v4398 = vunpack.c.h.s8.bf16 %v3494
    %v4399 = vunpack.c.h.s8.bf16 %v3495
    %v4400 = vunpack.c.h.s8.bf16 %v3496
    %v4401 = vunpack.c.h.s8.bf16 %v3497
    %v4402 = vunpack.c.h.s8.bf16 %v3498
    %v4403 = vunpack.c.h.s8.bf16 %v3499
    %v4404 = vunpack.c.h.s8.bf16 %v3500
    %v4405 = vunpack.c.h.s8.bf16 %v3501
    %v4406 = vunpack.c.l.s8.bf16 %v3502
    %v4407 = vunpack.c.l.s8.bf16 %v3503
    %v4408 = vunpack.c.l.s8.bf16 %v3504
    %v4409 = vunpack.c.l.s8.bf16 %v3505
    %v4410 = vunpack.c.l.s8.bf16 %v3506
    %v4411 = vunpack.c.l.s8.bf16 %v3507
    %v4412 = vunpack.c.l.s8.bf16 %v3508
    %v4413 = vunpack.c.l.s8.bf16 %v3509
    %v4414 = vunpack.c.h.s8.bf16 %v3502
    %v4415 = vunpack.c.h.s8.bf16 %v3503
    %v4416 = vunpack.c.h.s8.bf16 %v3504
    %v4417 = vunpack.c.h.s8.bf16 %v3505
    %v4418 = vunpack.c.h.s8.bf16 %v3506
    %v4419 = vunpack.c.h.s8.bf16 %v3507
    %v4420 = vunpack.c.h.s8.bf16 %v3508
    %v4421 = vunpack.c.h.s8.bf16 %v3509
    %v4422 = vunpack.c.l.s8.bf16 %v3510
    %v4423 = vunpack.c.l.s8.bf16 %v3511
    %v4424 = vunpack.c.l.s8.bf16 %v3512
    %v4425 = vunpack.c.l.s8.bf16 %v3513
    %v4426 = vunpack.c.l.s8.bf16 %v3514
    %v4427 = vunpack.c.l.s8.bf16 %v3515
    %v4428 = vunpack.c.l.s8.bf16 %v3516
    %v4429 = vunpack.c.l.s8.bf16 %v3517
    %v4430 = vunpack.c.h.s8.bf16 %v3510
    %v4431 = vunpack.c.h.s8.bf16 %v3511
    %v4432 = vunpack.c.h.s8.bf16 %v3512
    %v4433 = vunpack.c.h.s8.bf16 %v3513
    %v4434 = vunpack.c.h.s8.bf16 %v3514
    %v4435 = vunpack.c.h.s8.bf16 %v3515
    %v4436 = vunpack.c.h.s8.bf16 %v3516
    %v4437 = vunpack.c.h.s8.bf16 %v3517
    %v4438 = vunpack.c.l.s8.bf16 %v3518
    %v4439 = vunpack.c.l.s8.bf16 %v3519
    %v4440 = vunpack.c.l.s8.bf16 %v3520
    %v4441 = vunpack.c.l.s8.bf16 %v3521
    %v4442 = vunpack.c.l.s8.bf16 %v3522
    %v4443 = vunpack.c.l.s8.bf16 %v3523
    %v4444 = vunpack.c.l.s8.bf16 %v3524
    %v4445 = vunpack.c.l.s8.bf16 %v3525
    %v4446 = vunpack.c.h.s8.bf16 %v3518
    %v4447 = vunpack.c.h.s8.bf16 %v3519
    %v4448 = vunpack.c.h.s8.bf16 %v3520
    %v4449 = vunpack.c.h.s8.bf16 %v3521
    %v4450 = vunpack.c.h.s8.bf16 %v3522
    %v4451 = vunpack.c.h.s8.bf16 %v3523
    %v4452 = vunpack.c.h.s8.bf16 %v3524
    %v4453 = vunpack.c.h.s8.bf16 %v3525
    %v4454 = vunpack.c.l.s8.bf16 %v3526
    %v4455 = vunpack.c.l.s8.bf16 %v3527
    %v4456 = vunpack.c.l.s8.bf16 %v3528
    %v4457 = vunpack.c.l.s8.bf16 %v3529
    %v4458 = vunpack.c.l.s8.bf16 %v3530
    %v4459 = vunpack.c.l.s8.bf16 %v3531
    %v4460 = vunpack.c.l.s8.bf16 %v3532
    %v4461 = vunpack.c.l.s8.bf16 %v3533
    %v4462 = vunpack.c.h.s8.bf16 %v3526
    %v4463 = vunpack.c.h.s8.bf16 %v3527
    %v4464 = vunpack.c.h.s8.bf16 %v3528
    %v4465 = vunpack.c.h.s8.bf16 %v3529
    %v4466 = vunpack.c.h.s8.bf16 %v3530
    %v4467 = vunpack.c.h.s8.bf16 %v3531
    %v4468 = vunpack.c.h.s8.bf16 %v3532
    %v4469 = vunpack.c.h.s8.bf16 %v3533
    %v4470 = vunpack.c.l.s8.bf16 %v3534
    %v4471 = vunpack.c.l.s8.bf16 %v3535
    %v4472 = vunpack.c.l.s8.bf16 %v3536
    %v4473 = vunpack.c.l.s8.bf16 %v3537
    %v4474 = vunpack.c.l.s8.bf16 %v3538
    %v4475 = vunpack.c.l.s8.bf16 %v3539
    %v4476 = vunpack.c.l.s8.bf16 %v3540
    %v4477 = vunpack.c.l.s8.bf16 %v3541
    %v4478 = vunpack.c.h.s8.bf16 %v3534
    %v4479 = vunpack.c.h.s8.bf16 %v3535
    %v4480 = vunpack.c.h.s8.bf16 %v3536
    %v4481 = vunpack.c.h.s8.bf16 %v3537
    %v4482 = vunpack.c.h.s8.bf16 %v3538
    %v4483 = vunpack.c.h.s8.bf16 %v3539
    %v4484 = vunpack.c.h.s8.bf16 %v3540
    %v4485 = vunpack.c.h.s8.bf16 %v3541
    %v4486 = vunpack.c.l.s8.bf16 %v3542
    %v4487 = vunpack.c.l.s8.bf16 %v3543
    %v4488 = vunpack.c.l.s8.bf16 %v3544
    %v4489 = vunpack.c.l.s8.bf16 %v3545
    %v4490 = vunpack.c.l.s8.bf16 %v3546
    %v4491 = vunpack.c.l.s8.bf16 %v3547
    %v4492 = vunpack.c.l.s8.bf16 %v3548
    %v4493 = vunpack.c.l.s8.bf16 %v3549
    %v4494 = vunpack.c.h.s8.bf16 %v3542
    %v4495 = vunpack.c.h.s8.bf16 %v3543
    %v4496 = vunpack.c.h.s8.bf16 %v3544
    %v4497 = vunpack.c.h.s8.bf16 %v3545
    %v4498 = vunpack.c.h.s8.bf16 %v3546
    %v4499 = vunpack.c.h.s8.bf16 %v3547
    %v4500 = vunpack.c.h.s8.bf16 %v3548
    %v4501 = vunpack.c.h.s8.bf16 %v3549
    %v4502 = vunpack.c.l.s8.bf16 %v3550
    %v4503 = vunpack.c.l.s8.bf16 %v3551
    %v4504 = vunpack.c.l.s8.bf16 %v3552
    %v4505 = vunpack.c.l.s8.bf16 %v3553
    %v4506 = vunpack.c.l.s8.bf16 %v3554
    %v4507 = vunpack.c.l.s8.bf16 %v3555
    %v4508 = vunpack.c.l.s8.bf16 %v3556
    %v4509 = vunpack.c.l.s8.bf16 %v3557
    %v4510 = vunpack.c.h.s8.bf16 %v3550
    %v4511 = vunpack.c.h.s8.bf16 %v3551
    %v4512 = vunpack.c.h.s8.bf16 %v3552
    %v4513 = vunpack.c.h.s8.bf16 %v3553
    %v4514 = vunpack.c.h.s8.bf16 %v3554
    %v4515 = vunpack.c.h.s8.bf16 %v3555
    %v4516 = vunpack.c.h.s8.bf16 %v3556
    %v4517 = vunpack.c.h.s8.bf16 %v3557
    %v4518 = vunpack.c.l.s8.bf16 %v3558
    %v4519 = vunpack.c.l.s8.bf16 %v3559
    %v4520 = vunpack.c.l.s8.bf16 %v3560
    %v4521 = vunpack.c.l.s8.bf16 %v3561
    %v4522 = vunpack.c.l.s8.bf16 %v3562
    %v4523 = vunpack.c.l.s8.bf16 %v3563
    %v4524 = vunpack.c.l.s8.bf16 %v3564
    %v4525 = vunpack.c.l.s8.bf16 %v3565
    %v4526 = vunpack.c.h.s8.bf16 %v3558
    %v4527 = vunpack.c.h.s8.bf16 %v3559
    %v4528 = vunpack.c.h.s8.bf16 %v3560
    %v4529 = vunpack.c.h.s8.bf16 %v3561
    %v4530 = vunpack.c.h.s8.bf16 %v3562
    %v4531 = vunpack.c.h.s8.bf16 %v3563
    %v4532 = vunpack.c.h.s8.bf16 %v3564
    %v4533 = vunpack.c.h.s8.bf16 %v3565
    %v4534 = vunpack.c.l.s8.bf16 %v3566
    %v4535 = vunpack.c.l.s8.bf16 %v3567
    %v4536 = vunpack.c.l.s8.bf16 %v3568
    %v4537 = vunpack.c.l.s8.bf16 %v3569
    %v4538 = vunpack.c.l.s8.bf16 %v3570
    %v4539 = vunpack.c.l.s8.bf16 %v3571
    %v4540 = vunpack.c.l.s8.bf16 %v3572
    %v4541 = vunpack.c.l.s8.bf16 %v3573
    %v4542 = vunpack.c.h.s8.bf16 %v3566
    %v4543 = vunpack.c.h.s8.bf16 %v3567
    %v4544 = vunpack.c.h.s8.bf16 %v3568
    %v4545 = vunpack.c.h.s8.bf16 %v3569
    %v4546 = vunpack.c.h.s8.bf16 %v3570
    %v4547 = vunpack.c.h.s8.bf16 %v3571
    %v4548 = vunpack.c.h.s8.bf16 %v3572
    %v4549 = vunpack.c.h.s8.bf16 %v3573
    %v4550 = vunpack.c.l.s8.bf16 %v3574
    %v4551 = vunpack.c.l.s8.bf16 %v3575
    %v4552 = vunpack.c.l.s8.bf16 %v3576
    %v4553 = vunpack.c.l.s8.bf16 %v3577
    %v4554 = vunpack.c.l.s8.bf16 %v3578
    %v4555 = vunpack.c.l.s8.bf16 %v3579
    %v4556 = vunpack.c.l.s8.bf16 %v3580
    %v4557 = vunpack.c.l.s8.bf16 %v3581
    %v4558 = vunpack.c.h.s8.bf16 %v3574
    %v4559 = vunpack.c.h.s8.bf16 %v3575
    %v4560 = vunpack.c.h.s8.bf16 %v3576
    %v4561 = vunpack.c.h.s8.bf16 %v3577
    %v4562 = vunpack.c.h.s8.bf16 %v3578
    %v4563 = vunpack.c.h.s8.bf16 %v3579
    %v4564 = vunpack.c.h.s8.bf16 %v3580
    %v4565 = vunpack.c.h.s8.bf16 %v3581
    %v4566 = vunpack.c.l.s8.bf16 %v3582
    %v4567 = vunpack.c.l.s8.bf16 %v3583
    %v4568 = vunpack.c.l.s8.bf16 %v3584
    %v4569 = vunpack.c.l.s8.bf16 %v3585
    %v4570 = vunpack.c.l.s8.bf16 %v3586
    %v4571 = vunpack.c.l.s8.bf16 %v3587
    %v4572 = vunpack.c.l.s8.bf16 %v3588
    %v4573 = vunpack.c.l.s8.bf16 %v3589
    %v4574 = vunpack.c.h.s8.bf16 %v3582
    %v4575 = vunpack.c.h.s8.bf16 %v3583
    %v4576 = vunpack.c.h.s8.bf16 %v3584
    %v4577 = vunpack.c.h.s8.bf16 %v3585
    %v4578 = vunpack.c.h.s8.bf16 %v3586
    %v4579 = vunpack.c.h.s8.bf16 %v3587
    %v4580 = vunpack.c.h.s8.bf16 %v3588
    %v4581 = vunpack.c.h.s8.bf16 %v3589
    %v4582 = vunpack.c.l.s8.bf16 %v3590
    %v4583 = vunpack.c.l.s8.bf16 %v3591
    %v4584 = vunpack.c.l.s8.bf16 %v3592
    %v4585 = vunpack.c.l.s8.bf16 %v3593
    %v4586 = vunpack.c.l.s8.bf16 %v3594
    %v4587 = vunpack.c.l.s8.bf16 %v3595
    %v4588 = vunpack.c.l.s8.bf16 %v3596
    %v4589 = vunpack.c.l.s8.bf16 %v3597
    %v4590 = vunpack.c.h.s8.bf16 %v3590
    %v4591 = vunpack.c.h.s8.bf16 %v3591
    %v4592 = vunpack.c.h.s8.bf16 %v3592
    %v4593 = vunpack.c.h.s8.bf16 %v3593
    %v4594 = vunpack.c.h.s8.bf16 %v3594
    %v4595 = vunpack.c.h.s8.bf16 %v3595
    %v4596 = vunpack.c.h.s8.bf16 %v3596
    %v4597 = vunpack.c.h.s8.bf16 %v3597
    %v4598 = vunpack.c.l.s8.bf16 %v3598
    %v4599 = vunpack.c.l.s8.bf16 %v3599
    %v4600 = vunpack.c.l.s8.bf16 %v3600
    %v4601 = vunpack.c.l.s8.bf16 %v3601
    %v4602 = vunpack.c.l.s8.bf16 %v3602
    %v4603 = vunpack.c.l.s8.bf16 %v3603
    %v4604 = vunpack.c.l.s8.bf16 %v3604
    %v4605 = vunpack.c.l.s8.bf16 %v3605
    %v4606 = vunpack.c.h.s8.bf16 %v3598
    %v4607 = vunpack.c.h.s8.bf16 %v3599
    %v4608 = vunpack.c.h.s8.bf16 %v3600
    %v4609 = vunpack.c.h.s8.bf16 %v3601
    %v4610 = vunpack.c.h.s8.bf16 %v3602
    %v4611 = vunpack.c.h.s8.bf16 %v3603
    %v4612 = vunpack.c.h.s8.bf16 %v3604
    %v4613 = vunpack.c.h.s8.bf16 %v3605
    %v4614 = vunpack.c.l.s8.bf16 %v3606
    %v4615 = vunpack.c.l.s8.bf16 %v3607
    %v4616 = vunpack.c.l.s8.bf16 %v3608
    %v4617 = vunpack.c.l.s8.bf16 %v3609
    %v4618 = vunpack.c.l.s8.bf16 %v3610
    %v4619 = vunpack.c.l.s8.bf16 %v3611
    %v4620 = vunpack.c.l.s8.bf16 %v3612
    %v4621 = vunpack.c.l.s8.bf16 %v3613
    %v4622 = vunpack.c.h.s8.bf16 %v3606
    %v4623 = vunpack.c.h.s8.bf16 %v3607
    %v4624 = vunpack.c.h.s8.bf16 %v3608
    %v4625 = vunpack.c.h.s8.bf16 %v3609
    %v4626 = vunpack.c.h.s8.bf16 %v3610
    %v4627 = vunpack.c.h.s8.bf16 %v3611
    %v4628 = vunpack.c.h.s8.bf16 %v3612
    %v4629 = vunpack.c.h.s8.bf16 %v3613
    %v4630 = vunpack.c.l.s8.bf16 %v3614
    %v4631 = vunpack.c.l.s8.bf16 %v3615
    %v4632 = vunpack.c.l.s8.bf16 %v3616
    %v4633 = vunpack.c.l.s8.bf16 %v3617
    %v4634 = vunpack.c.l.s8.bf16 %v3618
    %v4635 = vunpack.c.l.s8.bf16 %v3619
    %v4636 = vunpack.c.l.s8.bf16 %v3620
    %v4637 = vunpack.c.l.s8.bf16 %v3621
    %v4638 = vunpack.c.h.s8.bf16 %v3614
    %v4639 = vunpack.c.h.s8.bf16 %v3615
    %v4640 = vunpack.c.h.s8.bf16 %v3616
    %v4641 = vunpack.c.h.s8.bf16 %v3617
    %v4642 = vunpack.c.h.s8.bf16 %v3618
    %v4643 = vunpack.c.h.s8.bf16 %v3619
    %v4644 = vunpack.c.h.s8.bf16 %v3620
    %v4645 = vunpack.c.h.s8.bf16 %v3621
    %4646 = vmatprep.subr.bf16.mxu0 %v3623
    %4647 = vmatpush1.bf16.msra.mxu0 %v3622
    %4648 = vmatprep.subr.bf16.mxu0 %v3631
    %4649 = vmatpush1.bf16.msra.mxu0 %v3630
    %4650 = vmatprep.subr.bf16.mxu0 %v3639
    %4651 = vmatpush1.bf16.msra.mxu0 %v3638
    %4652 = vmatprep.subr.bf16.mxu0 %v3647
    %4653 = vmatpush1.bf16.msra.mxu0 %v3646
    %4654 = vmatprep.subr.bf16.mxu0 %v3655
    %4655 = vmatpush1.bf16.msra.mxu0 %v3654
    %4656 = vmatprep.subr.bf16.mxu0 %v3663
    %4657 = vmatpush1.bf16.msra.mxu0 %v3662
    %4658 = vmatprep.subr.bf16.mxu0 %v3671
    %4659 = vmatpush1.bf16.msra.mxu0 %v3670
    %4660 = vmatprep.subr.bf16.mxu0 %v3679
    %4661 = vmatpush1.bf16.msra.mxu0 %v3678
    %4662 = vmatprep.subr.bf16.mxu0 %v3687
    %4663 = vmatpush1.bf16.msra.mxu0 %v3686
    %4664 = vmatprep.subr.bf16.mxu0 %v3695
    %4665 = vmatpush1.bf16.msra.mxu0 %v3694
    %4666 = vmatprep.subr.bf16.mxu0 %v3703
    %4667 = vmatpush1.bf16.msra.mxu0 %v3702
    %4668 = vmatprep.subr.bf16.mxu0 %v3711
    %4669 = vmatpush1.bf16.msra.mxu0 %v3710
    %4670 = vmatprep.subr.bf16.mxu0 %v3719
    %4671 = vmatpush1.bf16.msra.mxu0 %v3718
    %4672 = vmatprep.subr.bf16.mxu0 %v3727
    %4673 = vmatpush1.bf16.msra.mxu0 %v3726
    %4674 = vmatprep.subr.bf16.mxu0 %v3735
    %4675 = vmatpush1.bf16.msra.mxu0 %v3734
    %4676 = vmatprep.subr.bf16.mxu0 %v3743
    %4677 = vmatpush1.bf16.msra.mxu0 %v3742
    %4678 = vmatprep.mubr.bf16.mxu0 %v3095
    %4679 = vmatmul.mubr.bf16.gmra.mrb[0].mxu0 %v3094
    %v4680 = vpop.f32.mrb[0].mxu0
    %v4681 = vadd.f32 0.0, %v4680
    %v4682 = vpop.f32.mrb[0].mxu0
    %v4683 = vadd.f32 0.0, %v4682
    %v4684 = vpop.f32.mrb[0].mxu0
    %v4685 = vpop.f32.mrb[0].mxu0
    %4686 = vdwg.mxu0
    %4687 = vmatprep.subr.bf16.mxu0 %v3751
    %4688 = vmatpush1.bf16.msra.mxu0 %v3750
    %4689 = vmatprep.subr.bf16.mxu0 %v3759
    %4690 = vmatpush1.bf16.msra.mxu0 %v3758
    %4691 = vmatprep.subr.bf16.mxu0 %v3767
    %4692 = vmatpush1.bf16.msra.mxu0 %v3766
    %4693 = vmatprep.subr.bf16.mxu0 %v3775
    %4694 = vmatpush1.bf16.msra.mxu0 %v3774
    %4695 = vmatprep.subr.bf16.mxu0 %v3783
    %4696 = vmatpush1.bf16.msra.mxu0 %v3782
    %4697 = vmatprep.subr.bf16.mxu0 %v3791
    %4698 = vmatpush1.bf16.msra.mxu0 %v3790
    %4699 = vmatprep.subr.bf16.mxu0 %v3799
    %4700 = vmatpush1.bf16.msra.mxu0 %v3798
    %4701 = vmatprep.subr.bf16.mxu0 %v3807
    %4702 = vmatpush1.bf16.msra.mxu0 %v3806
    %4703 = vmatprep.subr.bf16.mxu0 %v3815
    %4704 = vmatpush1.bf16.msra.mxu0 %v3814
    %4705 = vmatprep.subr.bf16.mxu0 %v3823
    %4706 = vmatpush1.bf16.msra.mxu0 %v3822
    %4707 = vmatprep.subr.bf16.mxu0 %v3831
    %4708 = vmatpush1.bf16.msra.mxu0 %v3830
    %4709 = vmatprep.subr.bf16.mxu0 %v3839
    %4710 = vmatpush1.bf16.msra.mxu0 %v3838
    %4711 = vmatprep.subr.bf16.mxu0 %v3847
    %4712 = vmatpush1.bf16.msra.mxu0 %v3846
    %4713 = vmatprep.subr.bf16.mxu0 %v3855
    %4714 = vmatpush1.bf16.msra.mxu0 %v3854
    %4715 = vmatprep.subr.bf16.mxu0 %v3863
    %4716 = vmatpush1.bf16.msra.mxu0 %v3862
    %4717 = vmatprep.subr.bf16.mxu0 %v3871
    %4718 = vmatpush1.bf16.msra.mxu0 %v3870
    %4719 = vmatprep.mubr.bf16.mxu0 %v3097
    %4720 = vmatmul.mubr.bf16.gmra.mrb[0].mxu0 %v3096
    %v4721 = vpop.f32.mrb[0].mxu0
    %v4722 = vadd.f32 %v4681, %v4721
    %v4723 = vpop.f32.mrb[0].mxu0
    %v4724 = vadd.f32 %v4683, %v4723
    %v4725 = vpop.f32.mrb[0].mxu0
    %v4726 = vpop.f32.mrb[0].mxu0
    %4727 = vdwg.mxu0
    %4728 = vmatprep.subr.bf16.mxu0 %v3879
    %4729 = vmatpush1.bf16.msra.mxu0 %v3878
    %4730 = vmatprep.subr.bf16.mxu0 %v3887
    %4731 = vmatpush1.bf16.msra.mxu0 %v3886
    %4732 = vmatprep.subr.bf16.mxu0 %v3895
    %4733 = vmatpush1.bf16.msra.mxu0 %v3894
    %4734 = vmatprep.subr.bf16.mxu0 %v3903
    %4735 = vmatpush1.bf16.msra.mxu0 %v3902
    %4736 = vmatprep.subr.bf16.mxu0 %v3911
    %4737 = vmatpush1.bf16.msra.mxu0 %v3910
    %4738 = vmatprep.subr.bf16.mxu0 %v3919
    %4739 = vmatpush1.bf16.msra.mxu0 %v3918
    %4740 = vmatprep.subr.bf16.mxu0 %v3927
    %4741 = vmatpush1.bf16.msra.mxu0 %v3926
    %4742 = vmatprep.subr.bf16.mxu0 %v3935
    %4743 = vmatpush1.bf16.msra.mxu0 %v3934
    %4744 = vmatprep.subr.bf16.mxu0 %v3943
    %4745 = vmatpush1.bf16.msra.mxu0 %v3942
    %4746 = vmatprep.subr.bf16.mxu0 %v3951
    %4747 = vmatpush1.bf16.msra.mxu0 %v3950
    %4748 = vmatprep.subr.bf16.mxu0 %v3959
    %4749 = vmatpush1.bf16.msra.mxu0 %v3958
    %4750 = vmatprep.subr.bf16.mxu0 %v3967
    %4751 = vmatpush1.bf16.msra.mxu0 %v3966
    %4752 = vmatprep.subr.bf16.mxu0 %v3975
    %4753 = vmatpush1.bf16.msra.mxu0 %v3974
    %4754 = vmatprep.subr.bf16.mxu0 %v3983
    %4755 = vmatpush1.bf16.msra.mxu0 %v3982
    %4756 = vmatprep.subr.bf16.mxu0 %v3991
    %4757 = vmatpush1.bf16.msra.mxu0 %v3990
    %4758 = vmatprep.subr.bf16.mxu0 %v3999
    %4759 = vmatpush1.bf16.msra.mxu0 %v3998
    %4760 = vmatprep.mubr.bf16.mxu0 %v3099
    %4761 = vmatmul.mubr.bf16.gmra.mrb[0].mxu0 %v3098
    %v4762 = vpop.f32.mrb[0].mxu0
    %v4763 = vadd.f32 %v4722, %v4762
    %v4764 = vpop.f32.mrb[0].mxu0
    %v4765 = vadd.f32 %v4724, %v4764
    %v4766 = vpop.f32.mrb[0].mxu0
    %v4767 = vpop.f32.mrb[0].mxu0
    %4768 = vdwg.mxu0
    %4769 = vmatprep.subr.bf16.mxu0 %v4007
    %4770 = vmatpush1.bf16.msra.mxu0 %v4006
    %4771 = vmatprep.subr.bf16.mxu0 %v4015
    %4772 = vmatpush1.bf16.msra.mxu0 %v4014
    %4773 = vmatprep.subr.bf16.mxu0 %v4023
    %4774 = vmatpush1.bf16.msra.mxu0 %v4022
    %4775 = vmatprep.subr.bf16.mxu0 %v4031
    %4776 = vmatpush1.bf16.msra.mxu0 %v4030
    %4777 = vmatprep.subr.bf16.mxu0 %v4039
    %4778 = vmatpush1.bf16.msra.mxu0 %v4038
    %4779 = vmatprep.subr.bf16.mxu0 %v4047
    %4780 = vmatpush1.bf16.msra.mxu0 %v4046
    %4781 = vmatprep.subr.bf16.mxu0 %v4055
    %4782 = vmatpush1.bf16.msra.mxu0 %v4054
    %4783 = vmatprep.subr.bf16.mxu0 %v4063
    %4784 = vmatpush1.bf16.msra.mxu0 %v4062
    %4785 = vmatprep.subr.bf16.mxu0 %v4071
    %4786 = vmatpush1.bf16.msra.mxu0 %v4070
    %4787 = vmatprep.subr.bf16.mxu0 %v4079
    %4788 = vmatpush1.bf16.msra.mxu0 %v4078
    %4789 = vmatprep.subr.bf16.mxu0 %v4087
    %4790 = vmatpush1.bf16.msra.mxu0 %v4086
    %4791 = vmatprep.subr.bf16.mxu0 %v4095
    %4792 = vmatpush1.bf16.msra.mxu0 %v4094
    %4793 = vmatprep.subr.bf16.mxu0 %v4103
    %4794 = vmatpush1.bf16.msra.mxu0 %v4102
    %4795 = vmatprep.subr.bf16.mxu0 %v4111
    %4796 = vmatpush1.bf16.msra.mxu0 %v4110
    %4797 = vmatprep.subr.bf16.mxu0 %v4119
    %4798 = vmatpush1.bf16.msra.mxu0 %v4118
    %4799 = vmatprep.subr.bf16.mxu0 %v4127
    %4800 = vmatpush1.bf16.msra.mxu0 %v4126
    %4801 = vmatprep.mubr.bf16.mxu0 %v3101
    %4802 = vmatmul.mubr.bf16.gmra.mrb[0].mxu0 %v3100
    %v4803 = vpop.f32.mrb[0].mxu0
    %v4804 = vadd.f32 %v4763, %v4803
    %v4805 = vpop.f32.mrb[0].mxu0
    %v4806 = vadd.f32 %v4765, %v4805
    %v4807 = vpop.f32.mrb[0].mxu0
    %v4808 = vpop.f32.mrb[0].mxu0
    %4809 = vdwg.mxu0
    %4810 = vmatprep.subr.bf16.mxu0 %v4135
    %4811 = vmatpush1.bf16.msra.mxu0 %v4134
    %4812 = vmatprep.subr.bf16.mxu0 %v4143
    %4813 = vmatpush1.bf16.msra.mxu0 %v4142
    %4814 = vmatprep.subr.bf16.mxu0 %v4151
    %4815 = vmatpush1.bf16.msra.mxu0 %v4150
    %4816 = vmatprep.subr.bf16.mxu0 %v4159
    %4817 = vmatpush1.bf16.msra.mxu0 %v4158
    %4818 = vmatprep.subr.bf16.mxu0 %v4167
    %4819 = vmatpush1.bf16.msra.mxu0 %v4166
    %4820 = vmatprep.subr.bf16.mxu0 %v4175
    %4821 = vmatpush1.bf16.msra.mxu0 %v4174
    %4822 = vmatprep.subr.bf16.mxu0 %v4183
    %4823 = vmatpush1.bf16.msra.mxu0 %v4182
    %4824 = vmatprep.subr.bf16.mxu0 %v4191
    %4825 = vmatpush1.bf16.msra.mxu0 %v4190
    %4826 = vmatprep.subr.bf16.mxu0 %v4199
    %4827 = vmatpush1.bf16.msra.mxu0 %v4198
    %4828 = vmatprep.subr.bf16.mxu0 %v4207
    %4829 = vmatpush1.bf16.msra.mxu0 %v4206
    %4830 = vmatprep.subr.bf16.mxu0 %v4215
    %4831 = vmatpush1.bf16.msra.mxu0 %v4214
    %4832 = vmatprep.subr.bf16.mxu0 %v4223
    %4833 = vmatpush1.bf16.msra.mxu0 %v4222
    %4834 = vmatprep.subr.bf16.mxu0 %v4231
    %4835 = vmatpush1.bf16.msra.mxu0 %v4230
    %4836 = vmatprep.subr.bf16.mxu0 %v4239
    %4837 = vmatpush1.bf16.msra.mxu0 %v4238
    %4838 = vmatprep.subr.bf16.mxu0 %v4247
    %4839 = vmatpush1.bf16.msra.mxu0 %v4246
    %4840 = vmatprep.subr.bf16.mxu0 %v4255
    %4841 = vmatpush1.bf16.msra.mxu0 %v4254
    %4842 = vmatprep.mubr.bf16.mxu0 %v3103
    %4843 = vmatmul.mubr.bf16.gmra.mrb[0].mxu0 %v3102
    %v4844 = vpop.f32.mrb[0].mxu0
    %v4845 = vadd.f32 %v4804, %v4844
    %v4846 = vpop.f32.mrb[0].mxu0
    %v4847 = vadd.f32 %v4806, %v4846
    %v4848 = vpop.f32.mrb[0].mxu0
    %v4849 = vpop.f32.mrb[0].mxu0
    %4850 = vdwg.mxu0
    %4851 = vmatprep.subr.bf16.mxu0 %v4263
    %4852 = vmatpush1.bf16.msra.mxu0 %v4262
    %4853 = vmatprep.subr.bf16.mxu0 %v4271
    %4854 = vmatpush1.bf16.msra.mxu0 %v4270
    %4855 = vmatprep.subr.bf16.mxu0 %v4279
    %4856 = vmatpush1.bf16.msra.mxu0 %v4278
    %4857 = vmatprep.subr.bf16.mxu0 %v4287
    %4858 = vmatpush1.bf16.msra.mxu0 %v4286
    %4859 = vmatprep.subr.bf16.mxu0 %v4295
    %4860 = vmatpush1.bf16.msra.mxu0 %v4294
    %4861 = vmatprep.subr.bf16.mxu0 %v4303
    %4862 = vmatpush1.bf16.msra.mxu0 %v4302
    %4863 = vmatprep.subr.bf16.mxu0 %v4311
    %4864 = vmatpush1.bf16.msra.mxu0 %v4310
    %4865 = vmatprep.subr.bf16.mxu0 %v4319
    %4866 = vmatpush1.bf16.msra.mxu0 %v4318
    %4867 = vmatprep.subr.bf16.mxu0 %v4327
    %4868 = vmatpush1.bf16.msra.mxu0 %v4326
    %4869 = vmatprep.subr.bf16.mxu0 %v4335
    %4870 = vmatpush1.bf16.msra.mxu0 %v4334
    %4871 = vmatprep.subr.bf16.mxu0 %v4343
    %4872 = vmatpush1.bf16.msra.mxu0 %v4342
    %4873 = vmatprep.subr.bf16.mxu0 %v4351
    %4874 = vmatpush1.bf16.msra.mxu0 %v4350
    %4875 = vmatprep.subr.bf16.mxu0 %v4359
    %4876 = vmatpush1.bf16.msra.mxu0 %v4358
    %4877 = vmatprep.subr.bf16.mxu0 %v4367
    %4878 = vmatpush1.bf16.msra.mxu0 %v4366
    %4879 = vmatprep.subr.bf16.mxu0 %v4375
    %4880 = vmatpush1.bf16.msra.mxu0 %v4374
    %4881 = vmatprep.subr.bf16.mxu0 %v4383
    %4882 = vmatpush1.bf16.msra.mxu0 %v4382
    %4883 = vmatprep.mubr.bf16.mxu0 %v3105
    %4884 = vmatmul.mubr.bf16.gmra.mrb[0].mxu0 %v3104
    %v4885 = vpop.f32.mrb[0].mxu0
    %v4886 = vadd.f32 %v4845, %v4885
    %v4887 = vpop.f32.mrb[0].mxu0
    %v4888 = vadd.f32 %v4847, %v4887
    %v4889 = vpop.f32.mrb[0].mxu0
    %v4890 = vpop.f32.mrb[0].mxu0
    %4891 = vdwg.mxu0
    %4892 = vmatprep.subr.bf16.mxu0 %v4391
    %4893 = vmatpush1.bf16.msra.mxu0 %v4390
    %4894 = vmatprep.subr.bf16.mxu0 %v4399
    %4895 = vmatpush1.bf16.msra.mxu0 %v4398
    %4896 = vmatprep.subr.bf16.mxu0 %v4407
    %4897 = vmatpush1.bf16.msra.mxu0 %v4406
    %4898 = vmatprep.subr.bf16.mxu0 %v4415
    %4899 = vmatpush1.bf16.msra.mxu0 %v4414
    %4900 = vmatprep.subr.bf16.mxu0 %v4423
    %4901 = vmatpush1.bf16.msra.mxu0 %v4422
    %4902 = vmatprep.subr.bf16.mxu0 %v4431
    %4903 = vmatpush1.bf16.msra.mxu0 %v4430
    %4904 = vmatprep.subr.bf16.mxu0 %v4439
    %4905 = vmatpush1.bf16.msra.mxu0 %v4438
    %4906 = vmatprep.subr.bf16.mxu0 %v4447
    %4907 = vmatpush1.bf16.msra.mxu0 %v4446
    %4908 = vmatprep.subr.bf16.mxu0 %v4455
    %4909 = vmatpush1.bf16.msra.mxu0 %v4454
    %4910 = vmatprep.subr.bf16.mxu0 %v4463
    %4911 = vmatpush1.bf16.msra.mxu0 %v4462
    %4912 = vmatprep.subr.bf16.mxu0 %v4471
    %4913 = vmatpush1.bf16.msra.mxu0 %v4470
    %4914 = vmatprep.subr.bf16.mxu0 %v4479
    %4915 = vmatpush1.bf16.msra.mxu0 %v4478
    %4916 = vmatprep.subr.bf16.mxu0 %v4487
    %4917 = vmatpush1.bf16.msra.mxu0 %v4486
    %4918 = vmatprep.subr.bf16.mxu0 %v4495
    %4919 = vmatpush1.bf16.msra.mxu0 %v4494
    %4920 = vmatprep.subr.bf16.mxu0 %v4503
    %4921 = vmatpush1.bf16.msra.mxu0 %v4502
    %4922 = vmatprep.subr.bf16.mxu0 %v4511
    %4923 = vmatpush1.bf16.msra.mxu0 %v4510
    %4924 = vmatprep.mubr.bf16.mxu0 %v3107
    %4925 = vmatmul.mubr.bf16.gmra.mrb[0].mxu0 %v3106
    %v4926 = vpop.f32.mrb[0].mxu0
    %v4927 = vadd.f32 %v4886, %v4926
    %v4928 = vpop.f32.mrb[0].mxu0
    %v4929 = vadd.f32 %v4888, %v4928
    %v4930 = vpop.f32.mrb[0].mxu0
    %v4931 = vpop.f32.mrb[0].mxu0
    %4932 = vdwg.mxu0
    %4933 = vmatprep.subr.bf16.mxu0 %v4519
    %4934 = vmatpush1.bf16.msra.mxu0 %v4518
    %4935 = vmatprep.subr.bf16.mxu0 %v4527
    %4936 = vmatpush1.bf16.msra.mxu0 %v4526
    %4937 = vmatprep.subr.bf16.mxu0 %v4535
    %4938 = vmatpush1.bf16.msra.mxu0 %v4534
    %4939 = vmatprep.subr.bf16.mxu0 %v4543
    %4940 = vmatpush1.bf16.msra.mxu0 %v4542
    %4941 = vmatprep.subr.bf16.mxu0 %v4551
    %4942 = vmatpush1.bf16.msra.mxu0 %v4550
    %4943 = vmatprep.subr.bf16.mxu0 %v4559
    %4944 = vmatpush1.bf16.msra.mxu0 %v4558
    %4945 = vmatprep.subr.bf16.mxu0 %v4567
    %4946 = vmatpush1.bf16.msra.mxu0 %v4566
    %4947 = vmatprep.subr.bf16.mxu0 %v4575
    %4948 = vmatpush1.bf16.msra.mxu0 %v4574
    %4949 = vmatprep.subr.bf16.mxu0 %v4583
    %4950 = vmatpush1.bf16.msra.mxu0 %v4582
    %4951 = vmatprep.subr.bf16.mxu0 %v4591
    %4952 = vmatpush1.bf16.msra.mxu0 %v4590
    %4953 = vmatprep.subr.bf16.mxu0 %v4599
    %4954 = vmatpush1.bf16.msra.mxu0 %v4598
    %4955 = vmatprep.subr.bf16.mxu0 %v4607
    %4956 = vmatpush1.bf16.msra.mxu0 %v4606
    %4957 = vmatprep.subr.bf16.mxu0 %v4615
    %4958 = vmatpush1.bf16.msra.mxu0 %v4614
    %4959 = vmatprep.subr.bf16.mxu0 %v4623
    %4960 = vmatpush1.bf16.msra.mxu0 %v4622
    %4961 = vmatprep.subr.bf16.mxu0 %v4631
    %4962 = vmatpush1.bf16.msra.mxu0 %v4630
    %4963 = vmatprep.subr.bf16.mxu0 %v4639
    %4964 = vmatpush1.bf16.msra.mxu0 %v4638
    %4965 = vmatprep.mubr.bf16.mxu0 %v3109
    %4966 = vmatmul.mubr.bf16.gmra.mrb[0].mxu0 %v3108
    %v4967 = vpop.f32.mrb[0].mxu0
    %v4968 = vadd.f32 %v4927, %v4967
    %v4969 = vpop.f32.mrb[0].mxu0
    %v4970 = vadd.f32 %v4929, %v4969
    %v4971 = vpop.f32.mrb[0].mxu0
    %v4972 = vpop.f32.mrb[0].mxu0
    %4973 = vdwg.mxu0
    %4974 = vmatprep.subr.bf16.mxu0 %v3625
    %4975 = vmatpush1.bf16.msra.mxu0 %v3624
    %4976 = vmatprep.subr.bf16.mxu0 %v3633
    %4977 = vmatpush1.bf16.msra.mxu0 %v3632
    %4978 = vmatprep.subr.bf16.mxu0 %v3641
    %4979 = vmatpush1.bf16.msra.mxu0 %v3640
    %4980 = vmatprep.subr.bf16.mxu0 %v3649
    %4981 = vmatpush1.bf16.msra.mxu0 %v3648
    %4982 = vmatprep.subr.bf16.mxu0 %v3657
    %4983 = vmatpush1.bf16.msra.mxu0 %v3656
    %4984 = vmatprep.subr.bf16.mxu0 %v3665
    %4985 = vmatpush1.bf16.msra.mxu0 %v3664
    %4986 = vmatprep.subr.bf16.mxu0 %v3673
    %4987 = vmatpush1.bf16.msra.mxu0 %v3672
    %4988 = vmatprep.subr.bf16.mxu0 %v3681
    %4989 = vmatpush1.bf16.msra.mxu0 %v3680
    %4990 = vmatprep.subr.bf16.mxu0 %v3689
    %4991 = vmatpush1.bf16.msra.mxu0 %v3688
    %4992 = vmatprep.subr.bf16.mxu0 %v3697
    %4993 = vmatpush1.bf16.msra.mxu0 %v3696
    %4994 = vmatprep.subr.bf16.mxu0 %v3705
    %4995 = vmatpush1.bf16.msra.mxu0 %v3704
    %4996 = vmatprep.subr.bf16.mxu0 %v3713
    %4997 = vmatpush1.bf16.msra.mxu0 %v3712
    %4998 = vmatprep.subr.bf16.mxu0 %v3721
    %4999 = vmatpush1.bf16.msra.mxu0 %v3720
    %5000 = vmatprep.subr.bf16.mxu0 %v3729
    %5001 = vmatpush1.bf16.msra.mxu0 %v3728
    %5002 = vmatprep.subr.bf16.mxu0 %v3737
    %5003 = vmatpush1.bf16.msra.mxu0 %v3736
    %5004 = vmatprep.subr.bf16.mxu0 %v3745
    %5005 = vmatpush1.bf16.msra.mxu0 %v3744
    %5006 = vmatprep.mubr.bf16.mxu0 %v3095
    %5007 = vmatmul.mubr.bf16.gmra.mrb[0].mxu0 %v3094
    %v5008 = vpop.f32.mrb[0].mxu0
    %v5009 = vadd.f32 0.0, %v5008
    %v5010 = vpop.f32.mrb[0].mxu0
    %v5011 = vadd.f32 0.0, %v5010
    %v5012 = vpop.f32.mrb[0].mxu0
    %v5013 = vpop.f32.mrb[0].mxu0
    %5014 = vdwg.mxu0
    %5015 = vmatprep.subr.bf16.mxu0 %v3753
    %5016 = vmatpush1.bf16.msra.mxu0 %v3752
    %5017 = vmatprep.subr.bf16.mxu0 %v3761
    %5018 = vmatpush1.bf16.msra.mxu0 %v3760
    %5019 = vmatprep.subr.bf16.mxu0 %v3769
    %5020 = vmatpush1.bf16.msra.mxu0 %v3768
    %5021 = vmatprep.subr.bf16.mxu0 %v3777
    %5022 = vmatpush1.bf16.msra.mxu0 %v3776
    %5023 = vmatprep.subr.bf16.mxu0 %v3785
    %5024 = vmatpush1.bf16.msra.mxu0 %v3784
    %5025 = vmatprep.subr.bf16.mxu0 %v3793
    %5026 = vmatpush1.bf16.msra.mxu0 %v3792
    %5027 = vmatprep.subr.bf16.mxu0 %v3801
    %5028 = vmatpush1.bf16.msra.mxu0 %v3800
    %5029 = vmatprep.subr.bf16.mxu0 %v3809
    %5030 = vmatpush1.bf16.msra.mxu0 %v3808
    %5031 = vmatprep.subr.bf16.mxu0 %v3817
    %5032 = vmatpush1.bf16.msra.mxu0 %v3816
    %5033 = vmatprep.subr.bf16.mxu0 %v3825
    %5034 = vmatpush1.bf16.msra.mxu0 %v3824
    %5035 = vmatprep.subr.bf16.mxu0 %v3833
    %5036 = vmatpush1.bf16.msra.mxu0 %v3832
    %5037 = vmatprep.subr.bf16.mxu0 %v3841
    %5038 = vmatpush1.bf16.msra.mxu0 %v3840
    %5039 = vmatprep.subr.bf16.mxu0 %v3849
    %5040 = vmatpush1.bf16.msra.mxu0 %v3848
    %5041 = vmatprep.subr.bf16.mxu0 %v3857
    %5042 = vmatpush1.bf16.msra.mxu0 %v3856
    %5043 = vmatprep.subr.bf16.mxu0 %v3865
    %5044 = vmatpush1.bf16.msra.mxu0 %v3864
    %5045 = vmatprep.subr.bf16.mxu0 %v3873
    %5046 = vmatpush1.bf16.msra.mxu0 %v3872
    %5047 = vmatprep.mubr.bf16.mxu0 %v3097
    %5048 = vmatmul.mubr.bf16.gmra.mrb[0].mxu0 %v3096
    %v5049 = vpop.f32.mrb[0].mxu0
    %v5050 = vadd.f32 %v5009, %v5049
    %v5051 = vpop.f32.mrb[0].mxu0
    %v5052 = vadd.f32 %v5011, %v5051
    %v5053 = vpop.f32.mrb[0].mxu0
    %v5054 = vpop.f32.mrb[0].mxu0
    %5055 = vdwg.mxu0
    %5056 = vmatprep.subr.bf16.mxu0 %v3881
    %5057 = vmatpush1.bf16.msra.mxu0 %v3880
    %5058 = vmatprep.subr.bf16.mxu0 %v3889
    %5059 = vmatpush1.bf16.msra.mxu0 %v3888
    %5060 = vmatprep.subr.bf16.mxu0 %v3897
    %5061 = vmatpush1.bf16.msra.mxu0 %v3896
    %5062 = vmatprep.subr.bf16.mxu0 %v3905
    %5063 = vmatpush1.bf16.msra.mxu0 %v3904
    %5064 = vmatprep.subr.bf16.mxu0 %v3913
    %5065 = vmatpush1.bf16.msra.mxu0 %v3912
    %5066 = vmatprep.subr.bf16.mxu0 %v3921
    %5067 = vmatpush1.bf16.msra.mxu0 %v3920
    %5068 = vmatprep.subr.bf16.mxu0 %v3929
    %5069 = vmatpush1.bf16.msra.mxu0 %v3928
    %5070 = vmatprep.subr.bf16.mxu0 %v3937
    %5071 = vmatpush1.bf16.msra.mxu0 %v3936
    %5072 = vmatprep.subr.bf16.mxu0 %v3945
    %5073 = vmatpush1.bf16.msra.mxu0 %v3944
    %5074 = vmatprep.subr.bf16.mxu0 %v3953
    %5075 = vmatpush1.bf16.msra.mxu0 %v3952
    %5076 = vmatprep.subr.bf16.mxu0 %v3961
    %5077 = vmatpush1.bf16.msra.mxu0 %v3960
    %5078 = vmatprep.subr.bf16.mxu0 %v3969
    %5079 = vmatpush1.bf16.msra.mxu0 %v3968
    %5080 = vmatprep.subr.bf16.mxu0 %v3977
    %5081 = vmatpush1.bf16.msra.mxu0 %v3976
    %5082 = vmatprep.subr.bf16.mxu0 %v3985
    %5083 = vmatpush1.bf16.msra.mxu0 %v3984
    %5084 = vmatprep.subr.bf16.mxu0 %v3993
    %5085 = vmatpush1.bf16.msra.mxu0 %v3992
    %5086 = vmatprep.subr.bf16.mxu0 %v4001
    %5087 = vmatpush1.bf16.msra.mxu0 %v4000
    %5088 = vmatprep.mubr.bf16.mxu0 %v3099
    %5089 = vmatmul.mubr.bf16.gmra.mrb[0].mxu0 %v3098
    %v5090 = vpop.f32.mrb[0].mxu0
    %v5091 = vadd.f32 %v5050, %v5090
    %v5092 = vpop.f32.mrb[0].mxu0
    %v5093 = vadd.f32 %v5052, %v5092
    %v5094 = vpop.f32.mrb[0].mxu0
    %v5095 = vpop.f32.mrb[0].mxu0
    %5096 = vdwg.mxu0
    %5097 = vmatprep.subr.bf16.mxu0 %v4009
    %5098 = vmatpush1.bf16.msra.mxu0 %v4008
    %5099 = vmatprep.subr.bf16.mxu0 %v4017
    %5100 = vmatpush1.bf16.msra.mxu0 %v4016
    %5101 = vmatprep.subr.bf16.mxu0 %v4025
    %5102 = vmatpush1.bf16.msra.mxu0 %v4024
    %5103 = vmatprep.subr.bf16.mxu0 %v4033
    %5104 = vmatpush1.bf16.msra.mxu0 %v4032
    %5105 = vmatprep.subr.bf16.mxu0 %v4041
    %5106 = vmatpush1.bf16.msra.mxu0 %v4040
    %5107 = vmatprep.subr.bf16.mxu0 %v4049
    %5108 = vmatpush1.bf16.msra.mxu0 %v4048
    %5109 = vmatprep.subr.bf16.mxu0 %v4057
    %5110 = vmatpush1.bf16.msra.mxu0 %v4056
    %5111 = vmatprep.subr.bf16.mxu0 %v4065
    %5112 = vmatpush1.bf16.msra.mxu0 %v4064
    %5113 = vmatprep.subr.bf16.mxu0 %v4073
    %5114 = vmatpush1.bf16.msra.mxu0 %v4072
    %5115 = vmatprep.subr.bf16.mxu0 %v4081
    %5116 = vmatpush1.bf16.msra.mxu0 %v4080
    %5117 = vmatprep.subr.bf16.mxu0 %v4089
    %5118 = vmatpush1.bf16.msra.mxu0 %v4088
    %5119 = vmatprep.subr.bf16.mxu0 %v4097
    %5120 = vmatpush1.bf16.msra.mxu0 %v4096
    %5121 = vmatprep.subr.bf16.mxu0 %v4105
    %5122 = vmatpush1.bf16.msra.mxu0 %v4104
    %5123 = vmatprep.subr.bf16.mxu0 %v4113
    %5124 = vmatpush1.bf16.msra.mxu0 %v4112
    %5125 = vmatprep.subr.bf16.mxu0 %v4121
    %5126 = vmatpush1.bf16.msra.mxu0 %v4120
    %5127 = vmatprep.subr.bf16.mxu0 %v4129
    %5128 = vmatpush1.bf16.msra.mxu0 %v4128
    %5129 = vmatprep.mubr.bf16.mxu0 %v3101
    %5130 = vmatmul.mubr.bf16.gmra.mrb[0].mxu0 %v3100
    %v5131 = vpop.f32.mrb[0].mxu0
    %v5132 = vadd.f32 %v5091, %v5131
    %v5133 = vpop.f32.mrb[0].mxu0
    %v5134 = vadd.f32 %v5093, %v5133
    %v5135 = vpop.f32.mrb[0].mxu0
    %v5136 = vpop.f32.mrb[0].mxu0
    %5137 = vdwg.mxu0
    %5138 = vmatprep.subr.bf16.mxu0 %v4137
    %5139 = vmatpush1.bf16.msra.mxu0 %v4136
    %5140 = vmatprep.subr.bf16.mxu0 %v4145
    %5141 = vmatpush1.bf16.msra.mxu0 %v4144
    %5142 = vmatprep.subr.bf16.mxu0 %v4153
    %5143 = vmatpush1.bf16.msra.mxu0 %v4152
    %5144 = vmatprep.subr.bf16.mxu0 %v4161
    %5145 = vmatpush1.bf16.msra.mxu0 %v4160
    %5146 = vmatprep.subr.bf16.mxu0 %v4169
    %5147 = vmatpush1.bf16.msra.mxu0 %v4168
    %5148 = vmatprep.subr.bf16.mxu0 %v4177
    %5149 = vmatpush1.bf16.msra.mxu0 %v4176
    %5150 = vmatprep.subr.bf16.mxu0 %v4185
    %5151 = vmatpush1.bf16.msra.mxu0 %v4184
    %5152 = vmatprep.subr.bf16.mxu0 %v4193
    %5153 = vmatpush1.bf16.msra.mxu0 %v4192
    %5154 = vmatprep.subr.bf16.mxu0 %v4201
    %5155 = vmatpush1.bf16.msra.mxu0 %v4200
    %5156 = vmatprep.subr.bf16.mxu0 %v4209
    %5157 = vmatpush1.bf16.msra.mxu0 %v4208
    %5158 = vmatprep.subr.bf16.mxu0 %v4217
    %5159 = vmatpush1.bf16.msra.mxu0 %v4216
    %5160 = vmatprep.subr.bf16.mxu0 %v4225
    %5161 = vmatpush1.bf16.msra.mxu0 %v4224
    %5162 = vmatprep.subr.bf16.mxu0 %v4233
    %5163 = vmatpush1.bf16.msra.mxu0 %v4232
    %5164 = vmatprep.subr.bf16.mxu0 %v4241
    %5165 = vmatpush1.bf16.msra.mxu0 %v4240
    %5166 = vmatprep.subr.bf16.mxu0 %v4249
    %5167 = vmatpush1.bf16.msra.mxu0 %v4248
    %5168 = vmatprep.subr.bf16.mxu0 %v4257
    %5169 = vmatpush1.bf16.msra.mxu0 %v4256
    %5170 = vmatprep.mubr.bf16.mxu0 %v3103
    %5171 = vmatmul.mubr.bf16.gmra.mrb[0].mxu0 %v3102
    %v5172 = vpop.f32.mrb[0].mxu0
    %v5173 = vadd.f32 %v5132, %v5172
    %v5174 = vpop.f32.mrb[0].mxu0
    %v5175 = vadd.f32 %v5134, %v5174
    %v5176 = vpop.f32.mrb[0].mxu0
    %v5177 = vpop.f32.mrb[0].mxu0
    %5178 = vdwg.mxu0
    %5179 = vmatprep.subr.bf16.mxu0 %v4265
    %5180 = vmatpush1.bf16.msra.mxu0 %v4264
    %5181 = vmatprep.subr.bf16.mxu0 %v4273
    %5182 = vmatpush1.bf16.msra.mxu0 %v4272
    %5183 = vmatprep.subr.bf16.mxu0 %v4281
    %5184 = vmatpush1.bf16.msra.mxu0 %v4280
    %5185 = vmatprep.subr.bf16.mxu0 %v4289
    %5186 = vmatpush1.bf16.msra.mxu0 %v4288
    %5187 = vmatprep.subr.bf16.mxu0 %v4297
    %5188 = vmatpush1.bf16.msra.mxu0 %v4296
    %5189 = vmatprep.subr.bf16.mxu0 %v4305
    %5190 = vmatpush1.bf16.msra.mxu0 %v4304
    %5191 = vmatprep.subr.bf16.mxu0 %v4313
    %5192 = vmatpush1.bf16.msra.mxu0 %v4312
    %5193 = vmatprep.subr.bf16.mxu0 %v4321
    %5194 = vmatpush1.bf16.msra.mxu0 %v4320
    %5195 = vmatprep.subr.bf16.mxu0 %v4329
    %5196 = vmatpush1.bf16.msra.mxu0 %v4328
    %5197 = vmatprep.subr.bf16.mxu0 %v4337
    %5198 = vmatpush1.bf16.msra.mxu0 %v4336
    %5199 = vmatprep.subr.bf16.mxu0 %v4345
    %5200 = vmatpush1.bf16.msra.mxu0 %v4344
    %5201 = vmatprep.subr.bf16.mxu0 %v4353
    %5202 = vmatpush1.bf16.msra.mxu0 %v4352
    %5203 = vmatprep.subr.bf16.mxu0 %v4361
    %5204 = vmatpush1.bf16.msra.mxu0 %v4360
    %5205 = vmatprep.subr.bf16.mxu0 %v4369
    %5206 = vmatpush1.bf16.msra.mxu0 %v4368
    %5207 = vmatprep.subr.bf16.mxu0 %v4377
    %5208 = vmatpush1.bf16.msra.mxu0 %v4376
    %5209 = vmatprep.subr.bf16.mxu0 %v4385
    %5210 = vmatpush1.bf16.msra.mxu0 %v4384
    %5211 = vmatprep.mubr.bf16.mxu0 %v3105
    %5212 = vmatmul.mubr.bf16.gmra.mrb[0].mxu0 %v3104
    %v5213 = vpop.f32.mrb[0].mxu0
    %v5214 = vadd.f32 %v5173, %v5213
    %v5215 = vpop.f32.mrb[0].mxu0
    %v5216 = vadd.f32 %v5175, %v5215
    %v5217 = vpop.f32.mrb[0].mxu0
    %v5218 = vpop.f32.mrb[0].mxu0
    %5219 = vdwg.mxu0
    %5220 = vmatprep.subr.bf16.mxu0 %v4393
    %5221 = vmatpush1.bf16.msra.mxu0 %v4392
    %5222 = vmatprep.subr.bf16.mxu0 %v4401
    %5223 = vmatpush1.bf16.msra.mxu0 %v4400
    %5224 = vmatprep.subr.bf16.mxu0 %v4409
    %5225 = vmatpush1.bf16.msra.mxu0 %v4408
    %5226 = vmatprep.subr.bf16.mxu0 %v4417
    %5227 = vmatpush1.bf16.msra.mxu0 %v4416
    %5228 = vmatprep.subr.bf16.mxu0 %v4425
    %5229 = vmatpush1.bf16.msra.mxu0 %v4424
    %5230 = vmatprep.subr.bf16.mxu0 %v4433
    %5231 = vmatpush1.bf16.msra.mxu0 %v4432
    %5232 = vmatprep.subr.bf16.mxu0 %v4441
    %5233 = vmatpush1.bf16.msra.mxu0 %v4440
    %5234 = vmatprep.subr.bf16.mxu0 %v4449
    %5235 = vmatpush1.bf16.msra.mxu0 %v4448
    %5236 = vmatprep.subr.bf16.mxu0 %v4457
    %5237 = vmatpush1.bf16.msra.mxu0 %v4456
    %5238 = vmatprep.subr.bf16.mxu0 %v4465
    %5239 = vmatpush1.bf16.msra.mxu0 %v4464
    %5240 = vmatprep.subr.bf16.mxu0 %v4473
    %5241 = vmatpush1.bf16.msra.mxu0 %v4472
    %5242 = vmatprep.subr.bf16.mxu0 %v4481
    %5243 = vmatpush1.bf16.msra.mxu0 %v4480
    %5244 = vmatprep.subr.bf16.mxu0 %v4489
    %5245 = vmatpush1.bf16.msra.mxu0 %v4488
    %5246 = vmatprep.subr.bf16.mxu0 %v4497
    %5247 = vmatpush1.bf16.msra.mxu0 %v4496
    %5248 = vmatprep.subr.bf16.mxu0 %v4505
    %5249 = vmatpush1.bf16.msra.mxu0 %v4504
    %5250 = vmatprep.subr.bf16.mxu0 %v4513
    %5251 = vmatpush1.bf16.msra.mxu0 %v4512
    %5252 = vmatprep.mubr.bf16.mxu0 %v3107
    %5253 = vmatmul.mubr.bf16.gmra.mrb[0].mxu0 %v3106
    %v5254 = vpop.f32.mrb[0].mxu0
    %v5255 = vadd.f32 %v5214, %v5254
    %v5256 = vpop.f32.mrb[0].mxu0
    %v5257 = vadd.f32 %v5216, %v5256
    %v5258 = vpop.f32.mrb[0].mxu0
    %v5259 = vpop.f32.mrb[0].mxu0
    %5260 = vdwg.mxu0
    %5261 = vmatprep.subr.bf16.mxu0 %v4521
    %5262 = vmatpush1.bf16.msra.mxu0 %v4520
    %5263 = vmatprep.subr.bf16.mxu0 %v4529
    %5264 = vmatpush1.bf16.msra.mxu0 %v4528
    %5265 = vmatprep.subr.bf16.mxu0 %v4537
    %5266 = vmatpush1.bf16.msra.mxu0 %v4536
    %5267 = vmatprep.subr.bf16.mxu0 %v4545
    %5268 = vmatpush1.bf16.msra.mxu0 %v4544
    %5269 = vmatprep.subr.bf16.mxu0 %v4553
    %5270 = vmatpush1.bf16.msra.mxu0 %v4552
    %5271 = vmatprep.subr.bf16.mxu0 %v4561
    %5272 = vmatpush1.bf16.msra.mxu0 %v4560
    %5273 = vmatprep.subr.bf16.mxu0 %v4569
    %5274 = vmatpush1.bf16.msra.mxu0 %v4568
    %5275 = vmatprep.subr.bf16.mxu0 %v4577
    %5276 = vmatpush1.bf16.msra.mxu0 %v4576
    %5277 = vmatprep.subr.bf16.mxu0 %v4585
    %5278 = vmatpush1.bf16.msra.mxu0 %v4584
    %5279 = vmatprep.subr.bf16.mxu0 %v4593
    %5280 = vmatpush1.bf16.msra.mxu0 %v4592
    %5281 = vmatprep.subr.bf16.mxu0 %v4601
    %5282 = vmatpush1.bf16.msra.mxu0 %v4600
    %5283 = vmatprep.subr.bf16.mxu0 %v4609
    %5284 = vmatpush1.bf16.msra.mxu0 %v4608
    %5285 = vmatprep.subr.bf16.mxu0 %v4617
    %5286 = vmatpush1.bf16.msra.mxu0 %v4616
    %5287 = vmatprep.subr.bf16.mxu0 %v4625
    %5288 = vmatpush1.bf16.msra.mxu0 %v4624
    %5289 = vmatprep.subr.bf16.mxu0 %v4633
    %5290 = vmatpush1.bf16.msra.mxu0 %v4632
    %5291 = vmatprep.subr.bf16.mxu0 %v4641
    %5292 = vmatpush1.bf16.msra.mxu0 %v4640
    %5293 = vmatprep.mubr.bf16.mxu0 %v3109
    %5294 = vmatmul.mubr.bf16.gmra.mrb[0].mxu0 %v3108
    %v5295 = vpop.f32.mrb[0].mxu0
    %v5296 = vadd.f32 %v5255, %v5295
    %v5297 = vpop.f32.mrb[0].mxu0
    %v5298 = vadd.f32 %v5257, %v5297
    %v5299 = vpop.f32.mrb[0].mxu0
    %v5300 = vpop.f32.mrb[0].mxu0
    %5301 = vdwg.mxu0
    %5302 = vmatprep.subr.bf16.mxu0 %v3627
    %5303 = vmatpush1.bf16.msra.mxu0 %v3626
    %5304 = vmatprep.subr.bf16.mxu0 %v3635
    %5305 = vmatpush1.bf16.msra.mxu0 %v3634
    %5306 = vmatprep.subr.bf16.mxu0 %v3643
    %5307 = vmatpush1.bf16.msra.mxu0 %v3642
    %5308 = vmatprep.subr.bf16.mxu0 %v3651
    %5309 = vmatpush1.bf16.msra.mxu0 %v3650
    %5310 = vmatprep.subr.bf16.mxu0 %v3659
    %5311 = vmatpush1.bf16.msra.mxu0 %v3658
    %5312 = vmatprep.subr.bf16.mxu0 %v3667
    %5313 = vmatpush1.bf16.msra.mxu0 %v3666
    %5314 = vmatprep.subr.bf16.mxu0 %v3675
    %5315 = vmatpush1.bf16.msra.mxu0 %v3674
    %5316 = vmatprep.subr.bf16.mxu0 %v3683
    %5317 = vmatpush1.bf16.msra.mxu0 %v3682
    %5318 = vmatprep.subr.bf16.mxu0 %v3691
    %5319 = vmatpush1.bf16.msra.mxu0 %v3690
    %5320 = vmatprep.subr.bf16.mxu0 %v3699
    %5321 = vmatpush1.bf16.msra.mxu0 %v3698
    %5322 = vmatprep.subr.bf16.mxu0 %v3707
    %5323 = vmatpush1.bf16.msra.mxu0 %v3706
    %5324 = vmatprep.subr.bf16.mxu0 %v3715
    %5325 = vmatpush1.bf16.msra.mxu0 %v3714
    %5326 = vmatprep.subr.bf16.mxu0 %v3723
    %5327 = vmatpush1.bf16.msra.mxu0 %v3722
    %5328 = vmatprep.subr.bf16.mxu0 %v3731
    %5329 = vmatpush1.bf16.msra.mxu0 %v3730
    %5330 = vmatprep.subr.bf16.mxu0 %v3739
    %5331 = vmatpush1.bf16.msra.mxu0 %v3738
    %5332 = vmatprep.subr.bf16.mxu0 %v3747
    %5333 = vmatpush1.bf16.msra.mxu0 %v3746
    %5334 = vmatprep.mubr.bf16.mxu0 %v3095
    %5335 = vmatmul.mubr.bf16.gmra.mrb[0].mxu0 %v3094
    %v5336 = vpop.f32.mrb[0].mxu0
    %v5337 = vadd.f32 0.0, %v5336
    %v5338 = vpop.f32.mrb[0].mxu0
    %v5339 = vadd.f32 0.0, %v5338
    %v5340 = vpop.f32.mrb[0].mxu0
    %v5341 = vpop.f32.mrb[0].mxu0
    %5342 = vdwg.mxu0
    %5343 = vmatprep.subr.bf16.mxu0 %v3755
    %5344 = vmatpush1.bf16.msra.mxu0 %v3754
    %5345 = vmatprep.subr.bf16.mxu0 %v3763
    %5346 = vmatpush1.bf16.msra.mxu0 %v3762
    %5347 = vmatprep.subr.bf16.mxu0 %v3771
    %5348 = vmatpush1.bf16.msra.mxu0 %v3770
    %5349 = vmatprep.subr.bf16.mxu0 %v3779
    %5350 = vmatpush1.bf16.msra.mxu0 %v3778
    %5351 = vmatprep.subr.bf16.mxu0 %v3787
    %5352 = vmatpush1.bf16.msra.mxu0 %v3786
    %5353 = vmatprep.subr.bf16.mxu0 %v3795
    %5354 = vmatpush1.bf16.msra.mxu0 %v3794
    %5355 = vmatprep.subr.bf16.mxu0 %v3803
    %5356 = vmatpush1.bf16.msra.mxu0 %v3802
    %5357 = vmatprep.subr.bf16.mxu0 %v3811
    %5358 = vmatpush1.bf16.msra.mxu0 %v3810
    %5359 = vmatprep.subr.bf16.mxu0 %v3819
    %5360 = vmatpush1.bf16.msra.mxu0 %v3818
    %5361 = vmatprep.subr.bf16.mxu0 %v3827
    %5362 = vmatpush1.bf16.msra.mxu0 %v3826
    %5363 = vmatprep.subr.bf16.mxu0 %v3835
    %5364 = vmatpush1.bf16.msra.mxu0 %v3834
    %5365 = vmatprep.subr.bf16.mxu0 %v3843
    %5366 = vmatpush1.bf16.msra.mxu0 %v3842
    %5367 = vmatprep.subr.bf16.mxu0 %v3851
    %5368 = vmatpush1.bf16.msra.mxu0 %v3850
    %5369 = vmatprep.subr.bf16.mxu0 %v3859
    %5370 = vmatpush1.bf16.msra.mxu0 %v3858
    %5371 = vmatprep.subr.bf16.mxu0 %v3867
    %5372 = vmatpush1.bf16.msra.mxu0 %v3866
    %5373 = vmatprep.subr.bf16.mxu0 %v3875
    %5374 = vmatpush1.bf16.msra.mxu0 %v3874
    %5375 = vmatprep.mubr.bf16.mxu0 %v3097
    %5376 = vmatmul.mubr.bf16.gmra.mrb[0].mxu0 %v3096
    %v5377 = vpop.f32.mrb[0].mxu0
    %v5378 = vadd.f32 %v5337, %v5377
    %v5379 = vpop.f32.mrb[0].mxu0
    %v5380 = vadd.f32 %v5339, %v5379
    %v5381 = vpop.f32.mrb[0].mxu0
    %v5382 = vpop.f32.mrb[0].mxu0
    %5383 = vdwg.mxu0
    %5384 = vmatprep.subr.bf16.mxu0 %v3883
    %5385 = vmatpush1.bf16.msra.mxu0 %v3882
    %5386 = vmatprep.subr.bf16.mxu0 %v3891
    %5387 = vmatpush1.bf16.msra.mxu0 %v3890
    %5388 = vmatprep.subr.bf16.mxu0 %v3899
    %5389 = vmatpush1.bf16.msra.mxu0 %v3898
    %5390 = vmatprep.subr.bf16.mxu0 %v3907
    %5391 = vmatpush1.bf16.msra.mxu0 %v3906
    %5392 = vmatprep.subr.bf16.mxu0 %v3915
    %5393 = vmatpush1.bf16.msra.mxu0 %v3914
    %5394 = vmatprep.subr.bf16.mxu0 %v3923
    %5395 = vmatpush1.bf16.msra.mxu0 %v3922
    %5396 = vmatprep.subr.bf16.mxu0 %v3931
    %5397 = vmatpush1.bf16.msra.mxu0 %v3930
    %5398 = vmatprep.subr.bf16.mxu0 %v3939
    %5399 = vmatpush1.bf16.msra.mxu0 %v3938
    %5400 = vmatprep.subr.bf16.mxu0 %v3947
    %5401 = vmatpush1.bf16.msra.mxu0 %v3946
    %5402 = vmatprep.subr.bf16.mxu0 %v3955
    %5403 = vmatpush1.bf16.msra.mxu0 %v3954
    %5404 = vmatprep.subr.bf16.mxu0 %v3963
    %5405 = vmatpush1.bf16.msra.mxu0 %v3962
    %5406 = vmatprep.subr.bf16.mxu0 %v3971
    %5407 = vmatpush1.bf16.msra.mxu0 %v3970
    %5408 = vmatprep.subr.bf16.mxu0 %v3979
    %5409 = vmatpush1.bf16.msra.mxu0 %v3978
    %5410 = vmatprep.subr.bf16.mxu0 %v3987
    %5411 = vmatpush1.bf16.msra.mxu0 %v3986
    %5412 = vmatprep.subr.bf16.mxu0 %v3995
    %5413 = vmatpush1.bf16.msra.mxu0 %v3994
    %5414 = vmatprep.subr.bf16.mxu0 %v4003
    %5415 = vmatpush1.bf16.msra.mxu0 %v4002
    %5416 = vmatprep.mubr.bf16.mxu0 %v3099
    %5417 = vmatmul.mubr.bf16.gmra.mrb[0].mxu0 %v3098
    %v5418 = vpop.f32.mrb[0].mxu0
    %v5419 = vadd.f32 %v5378, %v5418
    %v5420 = vpop.f32.mrb[0].mxu0
    %v5421 = vadd.f32 %v5380, %v5420
    %v5422 = vpop.f32.mrb[0].mxu0
    %v5423 = vpop.f32.mrb[0].mxu0
    %5424 = vdwg.mxu0
    %5425 = vmatprep.subr.bf16.mxu0 %v4011
    %5426 = vmatpush1.bf16.msra.mxu0 %v4010
    %5427 = vmatprep.subr.bf16.mxu0 %v4019
    %5428 = vmatpush1.bf16.msra.mxu0 %v4018
    %5429 = vmatprep.subr.bf16.mxu0 %v4027
    %5430 = vmatpush1.bf16.msra.mxu0 %v4026
    %5431 = vmatprep.subr.bf16.mxu0 %v4035
    %5432 = vmatpush1.bf16.msra.mxu0 %v4034
    %5433 = vmatprep.subr.bf16.mxu0 %v4043
    %5434 = vmatpush1.bf16.msra.mxu0 %v4042
    %5435 = vmatprep.subr.bf16.mxu0 %v4051
    %5436 = vmatpush1.bf16.msra.mxu0 %v4050
    %5437 = vmatprep.subr.bf16.mxu0 %v4059
    %5438 = vmatpush1.bf16.msra.mxu0 %v4058
    %5439 = vmatprep.subr.bf16.mxu0 %v4067
    %5440 = vmatpush1.bf16.msra.mxu0 %v4066
    %5441 = vmatprep.subr.bf16.mxu0 %v4075
    %5442 = vmatpush1.bf16.msra.mxu0 %v4074
    %5443 = vmatprep.subr.bf16.mxu0 %v4083
    %5444 = vmatpush1.bf16.msra.mxu0 %v4082
    %5445 = vmatprep.subr.bf16.mxu0 %v4091
    %5446 = vmatpush1.bf16.msra.mxu0 %v4090
    %5447 = vmatprep.subr.bf16.mxu0 %v4099
    %5448 = vmatpush1.bf16.msra.mxu0 %v4098
    %5449 = vmatprep.subr.bf16.mxu0 %v4107
    %5450 = vmatpush1.bf16.msra.mxu0 %v4106
    %5451 = vmatprep.subr.bf16.mxu0 %v4115
    %5452 = vmatpush1.bf16.msra.mxu0 %v4114
    %5453 = vmatprep.subr.bf16.mxu0 %v4123
    %5454 = vmatpush1.bf16.msra.mxu0 %v4122
    %5455 = vmatprep.subr.bf16.mxu0 %v4131
    %5456 = vmatpush1.bf16.msra.mxu0 %v4130
    %5457 = vmatprep.mubr.bf16.mxu0 %v3101
    %5458 = vmatmul.mubr.bf16.gmra.mrb[0].mxu0 %v3100
    %v5459 = vpop.f32.mrb[0].mxu0
    %v5460 = vadd.f32 %v5419, %v5459
    %v5461 = vpop.f32.mrb[0].mxu0
    %v5462 = vadd.f32 %v5421, %v5461
    %v5463 = vpop.f32.mrb[0].mxu0
    %v5464 = vpop.f32.mrb[0].mxu0
    %5465 = vdwg.mxu0
    %5466 = vmatprep.subr.bf16.mxu0 %v4139
    %5467 = vmatpush1.bf16.msra.mxu0 %v4138
    %5468 = vmatprep.subr.bf16.mxu0 %v4147
    %5469 = vmatpush1.bf16.msra.mxu0 %v4146
    %5470 = vmatprep.subr.bf16.mxu0 %v4155
    %5471 = vmatpush1.bf16.msra.mxu0 %v4154
    %5472 = vmatprep.subr.bf16.mxu0 %v4163
    %5473 = vmatpush1.bf16.msra.mxu0 %v4162
    %5474 = vmatprep.subr.bf16.mxu0 %v4171
    %5475 = vmatpush1.bf16.msra.mxu0 %v4170
    %5476 = vmatprep.subr.bf16.mxu0 %v4179
    %5477 = vmatpush1.bf16.msra.mxu0 %v4178
    %5478 = vmatprep.subr.bf16.mxu0 %v4187
    %5479 = vmatpush1.bf16.msra.mxu0 %v4186
    %5480 = vmatprep.subr.bf16.mxu0 %v4195
    %5481 = vmatpush1.bf16.msra.mxu0 %v4194
    %5482 = vmatprep.subr.bf16.mxu0 %v4203
    %5483 = vmatpush1.bf16.msra.mxu0 %v4202
    %5484 = vmatprep.subr.bf16.mxu0 %v4211
    %5485 = vmatpush1.bf16.msra.mxu0 %v4210
    %5486 = vmatprep.subr.bf16.mxu0 %v4219
    %5487 = vmatpush1.bf16.msra.mxu0 %v4218
    %5488 = vmatprep.subr.bf16.mxu0 %v4227
    %5489 = vmatpush1.bf16.msra.mxu0 %v4226
    %5490 = vmatprep.subr.bf16.mxu0 %v4235
    %5491 = vmatpush1.bf16.msra.mxu0 %v4234
    %5492 = vmatprep.subr.bf16.mxu0 %v4243
    %5493 = vmatpush1.bf16.msra.mxu0 %v4242
    %5494 = vmatprep.subr.bf16.mxu0 %v4251
    %5495 = vmatpush1.bf16.msra.mxu0 %v4250
    %5496 = vmatprep.subr.bf16.mxu0 %v4259
    %5497 = vmatpush1.bf16.msra.mxu0 %v4258
    %5498 = vmatprep.mubr.bf16.mxu0 %v3103
    %5499 = vmatmul.mubr.bf16.gmra.mrb[0].mxu0 %v3102
    %v5500 = vpop.f32.mrb[0].mxu0
    %v5501 = vadd.f32 %v5460, %v5500
    %v5502 = vpop.f32.mrb[0].mxu0
    %v5503 = vadd.f32 %v5462, %v5502
    %v5504 = vpop.f32.mrb[0].mxu0
    %v5505 = vpop.f32.mrb[0].mxu0
    %5506 = vdwg.mxu0
    %5507 = vmatprep.subr.bf16.mxu0 %v4267
    %5508 = vmatpush1.bf16.msra.mxu0 %v4266
    %5509 = vmatprep.subr.bf16.mxu0 %v4275
    %5510 = vmatpush1.bf16.msra.mxu0 %v4274
    %5511 = vmatprep.subr.bf16.mxu0 %v4283
    %5512 = vmatpush1.bf16.msra.mxu0 %v4282
    %5513 = vmatprep.subr.bf16.mxu0 %v4291
    %5514 = vmatpush1.bf16.msra.mxu0 %v4290
    %5515 = vmatprep.subr.bf16.mxu0 %v4299
    %5516 = vmatpush1.bf16.msra.mxu0 %v4298
    %5517 = vmatprep.subr.bf16.mxu0 %v4307
    %5518 = vmatpush1.bf16.msra.mxu0 %v4306
    %5519 = vmatprep.subr.bf16.mxu0 %v4315
    %5520 = vmatpush1.bf16.msra.mxu0 %v4314
    %5521 = vmatprep.subr.bf16.mxu0 %v4323
    %5522 = vmatpush1.bf16.msra.mxu0 %v4322
    %5523 = vmatprep.subr.bf16.mxu0 %v4331
    %5524 = vmatpush1.bf16.msra.mxu0 %v4330
    %5525 = vmatprep.subr.bf16.mxu0 %v4339
    %5526 = vmatpush1.bf16.msra.mxu0 %v4338
    %5527 = vmatprep.subr.bf16.mxu0 %v4347
    %5528 = vmatpush1.bf16.msra.mxu0 %v4346
    %5529 = vmatprep.subr.bf16.mxu0 %v4355
    %5530 = vmatpush1.bf16.msra.mxu0 %v4354
    %5531 = vmatprep.subr.bf16.mxu0 %v4363
    %5532 = vmatpush1.bf16.msra.mxu0 %v4362
    %5533 = vmatprep.subr.bf16.mxu0 %v4371
    %5534 = vmatpush1.bf16.msra.mxu0 %v4370
    %5535 = vmatprep.subr.bf16.mxu0 %v4379
    %5536 = vmatpush1.bf16.msra.mxu0 %v4378
    %5537 = vmatprep.subr.bf16.mxu0 %v4387
    %5538 = vmatpush1.bf16.msra.mxu0 %v4386
    %5539 = vmatprep.mubr.bf16.mxu0 %v3105
    %5540 = vmatmul.mubr.bf16.gmra.mrb[0].mxu0 %v3104
    %v5541 = vpop.f32.mrb[0].mxu0
    %v5542 = vadd.f32 %v5501, %v5541
    %v5543 = vpop.f32.mrb[0].mxu0
    %v5544 = vadd.f32 %v5503, %v5543
    %v5545 = vpop.f32.mrb[0].mxu0
    %v5546 = vpop.f32.mrb[0].mxu0
    %5547 = vdwg.mxu0
    %5548 = vmatprep.subr.bf16.mxu0 %v4395
    %5549 = vmatpush1.bf16.msra.mxu0 %v4394
    %5550 = vmatprep.subr.bf16.mxu0 %v4403
    %5551 = vmatpush1.bf16.msra.mxu0 %v4402
    %5552 = vmatprep.subr.bf16.mxu0 %v4411
    %5553 = vmatpush1.bf16.msra.mxu0 %v4410
    %5554 = vmatprep.subr.bf16.mxu0 %v4419
    %5555 = vmatpush1.bf16.msra.mxu0 %v4418
    %5556 = vmatprep.subr.bf16.mxu0 %v4427
    %5557 = vmatpush1.bf16.msra.mxu0 %v4426
    %5558 = vmatprep.subr.bf16.mxu0 %v4435
    %5559 = vmatpush1.bf16.msra.mxu0 %v4434
    %5560 = vmatprep.subr.bf16.mxu0 %v4443
    %5561 = vmatpush1.bf16.msra.mxu0 %v4442
    %5562 = vmatprep.subr.bf16.mxu0 %v4451
    %5563 = vmatpush1.bf16.msra.mxu0 %v4450
    %5564 = vmatprep.subr.bf16.mxu0 %v4459
    %5565 = vmatpush1.bf16.msra.mxu0 %v4458
    %5566 = vmatprep.subr.bf16.mxu0 %v4467
    %5567 = vmatpush1.bf16.msra.mxu0 %v4466
    %5568 = vmatprep.subr.bf16.mxu0 %v4475
    %5569 = vmatpush1.bf16.msra.mxu0 %v4474
    %5570 = vmatprep.subr.bf16.mxu0 %v4483
    %5571 = vmatpush1.bf16.msra.mxu0 %v4482
    %5572 = vmatprep.subr.bf16.mxu0 %v4491
    %5573 = vmatpush1.bf16.msra.mxu0 %v4490
    %5574 = vmatprep.subr.bf16.mxu0 %v4499
    %5575 = vmatpush1.bf16.msra.mxu0 %v4498
    %5576 = vmatprep.subr.bf16.mxu0 %v4507
    %5577 = vmatpush1.bf16.msra.mxu0 %v4506
    %5578 = vmatprep.subr.bf16.mxu0 %v4515
    %5579 = vmatpush1.bf16.msra.mxu0 %v4514
    %5580 = vmatprep.mubr.bf16.mxu0 %v3107
    %5581 = vmatmul.mubr.bf16.gmra.mrb[0].mxu0 %v3106
    %v5582 = vpop.f32.mrb[0].mxu0
    %v5583 = vadd.f32 %v5542, %v5582
    %v5584 = vpop.f32.mrb[0].mxu0
    %v5585 = vadd.f32 %v5544, %v5584
    %v5586 = vpop.f32.mrb[0].mxu0
    %v5587 = vpop.f32.mrb[0].mxu0
    %5588 = vdwg.mxu0
    %5589 = vmatprep.subr.bf16.mxu0 %v4523
    %5590 = vmatpush1.bf16.msra.mxu0 %v4522
    %5591 = vmatprep.subr.bf16.mxu0 %v4531
    %5592 = vmatpush1.bf16.msra.mxu0 %v4530
    %5593 = vmatprep.subr.bf16.mxu0 %v4539
    %5594 = vmatpush1.bf16.msra.mxu0 %v4538
    %5595 = vmatprep.subr.bf16.mxu0 %v4547
    %5596 = vmatpush1.bf16.msra.mxu0 %v4546
    %5597 = vmatprep.subr.bf16.mxu0 %v4555
    %5598 = vmatpush1.bf16.msra.mxu0 %v4554
    %5599 = vmatprep.subr.bf16.mxu0 %v4563
    %5600 = vmatpush1.bf16.msra.mxu0 %v4562
    %5601 = vmatprep.subr.bf16.mxu0 %v4571
    %5602 = vmatpush1.bf16.msra.mxu0 %v4570
    %5603 = vmatprep.subr.bf16.mxu0 %v4579
    %5604 = vmatpush1.bf16.msra.mxu0 %v4578
    %5605 = vmatprep.subr.bf16.mxu0 %v4587
    %5606 = vmatpush1.bf16.msra.mxu0 %v4586
    %5607 = vmatprep.subr.bf16.mxu0 %v4595
    %5608 = vmatpush1.bf16.msra.mxu0 %v4594
    %5609 = vmatprep.subr.bf16.mxu0 %v4603
    %5610 = vmatpush1.bf16.msra.mxu0 %v4602
    %5611 = vmatprep.subr.bf16.mxu0 %v4611
    %5612 = vmatpush1.bf16.msra.mxu0 %v4610
    %5613 = vmatprep.subr.bf16.mxu0 %v4619
    %5614 = vmatpush1.bf16.msra.mxu0 %v4618
    %5615 = vmatprep.subr.bf16.mxu0 %v4627
    %5616 = vmatpush1.bf16.msra.mxu0 %v4626
    %5617 = vmatprep.subr.bf16.mxu0 %v4635
    %5618 = vmatpush1.bf16.msra.mxu0 %v4634
    %5619 = vmatprep.subr.bf16.mxu0 %v4643
    %5620 = vmatpush1.bf16.msra.mxu0 %v4642
    %5621 = vmatprep.mubr.bf16.mxu0 %v3109
    %5622 = vmatmul.mubr.bf16.gmra.mrb[0].mxu0 %v3108
    %v5623 = vpop.f32.mrb[0].mxu0
    %v5624 = vadd.f32 %v5583, %v5623
    %v5625 = vpop.f32.mrb[0].mxu0
    %v5626 = vadd.f32 %v5585, %v5625
    %v5627 = vpop.f32.mrb[0].mxu0
    %v5628 = vpop.f32.mrb[0].mxu0
    %5629 = vdwg.mxu0
    %5630 = vmatprep.subr.bf16.mxu0 %v3629
    %5631 = vmatpush1.bf16.msra.mxu0 %v3628
    %5632 = vmatprep.subr.bf16.mxu0 %v3637
    %5633 = vmatpush1.bf16.msra.mxu0 %v3636
    %5634 = vmatprep.subr.bf16.mxu0 %v3645
    %5635 = vmatpush1.bf16.msra.mxu0 %v3644
    %5636 = vmatprep.subr.bf16.mxu0 %v3653
    %5637 = vmatpush1.bf16.msra.mxu0 %v3652
    %5638 = vmatprep.subr.bf16.mxu0 %v3661
    %5639 = vmatpush1.bf16.msra.mxu0 %v3660
    %5640 = vmatprep.subr.bf16.mxu0 %v3669
    %5641 = vmatpush1.bf16.msra.mxu0 %v3668
    %5642 = vmatprep.subr.bf16.mxu0 %v3677
    %5643 = vmatpush1.bf16.msra.mxu0 %v3676
    %5644 = vmatprep.subr.bf16.mxu0 %v3685
    %5645 = vmatpush1.bf16.msra.mxu0 %v3684
    %5646 = vmatprep.subr.bf16.mxu0 %v3693
    %5647 = vmatpush1.bf16.msra.mxu0 %v3692
    %5648 = vmatprep.subr.bf16.mxu0 %v3701
    %5649 = vmatpush1.bf16.msra.mxu0 %v3700
    %5650 = vmatprep.subr.bf16.mxu0 %v3709
    %5651 = vmatpush1.bf16.msra.mxu0 %v3708
    %5652 = vmatprep.subr.bf16.mxu0 %v3717
    %5653 = vmatpush1.bf16.msra.mxu0 %v3716
    %5654 = vmatprep.subr.bf16.mxu0 %v3725
    %5655 = vmatpush1.bf16.msra.mxu0 %v3724
    %5656 = vmatprep.subr.bf16.mxu0 %v3733
    %5657 = vmatpush1.bf16.msra.mxu0 %v3732
    %5658 = vmatprep.subr.bf16.mxu0 %v3741
    %5659 = vmatpush1.bf16.msra.mxu0 %v3740
    %5660 = vmatprep.subr.bf16.mxu0 %v3749
    %5661 = vmatpush1.bf16.msra.mxu0 %v3748
    %5662 = vmatprep.mubr.bf16.mxu0 %v3095
    %5663 = vmatmul.mubr.bf16.gmra.mrb[0].mxu0 %v3094
    %v5664 = vpop.f32.mrb[0].mxu0
    %v5665 = vadd.f32 0.0, %v5664
    %v5666 = vpop.f32.mrb[0].mxu0
    %v5667 = vadd.f32 0.0, %v5666
    %v5668 = vpop.f32.mrb[0].mxu0
    %v5669 = vpop.f32.mrb[0].mxu0
    %5670 = vdwg.mxu0
    %5671 = vmatprep.subr.bf16.mxu0 %v3757
    %5672 = vmatpush1.bf16.msra.mxu0 %v3756
    %5673 = vmatprep.subr.bf16.mxu0 %v3765
    %5674 = vmatpush1.bf16.msra.mxu0 %v3764
    %5675 = vmatprep.subr.bf16.mxu0 %v3773
    %5676 = vmatpush1.bf16.msra.mxu0 %v3772
    %5677 = vmatprep.subr.bf16.mxu0 %v3781
    %5678 = vmatpush1.bf16.msra.mxu0 %v3780
    %5679 = vmatprep.subr.bf16.mxu0 %v3789
    %5680 = vmatpush1.bf16.msra.mxu0 %v3788
    %5681 = vmatprep.subr.bf16.mxu0 %v3797
    %5682 = vmatpush1.bf16.msra.mxu0 %v3796
    %5683 = vmatprep.subr.bf16.mxu0 %v3805
    %5684 = vmatpush1.bf16.msra.mxu0 %v3804
    %5685 = vmatprep.subr.bf16.mxu0 %v3813
    %5686 = vmatpush1.bf16.msra.mxu0 %v3812
    %5687 = vmatprep.subr.bf16.mxu0 %v3821
    %5688 = vmatpush1.bf16.msra.mxu0 %v3820
    %5689 = vmatprep.subr.bf16.mxu0 %v3829
    %5690 = vmatpush1.bf16.msra.mxu0 %v3828
    %5691 = vmatprep.subr.bf16.mxu0 %v3837
    %5692 = vmatpush1.bf16.msra.mxu0 %v3836
    %5693 = vmatprep.subr.bf16.mxu0 %v3845
    %5694 = vmatpush1.bf16.msra.mxu0 %v3844
    %5695 = vmatprep.subr.bf16.mxu0 %v3853
    %5696 = vmatpush1.bf16.msra.mxu0 %v3852
    %5697 = vmatprep.subr.bf16.mxu0 %v3861
    %5698 = vmatpush1.bf16.msra.mxu0 %v3860
    %5699 = vmatprep.subr.bf16.mxu0 %v3869
    %5700 = vmatpush1.bf16.msra.mxu0 %v3868
    %5701 = vmatprep.subr.bf16.mxu0 %v3877
    %5702 = vmatpush1.bf16.msra.mxu0 %v3876
    %5703 = vmatprep.mubr.bf16.mxu0 %v3097
    %5704 = vmatmul.mubr.bf16.gmra.mrb[0].mxu0 %v3096
    %v5705 = vpop.f32.mrb[0].mxu0
    %v5706 = vadd.f32 %v5665, %v5705
    %v5707 = vpop.f32.mrb[0].mxu0
    %v5708 = vadd.f32 %v5667, %v5707
    %v5709 = vpop.f32.mrb[0].mxu0
    %v5710 = vpop.f32.mrb[0].mxu0
    %5711 = vdwg.mxu0
    %5712 = vmatprep.subr.bf16.mxu0 %v3885
    %5713 = vmatpush1.bf16.msra.mxu0 %v3884
    %5714 = vmatprep.subr.bf16.mxu0 %v3893
    %5715 = vmatpush1.bf16.msra.mxu0 %v3892
    %5716 = vmatprep.subr.bf16.mxu0 %v3901
    %5717 = vmatpush1.bf16.msra.mxu0 %v3900
    %5718 = vmatprep.subr.bf16.mxu0 %v3909
    %5719 = vmatpush1.bf16.msra.mxu0 %v3908
    %5720 = vmatprep.subr.bf16.mxu0 %v3917
    %5721 = vmatpush1.bf16.msra.mxu0 %v3916
    %5722 = vmatprep.subr.bf16.mxu0 %v3925
    %5723 = vmatpush1.bf16.msra.mxu0 %v3924
    %5724 = vmatprep.subr.bf16.mxu0 %v3933
    %5725 = vmatpush1.bf16.msra.mxu0 %v3932
    %5726 = vmatprep.subr.bf16.mxu0 %v3941
    %5727 = vmatpush1.bf16.msra.mxu0 %v3940
    %5728 = vmatprep.subr.bf16.mxu0 %v3949
    %5729 = vmatpush1.bf16.msra.mxu0 %v3948
    %5730 = vmatprep.subr.bf16.mxu0 %v3957
    %5731 = vmatpush1.bf16.msra.mxu0 %v3956
    %5732 = vmatprep.subr.bf16.mxu0 %v3965
    %5733 = vmatpush1.bf16.msra.mxu0 %v3964
    %5734 = vmatprep.subr.bf16.mxu0 %v3973
    %5735 = vmatpush1.bf16.msra.mxu0 %v3972
    %5736 = vmatprep.subr.bf16.mxu0 %v3981
    %5737 = vmatpush1.bf16.msra.mxu0 %v3980
    %5738 = vmatprep.subr.bf16.mxu0 %v3989
    %5739 = vmatpush1.bf16.msra.mxu0 %v3988
    %5740 = vmatprep.subr.bf16.mxu0 %v3997
    %5741 = vmatpush1.bf16.msra.mxu0 %v3996
    %5742 = vmatprep.subr.bf16.mxu0 %v4005
    %5743 = vmatpush1.bf16.msra.mxu0 %v4004
    %5744 = vmatprep.mubr.bf16.mxu0 %v3099
    %5745 = vmatmul.mubr.bf16.gmra.mrb[0].mxu0 %v3098
    %v5746 = vpop.f32.mrb[0].mxu0
    %v5747 = vadd.f32 %v5706, %v5746
    %v5748 = vpop.f32.mrb[0].mxu0
    %v5749 = vadd.f32 %v5708, %v5748
    %v5750 = vpop.f32.mrb[0].mxu0
    %v5751 = vpop.f32.mrb[0].mxu0
    %5752 = vdwg.mxu0
    %5753 = vmatprep.subr.bf16.mxu0 %v4013
    %5754 = vmatpush1.bf16.msra.mxu0 %v4012
    %5755 = vmatprep.subr.bf16.mxu0 %v4021
    %5756 = vmatpush1.bf16.msra.mxu0 %v4020
    %5757 = vmatprep.subr.bf16.mxu0 %v4029
    %5758 = vmatpush1.bf16.msra.mxu0 %v4028
    %5759 = vmatprep.subr.bf16.mxu0 %v4037
    %5760 = vmatpush1.bf16.msra.mxu0 %v4036
    %5761 = vmatprep.subr.bf16.mxu0 %v4045
    %5762 = vmatpush1.bf16.msra.mxu0 %v4044
    %5763 = vmatprep.subr.bf16.mxu0 %v4053
    %5764 = vmatpush1.bf16.msra.mxu0 %v4052
    %5765 = vmatprep.subr.bf16.mxu0 %v4061
    %5766 = vmatpush1.bf16.msra.mxu0 %v4060
    %5767 = vmatprep.subr.bf16.mxu0 %v4069
    %5768 = vmatpush1.bf16.msra.mxu0 %v4068
    %5769 = vmatprep.subr.bf16.mxu0 %v4077
    %5770 = vmatpush1.bf16.msra.mxu0 %v4076
    %5771 = vmatprep.subr.bf16.mxu0 %v4085
    %5772 = vmatpush1.bf16.msra.mxu0 %v4084
    %5773 = vmatprep.subr.bf16.mxu0 %v4093
    %5774 = vmatpush1.bf16.msra.mxu0 %v4092
    %5775 = vmatprep.subr.bf16.mxu0 %v4101
    %5776 = vmatpush1.bf16.msra.mxu0 %v4100
    %5777 = vmatprep.subr.bf16.mxu0 %v4109
    %5778 = vmatpush1.bf16.msra.mxu0 %v4108
    %5779 = vmatprep.subr.bf16.mxu0 %v4117
    %5780 = vmatpush1.bf16.msra.mxu0 %v4116
    %5781 = vmatprep.subr.bf16.mxu0 %v4125
    %5782 = vmatpush1.bf16.msra.mxu0 %v4124
    %5783 = vmatprep.subr.bf16.mxu0 %v4133
    %5784 = vmatpush1.bf16.msra.mxu0 %v4132
    %5785 = vmatprep.mubr.bf16.mxu0 %v3101
    %5786 = vmatmul.mubr.bf16.gmra.mrb[0].mxu0 %v3100
    %v5787 = vpop.f32.mrb[0].mxu0
    %v5788 = vadd.f32 %v5747, %v5787
    %v5789 = vpop.f32.mrb[0].mxu0
    %v5790 = vadd.f32 %v5749, %v5789
    %v5791 = vpop.f32.mrb[0].mxu0
    %v5792 = vpop.f32.mrb[0].mxu0
    %5793 = vdwg.mxu0
    %5794 = vmatprep.subr.bf16.mxu0 %v4141
    %5795 = vmatpush1.bf16.msra.mxu0 %v4140
    %5796 = vmatprep.subr.bf16.mxu0 %v4149
    %5797 = vmatpush1.bf16.msra.mxu0 %v4148
    %5798 = vmatprep.subr.bf16.mxu0 %v4157
    %5799 = vmatpush1.bf16.msra.mxu0 %v4156
    %5800 = vmatprep.subr.bf16.mxu0 %v4165
    %5801 = vmatpush1.bf16.msra.mxu0 %v4164
    %5802 = vmatprep.subr.bf16.mxu0 %v4173
    %5803 = vmatpush1.bf16.msra.mxu0 %v4172
    %5804 = vmatprep.subr.bf16.mxu0 %v4181
    %5805 = vmatpush1.bf16.msra.mxu0 %v4180
    %5806 = vmatprep.subr.bf16.mxu0 %v4189
    %5807 = vmatpush1.bf16.msra.mxu0 %v4188
    %5808 = vmatprep.subr.bf16.mxu0 %v4197
    %5809 = vmatpush1.bf16.msra.mxu0 %v4196
    %5810 = vmatprep.subr.bf16.mxu0 %v4205
    %5811 = vmatpush1.bf16.msra.mxu0 %v4204
    %5812 = vmatprep.subr.bf16.mxu0 %v4213
    %5813 = vmatpush1.bf16.msra.mxu0 %v4212
    %5814 = vmatprep.subr.bf16.mxu0 %v4221
    %5815 = vmatpush1.bf16.msra.mxu0 %v4220
    %5816 = vmatprep.subr.bf16.mxu0 %v4229
    %5817 = vmatpush1.bf16.msra.mxu0 %v4228
    %5818 = vmatprep.subr.bf16.mxu0 %v4237
    %5819 = vmatpush1.bf16.msra.mxu0 %v4236
    %5820 = vmatprep.subr.bf16.mxu0 %v4245
    %5821 = vmatpush1.bf16.msra.mxu0 %v4244
    %5822 = vmatprep.subr.bf16.mxu0 %v4253
    %5823 = vmatpush1.bf16.msra.mxu0 %v4252
    %5824 = vmatprep.subr.bf16.mxu0 %v4261
    %5825 = vmatpush1.bf16.msra.mxu0 %v4260
    %5826 = vmatprep.mubr.bf16.mxu0 %v3103
    %5827 = vmatmul.mubr.bf16.gmra.mrb[0].mxu0 %v3102
    %v5828 = vpop.f32.mrb[0].mxu0
    %v5829 = vadd.f32 %v5788, %v5828
    %v5830 = vpop.f32.mrb[0].mxu0
    %v5831 = vadd.f32 %v5790, %v5830
    %v5832 = vpop.f32.mrb[0].mxu0
    %v5833 = vpop.f32.mrb[0].mxu0
    %5834 = vdwg.mxu0
    %5835 = vmatprep.subr.bf16.mxu0 %v4269
    %5836 = vmatpush1.bf16.msra.mxu0 %v4268
    %5837 = vmatprep.subr.bf16.mxu0 %v4277
    %5838 = vmatpush1.bf16.msra.mxu0 %v4276
    %5839 = vmatprep.subr.bf16.mxu0 %v4285
    %5840 = vmatpush1.bf16.msra.mxu0 %v4284
    %5841 = vmatprep.subr.bf16.mxu0 %v4293
    %5842 = vmatpush1.bf16.msra.mxu0 %v4292
    %5843 = vmatprep.subr.bf16.mxu0 %v4301
    %5844 = vmatpush1.bf16.msra.mxu0 %v4300
    %5845 = vmatprep.subr.bf16.mxu0 %v4309
    %5846 = vmatpush1.bf16.msra.mxu0 %v4308
    %5847 = vmatprep.subr.bf16.mxu0 %v4317
    %5848 = vmatpush1.bf16.msra.mxu0 %v4316
    %5849 = vmatprep.subr.bf16.mxu0 %v4325
    %5850 = vmatpush1.bf16.msra.mxu0 %v4324
    %5851 = vmatprep.subr.bf16.mxu0 %v4333
    %5852 = vmatpush1.bf16.msra.mxu0 %v4332
    %5853 = vmatprep.subr.bf16.mxu0 %v4341
    %5854 = vmatpush1.bf16.msra.mxu0 %v4340
    %5855 = vmatprep.subr.bf16.mxu0 %v4349
    %5856 = vmatpush1.bf16.msra.mxu0 %v4348
    %5857 = vmatprep.subr.bf16.mxu0 %v4357
    %5858 = vmatpush1.bf16.msra.mxu0 %v4356
    %5859 = vmatprep.subr.bf16.mxu0 %v4365
    %5860 = vmatpush1.bf16.msra.mxu0 %v4364
    %5861 = vmatprep.subr.bf16.mxu0 %v4373
    %5862 = vmatpush1.bf16.msra.mxu0 %v4372
    %5863 = vmatprep.subr.bf16.mxu0 %v4381
    %5864 = vmatpush1.bf16.msra.mxu0 %v4380
    %5865 = vmatprep.subr.bf16.mxu0 %v4389
    %5866 = vmatpush1.bf16.msra.mxu0 %v4388
    %5867 = vmatprep.mubr.bf16.mxu0 %v3105
    %5868 = vmatmul.mubr.bf16.gmra.mrb[0].mxu0 %v3104
    %v5869 = vpop.f32.mrb[0].mxu0
    %v5870 = vadd.f32 %v5829, %v5869
    %v5871 = vpop.f32.mrb[0].mxu0
    %v5872 = vadd.f32 %v5831, %v5871
    %v5873 = vpop.f32.mrb[0].mxu0
    %v5874 = vpop.f32.mrb[0].mxu0
    %5875 = vdwg.mxu0
    %5876 = vmatprep.subr.bf16.mxu0 %v4397
    %5877 = vmatpush1.bf16.msra.mxu0 %v4396
    %5878 = vmatprep.subr.bf16.mxu0 %v4405
    %5879 = vmatpush1.bf16.msra.mxu0 %v4404
    %5880 = vmatprep.subr.bf16.mxu0 %v4413
    %5881 = vmatpush1.bf16.msra.mxu0 %v4412
    %5882 = vmatprep.subr.bf16.mxu0 %v4421
    %5883 = vmatpush1.bf16.msra.mxu0 %v4420
    %5884 = vmatprep.subr.bf16.mxu0 %v4429
    %5885 = vmatpush1.bf16.msra.mxu0 %v4428
    %5886 = vmatprep.subr.bf16.mxu0 %v4437
    %5887 = vmatpush1.bf16.msra.mxu0 %v4436
    %5888 = vmatprep.subr.bf16.mxu0 %v4445
    %5889 = vmatpush1.bf16.msra.mxu0 %v4444
    %5890 = vmatprep.subr.bf16.mxu0 %v4453
    %5891 = vmatpush1.bf16.msra.mxu0 %v4452
    %5892 = vmatprep.subr.bf16.mxu0 %v4461
    %5893 = vmatpush1.bf16.msra.mxu0 %v4460
    %5894 = vmatprep.subr.bf16.mxu0 %v4469
    %5895 = vmatpush1.bf16.msra.mxu0 %v4468
    %5896 = vmatprep.subr.bf16.mxu0 %v4477
    %5897 = vmatpush1.bf16.msra.mxu0 %v4476
    %5898 = vmatprep.subr.bf16.mxu0 %v4485
    %5899 = vmatpush1.bf16.msra.mxu0 %v4484
    %5900 = vmatprep.subr.bf16.mxu0 %v4493
    %5901 = vmatpush1.bf16.msra.mxu0 %v4492
    %5902 = vmatprep.subr.bf16.mxu0 %v4501
    %5903 = vmatpush1.bf16.msra.mxu0 %v4500
    %5904 = vmatprep.subr.bf16.mxu0 %v4509
    %5905 = vmatpush1.bf16.msra.mxu0 %v4508
    %5906 = vmatprep.subr.bf16.mxu0 %v4517
    %5907 = vmatpush1.bf16.msra.mxu0 %v4516
    %5908 = vmatprep.mubr.bf16.mxu0 %v3107
    %5909 = vmatmul.mubr.bf16.gmra.mrb[0].mxu0 %v3106
    %v5910 = vpop.f32.mrb[0].mxu0
    %v5911 = vadd.f32 %v5870, %v5910
    %v5912 = vpop.f32.mrb[0].mxu0
    %v5913 = vadd.f32 %v5872, %v5912
    %v5914 = vpop.f32.mrb[0].mxu0
    %v5915 = vpop.f32.mrb[0].mxu0
    %5916 = vdwg.mxu0
    %5917 = vmatprep.subr.bf16.mxu0 %v4525
    %5918 = vmatpush1.bf16.msra.mxu0 %v4524
    %5919 = vmatprep.subr.bf16.mxu0 %v4533
    %5920 = vmatpush1.bf16.msra.mxu0 %v4532
    %5921 = vmatprep.subr.bf16.mxu0 %v4541
    %5922 = vmatpush1.bf16.msra.mxu0 %v4540
    %5923 = vmatprep.subr.bf16.mxu0 %v4549
    %5924 = vmatpush1.bf16.msra.mxu0 %v4548
    %5925 = vmatprep.subr.bf16.mxu0 %v4557
    %5926 = vmatpush1.bf16.msra.mxu0 %v4556
    %5927 = vmatprep.subr.bf16.mxu0 %v4565
    %5928 = vmatpush1.bf16.msra.mxu0 %v4564
    %5929 = vmatprep.subr.bf16.mxu0 %v4573
    %5930 = vmatpush1.bf16.msra.mxu0 %v4572
    %5931 = vmatprep.subr.bf16.mxu0 %v4581
    %5932 = vmatpush1.bf16.msra.mxu0 %v4580
    %5933 = vmatprep.subr.bf16.mxu0 %v4589
    %5934 = vmatpush1.bf16.msra.mxu0 %v4588
    %5935 = vmatprep.subr.bf16.mxu0 %v4597
    %5936 = vmatpush1.bf16.msra.mxu0 %v4596
    %5937 = vmatprep.subr.bf16.mxu0 %v4605
    %5938 = vmatpush1.bf16.msra.mxu0 %v4604
    %5939 = vmatprep.subr.bf16.mxu0 %v4613
    %5940 = vmatpush1.bf16.msra.mxu0 %v4612
    %5941 = vmatprep.subr.bf16.mxu0 %v4621
    %5942 = vmatpush1.bf16.msra.mxu0 %v4620
    %5943 = vmatprep.subr.bf16.mxu0 %v4629
    %5944 = vmatpush1.bf16.msra.mxu0 %v4628
    %5945 = vmatprep.subr.bf16.mxu0 %v4637
    %5946 = vmatpush1.bf16.msra.mxu0 %v4636
    %5947 = vmatprep.subr.bf16.mxu0 %v4645
    %5948 = vmatpush1.bf16.msra.mxu0 %v4644
    %5949 = vmatprep.mubr.bf16.mxu0 %v3109
    %5950 = vmatmul.mubr.bf16.gmra.mrb[0].mxu0 %v3108
    %v5951 = vpop.f32.mrb[0].mxu0
    %v5952 = vadd.f32 %v5911, %v5951
    %v5953 = vpop.f32.mrb[0].mxu0
    %v5954 = vadd.f32 %v5913, %v5953
    %v5955 = vpop.f32.mrb[0].mxu0
    %v5956 = vpop.f32.mrb[0].mxu0
    %5957 = vdwg.mxu0
    %v5958 = vld [vmem:[#allocation10] sm:$0xff]
    %v5960 = vlaneseq
    %v5961 = vshrl.u32 %v5960, 7
    %v5962 = vsub.s32 0, %v5961
    %v5963 = vrot.slane %v5958, %v5962
    %v5964 = vlaneseq
    %v5965 = vshrl.u32 %v5964, 7
    %v5966 = vsub.s32 1, %v5965
    %v5967 = vrot.slane %v5958, %v5966
    %v5968 = vlaneseq
    %v5969 = vshrl.u32 %v5968, 7
    %v5970 = vsub.s32 2, %v5969
    %v5971 = vrot.slane %v5958, %v5970
    %v5972 = vlaneseq
    %v5973 = vshrl.u32 %v5972, 7
    %v5974 = vsub.s32 3, %v5973
    %v5975 = vrot.slane %v5958, %v5974
    %v5976 = vlaneseq
    %v5977 = vshrl.u32 %v5976, 7
    %v5978 = vsub.s32 4, %v5977
    %v5979 = vrot.slane %v5958, %v5978
    %v5980 = vlaneseq
    %v5981 = vshrl.u32 %v5980, 7
    %v5982 = vsub.s32 5, %v5981
    %v5983 = vrot.slane %v5958, %v5982
    %v5984 = vlaneseq
    %v5985 = vshrl.u32 %v5984, 7
    %v5986 = vsub.s32 6, %v5985
    %v5987 = vrot.slane %v5958, %v5986
    %v5988 = vlaneseq
    %v5989 = vshrl.u32 %v5988, 7
    %v5990 = vsub.s32 7, %v5989
    %v5991 = vrot.slane %v5958, %v5990
    %v6000 = vmul.f32 %v4968, %v5963
    %v6001 = vmul.f32 %v4970, %v5967
    %v6002 = vmul.f32 %v5296, %v5971
    %v6003 = vmul.f32 %v5298, %v5975
    %v6004 = vmul.f32 %v5624, %v5979
    %v6005 = vmul.f32 %v5626, %v5983
    %v6006 = vmul.f32 %v5952, %v5987
    %v6007 = vmul.f32 %v5954, %v5991
    %v6008 = vld [vmem:[#allocation11] sm:$0xff]
    %v6010 = vlaneseq
    %v6011 = vshrl.u32 %v6010, 7
    %v6012 = vsub.s32 0, %v6011
    %v6013 = vrot.slane %v6008, %v6012
    %v6014 = vlaneseq
    %v6015 = vshrl.u32 %v6014, 7
    %v6016 = vsub.s32 1, %v6015
    %v6017 = vrot.slane %v6008, %v6016
    %v6018 = vlaneseq
    %v6019 = vshrl.u32 %v6018, 7
    %v6020 = vsub.s32 2, %v6019
    %v6021 = vrot.slane %v6008, %v6020
    %v6022 = vlaneseq
    %v6023 = vshrl.u32 %v6022, 7
    %v6024 = vsub.s32 3, %v6023
    %v6025 = vrot.slane %v6008, %v6024
    %v6026 = vlaneseq
    %v6027 = vshrl.u32 %v6026, 7
    %v6028 = vsub.s32 4, %v6027
    %v6029 = vrot.slane %v6008, %v6028
    %v6030 = vlaneseq
    %v6031 = vshrl.u32 %v6030, 7
    %v6032 = vsub.s32 5, %v6031
    %v6033 = vrot.slane %v6008, %v6032
    %v6034 = vlaneseq
    %v6035 = vshrl.u32 %v6034, 7
    %v6036 = vsub.s32 6, %v6035
    %v6037 = vrot.slane %v6008, %v6036
    %v6038 = vlaneseq
    %v6039 = vshrl.u32 %v6038, 7
    %v6040 = vsub.s32 7, %v6039
    %v6041 = vrot.slane %v6008, %v6040
    %v6050 = vadd.f32 %v6000, %v6013
    %v6051 = vadd.f32 %v6001, %v6017
    %v6052 = vadd.f32 %v6002, %v6021
    %v6053 = vadd.f32 %v6003, %v6025
    %v6054 = vadd.f32 %v6004, %v6029
    %v6055 = vadd.f32 %v6005, %v6033
    %v6056 = vadd.f32 %v6006, %v6037
    %v6057 = vadd.f32 %v6007, %v6041
    %v6058 = vmax.f32 %v6050, 0.0
    %v6059 = vmax.f32 %v6051, 0.0
    %v6060 = vmax.f32 %v6052, 0.0
    %v6061 = vmax.f32 %v6053, 0.0
    %v6062 = vmax.f32 %v6054, 0.0
    %v6063 = vmax.f32 %v6055, 0.0
    %v6064 = vmax.f32 %v6056, 0.0
    %v6065 = vmax.f32 %v6057, 0.0
    %v6066 = vpack.c.bf16 %v6058, %v6058
    %v6067 = vpack.c.bf16 %v6059, %v6059
    %v6068 = vpack.c.bf16 %v6060, %v6060
    %v6069 = vpack.c.bf16 %v6061, %v6061
    %v6070 = vpack.c.bf16 %v6062, %v6062
    %v6071 = vpack.c.bf16 %v6063, %v6063
    %v6072 = vpack.c.bf16 %v6064, %v6064
    %v6073 = vpack.c.bf16 %v6065, %v6065
    %v6074 = vld [vmem:[#allocation13] sm:$0xff]
    %v6075 = vld [vmem:[#allocation13 + $0x8] sm:$0xff]
    %v6076 = vld [vmem:[#allocation13 + $0x10] sm:$0xff]
    %v6077 = vld [vmem:[#allocation13 + $0x18] sm:$0xff]
    %v6078 = vld [vmem:[#allocation13 + $0x20] sm:$0xff]
    %v6079 = vld [vmem:[#allocation13 + $0x28] sm:$0xff]
    %v6080 = vld [vmem:[#allocation13 + $0x30] sm:$0xff]
    %v6081 = vld [vmem:[#allocation13 + $0x38] sm:$0xff]
    %v6082 = vld [vmem:[#allocation13 + $0x40] sm:$0xff]
    %v6083 = vld [vmem:[#allocation13 + $0x48] sm:$0xff]
    %v6084 = vld [vmem:[#allocation13 + $0x50] sm:$0xff]
    %v6085 = vld [vmem:[#allocation13 + $0x58] sm:$0xff]
    %v6086 = vld [vmem:[#allocation13 + $0x60] sm:$0xff]
    %v6087 = vld [vmem:[#allocation13 + $0x68] sm:$0xff]
    %v6088 = vld [vmem:[#allocation13 + $0x70] sm:$0xff]
    %v6089 = vld [vmem:[#allocation13 + $0x78] sm:$0xff]
    %v6090 = vld [vmem:[#allocation13 + $0x80] sm:$0xff]
    %v6091 = vld [vmem:[#allocation13 + $0x88] sm:$0xff]
    %v6092 = vld [vmem:[#allocation13 + $0x90] sm:$0xff]
    %v6093 = vld [vmem:[#allocation13 + $0x98] sm:$0xff]
    %v6094 = vld [vmem:[#allocation13 + $0xa0] sm:$0xff]
    %v6095 = vld [vmem:[#allocation13 + $0xa8] sm:$0xff]
    %v6096 = vld [vmem:[#allocation13 + $0xb0] sm:$0xff]
    %v6097 = vld [vmem:[#allocation13 + $0xb8] sm:$0xff]
    %v6098 = vld [vmem:[#allocation13 + $0xc0] sm:$0xff]
    %v6099 = vld [vmem:[#allocation13 + $0xc8] sm:$0xff]
    %v6100 = vld [vmem:[#allocation13 + $0xd0] sm:$0xff]
    %v6101 = vld [vmem:[#allocation13 + $0xd8] sm:$0xff]
    %v6102 = vld [vmem:[#allocation13 + $0xe0] sm:$0xff]
    %v6103 = vld [vmem:[#allocation13 + $0xe8] sm:$0xff]
    %v6104 = vld [vmem:[#allocation13 + $0xf0] sm:$0xff]
    %v6105 = vld [vmem:[#allocation13 + $0xf8] sm:$0xff]
    %v6106 = vld [vmem:[#allocation13 + $0x100] sm:$0xff]
    %v6107 = vld [vmem:[#allocation13 + $0x108] sm:$0xff]
    %v6108 = vld [vmem:[#allocation13 + $0x110] sm:$0xff]
    %v6109 = vld [vmem:[#allocation13 + $0x118] sm:$0xff]
    %v6110 = vld [vmem:[#allocation13 + $0x120] sm:$0xff]
    %v6111 = vld [vmem:[#allocation13 + $0x128] sm:$0xff]
    %v6112 = vld [vmem:[#allocation13 + $0x130] sm:$0xff]
    %v6113 = vld [vmem:[#allocation13 + $0x138] sm:$0xff]
    %v6114 = vld [vmem:[#allocation13 + $0x140] sm:$0xff]
    %v6115 = vld [vmem:[#allocation13 + $0x148] sm:$0xff]
    %v6116 = vld [vmem:[#allocation13 + $0x150] sm:$0xff]
    %v6117 = vld [vmem:[#allocation13 + $0x158] sm:$0xff]
    %v6118 = vld [vmem:[#allocation13 + $0x160] sm:$0xff]
    %v6119 = vld [vmem:[#allocation13 + $0x168] sm:$0xff]
    %v6120 = vld [vmem:[#allocation13 + $0x170] sm:$0xff]
    %v6121 = vld [vmem:[#allocation13 + $0x178] sm:$0xff]
    %v6122 = vld [vmem:[#allocation13 + $0x180] sm:$0xff]
    %v6123 = vld [vmem:[#allocation13 + $0x188] sm:$0xff]
    %v6124 = vld [vmem:[#allocation13 + $0x190] sm:$0xff]
    %v6125 = vld [vmem:[#allocation13 + $0x198] sm:$0xff]
    %v6126 = vld [vmem:[#allocation13 + $0x1a0] sm:$0xff]
    %v6127 = vld [vmem:[#allocation13 + $0x1a8] sm:$0xff]
    %v6128 = vld [vmem:[#allocation13 + $0x1b0] sm:$0xff]
    %v6129 = vld [vmem:[#allocation13 + $0x1b8] sm:$0xff]
    %v6130 = vld [vmem:[#allocation13 + $0x1c0] sm:$0xff]
    %v6131 = vld [vmem:[#allocation13 + $0x1c8] sm:$0xff]
    %v6132 = vld [vmem:[#allocation13 + $0x1d0] sm:$0xff]
    %v6133 = vld [vmem:[#allocation13 + $0x1d8] sm:$0xff]
    %v6134 = vld [vmem:[#allocation13 + $0x1e0] sm:$0xff]
    %v6135 = vld [vmem:[#allocation13 + $0x1e8] sm:$0xff]
    %v6136 = vld [vmem:[#allocation13 + $0x1f0] sm:$0xff]
    %v6137 = vld [vmem:[#allocation13 + $0x1f8] sm:$0xff]
    %v6138 = vld [vmem:[#allocation13 + $0x200] sm:$0xff]
    %v6139 = vld [vmem:[#allocation13 + $0x208] sm:$0xff]
    %v6140 = vld [vmem:[#allocation13 + $0x210] sm:$0xff]
    %v6141 = vld [vmem:[#allocation13 + $0x218] sm:$0xff]
    %v6142 = vld [vmem:[#allocation13 + $0x220] sm:$0xff]
    %v6143 = vld [vmem:[#allocation13 + $0x228] sm:$0xff]
    %v6144 = vld [vmem:[#allocation13 + $0x230] sm:$0xff]
    %v6145 = vld [vmem:[#allocation13 + $0x238] sm:$0xff]
    %v6146 = vld [vmem:[#allocation13 + $0x240] sm:$0xff]
    %v6147 = vld [vmem:[#allocation13 + $0x248] sm:$0xff]
    %v6148 = vld [vmem:[#allocation13 + $0x250] sm:$0xff]
    %v6149 = vld [vmem:[#allocation13 + $0x258] sm:$0xff]
    %v6150 = vld [vmem:[#allocation13 + $0x260] sm:$0xff]
    %v6151 = vld [vmem:[#allocation13 + $0x268] sm:$0xff]
    %v6152 = vld [vmem:[#allocation13 + $0x270] sm:$0xff]
    %v6153 = vld [vmem:[#allocation13 + $0x278] sm:$0xff]
    %v6154 = vld [vmem:[#allocation13 + $0x280] sm:$0xff]
    %v6155 = vld [vmem:[#allocation13 + $0x288] sm:$0xff]
    %v6156 = vld [vmem:[#allocation13 + $0x290] sm:$0xff]
    %v6157 = vld [vmem:[#allocation13 + $0x298] sm:$0xff]
    %v6158 = vld [vmem:[#allocation13 + $0x2a0] sm:$0xff]
    %v6159 = vld [vmem:[#allocation13 + $0x2a8] sm:$0xff]
    %v6160 = vld [vmem:[#allocation13 + $0x2b0] sm:$0xff]
    %v6161 = vld [vmem:[#allocation13 + $0x2b8] sm:$0xff]
    %v6162 = vld [vmem:[#allocation13 + $0x2c0] sm:$0xff]
    %v6163 = vld [vmem:[#allocation13 + $0x2c8] sm:$0xff]
    %v6164 = vld [vmem:[#allocation13 + $0x2d0] sm:$0xff]
    %v6165 = vld [vmem:[#allocation13 + $0x2d8] sm:$0xff]
    %v6166 = vld [vmem:[#allocation13 + $0x2e0] sm:$0xff]
    %v6167 = vld [vmem:[#allocation13 + $0x2e8] sm:$0xff]
    %v6168 = vld [vmem:[#allocation13 + $0x2f0] sm:$0xff]
    %v6169 = vld [vmem:[#allocation13 + $0x2f8] sm:$0xff]
    %v6170 = vld [vmem:[#allocation13 + $0x300] sm:$0xff]
    %v6171 = vld [vmem:[#allocation13 + $0x308] sm:$0xff]
    %v6172 = vld [vmem:[#allocation13 + $0x310] sm:$0xff]
    %v6173 = vld [vmem:[#allocation13 + $0x318] sm:$0xff]
    %v6174 = vld [vmem:[#allocation13 + $0x320] sm:$0xff]
    %v6175 = vld [vmem:[#allocation13 + $0x328] sm:$0xff]
    %v6176 = vld [vmem:[#allocation13 + $0x330] sm:$0xff]
    %v6177 = vld [vmem:[#allocation13 + $0x338] sm:$0xff]
    %v6178 = vld [vmem:[#allocation13 + $0x340] sm:$0xff]
    %v6179 = vld [vmem:[#allocation13 + $0x348] sm:$0xff]
    %v6180 = vld [vmem:[#allocation13 + $0x350] sm:$0xff]
    %v6181 = vld [vmem:[#allocation13 + $0x358] sm:$0xff]
    %v6182 = vld [vmem:[#allocation13 + $0x360] sm:$0xff]
    %v6183 = vld [vmem:[#allocation13 + $0x368] sm:$0xff]
    %v6184 = vld [vmem:[#allocation13 + $0x370] sm:$0xff]
    %v6185 = vld [vmem:[#allocation13 + $0x378] sm:$0xff]
    %v6186 = vld [vmem:[#allocation13 + $0x380] sm:$0xff]
    %v6187 = vld [vmem:[#allocation13 + $0x388] sm:$0xff]
    %v6188 = vld [vmem:[#allocation13 + $0x390] sm:$0xff]
    %v6189 = vld [vmem:[#allocation13 + $0x398] sm:$0xff]
    %v6190 = vld [vmem:[#allocation13 + $0x3a0] sm:$0xff]
    %v6191 = vld [vmem:[#allocation13 + $0x3a8] sm:$0xff]
    %v6192 = vld [vmem:[#allocation13 + $0x3b0] sm:$0xff]
    %v6193 = vld [vmem:[#allocation13 + $0x3b8] sm:$0xff]
    %v6194 = vld [vmem:[#allocation13 + $0x3c0] sm:$0xff]
    %v6195 = vld [vmem:[#allocation13 + $0x3c8] sm:$0xff]
    %v6196 = vld [vmem:[#allocation13 + $0x3d0] sm:$0xff]
    %v6197 = vld [vmem:[#allocation13 + $0x3d8] sm:$0xff]
    %v6198 = vld [vmem:[#allocation13 + $0x3e0] sm:$0xff]
    %v6199 = vld [vmem:[#allocation13 + $0x3e8] sm:$0xff]
    %v6200 = vld [vmem:[#allocation13 + $0x3f0] sm:$0xff]
    %v6201 = vld [vmem:[#allocation13 + $0x3f8] sm:$0xff]
    %v6202 = vunpack.c.l.s8.bf16 %v6074
    %v6203 = vunpack.c.l.s8.bf16 %v6075
    %v6204 = vunpack.c.l.s8.bf16 %v6076
    %v6205 = vunpack.c.l.s8.bf16 %v6077
    %v6206 = vunpack.c.h.s8.bf16 %v6074
    %v6207 = vunpack.c.h.s8.bf16 %v6075
    %v6208 = vunpack.c.h.s8.bf16 %v6076
    %v6209 = vunpack.c.h.s8.bf16 %v6077
    %v6210 = vunpack.c.l.s8.bf16 %v6078
    %v6211 = vunpack.c.l.s8.bf16 %v6079
    %v6212 = vunpack.c.l.s8.bf16 %v6080
    %v6213 = vunpack.c.l.s8.bf16 %v6081
    %v6214 = vunpack.c.h.s8.bf16 %v6078
    %v6215 = vunpack.c.h.s8.bf16 %v6079
    %v6216 = vunpack.c.h.s8.bf16 %v6080
    %v6217 = vunpack.c.h.s8.bf16 %v6081
    %v6218 = vunpack.c.l.s8.bf16 %v6082
    %v6219 = vunpack.c.l.s8.bf16 %v6083
    %v6220 = vunpack.c.l.s8.bf16 %v6084
    %v6221 = vunpack.c.l.s8.bf16 %v6085
    %v6222 = vunpack.c.h.s8.bf16 %v6082
    %v6223 = vunpack.c.h.s8.bf16 %v6083
    %v6224 = vunpack.c.h.s8.bf16 %v6084
    %v6225 = vunpack.c.h.s8.bf16 %v6085
    %v6226 = vunpack.c.l.s8.bf16 %v6086
    %v6227 = vunpack.c.l.s8.bf16 %v6087
    %v6228 = vunpack.c.l.s8.bf16 %v6088
    %v6229 = vunpack.c.l.s8.bf16 %v6089
    %v6230 = vunpack.c.h.s8.bf16 %v6086
    %v6231 = vunpack.c.h.s8.bf16 %v6087
    %v6232 = vunpack.c.h.s8.bf16 %v6088
    %v6233 = vunpack.c.h.s8.bf16 %v6089
    %v6234 = vunpack.c.l.s8.bf16 %v6090
    %v6235 = vunpack.c.l.s8.bf16 %v6091
    %v6236 = vunpack.c.l.s8.bf16 %v6092
    %v6237 = vunpack.c.l.s8.bf16 %v6093
    %v6238 = vunpack.c.h.s8.bf16 %v6090
    %v6239 = vunpack.c.h.s8.bf16 %v6091
    %v6240 = vunpack.c.h.s8.bf16 %v6092
    %v6241 = vunpack.c.h.s8.bf16 %v6093
    %v6242 = vunpack.c.l.s8.bf16 %v6094
    %v6243 = vunpack.c.l.s8.bf16 %v6095
    %v6244 = vunpack.c.l.s8.bf16 %v6096
    %v6245 = vunpack.c.l.s8.bf16 %v6097
    %v6246 = vunpack.c.h.s8.bf16 %v6094
    %v6247 = vunpack.c.h.s8.bf16 %v6095
    %v6248 = vunpack.c.h.s8.bf16 %v6096
    %v6249 = vunpack.c.h.s8.bf16 %v6097
    %v6250 = vunpack.c.l.s8.bf16 %v6098
    %v6251 = vunpack.c.l.s8.bf16 %v6099
    %v6252 = vunpack.c.l.s8.bf16 %v6100
    %v6253 = vunpack.c.l.s8.bf16 %v6101
    %v6254 = vunpack.c.h.s8.bf16 %v6098
    %v6255 = vunpack.c.h.s8.bf16 %v6099
    %v6256 = vunpack.c.h.s8.bf16 %v6100
    %v6257 = vunpack.c.h.s8.bf16 %v6101
    %v6258 = vunpack.c.l.s8.bf16 %v6102
    %v6259 = vunpack.c.l.s8.bf16 %v6103
    %v6260 = vunpack.c.l.s8.bf16 %v6104
    %v6261 = vunpack.c.l.s8.bf16 %v6105
    %v6262 = vunpack.c.h.s8.bf16 %v6102
    %v6263 = vunpack.c.h.s8.bf16 %v6103
    %v6264 = vunpack.c.h.s8.bf16 %v6104
    %v6265 = vunpack.c.h.s8.bf16 %v6105
    %v6266 = vunpack.c.l.s8.bf16 %v6106
    %v6267 = vunpack.c.l.s8.bf16 %v6107
    %v6268 = vunpack.c.l.s8.bf16 %v6108
    %v6269 = vunpack.c.l.s8.bf16 %v6109
    %v6270 = vunpack.c.h.s8.bf16 %v6106
    %v6271 = vunpack.c.h.s8.bf16 %v6107
    %v6272 = vunpack.c.h.s8.bf16 %v6108
    %v6273 = vunpack.c.h.s8.bf16 %v6109
    %v6274 = vunpack.c.l.s8.bf16 %v6110
    %v6275 = vunpack.c.l.s8.bf16 %v6111
    %v6276 = vunpack.c.l.s8.bf16 %v6112
    %v6277 = vunpack.c.l.s8.bf16 %v6113
    %v6278 = vunpack.c.h.s8.bf16 %v6110
    %v6279 = vunpack.c.h.s8.bf16 %v6111
    %v6280 = vunpack.c.h.s8.bf16 %v6112
    %v6281 = vunpack.c.h.s8.bf16 %v6113
    %v6282 = vunpack.c.l.s8.bf16 %v6114
    %v6283 = vunpack.c.l.s8.bf16 %v6115
    %v6284 = vunpack.c.l.s8.bf16 %v6116
    %v6285 = vunpack.c.l.s8.bf16 %v6117
    %v6286 = vunpack.c.h.s8.bf16 %v6114
    %v6287 = vunpack.c.h.s8.bf16 %v6115
    %v6288 = vunpack.c.h.s8.bf16 %v6116
    %v6289 = vunpack.c.h.s8.bf16 %v6117
    %v6290 = vunpack.c.l.s8.bf16 %v6118
    %v6291 = vunpack.c.l.s8.bf16 %v6119
    %v6292 = vunpack.c.l.s8.bf16 %v6120
    %v6293 = vunpack.c.l.s8.bf16 %v6121
    %v6294 = vunpack.c.h.s8.bf16 %v6118
    %v6295 = vunpack.c.h.s8.bf16 %v6119
    %v6296 = vunpack.c.h.s8.bf16 %v6120
    %v6297 = vunpack.c.h.s8.bf16 %v6121
    %v6298 = vunpack.c.l.s8.bf16 %v6122
    %v6299 = vunpack.c.l.s8.bf16 %v6123
    %v6300 = vunpack.c.l.s8.bf16 %v6124
    %v6301 = vunpack.c.l.s8.bf16 %v6125
    %v6302 = vunpack.c.h.s8.bf16 %v6122
    %v6303 = vunpack.c.h.s8.bf16 %v6123
    %v6304 = vunpack.c.h.s8.bf16 %v6124
    %v6305 = vunpack.c.h.s8.bf16 %v6125
    %v6306 = vunpack.c.l.s8.bf16 %v6126
    %v6307 = vunpack.c.l.s8.bf16 %v6127
    %v6308 = vunpack.c.l.s8.bf16 %v6128
    %v6309 = vunpack.c.l.s8.bf16 %v6129
    %v6310 = vunpack.c.h.s8.bf16 %v6126
    %v6311 = vunpack.c.h.s8.bf16 %v6127
    %v6312 = vunpack.c.h.s8.bf16 %v6128
    %v6313 = vunpack.c.h.s8.bf16 %v6129
    %v6314 = vunpack.c.l.s8.bf16 %v6130
    %v6315 = vunpack.c.l.s8.bf16 %v6131
    %v6316 = vunpack.c.l.s8.bf16 %v6132
    %v6317 = vunpack.c.l.s8.bf16 %v6133
    %v6318 = vunpack.c.h.s8.bf16 %v6130
    %v6319 = vunpack.c.h.s8.bf16 %v6131
    %v6320 = vunpack.c.h.s8.bf16 %v6132
    %v6321 = vunpack.c.h.s8.bf16 %v6133
    %v6322 = vunpack.c.l.s8.bf16 %v6134
    %v6323 = vunpack.c.l.s8.bf16 %v6135
    %v6324 = vunpack.c.l.s8.bf16 %v6136
    %v6325 = vunpack.c.l.s8.bf16 %v6137
    %v6326 = vunpack.c.h.s8.bf16 %v6134
    %v6327 = vunpack.c.h.s8.bf16 %v6135
    %v6328 = vunpack.c.h.s8.bf16 %v6136
    %v6329 = vunpack.c.h.s8.bf16 %v6137
    %v6330 = vunpack.c.l.s8.bf16 %v6138
    %v6331 = vunpack.c.l.s8.bf16 %v6139
    %v6332 = vunpack.c.l.s8.bf16 %v6140
    %v6333 = vunpack.c.l.s8.bf16 %v6141
    %v6334 = vunpack.c.h.s8.bf16 %v6138
    %v6335 = vunpack.c.h.s8.bf16 %v6139
    %v6336 = vunpack.c.h.s8.bf16 %v6140
    %v6337 = vunpack.c.h.s8.bf16 %v6141
    %v6338 = vunpack.c.l.s8.bf16 %v6142
    %v6339 = vunpack.c.l.s8.bf16 %v6143
    %v6340 = vunpack.c.l.s8.bf16 %v6144
    %v6341 = vunpack.c.l.s8.bf16 %v6145
    %v6342 = vunpack.c.h.s8.bf16 %v6142
    %v6343 = vunpack.c.h.s8.bf16 %v6143
    %v6344 = vunpack.c.h.s8.bf16 %v6144
    %v6345 = vunpack.c.h.s8.bf16 %v6145
    %v6346 = vunpack.c.l.s8.bf16 %v6146
    %v6347 = vunpack.c.l.s8.bf16 %v6147
    %v6348 = vunpack.c.l.s8.bf16 %v6148
    %v6349 = vunpack.c.l.s8.bf16 %v6149
    %v6350 = vunpack.c.h.s8.bf16 %v6146
    %v6351 = vunpack.c.h.s8.bf16 %v6147
    %v6352 = vunpack.c.h.s8.bf16 %v6148
    %v6353 = vunpack.c.h.s8.bf16 %v6149
    %v6354 = vunpack.c.l.s8.bf16 %v6150
    %v6355 = vunpack.c.l.s8.bf16 %v6151
    %v6356 = vunpack.c.l.s8.bf16 %v6152
    %v6357 = vunpack.c.l.s8.bf16 %v6153
    %v6358 = vunpack.c.h.s8.bf16 %v6150
    %v6359 = vunpack.c.h.s8.bf16 %v6151
    %v6360 = vunpack.c.h.s8.bf16 %v6152
    %v6361 = vunpack.c.h.s8.bf16 %v6153
    %v6362 = vunpack.c.l.s8.bf16 %v6154
    %v6363 = vunpack.c.l.s8.bf16 %v6155
    %v6364 = vunpack.c.l.s8.bf16 %v6156
    %v6365 = vunpack.c.l.s8.bf16 %v6157
    %v6366 = vunpack.c.h.s8.bf16 %v6154
    %v6367 = vunpack.c.h.s8.bf16 %v6155
    %v6368 = vunpack.c.h.s8.bf16 %v6156
    %v6369 = vunpack.c.h.s8.bf16 %v6157
    %v6370 = vunpack.c.l.s8.bf16 %v6158
    %v6371 = vunpack.c.l.s8.bf16 %v6159
    %v6372 = vunpack.c.l.s8.bf16 %v6160
    %v6373 = vunpack.c.l.s8.bf16 %v6161
    %v6374 = vunpack.c.h.s8.bf16 %v6158
    %v6375 = vunpack.c.h.s8.bf16 %v6159
    %v6376 = vunpack.c.h.s8.bf16 %v6160
    %v6377 = vunpack.c.h.s8.bf16 %v6161
    %v6378 = vunpack.c.l.s8.bf16 %v6162
    %v6379 = vunpack.c.l.s8.bf16 %v6163
    %v6380 = vunpack.c.l.s8.bf16 %v6164
    %v6381 = vunpack.c.l.s8.bf16 %v6165
    %v6382 = vunpack.c.h.s8.bf16 %v6162
    %v6383 = vunpack.c.h.s8.bf16 %v6163
    %v6384 = vunpack.c.h.s8.bf16 %v6164
    %v6385 = vunpack.c.h.s8.bf16 %v6165
    %v6386 = vunpack.c.l.s8.bf16 %v6166
    %v6387 = vunpack.c.l.s8.bf16 %v6167
    %v6388 = vunpack.c.l.s8.bf16 %v6168
    %v6389 = vunpack.c.l.s8.bf16 %v6169
    %v6390 = vunpack.c.h.s8.bf16 %v6166
    %v6391 = vunpack.c.h.s8.bf16 %v6167
    %v6392 = vunpack.c.h.s8.bf16 %v6168
    %v6393 = vunpack.c.h.s8.bf16 %v6169
    %v6394 = vunpack.c.l.s8.bf16 %v6170
    %v6395 = vunpack.c.l.s8.bf16 %v6171
    %v6396 = vunpack.c.l.s8.bf16 %v6172
    %v6397 = vunpack.c.l.s8.bf16 %v6173
    %v6398 = vunpack.c.h.s8.bf16 %v6170
    %v6399 = vunpack.c.h.s8.bf16 %v6171
    %v6400 = vunpack.c.h.s8.bf16 %v6172
    %v6401 = vunpack.c.h.s8.bf16 %v6173
    %v6402 = vunpack.c.l.s8.bf16 %v6174
    %v6403 = vunpack.c.l.s8.bf16 %v6175
    %v6404 = vunpack.c.l.s8.bf16 %v6176
    %v6405 = vunpack.c.l.s8.bf16 %v6177
    %v6406 = vunpack.c.h.s8.bf16 %v6174
    %v6407 = vunpack.c.h.s8.bf16 %v6175
    %v6408 = vunpack.c.h.s8.bf16 %v6176
    %v6409 = vunpack.c.h.s8.bf16 %v6177
    %v6410 = vunpack.c.l.s8.bf16 %v6178
    %v6411 = vunpack.c.l.s8.bf16 %v6179
    %v6412 = vunpack.c.l.s8.bf16 %v6180
    %v6413 = vunpack.c.l.s8.bf16 %v6181
    %v6414 = vunpack.c.h.s8.bf16 %v6178
    %v6415 = vunpack.c.h.s8.bf16 %v6179
    %v6416 = vunpack.c.h.s8.bf16 %v6180
    %v6417 = vunpack.c.h.s8.bf16 %v6181
    %v6418 = vunpack.c.l.s8.bf16 %v6182
    %v6419 = vunpack.c.l.s8.bf16 %v6183
    %v6420 = vunpack.c.l.s8.bf16 %v6184
    %v6421 = vunpack.c.l.s8.bf16 %v6185
    %v6422 = vunpack.c.h.s8.bf16 %v6182
    %v6423 = vunpack.c.h.s8.bf16 %v6183
    %v6424 = vunpack.c.h.s8.bf16 %v6184
    %v6425 = vunpack.c.h.s8.bf16 %v6185
    %v6426 = vunpack.c.l.s8.bf16 %v6186
    %v6427 = vunpack.c.l.s8.bf16 %v6187
    %v6428 = vunpack.c.l.s8.bf16 %v6188
    %v6429 = vunpack.c.l.s8.bf16 %v6189
    %v6430 = vunpack.c.h.s8.bf16 %v6186
    %v6431 = vunpack.c.h.s8.bf16 %v6187
    %v6432 = vunpack.c.h.s8.bf16 %v6188
    %v6433 = vunpack.c.h.s8.bf16 %v6189
    %v6434 = vunpack.c.l.s8.bf16 %v6190
    %v6435 = vunpack.c.l.s8.bf16 %v6191
    %v6436 = vunpack.c.l.s8.bf16 %v6192
    %v6437 = vunpack.c.l.s8.bf16 %v6193
    %v6438 = vunpack.c.h.s8.bf16 %v6190
    %v6439 = vunpack.c.h.s8.bf16 %v6191
    %v6440 = vunpack.c.h.s8.bf16 %v6192
    %v6441 = vunpack.c.h.s8.bf16 %v6193
    %v6442 = vunpack.c.l.s8.bf16 %v6194
    %v6443 = vunpack.c.l.s8.bf16 %v6195
    %v6444 = vunpack.c.l.s8.bf16 %v6196
    %v6445 = vunpack.c.l.s8.bf16 %v6197
    %v6446 = vunpack.c.h.s8.bf16 %v6194
    %v6447 = vunpack.c.h.s8.bf16 %v6195
    %v6448 = vunpack.c.h.s8.bf16 %v6196
    %v6449 = vunpack.c.h.s8.bf16 %v6197
    %v6450 = vunpack.c.l.s8.bf16 %v6198
    %v6451 = vunpack.c.l.s8.bf16 %v6199
    %v6452 = vunpack.c.l.s8.bf16 %v6200
    %v6453 = vunpack.c.l.s8.bf16 %v6201
    %v6454 = vunpack.c.h.s8.bf16 %v6198
    %v6455 = vunpack.c.h.s8.bf16 %v6199
    %v6456 = vunpack.c.h.s8.bf16 %v6200
    %v6457 = vunpack.c.h.s8.bf16 %v6201
    %6458 = vmatprep.subr.bf16.mxu0 %v6203
    %6459 = vmatpush1.bf16.msra.mxu0 %v6202
    %6460 = vmatprep.subr.bf16.mxu0 %v6207
    %6461 = vmatpush1.bf16.msra.mxu0 %v6206
    %6462 = vmatprep.subr.bf16.mxu0 %v6211
    %6463 = vmatpush1.bf16.msra.mxu0 %v6210
    %6464 = vmatprep.subr.bf16.mxu0 %v6215
    %6465 = vmatpush1.bf16.msra.mxu0 %v6214
    %6466 = vmatprep.subr.bf16.mxu0 %v6219
    %6467 = vmatpush1.bf16.msra.mxu0 %v6218
    %6468 = vmatprep.subr.bf16.mxu0 %v6223
    %6469 = vmatpush1.bf16.msra.mxu0 %v6222
    %6470 = vmatprep.subr.bf16.mxu0 %v6227
    %6471 = vmatpush1.bf16.msra.mxu0 %v6226
    %6472 = vmatprep.subr.bf16.mxu0 %v6231
    %6473 = vmatpush1.bf16.msra.mxu0 %v6230
    %6474 = vmatprep.subr.bf16.mxu0 %v6235
    %6475 = vmatpush1.bf16.msra.mxu0 %v6234
    %6476 = vmatprep.subr.bf16.mxu0 %v6239
    %6477 = vmatpush1.bf16.msra.mxu0 %v6238
    %6478 = vmatprep.subr.bf16.mxu0 %v6243
    %6479 = vmatpush1.bf16.msra.mxu0 %v6242
    %6480 = vmatprep.subr.bf16.mxu0 %v6247
    %6481 = vmatpush1.bf16.msra.mxu0 %v6246
    %6482 = vmatprep.subr.bf16.mxu0 %v6251
    %6483 = vmatpush1.bf16.msra.mxu0 %v6250
    %6484 = vmatprep.subr.bf16.mxu0 %v6255
    %6485 = vmatpush1.bf16.msra.mxu0 %v6254
    %6486 = vmatprep.subr.bf16.mxu0 %v6259
    %6487 = vmatpush1.bf16.msra.mxu0 %v6258
    %6488 = vmatprep.subr.bf16.mxu0 %v6263
    %6489 = vmatpush1.bf16.msra.mxu0 %v6262
    %6490 = vmatprep.mubr.bf16.mxu0 %v6067
    %6491 = vmatmul.mubr.bf16.gmra.mrb[0].mxu0 %v6066
    %v6492 = vpop.f32.mrb[0].mxu0
    %v6493 = vadd.f32 0.0, %v6492
    %v6494 = vpop.f32.mrb[0].mxu0
    %v6495 = vadd.f32 0.0, %v6494
    %v6496 = vpop.f32.mrb[0].mxu0
    %v6497 = vpop.f32.mrb[0].mxu0
    %6498 = vdwg.mxu0
    %6499 = vmatprep.subr.bf16.mxu0 %v6267
    %6500 = vmatpush1.bf16.msra.mxu0 %v6266
    %6501 = vmatprep.subr.bf16.mxu0 %v6271
    %6502 = vmatpush1.bf16.msra.mxu0 %v6270
    %6503 = vmatprep.subr.bf16.mxu0 %v6275
    %6504 = vmatpush1.bf16.msra.mxu0 %v6274
    %6505 = vmatprep.subr.bf16.mxu0 %v6279
    %6506 = vmatpush1.bf16.msra.mxu0 %v6278
    %6507 = vmatprep.subr.bf16.mxu0 %v6283
    %6508 = vmatpush1.bf16.msra.mxu0 %v6282
    %6509 = vmatprep.subr.bf16.mxu0 %v6287
    %6510 = vmatpush1.bf16.msra.mxu0 %v6286
    %6511 = vmatprep.subr.bf16.mxu0 %v6291
    %6512 = vmatpush1.bf16.msra.mxu0 %v6290
    %6513 = vmatprep.subr.bf16.mxu0 %v6295
    %6514 = vmatpush1.bf16.msra.mxu0 %v6294
    %6515 = vmatprep.subr.bf16.mxu0 %v6299
    %6516 = vmatpush1.bf16.msra.mxu0 %v6298
    %6517 = vmatprep.subr.bf16.mxu0 %v6303
    %6518 = vmatpush1.bf16.msra.mxu0 %v6302
    %6519 = vmatprep.subr.bf16.mxu0 %v6307
    %6520 = vmatpush1.bf16.msra.mxu0 %v6306
    %6521 = vmatprep.subr.bf16.mxu0 %v6311
    %6522 = vmatpush1.bf16.msra.mxu0 %v6310
    %6523 = vmatprep.subr.bf16.mxu0 %v6315
    %6524 = vmatpush1.bf16.msra.mxu0 %v6314
    %6525 = vmatprep.subr.bf16.mxu0 %v6319
    %6526 = vmatpush1.bf16.msra.mxu0 %v6318
    %6527 = vmatprep.subr.bf16.mxu0 %v6323
    %6528 = vmatpush1.bf16.msra.mxu0 %v6322
    %6529 = vmatprep.subr.bf16.mxu0 %v6327
    %6530 = vmatpush1.bf16.msra.mxu0 %v6326
    %6531 = vmatprep.mubr.bf16.mxu0 %v6069
    %6532 = vmatmul.mubr.bf16.gmra.mrb[0].mxu0 %v6068
    %v6533 = vpop.f32.mrb[0].mxu0
    %v6534 = vadd.f32 %v6493, %v6533
    %v6535 = vpop.f32.mrb[0].mxu0
    %v6536 = vadd.f32 %v6495, %v6535
    %v6537 = vpop.f32.mrb[0].mxu0
    %v6538 = vpop.f32.mrb[0].mxu0
    %6539 = vdwg.mxu0
    %6540 = vmatprep.subr.bf16.mxu0 %v6331
    %6541 = vmatpush1.bf16.msra.mxu0 %v6330
    %6542 = vmatprep.subr.bf16.mxu0 %v6335
    %6543 = vmatpush1.bf16.msra.mxu0 %v6334
    %6544 = vmatprep.subr.bf16.mxu0 %v6339
    %6545 = vmatpush1.bf16.msra.mxu0 %v6338
    %6546 = vmatprep.subr.bf16.mxu0 %v6343
    %6547 = vmatpush1.bf16.msra.mxu0 %v6342
    %6548 = vmatprep.subr.bf16.mxu0 %v6347
    %6549 = vmatpush1.bf16.msra.mxu0 %v6346
    %6550 = vmatprep.subr.bf16.mxu0 %v6351
    %6551 = vmatpush1.bf16.msra.mxu0 %v6350
    %6552 = vmatprep.subr.bf16.mxu0 %v6355
    %6553 = vmatpush1.bf16.msra.mxu0 %v6354
    %6554 = vmatprep.subr.bf16.mxu0 %v6359
    %6555 = vmatpush1.bf16.msra.mxu0 %v6358
    %6556 = vmatprep.subr.bf16.mxu0 %v6363
    %6557 = vmatpush1.bf16.msra.mxu0 %v6362
    %6558 = vmatprep.subr.bf16.mxu0 %v6367
    %6559 = vmatpush1.bf16.msra.mxu0 %v6366
    %6560 = vmatprep.subr.bf16.mxu0 %v6371
    %6561 = vmatpush1.bf16.msra.mxu0 %v6370
    %6562 = vmatprep.subr.bf16.mxu0 %v6375
    %6563 = vmatpush1.bf16.msra.mxu0 %v6374
    %6564 = vmatprep.subr.bf16.mxu0 %v6379
    %6565 = vmatpush1.bf16.msra.mxu0 %v6378
    %6566 = vmatprep.subr.bf16.mxu0 %v6383
    %6567 = vmatpush1.bf16.msra.mxu0 %v6382
    %6568 = vmatprep.subr.bf16.mxu0 %v6387
    %6569 = vmatpush1.bf16.msra.mxu0 %v6386
    %6570 = vmatprep.subr.bf16.mxu0 %v6391
    %6571 = vmatpush1.bf16.msra.mxu0 %v6390
    %6572 = vmatprep.mubr.bf16.mxu0 %v6071
    %6573 = vmatmul.mubr.bf16.gmra.mrb[0].mxu0 %v6070
    %v6574 = vpop.f32.mrb[0].mxu0
    %v6575 = vadd.f32 %v6534, %v6574
    %v6576 = vpop.f32.mrb[0].mxu0
    %v6577 = vadd.f32 %v6536, %v6576
    %v6578 = vpop.f32.mrb[0].mxu0
    %v6579 = vpop.f32.mrb[0].mxu0
    %6580 = vdwg.mxu0
    %6581 = vmatprep.subr.bf16.mxu0 %v6395
    %6582 = vmatpush1.bf16.msra.mxu0 %v6394
    %6583 = vmatprep.subr.bf16.mxu0 %v6399
    %6584 = vmatpush1.bf16.msra.mxu0 %v6398
    %6585 = vmatprep.subr.bf16.mxu0 %v6403
    %6586 = vmatpush1.bf16.msra.mxu0 %v6402
    %6587 = vmatprep.subr.bf16.mxu0 %v6407
    %6588 = vmatpush1.bf16.msra.mxu0 %v6406
    %6589 = vmatprep.subr.bf16.mxu0 %v6411
    %6590 = vmatpush1.bf16.msra.mxu0 %v6410
    %6591 = vmatprep.subr.bf16.mxu0 %v6415
    %6592 = vmatpush1.bf16.msra.mxu0 %v6414
    %6593 = vmatprep.subr.bf16.mxu0 %v6419
    %6594 = vmatpush1.bf16.msra.mxu0 %v6418
    %6595 = vmatprep.subr.bf16.mxu0 %v6423
    %6596 = vmatpush1.bf16.msra.mxu0 %v6422
    %6597 = vmatprep.subr.bf16.mxu0 %v6427
    %6598 = vmatpush1.bf16.msra.mxu0 %v6426
    %6599 = vmatprep.subr.bf16.mxu0 %v6431
    %6600 = vmatpush1.bf16.msra.mxu0 %v6430
    %6601 = vmatprep.subr.bf16.mxu0 %v6435
    %6602 = vmatpush1.bf16.msra.mxu0 %v6434
    %6603 = vmatprep.subr.bf16.mxu0 %v6439
    %6604 = vmatpush1.bf16.msra.mxu0 %v6438
    %6605 = vmatprep.subr.bf16.mxu0 %v6443
    %6606 = vmatpush1.bf16.msra.mxu0 %v6442
    %6607 = vmatprep.subr.bf16.mxu0 %v6447
    %6608 = vmatpush1.bf16.msra.mxu0 %v6446
    %6609 = vmatprep.subr.bf16.mxu0 %v6451
    %6610 = vmatpush1.bf16.msra.mxu0 %v6450
    %6611 = vmatprep.subr.bf16.mxu0 %v6455
    %6612 = vmatpush1.bf16.msra.mxu0 %v6454
    %6613 = vmatprep.mubr.bf16.mxu0 %v6073
    %6614 = vmatmul.mubr.bf16.gmra.mrb[0].mxu0 %v6072
    %v6615 = vpop.f32.mrb[0].mxu0
    %v6616 = vadd.f32 %v6575, %v6615
    %v6617 = vpop.f32.mrb[0].mxu0
    %v6618 = vadd.f32 %v6577, %v6617
    %v6619 = vpop.f32.mrb[0].mxu0
    %v6620 = vpop.f32.mrb[0].mxu0
    %6621 = vdwg.mxu0
    %6622 = vmatprep.subr.bf16.mxu0 %v6205
    %6623 = vmatpush1.bf16.msra.mxu0 %v6204
    %6624 = vmatprep.subr.bf16.mxu0 %v6209
    %6625 = vmatpush1.bf16.msra.mxu0 %v6208
    %6626 = vmatprep.subr.bf16.mxu0 %v6213
    %6627 = vmatpush1.bf16.msra.mxu0 %v6212
    %6628 = vmatprep.subr.bf16.mxu0 %v6217
    %6629 = vmatpush1.bf16.msra.mxu0 %v6216
    %6630 = vmatprep.subr.bf16.mxu0 %v6221
    %6631 = vmatpush1.bf16.msra.mxu0 %v6220
    %6632 = vmatprep.subr.bf16.mxu0 %v6225
    %6633 = vmatpush1.bf16.msra.mxu0 %v6224
    %6634 = vmatprep.subr.bf16.mxu0 %v6229
    %6635 = vmatpush1.bf16.msra.mxu0 %v6228
    %6636 = vmatprep.subr.bf16.mxu0 %v6233
    %6637 = vmatpush1.bf16.msra.mxu0 %v6232
    %6638 = vmatprep.subr.bf16.mxu0 %v6237
    %6639 = vmatpush1.bf16.msra.mxu0 %v6236
    %6640 = vmatprep.subr.bf16.mxu0 %v6241
    %6641 = vmatpush1.bf16.msra.mxu0 %v6240
    %6642 = vmatprep.subr.bf16.mxu0 %v6245
    %6643 = vmatpush1.bf16.msra.mxu0 %v6244
    %6644 = vmatprep.subr.bf16.mxu0 %v6249
    %6645 = vmatpush1.bf16.msra.mxu0 %v6248
    %6646 = vmatprep.subr.bf16.mxu0 %v6253
    %6647 = vmatpush1.bf16.msra.mxu0 %v6252
    %6648 = vmatprep.subr.bf16.mxu0 %v6257
    %6649 = vmatpush1.bf16.msra.mxu0 %v6256
    %6650 = vmatprep.subr.bf16.mxu0 %v6261
    %6651 = vmatpush1.bf16.msra.mxu0 %v6260
    %6652 = vmatprep.subr.bf16.mxu0 %v6265
    %6653 = vmatpush1.bf16.msra.mxu0 %v6264
    %6654 = vmatprep.mubr.bf16.mxu0 %v6067
    %6655 = vmatmul.mubr.bf16.gmra.mrb[0].mxu0 %v6066
    %v6656 = vpop.f32.mrb[0].mxu0
    %v6657 = vadd.f32 0.0, %v6656
    %v6658 = vpop.f32.mrb[0].mxu0
    %v6659 = vadd.f32 0.0, %v6658
    %v6660 = vpop.f32.mrb[0].mxu0
    %v6661 = vpop.f32.mrb[0].mxu0
    %6662 = vdwg.mxu0
    %6663 = vmatprep.subr.bf16.mxu0 %v6269
    %6664 = vmatpush1.bf16.msra.mxu0 %v6268
    %6665 = vmatprep.subr.bf16.mxu0 %v6273
    %6666 = vmatpush1.bf16.msra.mxu0 %v6272
    %6667 = vmatprep.subr.bf16.mxu0 %v6277
    %6668 = vmatpush1.bf16.msra.mxu0 %v6276
    %6669 = vmatprep.subr.bf16.mxu0 %v6281
    %6670 = vmatpush1.bf16.msra.mxu0 %v6280
    %6671 = vmatprep.subr.bf16.mxu0 %v6285
    %6672 = vmatpush1.bf16.msra.mxu0 %v6284
    %6673 = vmatprep.subr.bf16.mxu0 %v6289
    %6674 = vmatpush1.bf16.msra.mxu0 %v6288
    %6675 = vmatprep.subr.bf16.mxu0 %v6293
    %6676 = vmatpush1.bf16.msra.mxu0 %v6292
    %6677 = vmatprep.subr.bf16.mxu0 %v6297
    %6678 = vmatpush1.bf16.msra.mxu0 %v6296
    %6679 = vmatprep.subr.bf16.mxu0 %v6301
    %6680 = vmatpush1.bf16.msra.mxu0 %v6300
    %6681 = vmatprep.subr.bf16.mxu0 %v6305
    %6682 = vmatpush1.bf16.msra.mxu0 %v6304
    %6683 = vmatprep.subr.bf16.mxu0 %v6309
    %6684 = vmatpush1.bf16.msra.mxu0 %v6308
    %6685 = vmatprep.subr.bf16.mxu0 %v6313
    %6686 = vmatpush1.bf16.msra.mxu0 %v6312
    %6687 = vmatprep.subr.bf16.mxu0 %v6317
    %6688 = vmatpush1.bf16.msra.mxu0 %v6316
    %6689 = vmatprep.subr.bf16.mxu0 %v6321
    %6690 = vmatpush1.bf16.msra.mxu0 %v6320
    %6691 = vmatprep.subr.bf16.mxu0 %v6325
    %6692 = vmatpush1.bf16.msra.mxu0 %v6324
    %6693 = vmatprep.subr.bf16.mxu0 %v6329
    %6694 = vmatpush1.bf16.msra.mxu0 %v6328
    %6695 = vmatprep.mubr.bf16.mxu0 %v6069
    %6696 = vmatmul.mubr.bf16.gmra.mrb[0].mxu0 %v6068
    %v6697 = vpop.f32.mrb[0].mxu0
    %v6698 = vadd.f32 %v6657, %v6697
    %v6699 = vpop.f32.mrb[0].mxu0
    %v6700 = vadd.f32 %v6659, %v6699
    %v6701 = vpop.f32.mrb[0].mxu0
    %v6702 = vpop.f32.mrb[0].mxu0
    %6703 = vdwg.mxu0
    %6704 = vmatprep.subr.bf16.mxu0 %v6333
    %6705 = vmatpush1.bf16.msra.mxu0 %v6332
    %6706 = vmatprep.subr.bf16.mxu0 %v6337
    %6707 = vmatpush1.bf16.msra.mxu0 %v6336
    %6708 = vmatprep.subr.bf16.mxu0 %v6341
    %6709 = vmatpush1.bf16.msra.mxu0 %v6340
    %6710 = vmatprep.subr.bf16.mxu0 %v6345
    %6711 = vmatpush1.bf16.msra.mxu0 %v6344
    %6712 = vmatprep.subr.bf16.mxu0 %v6349
    %6713 = vmatpush1.bf16.msra.mxu0 %v6348
    %6714 = vmatprep.subr.bf16.mxu0 %v6353
    %6715 = vmatpush1.bf16.msra.mxu0 %v6352
    %6716 = vmatprep.subr.bf16.mxu0 %v6357
    %6717 = vmatpush1.bf16.msra.mxu0 %v6356
    %6718 = vmatprep.subr.bf16.mxu0 %v6361
    %6719 = vmatpush1.bf16.msra.mxu0 %v6360
    %6720 = vmatprep.subr.bf16.mxu0 %v6365
    %6721 = vmatpush1.bf16.msra.mxu0 %v6364
    %6722 = vmatprep.subr.bf16.mxu0 %v6369
    %6723 = vmatpush1.bf16.msra.mxu0 %v6368
    %6724 = vmatprep.subr.bf16.mxu0 %v6373
    %6725 = vmatpush1.bf16.msra.mxu0 %v6372
    %6726 = vmatprep.subr.bf16.mxu0 %v6377
    %6727 = vmatpush1.bf16.msra.mxu0 %v6376
    %6728 = vmatprep.subr.bf16.mxu0 %v6381
    %6729 = vmatpush1.bf16.msra.mxu0 %v6380
    %6730 = vmatprep.subr.bf16.mxu0 %v6385
    %6731 = vmatpush1.bf16.msra.mxu0 %v6384
    %6732 = vmatprep.subr.bf16.mxu0 %v6389
    %6733 = vmatpush1.bf16.msra.mxu0 %v6388
    %6734 = vmatprep.subr.bf16.mxu0 %v6393
    %6735 = vmatpush1.bf16.msra.mxu0 %v6392
    %6736 = vmatprep.mubr.bf16.mxu0 %v6071
    %6737 = vmatmul.mubr.bf16.gmra.mrb[0].mxu0 %v6070
    %v6738 = vpop.f32.mrb[0].mxu0
    %v6739 = vadd.f32 %v6698, %v6738
    %v6740 = vpop.f32.mrb[0].mxu0
    %v6741 = vadd.f32 %v6700, %v6740
    %v6742 = vpop.f32.mrb[0].mxu0
    %v6743 = vpop.f32.mrb[0].mxu0
    %6744 = vdwg.mxu0
    %6745 = vmatprep.subr.bf16.mxu0 %v6397
    %6746 = vmatpush1.bf16.msra.mxu0 %v6396
    %6747 = vmatprep.subr.bf16.mxu0 %v6401
    %6748 = vmatpush1.bf16.msra.mxu0 %v6400
    %6749 = vmatprep.subr.bf16.mxu0 %v6405
    %6750 = vmatpush1.bf16.msra.mxu0 %v6404
    %6751 = vmatprep.subr.bf16.mxu0 %v6409
    %6752 = vmatpush1.bf16.msra.mxu0 %v6408
    %6753 = vmatprep.subr.bf16.mxu0 %v6413
    %6754 = vmatpush1.bf16.msra.mxu0 %v6412
    %6755 = vmatprep.subr.bf16.mxu0 %v6417
    %6756 = vmatpush1.bf16.msra.mxu0 %v6416
    %6757 = vmatprep.subr.bf16.mxu0 %v6421
    %6758 = vmatpush1.bf16.msra.mxu0 %v6420
    %6759 = vmatprep.subr.bf16.mxu0 %v6425
    %6760 = vmatpush1.bf16.msra.mxu0 %v6424
    %6761 = vmatprep.subr.bf16.mxu0 %v6429
    %6762 = vmatpush1.bf16.msra.mxu0 %v6428
    %6763 = vmatprep.subr.bf16.mxu0 %v6433
    %6764 = vmatpush1.bf16.msra.mxu0 %v6432
    %6765 = vmatprep.subr.bf16.mxu0 %v6437
    %6766 = vmatpush1.bf16.msra.mxu0 %v6436
    %6767 = vmatprep.subr.bf16.mxu0 %v6441
    %6768 = vmatpush1.bf16.msra.mxu0 %v6440
    %6769 = vmatprep.subr.bf16.mxu0 %v6445
    %6770 = vmatpush1.bf16.msra.mxu0 %v6444
    %6771 = vmatprep.subr.bf16.mxu0 %v6449
    %6772 = vmatpush1.bf16.msra.mxu0 %v6448
    %6773 = vmatprep.subr.bf16.mxu0 %v6453
    %6774 = vmatpush1.bf16.msra.mxu0 %v6452
    %6775 = vmatprep.subr.bf16.mxu0 %v6457
    %6776 = vmatpush1.bf16.msra.mxu0 %v6456
    %6777 = vmatprep.mubr.bf16.mxu0 %v6073
    %6778 = vmatmul.mubr.bf16.gmra.mrb[0].mxu0 %v6072
    %v6779 = vpop.f32.mrb[0].mxu0
    %v6780 = vadd.f32 %v6739, %v6779
    %v6781 = vpop.f32.mrb[0].mxu0
    %v6782 = vadd.f32 %v6741, %v6781
    %v6783 = vpop.f32.mrb[0].mxu0
    %v6784 = vpop.f32.mrb[0].mxu0
    %6785 = vdwg.mxu0
    %v6786 = vld [vmem:[#allocation14] sm:$0xf]
    %v6788 = vlaneseq
    %v6789 = vshrl.u32 %v6788, 7
    %v6790 = vsub.s32 0, %v6789
    %v6791 = vrot.slane %v6786, %v6790
    %v6792 = vlaneseq
    %v6793 = vshrl.u32 %v6792, 7
    %v6794 = vsub.s32 1, %v6793
    %v6795 = vrot.slane %v6786, %v6794
    %v6796 = vlaneseq
    %v6797 = vshrl.u32 %v6796, 7
    %v6798 = vsub.s32 2, %v6797
    %v6799 = vrot.slane %v6786, %v6798
    %v6800 = vlaneseq
    %v6801 = vshrl.u32 %v6800, 7
    %v6802 = vsub.s32 3, %v6801
    %v6803 = vrot.slane %v6786, %v6802
    %v6808 = vmul.f32 %v6616, %v6791
    %v6809 = vmul.f32 %v6618, %v6795
    %v6810 = vmul.f32 %v6780, %v6799
    %v6811 = vmul.f32 %v6782, %v6803
    %v6812 = vld [vmem:[#allocation16] sm:$0xf]
    %v6814 = vlaneseq
    %v6815 = vshrl.u32 %v6814, 7
    %v6816 = vsub.s32 0, %v6815
    %v6817 = vrot.slane %v6812, %v6816
    %v6818 = vlaneseq
    %v6819 = vshrl.u32 %v6818, 7
    %v6820 = vsub.s32 1, %v6819
    %v6821 = vrot.slane %v6812, %v6820
    %v6822 = vlaneseq
    %v6823 = vshrl.u32 %v6822, 7
    %v6824 = vsub.s32 2, %v6823
    %v6825 = vrot.slane %v6812, %v6824
    %v6826 = vlaneseq
    %v6827 = vshrl.u32 %v6826, 7
    %v6828 = vsub.s32 3, %v6827
    %v6829 = vrot.slane %v6812, %v6828
    %v6834 = vadd.f32 %v6808, %v6817
    %v6835 = vadd.f32 %v6809, %v6821
    %v6836 = vadd.f32 %v6810, %v6825
    %v6837 = vadd.f32 %v6811, %v6829
    %v6838 = vmax.f32 %v6834, 0.0
    %v6839 = vmax.f32 %v6835, 0.0
    %v6840 = vmax.f32 %v6836, 0.0
    %v6841 = vmax.f32 %v6837, 0.0
    %v6842 = vpack.c.bf16 %v6838, %v6838
    %v6843 = vpack.c.bf16 %v6839, %v6839
    %v6844 = vpack.c.bf16 %v6840, %v6840
    %v6845 = vpack.c.bf16 %v6841, %v6841
    %v6846 = vld [vmem:[#allocation17] sm:$0xff]
    %v6847 = vld [vmem:[#allocation17 + $0x8] sm:$0xff]
    %v6848 = vld [vmem:[#allocation17 + $0x10] sm:$0xff]
    %v6849 = vld [vmem:[#allocation17 + $0x18] sm:$0xff]
    %v6850 = vld [vmem:[#allocation17 + $0x20] sm:$0xff]
    %v6851 = vld [vmem:[#allocation17 + $0x28] sm:$0xff]
    %v6852 = vld [vmem:[#allocation17 + $0x30] sm:$0xff]
    %v6853 = vld [vmem:[#allocation17 + $0x38] sm:$0xff]
    %v6854 = vld [vmem:[#allocation17 + $0x40] sm:$0xff]
    %v6855 = vld [vmem:[#allocation17 + $0x48] sm:$0xff]
    %v6856 = vld [vmem:[#allocation17 + $0x50] sm:$0xff]
    %v6857 = vld [vmem:[#allocation17 + $0x58] sm:$0xff]
    %v6858 = vld [vmem:[#allocation17 + $0x60] sm:$0xff]
    %v6859 = vld [vmem:[#allocation17 + $0x68] sm:$0xff]
    %v6860 = vld [vmem:[#allocation17 + $0x70] sm:$0xff]
    %v6861 = vld [vmem:[#allocation17 + $0x78] sm:$0xff]
    %v6862 = vld [vmem:[#allocation17 + $0x80] sm:$0xff]
    %v6863 = vld [vmem:[#allocation17 + $0x88] sm:$0xff]
    %v6864 = vld [vmem:[#allocation17 + $0x90] sm:$0xff]
    %v6865 = vld [vmem:[#allocation17 + $0x98] sm:$0xff]
    %v6866 = vld [vmem:[#allocation17 + $0xa0] sm:$0xff]
    %v6867 = vld [vmem:[#allocation17 + $0xa8] sm:$0xff]
    %v6868 = vld [vmem:[#allocation17 + $0xb0] sm:$0xff]
    %v6869 = vld [vmem:[#allocation17 + $0xb8] sm:$0xff]
    %v6870 = vld [vmem:[#allocation17 + $0xc0] sm:$0xff]
    %v6871 = vld [vmem:[#allocation17 + $0xc8] sm:$0xff]
    %v6872 = vld [vmem:[#allocation17 + $0xd0] sm:$0xff]
    %v6873 = vld [vmem:[#allocation17 + $0xd8] sm:$0xff]
    %v6874 = vld [vmem:[#allocation17 + $0xe0] sm:$0xff]
    %v6875 = vld [vmem:[#allocation17 + $0xe8] sm:$0xff]
    %v6876 = vld [vmem:[#allocation17 + $0xf0] sm:$0xff]
    %v6877 = vld [vmem:[#allocation17 + $0xf8] sm:$0xff]
    %v6878 = vunpack.c.l.s8.bf16 %v6846
    %v6879 = vunpack.c.l.s8.bf16 %v6847
    %v6880 = vunpack.c.h.s8.bf16 %v6846
    %v6881 = vunpack.c.h.s8.bf16 %v6847
    %v6882 = vunpack.c.l.s8.bf16 %v6848
    %v6883 = vunpack.c.l.s8.bf16 %v6849
    %v6884 = vunpack.c.h.s8.bf16 %v6848
    %v6885 = vunpack.c.h.s8.bf16 %v6849
    %v6886 = vunpack.c.l.s8.bf16 %v6850
    %v6887 = vunpack.c.l.s8.bf16 %v6851
    %v6888 = vunpack.c.h.s8.bf16 %v6850
    %v6889 = vunpack.c.h.s8.bf16 %v6851
    %v6890 = vunpack.c.l.s8.bf16 %v6852
    %v6891 = vunpack.c.l.s8.bf16 %v6853
    %v6892 = vunpack.c.h.s8.bf16 %v6852
    %v6893 = vunpack.c.h.s8.bf16 %v6853
    %v6894 = vunpack.c.l.s8.bf16 %v6854
    %v6895 = vunpack.c.l.s8.bf16 %v6855
    %v6896 = vunpack.c.h.s8.bf16 %v6854
    %v6897 = vunpack.c.h.s8.bf16 %v6855
    %v6898 = vunpack.c.l.s8.bf16 %v6856
    %v6899 = vunpack.c.l.s8.bf16 %v6857
    %v6900 = vunpack.c.h.s8.bf16 %v6856
    %v6901 = vunpack.c.h.s8.bf16 %v6857
    %v6902 = vunpack.c.l.s8.bf16 %v6858
    %v6903 = vunpack.c.l.s8.bf16 %v6859
    %v6904 = vunpack.c.h.s8.bf16 %v6858
    %v6905 = vunpack.c.h.s8.bf16 %v6859
    %v6906 = vunpack.c.l.s8.bf16 %v6860
    %v6907 = vunpack.c.l.s8.bf16 %v6861
    %v6908 = vunpack.c.h.s8.bf16 %v6860
    %v6909 = vunpack.c.h.s8.bf16 %v6861
    %v6910 = vunpack.c.l.s8.bf16 %v6862
    %v6911 = vunpack.c.l.s8.bf16 %v6863
    %v6912 = vunpack.c.h.s8.bf16 %v6862
    %v6913 = vunpack.c.h.s8.bf16 %v6863
    %v6914 = vunpack.c.l.s8.bf16 %v6864
    %v6915 = vunpack.c.l.s8.bf16 %v6865
    %v6916 = vunpack.c.h.s8.bf16 %v6864
    %v6917 = vunpack.c.h.s8.bf16 %v6865
    %v6918 = vunpack.c.l.s8.bf16 %v6866
    %v6919 = vunpack.c.l.s8.bf16 %v6867
    %v6920 = vunpack.c.h.s8.bf16 %v6866
    %v6921 = vunpack.c.h.s8.bf16 %v6867
    %v6922 = vunpack.c.l.s8.bf16 %v6868
    %v6923 = vunpack.c.l.s8.bf16 %v6869
    %v6924 = vunpack.c.h.s8.bf16 %v6868
    %v6925 = vunpack.c.h.s8.bf16 %v6869
    %v6926 = vunpack.c.l.s8.bf16 %v6870
    %v6927 = vunpack.c.l.s8.bf16 %v6871
    %v6928 = vunpack.c.h.s8.bf16 %v6870
    %v6929 = vunpack.c.h.s8.bf16 %v6871
    %v6930 = vunpack.c.l.s8.bf16 %v6872
    %v6931 = vunpack.c.l.s8.bf16 %v6873
    %v6932 = vunpack.c.h.s8.bf16 %v6872
    %v6933 = vunpack.c.h.s8.bf16 %v6873
    %v6934 = vunpack.c.l.s8.bf16 %v6874
    %v6935 = vunpack.c.l.s8.bf16 %v6875
    %v6936 = vunpack.c.h.s8.bf16 %v6874
    %v6937 = vunpack.c.h.s8.bf16 %v6875
    %v6938 = vunpack.c.l.s8.bf16 %v6876
    %v6939 = vunpack.c.l.s8.bf16 %v6877
    %v6940 = vunpack.c.h.s8.bf16 %v6876
    %v6941 = vunpack.c.h.s8.bf16 %v6877
    %6942 = vmatprep.subr.bf16.mxu0 %v6879
    %6943 = vmatpush1.bf16.msra.mxu0 %v6878
    %6944 = vmatprep.subr.bf16.mxu0 %v6881
    %6945 = vmatpush1.bf16.msra.mxu0 %v6880
    %6946 = vmatprep.subr.bf16.mxu0 %v6883
    %6947 = vmatpush1.bf16.msra.mxu0 %v6882
    %6948 = vmatprep.subr.bf16.mxu0 %v6885
    %6949 = vmatpush1.bf16.msra.mxu0 %v6884
    %6950 = vmatprep.subr.bf16.mxu0 %v6887
    %6951 = vmatpush1.bf16.msra.mxu0 %v6886
    %6952 = vmatprep.subr.bf16.mxu0 %v6889
    %6953 = vmatpush1.bf16.msra.mxu0 %v6888
    %6954 = vmatprep.subr.bf16.mxu0 %v6891
    %6955 = vmatpush1.bf16.msra.mxu0 %v6890
    %6956 = vmatprep.subr.bf16.mxu0 %v6893
    %6957 = vmatpush1.bf16.msra.mxu0 %v6892
    %6958 = vmatprep.subr.bf16.mxu0 %v6895
    %6959 = vmatpush1.bf16.msra.mxu0 %v6894
    %6960 = vmatprep.subr.bf16.mxu0 %v6897
    %6961 = vmatpush1.bf16.msra.mxu0 %v6896
    %6962 = vmatprep.subr.bf16.mxu0 %v6899
    %6963 = vmatpush1.bf16.msra.mxu0 %v6898
    %6964 = vmatprep.subr.bf16.mxu0 %v6901
    %6965 = vmatpush1.bf16.msra.mxu0 %v6900
    %6966 = vmatprep.subr.bf16.mxu0 %v6903
    %6967 = vmatpush1.bf16.msra.mxu0 %v6902
    %6968 = vmatprep.subr.bf16.mxu0 %v6905
    %6969 = vmatpush1.bf16.msra.mxu0 %v6904
    %6970 = vmatprep.subr.bf16.mxu0 %v6907
    %6971 = vmatpush1.bf16.msra.mxu0 %v6906
    %6972 = vmatprep.subr.bf16.mxu0 %v6909
    %6973 = vmatpush1.bf16.msra.mxu0 %v6908
    %6974 = vmatprep.mubr.bf16.mxu0 %v6843
    %6975 = vmatmul.mubr.bf16.gmra.mrb[0].mxu0 %v6842
    %v6976 = vpop.f32.mrb[0].mxu0
    %v6977 = vadd.f32 0.0, %v6976
    %v6978 = vpop.f32.mrb[0].mxu0
    %v6979 = vadd.f32 0.0, %v6978
    %v6980 = vpop.f32.mrb[0].mxu0
    %v6981 = vpop.f32.mrb[0].mxu0
    %6982 = vdwg.mxu0
    %6983 = vmatprep.subr.bf16.mxu0 %v6911
    %6984 = vmatpush1.bf16.msra.mxu0 %v6910
    %6985 = vmatprep.subr.bf16.mxu0 %v6913
    %6986 = vmatpush1.bf16.msra.mxu0 %v6912
    %6987 = vmatprep.subr.bf16.mxu0 %v6915
    %6988 = vmatpush1.bf16.msra.mxu0 %v6914
    %6989 = vmatprep.subr.bf16.mxu0 %v6917
    %6990 = vmatpush1.bf16.msra.mxu0 %v6916
    %6991 = vmatprep.subr.bf16.mxu0 %v6919
    %6992 = vmatpush1.bf16.msra.mxu0 %v6918
    %6993 = vmatprep.subr.bf16.mxu0 %v6921
    %6994 = vmatpush1.bf16.msra.mxu0 %v6920
    %6995 = vmatprep.subr.bf16.mxu0 %v6923
    %6996 = vmatpush1.bf16.msra.mxu0 %v6922
    %6997 = vmatprep.subr.bf16.mxu0 %v6925
    %6998 = vmatpush1.bf16.msra.mxu0 %v6924
    %6999 = vmatprep.subr.bf16.mxu0 %v6927
    %7000 = vmatpush1.bf16.msra.mxu0 %v6926
    %7001 = vmatprep.subr.bf16.mxu0 %v6929
    %7002 = vmatpush1.bf16.msra.mxu0 %v6928
    %7003 = vmatprep.subr.bf16.mxu0 %v6931
    %7004 = vmatpush1.bf16.msra.mxu0 %v6930
    %7005 = vmatprep.subr.bf16.mxu0 %v6933
    %7006 = vmatpush1.bf16.msra.mxu0 %v6932
    %7007 = vmatprep.subr.bf16.mxu0 %v6935
    %7008 = vmatpush1.bf16.msra.mxu0 %v6934
    %7009 = vmatprep.subr.bf16.mxu0 %v6937
    %7010 = vmatpush1.bf16.msra.mxu0 %v6936
    %7011 = vmatprep.subr.bf16.mxu0 %v6939
    %7012 = vmatpush1.bf16.msra.mxu0 %v6938
    %7013 = vmatprep.subr.bf16.mxu0 %v6941
    %7014 = vmatpush1.bf16.msra.mxu0 %v6940
    %7015 = vmatprep.mubr.bf16.mxu0 %v6845
    %7016 = vmatmul.mubr.bf16.gmra.mrb[0].mxu0 %v6844
    %v7017 = vpop.f32.mrb[0].mxu0
    %v7018 = vadd.f32 %v6977, %v7017
    %v7019 = vpop.f32.mrb[0].mxu0
    %v7020 = vadd.f32 %v6979, %v7019
    %v7021 = vpop.f32.mrb[0].mxu0
    %v7022 = vpop.f32.mrb[0].mxu0
    %7023 = vdwg.mxu0
    %v7024 = vld [vmem:[#allocation19] sm:$0x3]
    %v7026 = vlaneseq
    %v7027 = vshrl.u32 %v7026, 7
    %v7028 = vsub.s32 0, %v7027
    %v7029 = vrot.slane %v7024, %v7028
    %v7030 = vlaneseq
    %v7031 = vshrl.u32 %v7030, 7
    %v7032 = vsub.s32 1, %v7031
    %v7033 = vrot.slane %v7024, %v7032
    %v7036 = vmul.f32 %v7018, %v7029
    %v7037 = vmul.f32 %v7020, %v7033
    %v7038 = vld [vmem:[#allocation20] sm:$0x3]
    %v7040 = vlaneseq
    %v7041 = vshrl.u32 %v7040, 7
    %v7042 = vsub.s32 0, %v7041
    %v7043 = vrot.slane %v7038, %v7042
    %v7044 = vlaneseq
    %v7045 = vshrl.u32 %v7044, 7
    %v7046 = vsub.s32 1, %v7045
    %v7047 = vrot.slane %v7038, %v7046
    %v7050 = vadd.f32 %v7036, %v7043
    %v7051 = vadd.f32 %v7037, %v7047
    %7052 = vst [vmem:[#allocation22] sm:$0xff] %v7050
    %7053 = vst [vmem:[#allocation22 + $0x8] sm:$0xff] %v7051
    // Predicated region
    $region102: #{net_forward.1} parent=1 // pred_check
      _
    $region103: #{net_forward.1} parent=1 // pred_check_branch
      %7055 = sbr.rel (0) target = $region105
    $region104: #{net_forward.1} parent=1 // pred_region
      %s7057 = ssub.s32 256, 256
      %7058 = vsyncadd [#allocation4], %s7057
      %s7060 = sshll.u32 [#allocation22], 4
      %s7061 = int_to_ptr.vmem [resolvable:$true] %s7060
      %7063 = dma.vmem_to_hbm [thread:$0]  %s7061, 256, %s13, [#allocation4]
    $region105: #{net_forward.1} parent=1 // pred_fallthru
      _
    // Predicated region
    $region106: #{net_forward.1} parent=1 // pred_check
      _
    $region107: #{net_forward.1} parent=1 // pred_check_branch
      %7065 = sbr.rel (0) target = $region109
    $region108: #{net_forward.1} parent=1 // pred_region
      %7066 = dma.done [#allocation4], 256
    $region109: #{net_forward.1} parent=1 // pred_fallthru
      _
    %7067 = vsyncpa [#allocation3], 1
    %7068 = vsyncpa [#allocation6], 1
    %7069 = vsyncpa [#allocation9], 1
    %7070 = vsyncpa [#allocation12], 1
    %7071 = vsyncpa [#allocation15], 1
    %7072 = vsyncpa [#allocation18], 1
    %7073 = vsyncpa [#allocation21], 1
    %7074 = vsyncpa [#allocation4], 1

</llo_original>
